<compile_context>
chip_gen: v7x
topology: tpu7x:2x2x1
jax: 0.10.0
libtpu: 0.0.40
codegen_flags: <defaults>
</compile_context>

<pallas_src>
import functools

import jax
import jax.numpy as jnp
from jax.experimental import pallas as pl
from jax.experimental.pallas import tpu as pltpu

LANE = 128


# ----------------------------- Pallas kernels ------------------------------

def _conv_bn_relu_kernel(p_ref, w_ref, b_ref, g_ref, be_ref, o_ref, *, eps):
    """Fused conv-as-matmul + bias + training-mode BatchNorm + ReLU.

    p_ref : (M, K)   f32  im2col patches, rows ordered (b, oh, ow)
    w_ref : (K, 128) bf16 packed conv weights (padded channels are zero)
    b/g/be: (1, 128) f32  conv bias / BN gamma / BN beta (zero in padded lanes)
    o_ref : (M, 128) f32  relu(bn(conv(x))); padded channels stay exactly zero
    """
    x = p_ref[...].astype(jnp.bfloat16)                       # bf16 MXU operands
    z = jnp.dot(x, w_ref[...], preferred_element_type=jnp.float32)
    z = z + b_ref[...]
    m = jnp.float32(z.shape[0])
    mean = jnp.sum(z, axis=0, keepdims=True) / m              # batch stats over (N,H,W)
    d = z - mean
    var = jnp.sum(d * d, axis=0, keepdims=True) / m           # biased variance (PyTorch BN)
    inv = jax.lax.rsqrt(var + eps)
    o_ref[...] = jnp.maximum(d * inv * g_ref[...] + be_ref[...], 0.0)


def _fc_head_kernel(x_ref, w4_ref, b4_ref, w5_ref, b5_ref, o_ref):
    """Fused relu(fc4(x)) and head linear layer in one kernel."""
    x = x_ref[...].astype(jnp.bfloat16)
    h = jnp.dot(x, w4_ref[...], preferred_element_type=jnp.float32) + b4_ref[...]
    h = jnp.maximum(h, 0.0)
    o_ref[...] = (jnp.dot(h.astype(jnp.bfloat16), w5_ref[...],
                          preferred_element_type=jnp.float32) + b5_ref[...])


def _full_spec(shape):
    return pl.BlockSpec(shape, lambda i: (0,) * len(shape))


def conv_bn_relu(patches, w, b, g, be, *, eps=1e-5):
    """One fused pallas_call per conv layer; single VMEM block (shapes are tiny)."""
    M, K = patches.shape
    _, N = w.shape
    return pl.pallas_call(
        functools.partial(_conv_bn_relu_kernel, eps=eps),
        out_shape=jax.ShapeDtypeStruct((M, N), jnp.float32),
        grid=(1,),
        in_specs=[_full_spec((M, K)), _full_spec((K, N)),
                  _full_spec((1, N)), _full_spec((1, N)), _full_spec((1, N))],
        out_specs=_full_spec((M, N)),
        compiler_params=pltpu.CompilerParams(dimension_semantics=("arbitrary",)),
    )(patches, w, b, g, be)


def fc4_head(x, w4, b4, w5, b5):
    M, K = x.shape
    _, H = w4.shape
    _, N = w5.shape
    return pl.pallas_call(
        _fc_head_kernel,
        out_shape=jax.ShapeDtypeStruct((M, N), jnp.float32),
        grid=(1,),
        in_specs=[_full_spec((M, K)), _full_spec((K, H)), _full_spec((1, H)),
                  _full_spec((H, N)), _full_spec((1, N))],
        out_specs=_full_spec((M, N)),
        compiler_params=pltpu.CompilerParams(dimension_semantics=("arbitrary",)),
    )(x, w4, b4, w5, b5)


# ------------------------------ JAX glue ------------------------------------

def im2col_nhwc(x, kh, kw, stride):
    """x: (B, H, W, C) -> patches (B*OH*OW, kh*kw*C); column order (kh, kw, C)."""
    B, H, W, C = x.shape
    OH = (H - kh) // stride + 1
    OW = (W - kw) // stride + 1
    cols = [x[:, i:i + stride * OH:stride, j:j + stride * OW:stride, :]
            for i in range(kh) for j in range(kw)]
    p = jnp.concatenate(cols, axis=-1)                  # (B, OH, OW, kh*kw*C)
    return p.reshape(B * OH * OW, kh * kw * C), OH, OW


def _prep_conv(w, b, gamma, beta, cin_layout):
    """Pack conv+BN params once into MXU/lane-friendly matrices.

    w: (Cout, Cin, kh, kw) torch layout.  cin_layout is the channel count of the
    incoming activation's lane dimension (raw Cin for the network input, 128 for
    padded intermediate activations).
    """
    cout, cin, kh, kw = w.shape
    wt = jnp.transpose(w, (2, 3, 1, 0)).astype(jnp.float32)      # (kh, kw, cin, cout)
    wp = jnp.zeros((kh, kw, cin_layout, LANE), jnp.float32)
    wp = wp.at[:, :, :cin, :cout].set(wt)
    wp = wp.reshape(kh * kw * cin_layout, LANE).astype(jnp.bfloat16)

    def pad_vec(v):
        return jnp.zeros((1, LANE), jnp.float32).at[0, :cout].set(v.astype(jnp.float32))

    return wp, pad_vec(b), pad_vec(gamma), pad_vec(beta)


def prepare_params(params, in_channel, n_actions):
    """One-time weight packing: do NOT call this per forward pass."""
    prep = {}
    prep["w1"], prep["b1"], prep["g1"], prep["be1"] = _prep_conv(
        params["w1"], params["b1"], params["g1"], params["be1"], in_channel)
    prep["w2"], prep["b2"], prep["g2"], prep["be2"] = _prep_conv(
        params["w2"], params["b2"], params["g2"], params["be2"], LANE)
    prep["w3"], prep["b3"], prep["g3"], prep["be3"] = _prep_conv(
        params["w3"], params["b3"], params["g3"], params["be3"], LANE)

    # fc4: fold torch's NCHW flatten order (c, h, w) into a (h, w, c_padded) -> 512
    # weight matrix so the conv stack never needs to transpose back to NCHW.
    w4 = params["w4"].astype(jnp.float32).reshape(512, 64, 7, 4)   # (o, c, h, w)
    w4 = jnp.transpose(w4, (2, 3, 1, 0))                           # (h, w, c, o)
    w4p = jnp.zeros((7, 4, LANE, 512), jnp.float32).at[:, :, :64, :].set(w4)
    prep["w4"] = w4p.reshape(7 * 4 * LANE, 512).astype(jnp.bfloat16)
    prep["b4"] = params["b4"].astype(jnp.float32).reshape(1, 512)

    # head: pad n_actions up to one 128-lane tile (padded lanes are zero).
    w5 = params["w5"].astype(jnp.float32)                          # (n_actions, 512)
    prep["w5"] = (jnp.zeros((512, LANE), jnp.float32)
                  .at[:, :n_actions].set(w5.T).astype(jnp.bfloat16))
    prep["b5"] = (jnp.zeros((1, LANE), jnp.float32)
                  .at[0, :n_actions].set(params["b5"].astype(jnp.float32)))
    return prep


@functools.partial(jax.jit, static_argnames=("n_actions",))
def cnn_forward(prep, x, *, n_actions):
    """Equivalent of CNN.forward; x is NCHW (B, in_channel, 84, 60)."""
    B = x.shape[0]
    x = jnp.transpose(x, (0, 2, 3, 1)).astype(jnp.float32)     # NCHW -> NHWC, once

    p, oh, ow = im2col_nhwc(x, 8, 8, 4)                        # (B*20*14, 8*8*Cin)
    a = conv_bn_relu(p, prep["w1"], prep["b1"], prep["g1"], prep["be1"])
    a = a.reshape(B, oh, ow, LANE)

    p, oh, ow = im2col_nhwc(a, 4, 4, 2)                        # (B*9*6, 4*4*128)
    a = conv_bn_relu(p, prep["w2"], prep["b2"], prep["g2"], prep["be2"])
    a = a.reshape(B, oh, ow, LANE)

    p, oh, ow = im2col_nhwc(a, 3, 3, 1)                        # (B*7*4, 3*3*128)
    a = conv_bn_relu(p, prep["w3"], prep["b3"], prep["g3"], prep["be3"])

    feat = a.reshape(B, oh * ow * LANE)                        # (B, 7*4*128), contiguous
    out = fc4_head(feat, prep["w4"], prep["b4"], prep["w5"], prep["b5"])
    return out[:, :n_actions]


def init_params(key, in_channel, n_actions):
    def uniform(k, shape, fan_in):
        bound = fan_in ** -0.5
        return jax.random.uniform(k, shape, jnp.float32, -bound, bound)

    ks = jax.random.split(key, 10)
    p = {}
    # conv1: Conv2d(in_channel, 32, kernel_size=8, stride=4) + BatchNorm2d(32)
    p["w1"] = uniform(ks[0], (32, in_channel, 8, 8), in_channel * 8 * 8)
    p["b1"] = uniform(ks[1], (32,), in_channel * 8 * 8)
    p["g1"] = jnp.ones((32,), jnp.float32)
    p["be1"] = jnp.zeros((32,), jnp.float32)
    # conv2: Conv2d(32, 64, kernel_size=4, stride=2) + BatchNorm2d(64)
    p["w2"] = uniform(ks[2], (64, 32, 4, 4), 32 * 4 * 4)
    p["b2"] = uniform(ks[3], (64,), 32 * 4 * 4)
    p["g2"] = jnp.ones((64,), jnp.float32)
    p["be2"] = jnp.zeros((64,), jnp.float32)
    # conv3: Conv2d(64, 64, kernel_size=3, stride=1) + BatchNorm2d(64)
    p["w3"] = uniform(ks[4], (64, 64, 3, 3), 64 * 3 * 3)
    p["b3"] = uniform(ks[5], (64,), 64 * 3 * 3)
    p["g3"] = jnp.ones((64,), jnp.float32)
    p["be3"] = jnp.zeros((64,), jnp.float32)
    # fc4: Linear(7*4*64, 512)
    p["w4"] = uniform(ks[6], (512, 7 * 4 * 64), 7 * 4 * 64)
    p["b4"] = uniform(ks[7], (512,), 7 * 4 * 64)
    # head: Linear(512, n_actions)
    p["w5"] = uniform(ks[8], (n_actions, 512), 512)
    p["b5"] = uniform(ks[9], (n_actions,), 512)
    return p


if __name__ == "__main__":
    in_channel, n_actions = 4, 6
    key = jax.random.PRNGKey(0)
    pkey, xkey = jax.random.split(key)
    params = init_params(pkey, in_channel, n_actions)
    prep = prepare_params(params, in_channel, n_actions)    # one-time weight packing

    # Spatial size is fixed by fc4's 7*4*64 features: (84, 60) -> ... -> (7, 4).
    x = jax.random.normal(xkey, (2, in_channel, 84, 60), jnp.float32)

    out = cnn_forward(prep, x, n_actions=n_actions)
    out = jax.block_until_ready(out)
    assert out.shape == (2, n_actions) and out.dtype == jnp.float32
    print("KERNEL_OK")
</pallas_src>

<mosaic_0001>
module attributes {stable_mosaic.version = 11 : i64} {
  func.func @_conv_bn_relu_kernel(%arg0: i32, %arg1: memref<560x256xf32, #tpu.memory_space<vmem>>, %arg2: memref<256x128xbf16, #tpu.memory_space<vmem>>, %arg3: memref<1x128xf32, #tpu.memory_space<vmem>>, %arg4: memref<1x128xf32, #tpu.memory_space<vmem>>, %arg5: memref<1x128xf32, #tpu.memory_space<vmem>>, %arg6: memref<560x128xf32, #tpu.memory_space<vmem>>) attributes {dimension_semantics = [#tpu.dimension_semantics<arbitrary>], iteration_bounds = array<i64: 1>, scalar_prefetch = 0 : i64, scratch_operands = 0 : i64, tpu.core_type = #tpu.core_type<tc>, window_params = [{pipeline_mode = #tpu.pipeline_mode<synchronous>, transform_indices = @transform_0, window_bounds = array<i64: 560, 256>}, {pipeline_mode = #tpu.pipeline_mode<synchronous>, transform_indices = @transform_1, window_bounds = array<i64: 256, 128>}, {pipeline_mode = #tpu.pipeline_mode<synchronous>, transform_indices = @transform_2, window_bounds = array<i64: 1, 128>}, {pipeline_mode = #tpu.pipeline_mode<synchronous>, transform_indices = @transform_3, window_bounds = array<i64: 1, 128>}, {pipeline_mode = #tpu.pipeline_mode<synchronous>, transform_indices = @transform_4, window_bounds = array<i64: 1, 128>}, {pipeline_mode = #tpu.pipeline_mode<synchronous>, transform_indices = @transform_5, window_bounds = array<i64: 560, 128>}]} {
    %c0 = arith.constant 0 : index
    %c0_0 = arith.constant 0 : index
    %0 = vector.load %arg1[%c0, %c0_0] : memref<560x256xf32, #tpu.memory_space<vmem>>, vector<560x256xf32>
    %1 = arith.truncf %0 : vector<560x256xf32> to vector<560x256xbf16>
    %c0_1 = arith.constant 0 : index
    %c0_2 = arith.constant 0 : index
    %2 = vector.load %arg2[%c0_1, %c0_2] : memref<256x128xbf16, #tpu.memory_space<vmem>>, vector<256x128xbf16>
    %cst = arith.constant dense<0.000000e+00> : vector<560x128xf32>
    %3 = tpu.matmul %1, %2, %cst {dimension_numbers = #tpu.dot_dimension_numbers<[1], [0], [0], [1], [0, 0, 1, 1], [], []>} : vector<560x256xbf16>, vector<256x128xbf16>, vector<560x128xf32> -> vector<560x128xf32>
    %c0_3 = arith.constant 0 : index
    %c0_4 = arith.constant 0 : index
    %4 = vector.load %arg3[%c0_3, %c0_4] : memref<1x128xf32, #tpu.memory_space<vmem>>, vector<1x128xf32>
    %5 = vector.broadcast %4 : vector<1x128xf32> to vector<560x128xf32>
    %6 = arith.addf %3, %5 : vector<560x128xf32>
    %cst_5 = arith.constant dense<0.000000e+00> : vector<128xf32>
    %7 = vector.multi_reduction <add>, %6, %cst_5 [0] : vector<560x128xf32> to vector<128xf32>
    %8 = vector.shape_cast %7 : vector<128xf32> to vector<1x128xf32>
    %cst_6 = arith.constant 5.600000e+02 : f32
    %9 = vector.broadcast %cst_6 : f32 to vector<1x128xf32>
    %10 = arith.divf %8, %9 : vector<1x128xf32>
    %11 = vector.broadcast %10 : vector<1x128xf32> to vector<560x128xf32>
    %12 = arith.subf %6, %11 : vector<560x128xf32>
    %13 = arith.mulf %12, %12 : vector<560x128xf32>
    %cst_7 = arith.constant dense<0.000000e+00> : vector<128xf32>
    %14 = vector.multi_reduction <add>, %13, %cst_7 [0] : vector<560x128xf32> to vector<128xf32>
    %15 = vector.shape_cast %14 : vector<128xf32> to vector<1x128xf32>
    %cst_8 = arith.constant 5.600000e+02 : f32
    %16 = vector.broadcast %cst_8 : f32 to vector<1x128xf32>
    %17 = arith.divf %15, %16 : vector<1x128xf32>
    %cst_9 = arith.constant 9.99999974E-6 : f32
    %18 = vector.broadcast %cst_9 : f32 to vector<1x128xf32>
    %19 = arith.addf %17, %18 : vector<1x128xf32>
    %20 = math.rsqrt %19 : vector<1x128xf32>
    %21 = vector.broadcast %20 : vector<1x128xf32> to vector<560x128xf32>
    %22 = arith.mulf %12, %21 : vector<560x128xf32>
    %c0_10 = arith.constant 0 : index
    %c0_11 = arith.constant 0 : index
    %23 = vector.load %arg4[%c0_10, %c0_11] : memref<1x128xf32, #tpu.memory_space<vmem>>, vector<1x128xf32>
    %24 = vector.broadcast %23 : vector<1x128xf32> to vector<560x128xf32>
    %25 = arith.mulf %22, %24 : vector<560x128xf32>
    %c0_12 = arith.constant 0 : index
    %c0_13 = arith.constant 0 : index
    %26 = vector.load %arg5[%c0_12, %c0_13] : memref<1x128xf32, #tpu.memory_space<vmem>>, vector<1x128xf32>
    %27 = vector.broadcast %26 : vector<1x128xf32> to vector<560x128xf32>
    %28 = arith.addf %25, %27 : vector<560x128xf32>
    %cst_14 = arith.constant 0.000000e+00 : f32
    %29 = vector.broadcast %cst_14 : f32 to vector<560x128xf32>
    %30 = arith.maximumf %28, %29 : vector<560x128xf32>
    %c0_15 = arith.constant 0 : index
    %c0_16 = arith.constant 0 : index
    %31 = vector.load %arg6[%c0_15, %c0_16] : memref<560x128xf32, #tpu.memory_space<vmem>>, vector<560x128xf32>
    tpu.vector_store %arg6[%c0_15, %c0_16], %30 {strides = array<i32>} : memref<560x128xf32, #tpu.memory_space<vmem>>, vector<560x128xf32>,
    return
  }
  func.func @transform_0(%arg0: i32) -> (i32, i32) {
    %c0_i32 = arith.constant 0 : i32
    %c0_i32_0 = arith.constant 0 : i32
    %c0_i32_1 = arith.constant 0 : i32
    return %c0_i32, %c0_i32_0 : i32, i32
  }
  func.func @transform_1(%arg0: i32) -> (i32, i32) {
    %c0_i32 = arith.constant 0 : i32
    %c0_i32_0 = arith.constant 0 : i32
    %c0_i32_1 = arith.constant 0 : i32
    return %c0_i32, %c0_i32_0 : i32, i32
  }
  func.func @transform_2(%arg0: i32) -> (i32, i32) {
    %c0_i32 = arith.constant 0 : i32
    %c0_i32_0 = arith.constant 0 : i32
    %c0_i32_1 = arith.constant 0 : i32
    return %c0_i32, %c0_i32_0 : i32, i32
  }
  func.func @transform_3(%arg0: i32) -> (i32, i32) {
    %c0_i32 = arith.constant 0 : i32
    %c0_i32_0 = arith.constant 0 : i32
    %c0_i32_1 = arith.constant 0 : i32
    return %c0_i32, %c0_i32_0 : i32, i32
  }
  func.func @transform_4(%arg0: i32) -> (i32, i32) {
    %c0_i32 = arith.constant 0 : i32
    %c0_i32_0 = arith.constant 0 : i32
    %c0_i32_1 = arith.constant 0 : i32
    return %c0_i32, %c0_i32_0 : i32, i32
  }
  func.func @transform_5(%arg0: i32) -> (i32, i32) {
    %c0_i32 = arith.constant 0 : i32
    %c0_i32_0 = arith.constant 0 : i32
    %c0_i32_1 = arith.constant 0 : i32
    return %c0_i32, %c0_i32_0 : i32, i32
  }
}

module attributes {stable_mosaic.version = 11 : i64} {
  func.func @_conv_bn_relu_kernel(%arg0: i32, %arg1: memref<108x2048xf32, #tpu.memory_space<vmem>>, %arg2: memref<2048x128xbf16, #tpu.memory_space<vmem>>, %arg3: memref<1x128xf32, #tpu.memory_space<vmem>>, %arg4: memref<1x128xf32, #tpu.memory_space<vmem>>, %arg5: memref<1x128xf32, #tpu.memory_space<vmem>>, %arg6: memref<108x128xf32, #tpu.memory_space<vmem>>) attributes {dimension_semantics = [#tpu.dimension_semantics<arbitrary>], iteration_bounds = array<i64: 1>, scalar_prefetch = 0 : i64, scratch_operands = 0 : i64, tpu.core_type = #tpu.core_type<tc>, window_params = [{pipeline_mode = #tpu.pipeline_mode<synchronous>, transform_indices = @transform_0, window_bounds = array<i64: 108, 2048>}, {pipeline_mode = #tpu.pipeline_mode<synchronous>, transform_indices = @transform_1, window_bounds = array<i64: 2048, 128>}, {pipeline_mode = #tpu.pipeline_mode<synchronous>, transform_indices = @transform_2, window_bounds = array<i64: 1, 128>}, {pipeline_mode = #tpu.pipeline_mode<synchronous>, transform_indices = @transform_3, window_bounds = array<i64: 1, 128>}, {pipeline_mode = #tpu.pipeline_mode<synchronous>, transform_indices = @transform_4, window_bounds = array<i64: 1, 128>}, {pipeline_mode = #tpu.pipeline_mode<synchronous>, transform_indices = @transform_5, window_bounds = array<i64: 108, 128>}]} {
    %c0 = arith.constant 0 : index
    %c0_0 = arith.constant 0 : index
    %0 = vector.load %arg1[%c0, %c0_0] : memref<108x2048xf32, #tpu.memory_space<vmem>>, vector<108x2048xf32>
    %1 = arith.truncf %0 : vector<108x2048xf32> to vector<108x2048xbf16>
    %c0_1 = arith.constant 0 : index
    %c0_2 = arith.constant 0 : index
    %2 = vector.load %arg2[%c0_1, %c0_2] : memref<2048x128xbf16, #tpu.memory_space<vmem>>, vector<2048x128xbf16>
    %cst = arith.constant dense<0.000000e+00> : vector<108x128xf32>
    %3 = tpu.matmul %1, %2, %cst {dimension_numbers = #tpu.dot_dimension_numbers<[1], [0], [0], [1], [0, 0, 1, 1], [], []>} : vector<108x2048xbf16>, vector<2048x128xbf16>, vector<108x128xf32> -> vector<108x128xf32>
    %c0_3 = arith.constant 0 : index
    %c0_4 = arith.constant 0 : index
    %4 = vector.load %arg3[%c0_3, %c0_4] : memref<1x128xf32, #tpu.memory_space<vmem>>, vector<1x128xf32>
    %5 = vector.broadcast %4 : vector<1x128xf32> to vector<108x128xf32>
    %6 = arith.addf %3, %5 : vector<108x128xf32>
    %cst_5 = arith.constant dense<0.000000e+00> : vector<128xf32>
    %7 = vector.multi_reduction <add>, %6, %cst_5 [0] : vector<108x128xf32> to vector<128xf32>
    %8 = vector.shape_cast %7 : vector<128xf32> to vector<1x128xf32>
    %cst_6 = arith.constant 1.080000e+02 : f32
    %9 = vector.broadcast %cst_6 : f32 to vector<1x128xf32>
    %10 = arith.divf %8, %9 : vector<1x128xf32>
    %11 = vector.broadcast %10 : vector<1x128xf32> to vector<108x128xf32>
    %12 = arith.subf %6, %11 : vector<108x128xf32>
    %13 = arith.mulf %12, %12 : vector<108x128xf32>
    %cst_7 = arith.constant dense<0.000000e+00> : vector<128xf32>
    %14 = vector.multi_reduction <add>, %13, %cst_7 [0] : vector<108x128xf32> to vector<128xf32>
    %15 = vector.shape_cast %14 : vector<128xf32> to vector<1x128xf32>
    %cst_8 = arith.constant 1.080000e+02 : f32
    %16 = vector.broadcast %cst_8 : f32 to vector<1x128xf32>
    %17 = arith.divf %15, %16 : vector<1x128xf32>
    %cst_9 = arith.constant 9.99999974E-6 : f32
    %18 = vector.broadcast %cst_9 : f32 to vector<1x128xf32>
    %19 = arith.addf %17, %18 : vector<1x128xf32>
    %20 = math.rsqrt %19 : vector<1x128xf32>
    %21 = vector.broadcast %20 : vector<1x128xf32> to vector<108x128xf32>
    %22 = arith.mulf %12, %21 : vector<108x128xf32>
    %c0_10 = arith.constant 0 : index
    %c0_11 = arith.constant 0 : index
    %23 = vector.load %arg4[%c0_10, %c0_11] : memref<1x128xf32, #tpu.memory_space<vmem>>, vector<1x128xf32>
    %24 = vector.broadcast %23 : vector<1x128xf32> to vector<108x128xf32>
    %25 = arith.mulf %22, %24 : vector<108x128xf32>
    %c0_12 = arith.constant 0 : index
    %c0_13 = arith.constant 0 : index
    %26 = vector.load %arg5[%c0_12, %c0_13] : memref<1x128xf32, #tpu.memory_space<vmem>>, vector<1x128xf32>
    %27 = vector.broadcast %26 : vector<1x128xf32> to vector<108x128xf32>
    %28 = arith.addf %25, %27 : vector<108x128xf32>
    %cst_14 = arith.constant 0.000000e+00 : f32
    %29 = vector.broadcast %cst_14 : f32 to vector<108x128xf32>
    %30 = arith.maximumf %28, %29 : vector<108x128xf32>
    %c0_15 = arith.constant 0 : index
    %c0_16 = arith.constant 0 : index
    %31 = vector.load %arg6[%c0_15, %c0_16] : memref<108x128xf32, #tpu.memory_space<vmem>>, vector<108x128xf32>
    tpu.vector_store %arg6[%c0_15, %c0_16], %30 {strides = array<i32>} : memref<108x128xf32, #tpu.memory_space<vmem>>, vector<108x128xf32>,
    return
  }
  func.func @transform_0(%arg0: i32) -> (i32, i32) {
    %c0_i32 = arith.constant 0 : i32
    %c0_i32_0 = arith.constant 0 : i32
    %c0_i32_1 = arith.constant 0 : i32
    return %c0_i32, %c0_i32_0 : i32, i32
  }
  func.func @transform_1(%arg0: i32) -> (i32, i32) {
    %c0_i32 = arith.constant 0 : i32
    %c0_i32_0 = arith.constant 0 : i32
    %c0_i32_1 = arith.constant 0 : i32
    return %c0_i32, %c0_i32_0 : i32, i32
  }
  func.func @transform_2(%arg0: i32) -> (i32, i32) {
    %c0_i32 = arith.constant 0 : i32
    %c0_i32_0 = arith.constant 0 : i32
    %c0_i32_1 = arith.constant 0 : i32
    return %c0_i32, %c0_i32_0 : i32, i32
  }
  func.func @transform_3(%arg0: i32) -> (i32, i32) {
    %c0_i32 = arith.constant 0 : i32
    %c0_i32_0 = arith.constant 0 : i32
    %c0_i32_1 = arith.constant 0 : i32
    return %c0_i32, %c0_i32_0 : i32, i32
  }
  func.func @transform_4(%arg0: i32) -> (i32, i32) {
    %c0_i32 = arith.constant 0 : i32
    %c0_i32_0 = arith.constant 0 : i32
    %c0_i32_1 = arith.constant 0 : i32
    return %c0_i32, %c0_i32_0 : i32, i32
  }
  func.func @transform_5(%arg0: i32) -> (i32, i32) {
    %c0_i32 = arith.constant 0 : i32
    %c0_i32_0 = arith.constant 0 : i32
    %c0_i32_1 = arith.constant 0 : i32
    return %c0_i32, %c0_i32_0 : i32, i32
  }
}

module attributes {stable_mosaic.version = 11 : i64} {
  func.func @_fc_head_kernel(%arg0: i32, %arg1: memref<2x3584xf32, #tpu.memory_space<vmem>>, %arg2: memref<3584x512xbf16, #tpu.memory_space<vmem>>, %arg3: memref<1x512xf32, #tpu.memory_space<vmem>>, %arg4: memref<512x128xbf16, #tpu.memory_space<vmem>>, %arg5: memref<1x128xf32, #tpu.memory_space<vmem>>, %arg6: memref<2x128xf32, #tpu.memory_space<vmem>>) attributes {dimension_semantics = [#tpu.dimension_semantics<arbitrary>], iteration_bounds = array<i64: 1>, scalar_prefetch = 0 : i64, scratch_operands = 0 : i64, tpu.core_type = #tpu.core_type<tc>, window_params = [{pipeline_mode = #tpu.pipeline_mode<synchronous>, transform_indices = @transform_0, window_bounds = array<i64: 2, 3584>}, {pipeline_mode = #tpu.pipeline_mode<synchronous>, transform_indices = @transform_1, window_bounds = array<i64: 3584, 512>}, {pipeline_mode = #tpu.pipeline_mode<synchronous>, transform_indices = @transform_2, window_bounds = array<i64: 1, 512>}, {pipeline_mode = #tpu.pipeline_mode<synchronous>, transform_indices = @transform_3, window_bounds = array<i64: 512, 128>}, {pipeline_mode = #tpu.pipeline_mode<synchronous>, transform_indices = @transform_4, window_bounds = array<i64: 1, 128>}, {pipeline_mode = #tpu.pipeline_mode<synchronous>, transform_indices = @transform_5, window_bounds = array<i64: 2, 128>}]} {
    %c0 = arith.constant 0 : index
    %c0_0 = arith.constant 0 : index
    %0 = vector.load %arg1[%c0, %c0_0] : memref<2x3584xf32, #tpu.memory_space<vmem>>, vector<2x3584xf32>
    %1 = arith.truncf %0 : vector<2x3584xf32> to vector<2x3584xbf16>
    %c0_1 = arith.constant 0 : index
    %c0_2 = arith.constant 0 : index
    %2 = vector.load %arg2[%c0_1, %c0_2] : memref<3584x512xbf16, #tpu.memory_space<vmem>>, vector<3584x512xbf16>
    %cst = arith.constant dense<0.000000e+00> : vector<2x512xf32>
    %3 = tpu.matmul %1, %2, %cst {dimension_numbers = #tpu.dot_dimension_numbers<[1], [0], [0], [1], [0, 0, 1, 1], [], []>} : vector<2x3584xbf16>, vector<3584x512xbf16>, vector<2x512xf32> -> vector<2x512xf32>
    %c0_3 = arith.constant 0 : index
    %c0_4 = arith.constant 0 : index
    %4 = vector.load %arg3[%c0_3, %c0_4] : memref<1x512xf32, #tpu.memory_space<vmem>>, vector<1x512xf32>
    %5 = vector.broadcast %4 : vector<1x512xf32> to vector<2x512xf32>
    %6 = arith.addf %3, %5 : vector<2x512xf32>
    %cst_5 = arith.constant 0.000000e+00 : f32
    %7 = vector.broadcast %cst_5 : f32 to vector<2x512xf32>
    %8 = arith.maximumf %6, %7 : vector<2x512xf32>
    %9 = arith.truncf %8 : vector<2x512xf32> to vector<2x512xbf16>
    %c0_6 = arith.constant 0 : index
    %c0_7 = arith.constant 0 : index
    %10 = vector.load %arg4[%c0_6, %c0_7] : memref<512x128xbf16, #tpu.memory_space<vmem>>, vector<512x128xbf16>
    %cst_8 = arith.constant dense<0.000000e+00> : vector<2x128xf32>
    %11 = tpu.matmul %9, %10, %cst_8 {dimension_numbers = #tpu.dot_dimension_numbers<[1], [0], [0], [1], [0, 0, 1, 1], [], []>} : vector<2x512xbf16>, vector<512x128xbf16>, vector<2x128xf32> -> vector<2x128xf32>
    %c0_9 = arith.constant 0 : index
    %c0_10 = arith.constant 0 : index
    %12 = vector.load %arg5[%c0_9, %c0_10] : memref<1x128xf32, #tpu.memory_space<vmem>>, vector<1x128xf32>
    %13 = vector.broadcast %12 : vector<1x128xf32> to vector<2x128xf32>
    %14 = arith.addf %11, %13 : vector<2x128xf32>
    %c0_11 = arith.constant 0 : index
    %c0_12 = arith.constant 0 : index
    %15 = vector.load %arg6[%c0_11, %c0_12] : memref<2x128xf32, #tpu.memory_space<vmem>>, vector<2x128xf32>
    tpu.vector_store %arg6[%c0_11, %c0_12], %14 {strides = array<i32>} : memref<2x128xf32, #tpu.memory_space<vmem>>, vector<2x128xf32>,
    return
  }
  func.func @transform_0(%arg0: i32) -> (i32, i32) {
    %c0_i32 = arith.constant 0 : i32
    %c0_i32_0 = arith.constant 0 : i32
    %c0_i32_1 = arith.constant 0 : i32
    return %c0_i32, %c0_i32_0 : i32, i32
  }
  func.func @transform_1(%arg0: i32) -> (i32, i32) {
    %c0_i32 = arith.constant 0 : i32
    %c0_i32_0 = arith.constant 0 : i32
    %c0_i32_1 = arith.constant 0 : i32
    return %c0_i32, %c0_i32_0 : i32, i32
  }
  func.func @transform_2(%arg0: i32) -> (i32, i32) {
    %c0_i32 = arith.constant 0 : i32
    %c0_i32_0 = arith.constant 0 : i32
    %c0_i32_1 = arith.constant 0 : i32
    return %c0_i32, %c0_i32_0 : i32, i32
  }
  func.func @transform_3(%arg0: i32) -> (i32, i32) {
    %c0_i32 = arith.constant 0 : i32
    %c0_i32_0 = arith.constant 0 : i32
    %c0_i32_1 = arith.constant 0 : i32
    return %c0_i32, %c0_i32_0 : i32, i32
  }
  func.func @transform_4(%arg0: i32) -> (i32, i32) {
    %c0_i32 = arith.constant 0 : i32
    %c0_i32_0 = arith.constant 0 : i32
    %c0_i32_1 = arith.constant 0 : i32
    return %c0_i32, %c0_i32_0 : i32, i32
  }
  func.func @transform_5(%arg0: i32) -> (i32, i32) {
    %c0_i32 = arith.constant 0 : i32
    %c0_i32_0 = arith.constant 0 : i32
    %c0_i32_1 = arith.constant 0 : i32
    return %c0_i32, %c0_i32_0 : i32, i32
  }
}

module attributes {stable_mosaic.version = 11 : i64} {
  func.func @_conv_bn_relu_kernel(%arg0: i32, %arg1: memref<56x1152xf32, #tpu.memory_space<vmem>>, %arg2: memref<1152x128xbf16, #tpu.memory_space<vmem>>, %arg3: memref<1x128xf32, #tpu.memory_space<vmem>>, %arg4: memref<1x128xf32, #tpu.memory_space<vmem>>, %arg5: memref<1x128xf32, #tpu.memory_space<vmem>>, %arg6: memref<56x128xf32, #tpu.memory_space<vmem>>) attributes {dimension_semantics = [#tpu.dimension_semantics<arbitrary>], iteration_bounds = array<i64: 1>, scalar_prefetch = 0 : i64, scratch_operands = 0 : i64, tpu.core_type = #tpu.core_type<tc>, window_params = [{pipeline_mode = #tpu.pipeline_mode<synchronous>, transform_indices = @transform_0, window_bounds = array<i64: 56, 1152>}, {pipeline_mode = #tpu.pipeline_mode<synchronous>, transform_indices = @transform_1, window_bounds = array<i64: 1152, 128>}, {pipeline_mode = #tpu.pipeline_mode<synchronous>, transform_indices = @transform_2, window_bounds = array<i64: 1, 128>}, {pipeline_mode = #tpu.pipeline_mode<synchronous>, transform_indices = @transform_3, window_bounds = array<i64: 1, 128>}, {pipeline_mode = #tpu.pipeline_mode<synchronous>, transform_indices = @transform_4, window_bounds = array<i64: 1, 128>}, {pipeline_mode = #tpu.pipeline_mode<synchronous>, transform_indices = @transform_5, window_bounds = array<i64: 56, 128>}]} {
    %c0 = arith.constant 0 : index
    %c0_0 = arith.constant 0 : index
    %0 = vector.load %arg1[%c0, %c0_0] : memref<56x1152xf32, #tpu.memory_space<vmem>>, vector<56x1152xf32>
    %1 = arith.truncf %0 : vector<56x1152xf32> to vector<56x1152xbf16>
    %c0_1 = arith.constant 0 : index
    %c0_2 = arith.constant 0 : index
    %2 = vector.load %arg2[%c0_1, %c0_2] : memref<1152x128xbf16, #tpu.memory_space<vmem>>, vector<1152x128xbf16>
    %cst = arith.constant dense<0.000000e+00> : vector<56x128xf32>
    %3 = tpu.matmul %1, %2, %cst {dimension_numbers = #tpu.dot_dimension_numbers<[1], [0], [0], [1], [0, 0, 1, 1], [], []>} : vector<56x1152xbf16>, vector<1152x128xbf16>, vector<56x128xf32> -> vector<56x128xf32>
    %c0_3 = arith.constant 0 : index
    %c0_4 = arith.constant 0 : index
    %4 = vector.load %arg3[%c0_3, %c0_4] : memref<1x128xf32, #tpu.memory_space<vmem>>, vector<1x128xf32>
    %5 = vector.broadcast %4 : vector<1x128xf32> to vector<56x128xf32>
    %6 = arith.addf %3, %5 : vector<56x128xf32>
    %cst_5 = arith.constant dense<0.000000e+00> : vector<128xf32>
    %7 = vector.multi_reduction <add>, %6, %cst_5 [0] : vector<56x128xf32> to vector<128xf32>
    %8 = vector.shape_cast %7 : vector<128xf32> to vector<1x128xf32>
    %cst_6 = arith.constant 5.600000e+01 : f32
    %9 = vector.broadcast %cst_6 : f32 to vector<1x128xf32>
    %10 = arith.divf %8, %9 : vector<1x128xf32>
    %11 = vector.broadcast %10 : vector<1x128xf32> to vector<56x128xf32>
    %12 = arith.subf %6, %11 : vector<56x128xf32>
    %13 = arith.mulf %12, %12 : vector<56x128xf32>
    %cst_7 = arith.constant dense<0.000000e+00> : vector<128xf32>
    %14 = vector.multi_reduction <add>, %13, %cst_7 [0] : vector<56x128xf32> to vector<128xf32>
    %15 = vector.shape_cast %14 : vector<128xf32> to vector<1x128xf32>
    %cst_8 = arith.constant 5.600000e+01 : f32
    %16 = vector.broadcast %cst_8 : f32 to vector<1x128xf32>
    %17 = arith.divf %15, %16 : vector<1x128xf32>
    %cst_9 = arith.constant 9.99999974E-6 : f32
    %18 = vector.broadcast %cst_9 : f32 to vector<1x128xf32>
    %19 = arith.addf %17, %18 : vector<1x128xf32>
    %20 = math.rsqrt %19 : vector<1x128xf32>
    %21 = vector.broadcast %20 : vector<1x128xf32> to vector<56x128xf32>
    %22 = arith.mulf %12, %21 : vector<56x128xf32>
    %c0_10 = arith.constant 0 : index
    %c0_11 = arith.constant 0 : index
    %23 = vector.load %arg4[%c0_10, %c0_11] : memref<1x128xf32, #tpu.memory_space<vmem>>, vector<1x128xf32>
    %24 = vector.broadcast %23 : vector<1x128xf32> to vector<56x128xf32>
    %25 = arith.mulf %22, %24 : vector<56x128xf32>
    %c0_12 = arith.constant 0 : index
    %c0_13 = arith.constant 0 : index
    %26 = vector.load %arg5[%c0_12, %c0_13] : memref<1x128xf32, #tpu.memory_space<vmem>>, vector<1x128xf32>
    %27 = vector.broadcast %26 : vector<1x128xf32> to vector<56x128xf32>
    %28 = arith.addf %25, %27 : vector<56x128xf32>
    %cst_14 = arith.constant 0.000000e+00 : f32
    %29 = vector.broadcast %cst_14 : f32 to vector<56x128xf32>
    %30 = arith.maximumf %28, %29 : vector<56x128xf32>
    %c0_15 = arith.constant 0 : index
    %c0_16 = arith.constant 0 : index
    %31 = vector.load %arg6[%c0_15, %c0_16] : memref<56x128xf32, #tpu.memory_space<vmem>>, vector<56x128xf32>
    tpu.vector_store %arg6[%c0_15, %c0_16], %30 {strides = array<i32>} : memref<56x128xf32, #tpu.memory_space<vmem>>, vector<56x128xf32>,
    return
  }
  func.func @transform_0(%arg0: i32) -> (i32, i32) {
    %c0_i32 = arith.constant 0 : i32
    %c0_i32_0 = arith.constant 0 : i32
    %c0_i32_1 = arith.constant 0 : i32
    return %c0_i32, %c0_i32_0 : i32, i32
  }
  func.func @transform_1(%arg0: i32) -> (i32, i32) {
    %c0_i32 = arith.constant 0 : i32
    %c0_i32_0 = arith.constant 0 : i32
    %c0_i32_1 = arith.constant 0 : i32
    return %c0_i32, %c0_i32_0 : i32, i32
  }
  func.func @transform_2(%arg0: i32) -> (i32, i32) {
    %c0_i32 = arith.constant 0 : i32
    %c0_i32_0 = arith.constant 0 : i32
    %c0_i32_1 = arith.constant 0 : i32
    return %c0_i32, %c0_i32_0 : i32, i32
  }
  func.func @transform_3(%arg0: i32) -> (i32, i32) {
    %c0_i32 = arith.constant 0 : i32
    %c0_i32_0 = arith.constant 0 : i32
    %c0_i32_1 = arith.constant 0 : i32
    return %c0_i32, %c0_i32_0 : i32, i32
  }
  func.func @transform_4(%arg0: i32) -> (i32, i32) {
    %c0_i32 = arith.constant 0 : i32
    %c0_i32_0 = arith.constant 0 : i32
    %c0_i32_1 = arith.constant 0 : i32
    return %c0_i32, %c0_i32_0 : i32, i32
  }
  func.func @transform_5(%arg0: i32) -> (i32, i32) {
    %c0_i32 = arith.constant 0 : i32
    %c0_i32_0 = arith.constant 0 : i32
    %c0_i32_1 = arith.constant 0 : i32
    return %c0_i32, %c0_i32_0 : i32, i32
  }
}

</mosaic_0001>

<llo_original>
// kernel: cnn_forward.4
$region0: #{cnn_forward.4}
  #allocation0 [shape = 'u32[]', space=smem, size = 0x4, offset = 0x4, fixed_abs, tag = 'smem constant byte address 0x4 - core index']
  #allocation1 [shape = 'u32[144,128]{1,0:T(1,128)}', space=vmem, size = 0x12000, scoped, tag = 'internal scratch']
  %s0 = inlined_call_operand.vmem [shape: f32[560,256], index: 0, kind: input, shape index: {}]
  %s1 = inlined_call_operand.vmem [shape: bf16[256,128], index: 1, kind: input, shape index: {}]
  %s2 = inlined_call_operand.vmem [shape: f32[1,128], index: 2, kind: input, shape index: {}]
  %s3 = inlined_call_operand.vmem [shape: f32[1,128], index: 3, kind: input, shape index: {}]
  %s4 = inlined_call_operand.vmem [shape: f32[1,128], index: 4, kind: input, shape index: {}]
  %s5 = inlined_call_operand.vmem [shape: f32[560,128], index: 5, kind: output, shape index: {}]
  %s6 = sld [smem:[#allocation0]]
  $region30: #{cnn_forward.4} parent=0
    _
  %s8 = ssub.s32 1, %s6
  %s9 = scalar_select 0, %s8, %s6
  // Predicated region
  $region2: #{cnn_forward.4} parent=0 // pred_check
    _
  $region3: #{cnn_forward.4} parent=0 // pred_check_branch
    %11 = sbr.rel (0) target = $region5
  $region4: #{cnn_forward.4} parent=0 // pred_region
    _
  $region5: #{cnn_forward.4} parent=0 // pred_fallthru
    _
  // Predicated region
  $region6: #{cnn_forward.4} parent=0 // pred_check
    _
  $region7: #{cnn_forward.4} parent=0 // pred_check_branch
    %13 = sbr.rel (0) target = $region9
  $region8: #{cnn_forward.4} parent=0 // pred_region
    _
  $region9: #{cnn_forward.4} parent=0 // pred_fallthru
    _
  // Predicated region
  $region10: #{cnn_forward.4} parent=0 // pred_check
    _
  $region11: #{cnn_forward.4} parent=0 // pred_check_branch
    %15 = sbr.rel (0) target = $region13
  $region12: #{cnn_forward.4} parent=0 // pred_region
    _
  $region13: #{cnn_forward.4} parent=0 // pred_fallthru
    _
  // Predicated region
  $region14: #{cnn_forward.4} parent=0 // pred_check
    _
  $region15: #{cnn_forward.4} parent=0 // pred_check_branch
    %17 = sbr.rel (0) target = $region17
  $region16: #{cnn_forward.4} parent=0 // pred_region
    _
  $region17: #{cnn_forward.4} parent=0 // pred_fallthru
    _
  // Predicated region
  $region18: #{cnn_forward.4} parent=0 // pred_check
    _
  $region19: #{cnn_forward.4} parent=0 // pred_check_branch
    %19 = sbr.rel (0) target = $region21
  $region20: #{cnn_forward.4} parent=0 // pred_region
    _
  $region21: #{cnn_forward.4} parent=0 // pred_fallthru
    _
  %v21 = vld [vmem:[%s0] sm:$0xff]
  %v22 = vld [vmem:[%s0 + $0x8] sm:$0xff]
  %v23 = vld [vmem:[%s0 + $0x10] sm:$0xff]
  %v24 = vld [vmem:[%s0 + $0x18] sm:$0xff]
  %v25 = vld [vmem:[%s0 + $0x20] sm:$0xff]
  %v26 = vld [vmem:[%s0 + $0x28] sm:$0xff]
  %v27 = vld [vmem:[%s0 + $0x30] sm:$0xff]
  %v28 = vld [vmem:[%s0 + $0x38] sm:$0xff]
  %v29 = vld [vmem:[%s0 + $0x40] sm:$0xff]
  %v30 = vld [vmem:[%s0 + $0x48] sm:$0xff]
  %v31 = vld [vmem:[%s0 + $0x50] sm:$0xff]
  %v32 = vld [vmem:[%s0 + $0x58] sm:$0xff]
  %v33 = vld [vmem:[%s0 + $0x60] sm:$0xff]
  %v34 = vld [vmem:[%s0 + $0x68] sm:$0xff]
  %v35 = vld [vmem:[%s0 + $0x70] sm:$0xff]
  %v36 = vld [vmem:[%s0 + $0x78] sm:$0xff]
  %v37 = vld [vmem:[%s0 + $0x80] sm:$0xff]
  %v38 = vld [vmem:[%s0 + $0x88] sm:$0xff]
  %v39 = vld [vmem:[%s0 + $0x90] sm:$0xff]
  %v40 = vld [vmem:[%s0 + $0x98] sm:$0xff]
  %v41 = vld [vmem:[%s0 + $0xa0] sm:$0xff]
  %v42 = vld [vmem:[%s0 + $0xa8] sm:$0xff]
  %v43 = vld [vmem:[%s0 + $0xb0] sm:$0xff]
  %v44 = vld [vmem:[%s0 + $0xb8] sm:$0xff]
  %v45 = vld [vmem:[%s0 + $0xc0] sm:$0xff]
  %v46 = vld [vmem:[%s0 + $0xc8] sm:$0xff]
  %v47 = vld [vmem:[%s0 + $0xd0] sm:$0xff]
  %v48 = vld [vmem:[%s0 + $0xd8] sm:$0xff]
  %v49 = vld [vmem:[%s0 + $0xe0] sm:$0xff]
  %v50 = vld [vmem:[%s0 + $0xe8] sm:$0xff]
  %v51 = vld [vmem:[%s0 + $0xf0] sm:$0xff]
  %v52 = vld [vmem:[%s0 + $0xf8] sm:$0xff]
  %v53 = vld [vmem:[%s0 + $0x100] sm:$0xff]
  %v54 = vld [vmem:[%s0 + $0x108] sm:$0xff]
  %v55 = vld [vmem:[%s0 + $0x110] sm:$0xff]
  %v56 = vld [vmem:[%s0 + $0x118] sm:$0xff]
  %v57 = vld [vmem:[%s0 + $0x120] sm:$0xff]
  %v58 = vld [vmem:[%s0 + $0x128] sm:$0xff]
  %v59 = vld [vmem:[%s0 + $0x130] sm:$0xff]
  %v60 = vld [vmem:[%s0 + $0x138] sm:$0xff]
  %v61 = vld [vmem:[%s0 + $0x140] sm:$0xff]
  %v62 = vld [vmem:[%s0 + $0x148] sm:$0xff]
  %v63 = vld [vmem:[%s0 + $0x150] sm:$0xff]
  %v64 = vld [vmem:[%s0 + $0x158] sm:$0xff]
  %v65 = vld [vmem:[%s0 + $0x160] sm:$0xff]
  %v66 = vld [vmem:[%s0 + $0x168] sm:$0xff]
  %v67 = vld [vmem:[%s0 + $0x170] sm:$0xff]
  %v68 = vld [vmem:[%s0 + $0x178] sm:$0xff]
  %v69 = vld [vmem:[%s0 + $0x180] sm:$0xff]
  %v70 = vld [vmem:[%s0 + $0x188] sm:$0xff]
  %v71 = vld [vmem:[%s0 + $0x190] sm:$0xff]
  %v72 = vld [vmem:[%s0 + $0x198] sm:$0xff]
  %v73 = vld [vmem:[%s0 + $0x1a0] sm:$0xff]
  %v74 = vld [vmem:[%s0 + $0x1a8] sm:$0xff]
  %v75 = vld [vmem:[%s0 + $0x1b0] sm:$0xff]
  %v76 = vld [vmem:[%s0 + $0x1b8] sm:$0xff]
  %v77 = vld [vmem:[%s0 + $0x1c0] sm:$0xff]
  %v78 = vld [vmem:[%s0 + $0x1c8] sm:$0xff]
  %v79 = vld [vmem:[%s0 + $0x1d0] sm:$0xff]
  %v80 = vld [vmem:[%s0 + $0x1d8] sm:$0xff]
  %v81 = vld [vmem:[%s0 + $0x1e0] sm:$0xff]
  %v82 = vld [vmem:[%s0 + $0x1e8] sm:$0xff]
  %v83 = vld [vmem:[%s0 + $0x1f0] sm:$0xff]
  %v84 = vld [vmem:[%s0 + $0x1f8] sm:$0xff]
  %v85 = vld [vmem:[%s0 + $0x200] sm:$0xff]
  %v86 = vld [vmem:[%s0 + $0x208] sm:$0xff]
  %v87 = vld [vmem:[%s0 + $0x210] sm:$0xff]
  %v88 = vld [vmem:[%s0 + $0x218] sm:$0xff]
  %v89 = vld [vmem:[%s0 + $0x220] sm:$0xff]
  %v90 = vld [vmem:[%s0 + $0x228] sm:$0xff]
  %v91 = vld [vmem:[%s0 + $0x230] sm:$0xff]
  %v92 = vld [vmem:[%s0 + $0x238] sm:$0xff]
  %v93 = vld [vmem:[%s0 + $0x240] sm:$0xff]
  %v94 = vld [vmem:[%s0 + $0x248] sm:$0xff]
  %v95 = vld [vmem:[%s0 + $0x250] sm:$0xff]
  %v96 = vld [vmem:[%s0 + $0x258] sm:$0xff]
  %v97 = vld [vmem:[%s0 + $0x260] sm:$0xff]
  %v98 = vld [vmem:[%s0 + $0x268] sm:$0xff]
  %v99 = vld [vmem:[%s0 + $0x270] sm:$0xff]
  %v100 = vld [vmem:[%s0 + $0x278] sm:$0xff]
  %v101 = vld [vmem:[%s0 + $0x280] sm:$0xff]
  %v102 = vld [vmem:[%s0 + $0x288] sm:$0xff]
  %v103 = vld [vmem:[%s0 + $0x290] sm:$0xff]
  %v104 = vld [vmem:[%s0 + $0x298] sm:$0xff]
  %v105 = vld [vmem:[%s0 + $0x2a0] sm:$0xff]
  %v106 = vld [vmem:[%s0 + $0x2a8] sm:$0xff]
  %v107 = vld [vmem:[%s0 + $0x2b0] sm:$0xff]
  %v108 = vld [vmem:[%s0 + $0x2b8] sm:$0xff]
  %v109 = vld [vmem:[%s0 + $0x2c0] sm:$0xff]
  %v110 = vld [vmem:[%s0 + $0x2c8] sm:$0xff]
  %v111 = vld [vmem:[%s0 + $0x2d0] sm:$0xff]
  %v112 = vld [vmem:[%s0 + $0x2d8] sm:$0xff]
  %v113 = vld [vmem:[%s0 + $0x2e0] sm:$0xff]
  %v114 = vld [vmem:[%s0 + $0x2e8] sm:$0xff]
  %v115 = vld [vmem:[%s0 + $0x2f0] sm:$0xff]
  %v116 = vld [vmem:[%s0 + $0x2f8] sm:$0xff]
  %v117 = vld [vmem:[%s0 + $0x300] sm:$0xff]
  %v118 = vld [vmem:[%s0 + $0x308] sm:$0xff]
  %v119 = vld [vmem:[%s0 + $0x310] sm:$0xff]
  %v120 = vld [vmem:[%s0 + $0x318] sm:$0xff]
  %v121 = vld [vmem:[%s0 + $0x320] sm:$0xff]
  %v122 = vld [vmem:[%s0 + $0x328] sm:$0xff]
  %v123 = vld [vmem:[%s0 + $0x330] sm:$0xff]
  %v124 = vld [vmem:[%s0 + $0x338] sm:$0xff]
  %v125 = vld [vmem:[%s0 + $0x340] sm:$0xff]
  %v126 = vld [vmem:[%s0 + $0x348] sm:$0xff]
  %v127 = vld [vmem:[%s0 + $0x350] sm:$0xff]
  %v128 = vld [vmem:[%s0 + $0x358] sm:$0xff]
  %v129 = vld [vmem:[%s0 + $0x360] sm:$0xff]
  %v130 = vld [vmem:[%s0 + $0x368] sm:$0xff]
  %v131 = vld [vmem:[%s0 + $0x370] sm:$0xff]
  %v132 = vld [vmem:[%s0 + $0x378] sm:$0xff]
  %v133 = vld [vmem:[%s0 + $0x380] sm:$0xff]
  %v134 = vld [vmem:[%s0 + $0x388] sm:$0xff]
  %v135 = vld [vmem:[%s0 + $0x390] sm:$0xff]
  %v136 = vld [vmem:[%s0 + $0x398] sm:$0xff]
  %v137 = vld [vmem:[%s0 + $0x3a0] sm:$0xff]
  %v138 = vld [vmem:[%s0 + $0x3a8] sm:$0xff]
  %v139 = vld [vmem:[%s0 + $0x3b0] sm:$0xff]
  %v140 = vld [vmem:[%s0 + $0x3b8] sm:$0xff]
  %v141 = vld [vmem:[%s0 + $0x3c0] sm:$0xff]
  %v142 = vld [vmem:[%s0 + $0x3c8] sm:$0xff]
  %v143 = vld [vmem:[%s0 + $0x3d0] sm:$0xff]
  %v144 = vld [vmem:[%s0 + $0x3d8] sm:$0xff]
  %v145 = vld [vmem:[%s0 + $0x3e0] sm:$0xff]
  %v146 = vld [vmem:[%s0 + $0x3e8] sm:$0xff]
  %v147 = vld [vmem:[%s0 + $0x3f0] sm:$0xff]
  %v148 = vld [vmem:[%s0 + $0x3f8] sm:$0xff]
  %v149 = vld [vmem:[%s0 + $0x400] sm:$0xff]
  %v150 = vld [vmem:[%s0 + $0x408] sm:$0xff]
  %v151 = vld [vmem:[%s0 + $0x410] sm:$0xff]
  %v152 = vld [vmem:[%s0 + $0x418] sm:$0xff]
  %v153 = vld [vmem:[%s0 + $0x420] sm:$0xff]
  %v154 = vld [vmem:[%s0 + $0x428] sm:$0xff]
  %v155 = vld [vmem:[%s0 + $0x430] sm:$0xff]
  %v156 = vld [vmem:[%s0 + $0x438] sm:$0xff]
  %v157 = vld [vmem:[%s0 + $0x440] sm:$0xff]
  %v158 = vld [vmem:[%s0 + $0x448] sm:$0xff]
  %v159 = vld [vmem:[%s0 + $0x450] sm:$0xff]
  %v160 = vld [vmem:[%s0 + $0x458] sm:$0xff]
  %v161 = vpack.c.bf16 %v23, %v21
  %v162 = vpack.c.bf16 %v24, %v22
  %v163 = vpack.c.bf16 %v27, %v25
  %v164 = vpack.c.bf16 %v28, %v26
  %v165 = vpack.c.bf16 %v31, %v29
  %v166 = vpack.c.bf16 %v32, %v30
  %v167 = vpack.c.bf16 %v35, %v33
  %v168 = vpack.c.bf16 %v36, %v34
  %v169 = vpack.c.bf16 %v39, %v37
  %v170 = vpack.c.bf16 %v40, %v38
  %v171 = vpack.c.bf16 %v43, %v41
  %v172 = vpack.c.bf16 %v44, %v42
  %v173 = vpack.c.bf16 %v47, %v45
  %v174 = vpack.c.bf16 %v48, %v46
  %v175 = vpack.c.bf16 %v51, %v49
  %v176 = vpack.c.bf16 %v52, %v50
  %v177 = vpack.c.bf16 %v55, %v53
  %v178 = vpack.c.bf16 %v56, %v54
  %v179 = vpack.c.bf16 %v59, %v57
  %v180 = vpack.c.bf16 %v60, %v58
  %v181 = vpack.c.bf16 %v63, %v61
  %v182 = vpack.c.bf16 %v64, %v62
  %v183 = vpack.c.bf16 %v67, %v65
  %v184 = vpack.c.bf16 %v68, %v66
  %v185 = vpack.c.bf16 %v71, %v69
  %v186 = vpack.c.bf16 %v72, %v70
  %v187 = vpack.c.bf16 %v75, %v73
  %v188 = vpack.c.bf16 %v76, %v74
  %v189 = vpack.c.bf16 %v79, %v77
  %v190 = vpack.c.bf16 %v80, %v78
  %v191 = vpack.c.bf16 %v83, %v81
  %v192 = vpack.c.bf16 %v84, %v82
  %v193 = vpack.c.bf16 %v87, %v85
  %v194 = vpack.c.bf16 %v88, %v86
  %v195 = vpack.c.bf16 %v91, %v89
  %v196 = vpack.c.bf16 %v92, %v90
  %v197 = vpack.c.bf16 %v95, %v93
  %v198 = vpack.c.bf16 %v96, %v94
  %v199 = vpack.c.bf16 %v99, %v97
  %v200 = vpack.c.bf16 %v100, %v98
  %v201 = vpack.c.bf16 %v103, %v101
  %v202 = vpack.c.bf16 %v104, %v102
  %v203 = vpack.c.bf16 %v107, %v105
  %v204 = vpack.c.bf16 %v108, %v106
  %v205 = vpack.c.bf16 %v111, %v109
  %v206 = vpack.c.bf16 %v112, %v110
  %v207 = vpack.c.bf16 %v115, %v113
  %v208 = vpack.c.bf16 %v116, %v114
  %v209 = vpack.c.bf16 %v119, %v117
  %v210 = vpack.c.bf16 %v120, %v118
  %v211 = vpack.c.bf16 %v123, %v121
  %v212 = vpack.c.bf16 %v124, %v122
  %v213 = vpack.c.bf16 %v127, %v125
  %v214 = vpack.c.bf16 %v128, %v126
  %v215 = vpack.c.bf16 %v131, %v129
  %v216 = vpack.c.bf16 %v132, %v130
  %v217 = vpack.c.bf16 %v135, %v133
  %v218 = vpack.c.bf16 %v136, %v134
  %v219 = vpack.c.bf16 %v139, %v137
  %v220 = vpack.c.bf16 %v140, %v138
  %v221 = vpack.c.bf16 %v143, %v141
  %v222 = vpack.c.bf16 %v144, %v142
  %v223 = vpack.c.bf16 %v147, %v145
  %v224 = vpack.c.bf16 %v148, %v146
  %v225 = vpack.c.bf16 %v151, %v149
  %v226 = vpack.c.bf16 %v152, %v150
  %v227 = vpack.c.bf16 %v155, %v153
  %v228 = vpack.c.bf16 %v156, %v154
  %v229 = vpack.c.bf16 %v159, %v157
  %v230 = vpack.c.bf16 %v160, %v158
  %v231 = vld [vmem:[%s1] sm:$0xf]
  %v232 = vld [vmem:[%s1 + $0x4] sm:$0xf]
  %v233 = vld [vmem:[%s1 + $0x8] sm:$0xf]
  %v234 = vld [vmem:[%s1 + $0xc] sm:$0xf]
  %v235 = vld [vmem:[%s1 + $0x10] sm:$0xf]
  %v236 = vld [vmem:[%s1 + $0x14] sm:$0xf]
  %v237 = vld [vmem:[%s1 + $0x18] sm:$0xf]
  %v238 = vld [vmem:[%s1 + $0x1c] sm:$0xf]
  %v239 = vld [vmem:[%s1 + $0x20] sm:$0xf]
  %v240 = vld [vmem:[%s1 + $0x24] sm:$0xf]
  %v241 = vld [vmem:[%s1 + $0x28] sm:$0xf]
  %v242 = vld [vmem:[%s1 + $0x2c] sm:$0xf]
  %v243 = vld [vmem:[%s1 + $0x30] sm:$0xf]
  %v244 = vld [vmem:[%s1 + $0x34] sm:$0xf]
  %v245 = vld [vmem:[%s1 + $0x38] sm:$0xf]
  %v246 = vld [vmem:[%s1 + $0x3c] sm:$0xf]
  %v247 = vld [vmem:[%s1 + $0x40] sm:$0xf]
  %v248 = vld [vmem:[%s1 + $0x44] sm:$0xf]
  %v249 = vld [vmem:[%s1 + $0x48] sm:$0xf]
  %v250 = vld [vmem:[%s1 + $0x4c] sm:$0xf]
  %v251 = vld [vmem:[%s1 + $0x50] sm:$0xf]
  %v252 = vld [vmem:[%s1 + $0x54] sm:$0xf]
  %v253 = vld [vmem:[%s1 + $0x58] sm:$0xf]
  %v254 = vld [vmem:[%s1 + $0x5c] sm:$0xf]
  %v255 = vld [vmem:[%s1 + $0x60] sm:$0xf]
  %v256 = vld [vmem:[%s1 + $0x64] sm:$0xf]
  %v257 = vld [vmem:[%s1 + $0x68] sm:$0xf]
  %v258 = vld [vmem:[%s1 + $0x6c] sm:$0xf]
  %v259 = vld [vmem:[%s1 + $0x70] sm:$0xf]
  %v260 = vld [vmem:[%s1 + $0x74] sm:$0xf]
  %v261 = vld [vmem:[%s1 + $0x78] sm:$0xf]
  %v262 = vld [vmem:[%s1 + $0x7c] sm:$0xf]
  %v263 = vld [vmem:[%s2] sm:$0x1]
  %v265 = vlaneseq
  %v266 = vshrl.u32 %v265, 7
  %v267 = vsub.s32 0, %v266
  %v268 = vrot.slane %v263, %v267
  %v302 = vunpack.c.l.b16 %v231
  %v303 = vunpack.c.l.b16 %v232
  %v304 = vunpack.c.l.b16 %v233
  %v305 = vunpack.c.l.b16 %v234
  %v306 = vunpack.c.l.b16 %v235
  %v307 = vunpack.c.l.b16 %v236
  %v308 = vunpack.c.l.b16 %v237
  %v309 = vunpack.c.l.b16 %v238
  %v310 = vunpack.c.l.b16 %v239
  %v311 = vunpack.c.l.b16 %v240
  %v312 = vunpack.c.l.b16 %v241
  %v313 = vunpack.c.l.b16 %v242
  %v314 = vunpack.c.l.b16 %v243
  %v315 = vunpack.c.l.b16 %v244
  %v316 = vunpack.c.l.b16 %v245
  %v317 = vunpack.c.l.b16 %v246
  %v318 = vunpack.c.l.b16 %v247
  %v319 = vunpack.c.l.b16 %v248
  %v320 = vunpack.c.l.b16 %v249
  %v321 = vunpack.c.l.b16 %v250
  %v322 = vunpack.c.l.b16 %v251
  %v323 = vunpack.c.l.b16 %v252
  %v324 = vunpack.c.l.b16 %v253
  %v325 = vunpack.c.l.b16 %v254
  %v326 = vunpack.c.l.b16 %v255
  %v327 = vunpack.c.l.b16 %v256
  %v328 = vunpack.c.l.b16 %v257
  %v329 = vunpack.c.l.b16 %v258
  %v330 = vunpack.c.l.b16 %v259
  %v331 = vunpack.c.l.b16 %v260
  %v332 = vunpack.c.l.b16 %v261
  %v333 = vunpack.c.l.b16 %v262
  %v334 = vpack.c.b16 %v303, %v302
  %v335 = vpack.c.b16 %v305, %v304
  %v336 = vpack.c.b16 %v307, %v306
  %v337 = vpack.c.b16 %v309, %v308
  %v338 = vpack.c.b16 %v311, %v310
  %v339 = vpack.c.b16 %v313, %v312
  %v340 = vpack.c.b16 %v315, %v314
  %v341 = vpack.c.b16 %v317, %v316
  %v342 = vpack.c.b16 %v319, %v318
  %v343 = vpack.c.b16 %v321, %v320
  %v344 = vpack.c.b16 %v323, %v322
  %v345 = vpack.c.b16 %v325, %v324
  %v346 = vpack.c.b16 %v327, %v326
  %v347 = vpack.c.b16 %v329, %v328
  %v348 = vpack.c.b16 %v331, %v330
  %v349 = vpack.c.b16 %v333, %v332
  %366 = vmatprep.subr.bf16.mxu0 0
  %367 = vmatpush1.bf16.msra.mxu0 %v334
  %368 = vmatprep.subr.bf16.mxu0 0
  %369 = vmatpush1.bf16.msra.mxu0 %v335
  %370 = vmatprep.subr.bf16.mxu0 0
  %371 = vmatpush1.bf16.msra.mxu0 %v336
  %372 = vmatprep.subr.bf16.mxu0 0
  %373 = vmatpush1.bf16.msra.mxu0 %v337
  %374 = vmatprep.subr.bf16.mxu0 0
  %375 = vmatpush1.bf16.msra.mxu0 %v338
  %376 = vmatprep.subr.bf16.mxu0 0
  %377 = vmatpush1.bf16.msra.mxu0 %v339
  %378 = vmatprep.subr.bf16.mxu0 0
  %379 = vmatpush1.bf16.msra.mxu0 %v340
  %380 = vmatprep.subr.bf16.mxu0 0
  %381 = vmatpush1.bf16.msra.mxu0 %v341
  %382 = vmatprep.subr.bf16.mxu0 0
  %383 = vmatpush1.bf16.msra.mxu0 %v342
  %384 = vmatprep.subr.bf16.mxu0 0
  %385 = vmatpush1.bf16.msra.mxu0 %v343
  %386 = vmatprep.subr.bf16.mxu0 0
  %387 = vmatpush1.bf16.msra.mxu0 %v344
  %388 = vmatprep.subr.bf16.mxu0 0
  %389 = vmatpush1.bf16.msra.mxu0 %v345
  %390 = vmatprep.subr.bf16.mxu0 0
  %391 = vmatpush1.bf16.msra.mxu0 %v346
  %392 = vmatprep.subr.bf16.mxu0 0
  %393 = vmatpush1.bf16.msra.mxu0 %v347
  %394 = vmatprep.subr.bf16.mxu0 0
  %395 = vmatpush1.bf16.msra.mxu0 %v348
  %396 = vmatprep.subr.bf16.mxu0 0
  %397 = vmatpush1.bf16.msra.mxu0 %v349
  %398 = vmatprep.mubr.bf16.mxu0 %v162
  %399 = vmatmul.mubr.bf16.gmra.mrb[0].mxu0 %v161
  %v400 = vpop.f32.mrb[0].mxu0
  %v401 = vadd.f32 %v268, %v400
  %v402 = vpop.f32.mrb[0].mxu0
  %v403 = vpop.f32.mrb[0].mxu0
  %v404 = vadd.f32 %v268, %v403
  %v405 = vpop.f32.mrb[0].mxu0
  %406 = vmatprep.mubr.bf16.mxu0 %v164
  %407 = vmatmul.mubr.bf16.gmra.mrb[0].mxu0 %v163
  %v408 = vpop.f32.mrb[0].mxu0
  %v409 = vadd.f32 %v268, %v408
  %v410 = vpop.f32.mrb[0].mxu0
  %v411 = vpop.f32.mrb[0].mxu0
  %v412 = vadd.f32 %v268, %v411
  %v413 = vpop.f32.mrb[0].mxu0
  %414 = vmatprep.mubr.bf16.mxu0 %v166
  %415 = vmatmul.mubr.bf16.gmra.mrb[0].mxu0 %v165
  %v416 = vpop.f32.mrb[0].mxu0
  %v417 = vadd.f32 %v268, %v416
  %v418 = vpop.f32.mrb[0].mxu0
  %v419 = vpop.f32.mrb[0].mxu0
  %v420 = vadd.f32 %v268, %v419
  %v421 = vpop.f32.mrb[0].mxu0
  %422 = vmatprep.mubr.bf16.mxu0 %v168
  %423 = vmatmul.mubr.bf16.gmra.mrb[0].mxu0 %v167
  %v424 = vpop.f32.mrb[0].mxu0
  %v425 = vadd.f32 %v268, %v424
  %v426 = vpop.f32.mrb[0].mxu0
  %v427 = vpop.f32.mrb[0].mxu0
  %v428 = vadd.f32 %v268, %v427
  %v429 = vpop.f32.mrb[0].mxu0
  %430 = vmatprep.mubr.bf16.mxu0 %v170
  %431 = vmatmul.mubr.bf16.gmra.mrb[0].mxu0 %v169
  %v432 = vpop.f32.mrb[0].mxu0
  %v433 = vadd.f32 %v268, %v432
  %v434 = vpop.f32.mrb[0].mxu0
  %v435 = vpop.f32.mrb[0].mxu0
  %v436 = vadd.f32 %v268, %v435
  %v437 = vpop.f32.mrb[0].mxu0
  %438 = vmatprep.mubr.bf16.mxu0 %v172
  %439 = vmatmul.mubr.bf16.gmra.mrb[0].mxu0 %v171
  %v440 = vpop.f32.mrb[0].mxu0
  %v441 = vadd.f32 %v268, %v440
  %v442 = vpop.f32.mrb[0].mxu0
  %v443 = vpop.f32.mrb[0].mxu0
  %v444 = vadd.f32 %v268, %v443
  %v445 = vpop.f32.mrb[0].mxu0
  %446 = vmatprep.mubr.bf16.mxu0 %v174
  %447 = vmatmul.mubr.bf16.gmra.mrb[0].mxu0 %v173
  %v448 = vpop.f32.mrb[0].mxu0
  %v449 = vadd.f32 %v268, %v448
  %v450 = vpop.f32.mrb[0].mxu0
  %v451 = vpop.f32.mrb[0].mxu0
  %v452 = vadd.f32 %v268, %v451
  %v453 = vpop.f32.mrb[0].mxu0
  %454 = vmatprep.mubr.bf16.mxu0 %v176
  %455 = vmatmul.mubr.bf16.gmra.mrb[0].mxu0 %v175
  %v456 = vpop.f32.mrb[0].mxu0
  %v457 = vadd.f32 %v268, %v456
  %v458 = vpop.f32.mrb[0].mxu0
  %v459 = vpop.f32.mrb[0].mxu0
  %v460 = vadd.f32 %v268, %v459
  %v461 = vpop.f32.mrb[0].mxu0
  %462 = vmatprep.mubr.bf16.mxu0 %v178
  %463 = vmatmul.mubr.bf16.gmra.mrb[0].mxu0 %v177
  %v464 = vpop.f32.mrb[0].mxu0
  %v465 = vadd.f32 %v268, %v464
  %v466 = vpop.f32.mrb[0].mxu0
  %v467 = vpop.f32.mrb[0].mxu0
  %v468 = vadd.f32 %v268, %v467
  %v469 = vpop.f32.mrb[0].mxu0
  %470 = vmatprep.mubr.bf16.mxu0 %v180
  %471 = vmatmul.mubr.bf16.gmra.mrb[0].mxu0 %v179
  %v472 = vpop.f32.mrb[0].mxu0
  %v473 = vadd.f32 %v268, %v472
  %v474 = vpop.f32.mrb[0].mxu0
  %v475 = vpop.f32.mrb[0].mxu0
  %v476 = vadd.f32 %v268, %v475
  %v477 = vpop.f32.mrb[0].mxu0
  %478 = vmatprep.mubr.bf16.mxu0 %v182
  %479 = vmatmul.mubr.bf16.gmra.mrb[0].mxu0 %v181
  %v480 = vpop.f32.mrb[0].mxu0
  %v481 = vadd.f32 %v268, %v480
  %v482 = vpop.f32.mrb[0].mxu0
  %v483 = vpop.f32.mrb[0].mxu0
  %v484 = vadd.f32 %v268, %v483
  %v485 = vpop.f32.mrb[0].mxu0
  %486 = vmatprep.mubr.bf16.mxu0 %v184
  %487 = vmatmul.mubr.bf16.gmra.mrb[0].mxu0 %v183
  %v488 = vpop.f32.mrb[0].mxu0
  %v489 = vadd.f32 %v268, %v488
  %v490 = vpop.f32.mrb[0].mxu0
  %v491 = vpop.f32.mrb[0].mxu0
  %v492 = vadd.f32 %v268, %v491
  %v493 = vpop.f32.mrb[0].mxu0
  %494 = vmatprep.mubr.bf16.mxu0 %v186
  %495 = vmatmul.mubr.bf16.gmra.mrb[0].mxu0 %v185
  %v496 = vpop.f32.mrb[0].mxu0
  %v497 = vadd.f32 %v268, %v496
  %v498 = vpop.f32.mrb[0].mxu0
  %v499 = vpop.f32.mrb[0].mxu0
  %v500 = vadd.f32 %v268, %v499
  %v501 = vpop.f32.mrb[0].mxu0
  %502 = vmatprep.mubr.bf16.mxu0 %v188
  %503 = vmatmul.mubr.bf16.gmra.mrb[0].mxu0 %v187
  %v504 = vpop.f32.mrb[0].mxu0
  %v505 = vadd.f32 %v268, %v504
  %v506 = vpop.f32.mrb[0].mxu0
  %v507 = vpop.f32.mrb[0].mxu0
  %v508 = vadd.f32 %v268, %v507
  %v509 = vpop.f32.mrb[0].mxu0
  %510 = vmatprep.mubr.bf16.mxu0 %v190
  %511 = vmatmul.mubr.bf16.gmra.mrb[0].mxu0 %v189
  %v512 = vpop.f32.mrb[0].mxu0
  %v513 = vadd.f32 %v268, %v512
  %v514 = vpop.f32.mrb[0].mxu0
  %v515 = vpop.f32.mrb[0].mxu0
  %v516 = vadd.f32 %v268, %v515
  %v517 = vpop.f32.mrb[0].mxu0
  %518 = vmatprep.mubr.bf16.mxu0 %v192
  %519 = vmatmul.mubr.bf16.gmra.mrb[0].mxu0 %v191
  %v520 = vpop.f32.mrb[0].mxu0
  %v521 = vadd.f32 %v268, %v520
  %v522 = vpop.f32.mrb[0].mxu0
  %v523 = vpop.f32.mrb[0].mxu0
  %v524 = vadd.f32 %v268, %v523
  %v525 = vpop.f32.mrb[0].mxu0
  %526 = vmatprep.mubr.bf16.mxu0 %v194
  %527 = vmatmul.mubr.bf16.gmra.mrb[0].mxu0 %v193
  %v528 = vpop.f32.mrb[0].mxu0
  %v529 = vadd.f32 %v268, %v528
  %v530 = vpop.f32.mrb[0].mxu0
  %v531 = vpop.f32.mrb[0].mxu0
  %v532 = vadd.f32 %v268, %v531
  %v533 = vpop.f32.mrb[0].mxu0
  %534 = vmatprep.mubr.bf16.mxu0 %v196
  %535 = vmatmul.mubr.bf16.gmra.mrb[0].mxu0 %v195
  %v536 = vpop.f32.mrb[0].mxu0
  %v537 = vadd.f32 %v268, %v536
  %v538 = vpop.f32.mrb[0].mxu0
  %v539 = vpop.f32.mrb[0].mxu0
  %v540 = vadd.f32 %v268, %v539
  %v541 = vpop.f32.mrb[0].mxu0
  %542 = vmatprep.mubr.bf16.mxu0 %v198
  %543 = vmatmul.mubr.bf16.gmra.mrb[0].mxu0 %v197
  %v544 = vpop.f32.mrb[0].mxu0
  %v545 = vadd.f32 %v268, %v544
  %v546 = vpop.f32.mrb[0].mxu0
  %v547 = vpop.f32.mrb[0].mxu0
  %v548 = vadd.f32 %v268, %v547
  %v549 = vpop.f32.mrb[0].mxu0
  %550 = vmatprep.mubr.bf16.mxu0 %v200
  %551 = vmatmul.mubr.bf16.gmra.mrb[0].mxu0 %v199
  %v552 = vpop.f32.mrb[0].mxu0
  %v553 = vadd.f32 %v268, %v552
  %v554 = vpop.f32.mrb[0].mxu0
  %v555 = vpop.f32.mrb[0].mxu0
  %v556 = vadd.f32 %v268, %v555
  %v557 = vpop.f32.mrb[0].mxu0
  %558 = vmatprep.mubr.bf16.mxu0 %v202
  %559 = vmatmul.mubr.bf16.gmra.mrb[0].mxu0 %v201
  %v560 = vpop.f32.mrb[0].mxu0
  %v561 = vadd.f32 %v268, %v560
  %v562 = vpop.f32.mrb[0].mxu0
  %v563 = vpop.f32.mrb[0].mxu0
  %v564 = vadd.f32 %v268, %v563
  %v565 = vpop.f32.mrb[0].mxu0
  %566 = vmatprep.mubr.bf16.mxu0 %v204
  %567 = vmatmul.mubr.bf16.gmra.mrb[0].mxu0 %v203
  %v568 = vpop.f32.mrb[0].mxu0
  %v569 = vadd.f32 %v268, %v568
  %v570 = vpop.f32.mrb[0].mxu0
  %v571 = vpop.f32.mrb[0].mxu0
  %v572 = vadd.f32 %v268, %v571
  %v573 = vpop.f32.mrb[0].mxu0
  %574 = vmatprep.mubr.bf16.mxu0 %v206
  %575 = vmatmul.mubr.bf16.gmra.mrb[0].mxu0 %v205
  %v576 = vpop.f32.mrb[0].mxu0
  %v577 = vadd.f32 %v268, %v576
  %v578 = vpop.f32.mrb[0].mxu0
  %v579 = vpop.f32.mrb[0].mxu0
  %v580 = vadd.f32 %v268, %v579
  %v581 = vpop.f32.mrb[0].mxu0
  %582 = vmatprep.mubr.bf16.mxu0 %v208
  %583 = vmatmul.mubr.bf16.gmra.mrb[0].mxu0 %v207
  %v584 = vpop.f32.mrb[0].mxu0
  %v585 = vadd.f32 %v268, %v584
  %v586 = vpop.f32.mrb[0].mxu0
  %v587 = vpop.f32.mrb[0].mxu0
  %v588 = vadd.f32 %v268, %v587
  %v589 = vpop.f32.mrb[0].mxu0
  %590 = vmatprep.mubr.bf16.mxu0 %v210
  %591 = vmatmul.mubr.bf16.gmra.mrb[0].mxu0 %v209
  %v592 = vpop.f32.mrb[0].mxu0
  %v593 = vadd.f32 %v268, %v592
  %v594 = vpop.f32.mrb[0].mxu0
  %v595 = vpop.f32.mrb[0].mxu0
  %v596 = vadd.f32 %v268, %v595
  %v597 = vpop.f32.mrb[0].mxu0
  %598 = vmatprep.mubr.bf16.mxu0 %v212
  %599 = vmatmul.mubr.bf16.gmra.mrb[0].mxu0 %v211
  %v600 = vpop.f32.mrb[0].mxu0
  %v601 = vadd.f32 %v268, %v600
  %v602 = vpop.f32.mrb[0].mxu0
  %v603 = vpop.f32.mrb[0].mxu0
  %v604 = vadd.f32 %v268, %v603
  %v605 = vpop.f32.mrb[0].mxu0
  %606 = vmatprep.mubr.bf16.mxu0 %v214
  %607 = vmatmul.mubr.bf16.gmra.mrb[0].mxu0 %v213
  %v608 = vpop.f32.mrb[0].mxu0
  %v609 = vadd.f32 %v268, %v608
  %v610 = vpop.f32.mrb[0].mxu0
  %v611 = vpop.f32.mrb[0].mxu0
  %v612 = vadd.f32 %v268, %v611
  %v613 = vpop.f32.mrb[0].mxu0
  %614 = vmatprep.mubr.bf16.mxu0 %v216
  %615 = vmatmul.mubr.bf16.gmra.mrb[0].mxu0 %v215
  %v616 = vpop.f32.mrb[0].mxu0
  %v617 = vadd.f32 %v268, %v616
  %v618 = vpop.f32.mrb[0].mxu0
  %v619 = vpop.f32.mrb[0].mxu0
  %v620 = vadd.f32 %v268, %v619
  %v621 = vpop.f32.mrb[0].mxu0
  %622 = vmatprep.mubr.bf16.mxu0 %v218
  %623 = vmatmul.mubr.bf16.gmra.mrb[0].mxu0 %v217
  %v624 = vpop.f32.mrb[0].mxu0
  %v625 = vadd.f32 %v268, %v624
  %v626 = vpop.f32.mrb[0].mxu0
  %v627 = vpop.f32.mrb[0].mxu0
  %v628 = vadd.f32 %v268, %v627
  %v629 = vpop.f32.mrb[0].mxu0
  %630 = vmatprep.mubr.bf16.mxu0 %v220
  %631 = vmatmul.mubr.bf16.gmra.mrb[0].mxu0 %v219
  %v632 = vpop.f32.mrb[0].mxu0
  %v633 = vadd.f32 %v268, %v632
  %v634 = vpop.f32.mrb[0].mxu0
  %v635 = vpop.f32.mrb[0].mxu0
  %v636 = vadd.f32 %v268, %v635
  %v637 = vpop.f32.mrb[0].mxu0
  %638 = vmatprep.mubr.bf16.mxu0 %v222
  %639 = vmatmul.mubr.bf16.gmra.mrb[0].mxu0 %v221
  %v640 = vpop.f32.mrb[0].mxu0
  %v641 = vadd.f32 %v268, %v640
  %v642 = vpop.f32.mrb[0].mxu0
  %v643 = vpop.f32.mrb[0].mxu0
  %v644 = vadd.f32 %v268, %v643
  %v645 = vpop.f32.mrb[0].mxu0
  %646 = vmatprep.mubr.bf16.mxu0 %v224
  %647 = vmatmul.mubr.bf16.gmra.mrb[0].mxu0 %v223
  %v648 = vpop.f32.mrb[0].mxu0
  %v649 = vadd.f32 %v268, %v648
  %v650 = vpop.f32.mrb[0].mxu0
  %v651 = vpop.f32.mrb[0].mxu0
  %v652 = vadd.f32 %v268, %v651
  %v653 = vpop.f32.mrb[0].mxu0
  %654 = vmatprep.mubr.bf16.mxu0 %v226
  %655 = vmatmul.mubr.bf16.gmra.mrb[0].mxu0 %v225
  %v656 = vpop.f32.mrb[0].mxu0
  %v657 = vadd.f32 %v268, %v656
  %v658 = vpop.f32.mrb[0].mxu0
  %v659 = vpop.f32.mrb[0].mxu0
  %v660 = vadd.f32 %v268, %v659
  %v661 = vpop.f32.mrb[0].mxu0
  %662 = vmatprep.mubr.bf16.mxu0 %v228
  %663 = vmatmul.mubr.bf16.gmra.mrb[0].mxu0 %v227
  %v664 = vpop.f32.mrb[0].mxu0
  %v665 = vadd.f32 %v268, %v664
  %v666 = vpop.f32.mrb[0].mxu0
  %v667 = vpop.f32.mrb[0].mxu0
  %v668 = vadd.f32 %v268, %v667
  %v669 = vpop.f32.mrb[0].mxu0
  %670 = vmatprep.mubr.bf16.mxu0 %v230
  %671 = vmatmul.mubr.bf16.gmra.mrb[0].mxu0 %v229
  %v672 = vpop.f32.mrb[0].mxu0
  %v673 = vadd.f32 %v268, %v672
  %v674 = vpop.f32.mrb[0].mxu0
  %v675 = vpop.f32.mrb[0].mxu0
  %v676 = vadd.f32 %v268, %v675
  %v677 = vpop.f32.mrb[0].mxu0
  %678 = vdwg.mxu0
  %v679 = vadd.f32 %v401, %v404
  %v680 = vadd.f32 %v679, %v409
  %v681 = vadd.f32 %v680, %v412
  %v682 = vadd.f32 %v681, %v417
  %v683 = vadd.f32 %v682, %v420
  %v684 = vadd.f32 %v683, %v425
  %v685 = vadd.f32 %v684, %v428
  %v686 = vadd.f32 %v685, %v433
  %v687 = vadd.f32 %v686, %v436
  %v688 = vadd.f32 %v687, %v441
  %v689 = vadd.f32 %v688, %v444
  %v690 = vadd.f32 %v689, %v449
  %v691 = vadd.f32 %v690, %v452
  %v692 = vadd.f32 %v691, %v457
  %v693 = vadd.f32 %v692, %v460
  %v694 = vadd.f32 %v693, %v465
  %v695 = vadd.f32 %v694, %v468
  %v696 = vadd.f32 %v695, %v473
  %v697 = vadd.f32 %v696, %v476
  %v698 = vadd.f32 %v697, %v481
  %v699 = vadd.f32 %v698, %v484
  %v700 = vadd.f32 %v699, %v489
  %v701 = vadd.f32 %v700, %v492
  %v702 = vadd.f32 %v701, %v497
  %v703 = vadd.f32 %v702, %v500
  %v704 = vadd.f32 %v703, %v505
  %v705 = vadd.f32 %v704, %v508
  %v706 = vadd.f32 %v705, %v513
  %v707 = vadd.f32 %v706, %v516
  %v708 = vadd.f32 %v707, %v521
  %v709 = vadd.f32 %v708, %v524
  %v710 = vadd.f32 %v709, %v529
  %v711 = vadd.f32 %v710, %v532
  %v712 = vadd.f32 %v711, %v537
  %v713 = vadd.f32 %v712, %v540
  %v714 = vadd.f32 %v713, %v545
  %v715 = vadd.f32 %v714, %v548
  %v716 = vadd.f32 %v715, %v553
  %v717 = vadd.f32 %v716, %v556
  %v718 = vadd.f32 %v717, %v561
  %v719 = vadd.f32 %v718, %v564
  %v720 = vadd.f32 %v719, %v569
  %v721 = vadd.f32 %v720, %v572
  %v722 = vadd.f32 %v721, %v577
  %v723 = vadd.f32 %v722, %v580
  %v724 = vadd.f32 %v723, %v585
  %v725 = vadd.f32 %v724, %v588
  %v726 = vadd.f32 %v725, %v593
  %v727 = vadd.f32 %v726, %v596
  %v728 = vadd.f32 %v727, %v601
  %v729 = vadd.f32 %v728, %v604
  %v730 = vadd.f32 %v729, %v609
  %v731 = vadd.f32 %v730, %v612
  %v732 = vadd.f32 %v731, %v617
  %v733 = vadd.f32 %v732, %v620
  %v734 = vadd.f32 %v733, %v625
  %v735 = vadd.f32 %v734, %v628
  %v736 = vadd.f32 %v735, %v633
  %v737 = vadd.f32 %v736, %v636
  %v738 = vadd.f32 %v737, %v641
  %v739 = vadd.f32 %v738, %v644
  %v740 = vadd.f32 %v739, %v649
  %v741 = vadd.f32 %v740, %v652
  %v742 = vadd.f32 %v741, %v657
  %v743 = vadd.f32 %v742, %v660
  %v744 = vadd.f32 %v743, %v665
  %v745 = vadd.f32 %v744, %v668
  %v746 = vadd.f32 %v745, %v673
  %v747 = vadd.f32 %v746, %v676
  %v748 = vrot.slane %v747, 4
  %v749 = vadd.f32 %v747, %v748
  %v750 = vrot.slane %v749, 2
  %v751 = vadd.f32 %v749, %v750
  %v752 = vrot.slane %v751, 1
  %v753 = vadd.f32 %v751, %v752
  %v754 = vrcp.pop 560.0
  %v755 = vmul.f32 %v753, %v754
  %v756 = vsub.f32 %v401, %v755
  %v757 = vsub.f32 %v404, %v755
  %v758 = vsub.f32 %v409, %v755
  %v759 = vsub.f32 %v412, %v755
  %v760 = vsub.f32 %v417, %v755
  %v761 = vsub.f32 %v420, %v755
  %v762 = vsub.f32 %v425, %v755
  %v763 = vsub.f32 %v428, %v755
  %v764 = vsub.f32 %v433, %v755
  %v765 = vsub.f32 %v436, %v755
  %v766 = vsub.f32 %v441, %v755
  %v767 = vsub.f32 %v444, %v755
  %v768 = vsub.f32 %v449, %v755
  %v769 = vsub.f32 %v452, %v755
  %v770 = vsub.f32 %v457, %v755
  %v771 = vsub.f32 %v460, %v755
  %v772 = vsub.f32 %v465, %v755
  %v773 = vsub.f32 %v468, %v755
  %v774 = vsub.f32 %v473, %v755
  %v775 = vsub.f32 %v476, %v755
  %v776 = vsub.f32 %v481, %v755
  %v777 = vsub.f32 %v484, %v755
  %v778 = vsub.f32 %v489, %v755
  %v779 = vsub.f32 %v492, %v755
  %v780 = vsub.f32 %v497, %v755
  %v781 = vsub.f32 %v500, %v755
  %v782 = vsub.f32 %v505, %v755
  %v783 = vsub.f32 %v508, %v755
  %v784 = vsub.f32 %v513, %v755
  %v785 = vsub.f32 %v516, %v755
  %v786 = vsub.f32 %v521, %v755
  %v787 = vsub.f32 %v524, %v755
  %v788 = vsub.f32 %v529, %v755
  %v789 = vsub.f32 %v532, %v755
  %v790 = vsub.f32 %v537, %v755
  %v791 = vsub.f32 %v540, %v755
  %v792 = vsub.f32 %v545, %v755
  %v793 = vsub.f32 %v548, %v755
  %v794 = vsub.f32 %v553, %v755
  %v795 = vsub.f32 %v556, %v755
  %v796 = vsub.f32 %v561, %v755
  %v797 = vsub.f32 %v564, %v755
  %v798 = vsub.f32 %v569, %v755
  %v799 = vsub.f32 %v572, %v755
  %v800 = vsub.f32 %v577, %v755
  %v801 = vsub.f32 %v580, %v755
  %v802 = vsub.f32 %v585, %v755
  %v803 = vsub.f32 %v588, %v755
  %v804 = vsub.f32 %v593, %v755
  %v805 = vsub.f32 %v596, %v755
  %v806 = vsub.f32 %v601, %v755
  %v807 = vsub.f32 %v604, %v755
  %v808 = vsub.f32 %v609, %v755
  %v809 = vsub.f32 %v612, %v755
  %v810 = vsub.f32 %v617, %v755
  %v811 = vsub.f32 %v620, %v755
  %v812 = vsub.f32 %v625, %v755
  %v813 = vsub.f32 %v628, %v755
  %v814 = vsub.f32 %v633, %v755
  %v815 = vsub.f32 %v636, %v755
  %v816 = vsub.f32 %v641, %v755
  %v817 = vsub.f32 %v644, %v755
  %v818 = vsub.f32 %v649, %v755
  %v819 = vsub.f32 %v652, %v755
  %v820 = vsub.f32 %v657, %v755
  %v821 = vsub.f32 %v660, %v755
  %v822 = vsub.f32 %v665, %v755
  %v823 = vsub.f32 %v668, %v755
  %v824 = vsub.f32 %v673, %v755
  %v825 = vsub.f32 %v676, %v755
  %v826 = vmul.f32 %v756, %v756
  %v827 = vmul.f32 %v757, %v757
  %v828 = vmul.f32 %v758, %v758
  %v829 = vmul.f32 %v759, %v759
  %v830 = vmul.f32 %v760, %v760
  %v831 = vmul.f32 %v761, %v761
  %v832 = vmul.f32 %v762, %v762
  %v833 = vmul.f32 %v763, %v763
  %v834 = vmul.f32 %v764, %v764
  %v835 = vmul.f32 %v765, %v765
  %v836 = vmul.f32 %v766, %v766
  %v837 = vmul.f32 %v767, %v767
  %v838 = vmul.f32 %v768, %v768
  %v839 = vmul.f32 %v769, %v769
  %v840 = vmul.f32 %v770, %v770
  %v841 = vmul.f32 %v771, %v771
  %v842 = vmul.f32 %v772, %v772
  %v843 = vmul.f32 %v773, %v773
  %v844 = vmul.f32 %v774, %v774
  %v845 = vmul.f32 %v775, %v775
  %v846 = vmul.f32 %v776, %v776
  %v847 = vmul.f32 %v777, %v777
  %v848 = vmul.f32 %v778, %v778
  %v849 = vmul.f32 %v779, %v779
  %v850 = vmul.f32 %v780, %v780
  %v851 = vmul.f32 %v781, %v781
  %v852 = vmul.f32 %v782, %v782
  %v853 = vmul.f32 %v783, %v783
  %v854 = vmul.f32 %v784, %v784
  %v855 = vmul.f32 %v785, %v785
  %v856 = vmul.f32 %v786, %v786
  %v857 = vmul.f32 %v787, %v787
  %v858 = vmul.f32 %v788, %v788
  %v859 = vmul.f32 %v789, %v789
  %v860 = vmul.f32 %v790, %v790
  %v861 = vmul.f32 %v791, %v791
  %v862 = vmul.f32 %v792, %v792
  %v863 = vmul.f32 %v793, %v793
  %v864 = vmul.f32 %v794, %v794
  %v865 = vmul.f32 %v795, %v795
  %v866 = vmul.f32 %v796, %v796
  %v867 = vmul.f32 %v797, %v797
  %v868 = vmul.f32 %v798, %v798
  %v869 = vmul.f32 %v799, %v799
  %v870 = vmul.f32 %v800, %v800
  %v871 = vmul.f32 %v801, %v801
  %v872 = vmul.f32 %v802, %v802
  %v873 = vmul.f32 %v803, %v803
  %v874 = vmul.f32 %v804, %v804
  %v875 = vmul.f32 %v805, %v805
  %v876 = vmul.f32 %v806, %v806
  %v877 = vmul.f32 %v807, %v807
  %v878 = vmul.f32 %v808, %v808
  %v879 = vmul.f32 %v809, %v809
  %v880 = vmul.f32 %v810, %v810
  %v881 = vmul.f32 %v811, %v811
  %v882 = vmul.f32 %v812, %v812
  %v883 = vmul.f32 %v813, %v813
  %v884 = vmul.f32 %v814, %v814
  %v885 = vmul.f32 %v815, %v815
  %v886 = vmul.f32 %v816, %v816
  %v887 = vmul.f32 %v817, %v817
  %v888 = vmul.f32 %v818, %v818
  %v889 = vmul.f32 %v819, %v819
  %v890 = vmul.f32 %v820, %v820
  %v891 = vmul.f32 %v821, %v821
  %v892 = vmul.f32 %v822, %v822
  %v893 = vmul.f32 %v823, %v823
  %v894 = vmul.f32 %v824, %v824
  %v895 = vmul.f32 %v825, %v825
  %v896 = vadd.f32 %v826, %v827
  %v897 = vadd.f32 %v896, %v828
  %v898 = vadd.f32 %v897, %v829
  %v899 = vadd.f32 %v898, %v830
  %v900 = vadd.f32 %v899, %v831
  %v901 = vadd.f32 %v900, %v832
  %v902 = vadd.f32 %v901, %v833
  %v903 = vadd.f32 %v902, %v834
  %v904 = vadd.f32 %v903, %v835
  %v905 = vadd.f32 %v904, %v836
  %v906 = vadd.f32 %v905, %v837
  %v907 = vadd.f32 %v906, %v838
  %v908 = vadd.f32 %v907, %v839
  %v909 = vadd.f32 %v908, %v840
  %v910 = vadd.f32 %v909, %v841
  %v911 = vadd.f32 %v910, %v842
  %v912 = vadd.f32 %v911, %v843
  %v913 = vadd.f32 %v912, %v844
  %v914 = vadd.f32 %v913, %v845
  %v915 = vadd.f32 %v914, %v846
  %v916 = vadd.f32 %v915, %v847
  %v917 = vadd.f32 %v916, %v848
  %v918 = vadd.f32 %v917, %v849
  %v919 = vadd.f32 %v918, %v850
  %v920 = vadd.f32 %v919, %v851
  %v921 = vadd.f32 %v920, %v852
  %v922 = vadd.f32 %v921, %v853
  %v923 = vadd.f32 %v922, %v854
  %v924 = vadd.f32 %v923, %v855
  %v925 = vadd.f32 %v924, %v856
  %v926 = vadd.f32 %v925, %v857
  %v927 = vadd.f32 %v926, %v858
  %v928 = vadd.f32 %v927, %v859
  %v929 = vadd.f32 %v928, %v860
  %v930 = vadd.f32 %v929, %v861
  %v931 = vadd.f32 %v930, %v862
  %v932 = vadd.f32 %v931, %v863
  %v933 = vadd.f32 %v932, %v864
  %v934 = vadd.f32 %v933, %v865
  %v935 = vadd.f32 %v934, %v866
  %v936 = vadd.f32 %v935, %v867
  %v937 = vadd.f32 %v936, %v868
  %v938 = vadd.f32 %v937, %v869
  %v939 = vadd.f32 %v938, %v870
  %v940 = vadd.f32 %v939, %v871
  %v941 = vadd.f32 %v940, %v872
  %v942 = vadd.f32 %v941, %v873
  %v943 = vadd.f32 %v942, %v874
  %v944 = vadd.f32 %v943, %v875
  %v945 = vadd.f32 %v944, %v876
  %v946 = vadd.f32 %v945, %v877
  %v947 = vadd.f32 %v946, %v878
  %v948 = vadd.f32 %v947, %v879
  %v949 = vadd.f32 %v948, %v880
  %v950 = vadd.f32 %v949, %v881
  %v951 = vadd.f32 %v950, %v882
  %v952 = vadd.f32 %v951, %v883
  %v953 = vadd.f32 %v952, %v884
  %v954 = vadd.f32 %v953, %v885
  %v955 = vadd.f32 %v954, %v886
  %v956 = vadd.f32 %v955, %v887
  %v957 = vadd.f32 %v956, %v888
  %v958 = vadd.f32 %v957, %v889
  %v959 = vadd.f32 %v958, %v890
  %v960 = vadd.f32 %v959, %v891
  %v961 = vadd.f32 %v960, %v892
  %v962 = vadd.f32 %v961, %v893
  %v963 = vadd.f32 %v962, %v894
  %v964 = vadd.f32 %v963, %v895
  %v965 = vrot.slane %v964, 4
  %v966 = vadd.f32 %v964, %v965
  %v967 = vrot.slane %v966, 2
  %v968 = vadd.f32 %v966, %v967
  %v969 = vrot.slane %v968, 1
  %v970 = vadd.f32 %v968, %v969
  %v971 = vmul.f32 %v970, %v754
  %v972 = vadd.f32 %v971, 1e-05
  %v973 = vrsqrt.pop %v972
  %v974 = vmul.f32 %v756, %v973
  %v975 = vmul.f32 %v757, %v973
  %v976 = vmul.f32 %v758, %v973
  %v977 = vmul.f32 %v759, %v973
  %v978 = vmul.f32 %v760, %v973
  %v979 = vmul.f32 %v761, %v973
  %v980 = vmul.f32 %v762, %v973
  %v981 = vmul.f32 %v763, %v973
  %v982 = vmul.f32 %v764, %v973
  %v983 = vmul.f32 %v765, %v973
  %v984 = vmul.f32 %v766, %v973
  %v985 = vmul.f32 %v767, %v973
  %v986 = vmul.f32 %v768, %v973
  %v987 = vmul.f32 %v769, %v973
  %v988 = vmul.f32 %v770, %v973
  %v989 = vmul.f32 %v771, %v973
  %v990 = vmul.f32 %v772, %v973
  %v991 = vmul.f32 %v773, %v973
  %v992 = vmul.f32 %v774, %v973
  %v993 = vmul.f32 %v775, %v973
  %v994 = vmul.f32 %v776, %v973
  %v995 = vmul.f32 %v777, %v973
  %v996 = vmul.f32 %v778, %v973
  %v997 = vmul.f32 %v779, %v973
  %v998 = vmul.f32 %v780, %v973
  %v999 = vmul.f32 %v781, %v973
  %v1000 = vmul.f32 %v782, %v973
  %v1001 = vmul.f32 %v783, %v973
  %v1002 = vmul.f32 %v784, %v973
  %v1003 = vmul.f32 %v785, %v973
  %v1004 = vmul.f32 %v786, %v973
  %v1005 = vmul.f32 %v787, %v973
  %v1006 = vmul.f32 %v788, %v973
  %v1007 = vmul.f32 %v789, %v973
  %v1008 = vmul.f32 %v790, %v973
  %v1009 = vmul.f32 %v791, %v973
  %v1010 = vmul.f32 %v792, %v973
  %v1011 = vmul.f32 %v793, %v973
  %v1012 = vmul.f32 %v794, %v973
  %v1013 = vmul.f32 %v795, %v973
  %v1014 = vmul.f32 %v796, %v973
  %v1015 = vmul.f32 %v797, %v973
  %v1016 = vmul.f32 %v798, %v973
  %v1017 = vmul.f32 %v799, %v973
  %v1018 = vmul.f32 %v800, %v973
  %v1019 = vmul.f32 %v801, %v973
  %v1020 = vmul.f32 %v802, %v973
  %v1021 = vmul.f32 %v803, %v973
  %v1022 = vmul.f32 %v804, %v973
  %v1023 = vmul.f32 %v805, %v973
  %v1024 = vmul.f32 %v806, %v973
  %v1025 = vmul.f32 %v807, %v973
  %v1026 = vmul.f32 %v808, %v973
  %v1027 = vmul.f32 %v809, %v973
  %v1028 = vmul.f32 %v810, %v973
  %v1029 = vmul.f32 %v811, %v973
  %v1030 = vmul.f32 %v812, %v973
  %v1031 = vmul.f32 %v813, %v973
  %v1032 = vmul.f32 %v814, %v973
  %v1033 = vmul.f32 %v815, %v973
  %v1034 = vmul.f32 %v816, %v973
  %v1035 = vmul.f32 %v817, %v973
  %v1036 = vmul.f32 %v818, %v973
  %v1037 = vmul.f32 %v819, %v973
  %v1038 = vmul.f32 %v820, %v973
  %v1039 = vmul.f32 %v821, %v973
  %v1040 = vmul.f32 %v822, %v973
  %v1041 = vmul.f32 %v823, %v973
  %v1042 = vmul.f32 %v824, %v973
  %v1043 = vmul.f32 %v825, %v973
  %v1044 = vld [vmem:[%s3] sm:$0x1]
  %v1046 = vlaneseq
  %v1047 = vshrl.u32 %v1046, 7
  %v1048 = vsub.s32 0, %v1047
  %v1049 = vrot.slane %v1044, %v1048
  %v1051 = vmul.f32 %v974, %v1049
  %v1052 = vmul.f32 %v975, %v1049
  %v1053 = vmul.f32 %v976, %v1049
  %v1054 = vmul.f32 %v977, %v1049
  %v1055 = vmul.f32 %v978, %v1049
  %v1056 = vmul.f32 %v979, %v1049
  %v1057 = vmul.f32 %v980, %v1049
  %v1058 = vmul.f32 %v981, %v1049
  %v1059 = vmul.f32 %v982, %v1049
  %v1060 = vmul.f32 %v983, %v1049
  %v1061 = vmul.f32 %v984, %v1049
  %v1062 = vmul.f32 %v985, %v1049
  %v1063 = vmul.f32 %v986, %v1049
  %v1064 = vmul.f32 %v987, %v1049
  %v1065 = vmul.f32 %v988, %v1049
  %v1066 = vmul.f32 %v989, %v1049
  %v1067 = vmul.f32 %v990, %v1049
  %v1068 = vmul.f32 %v991, %v1049
  %v1069 = vmul.f32 %v992, %v1049
  %v1070 = vmul.f32 %v993, %v1049
  %v1071 = vmul.f32 %v994, %v1049
  %v1072 = vmul.f32 %v995, %v1049
  %v1073 = vmul.f32 %v996, %v1049
  %v1074 = vmul.f32 %v997, %v1049
  %v1075 = vmul.f32 %v998, %v1049
  %v1076 = vmul.f32 %v999, %v1049
  %v1077 = vmul.f32 %v1000, %v1049
  %v1078 = vmul.f32 %v1001, %v1049
  %v1079 = vmul.f32 %v1002, %v1049
  %v1080 = vmul.f32 %v1003, %v1049
  %v1081 = vmul.f32 %v1004, %v1049
  %v1082 = vmul.f32 %v1005, %v1049
  %v1083 = vmul.f32 %v1006, %v1049
  %v1084 = vmul.f32 %v1007, %v1049
  %v1085 = vmul.f32 %v1008, %v1049
  %v1086 = vmul.f32 %v1009, %v1049
  %v1087 = vmul.f32 %v1010, %v1049
  %v1088 = vmul.f32 %v1011, %v1049
  %v1089 = vmul.f32 %v1012, %v1049
  %v1090 = vmul.f32 %v1013, %v1049
  %v1091 = vmul.f32 %v1014, %v1049
  %v1092 = vmul.f32 %v1015, %v1049
  %v1093 = vmul.f32 %v1016, %v1049
  %v1094 = vmul.f32 %v1017, %v1049
  %v1095 = vmul.f32 %v1018, %v1049
  %v1096 = vmul.f32 %v1019, %v1049
  %v1097 = vmul.f32 %v1020, %v1049
  %v1098 = vmul.f32 %v1021, %v1049
  %v1099 = vmul.f32 %v1022, %v1049
  %v1100 = vmul.f32 %v1023, %v1049
  %v1101 = vmul.f32 %v1024, %v1049
  %v1102 = vmul.f32 %v1025, %v1049
  %v1103 = vmul.f32 %v1026, %v1049
  %v1104 = vmul.f32 %v1027, %v1049
  %v1105 = vmul.f32 %v1028, %v1049
  %v1106 = vmul.f32 %v1029, %v1049
  %v1107 = vmul.f32 %v1030, %v1049
  %v1108 = vmul.f32 %v1031, %v1049
  %v1109 = vmul.f32 %v1032, %v1049
  %v1110 = vmul.f32 %v1033, %v1049
  %v1111 = vmul.f32 %v1034, %v1049
  %v1112 = vmul.f32 %v1035, %v1049
  %v1113 = vmul.f32 %v1036, %v1049
  %v1114 = vmul.f32 %v1037, %v1049
  %v1115 = vmul.f32 %v1038, %v1049
  %v1116 = vmul.f32 %v1039, %v1049
  %v1117 = vmul.f32 %v1040, %v1049
  %v1118 = vmul.f32 %v1041, %v1049
  %v1119 = vmul.f32 %v1042, %v1049
  %v1120 = vmul.f32 %v1043, %v1049
  %v1121 = vld [vmem:[%s4] sm:$0x1]
  %v1123 = vlaneseq
  %v1124 = vshrl.u32 %v1123, 7
  %v1125 = vsub.s32 0, %v1124
  %v1126 = vrot.slane %v1121, %v1125
  %v1128 = vadd.f32 %v1051, %v1126
  %v1129 = vadd.f32 %v1052, %v1126
  %v1130 = vadd.f32 %v1053, %v1126
  %v1131 = vadd.f32 %v1054, %v1126
  %v1132 = vadd.f32 %v1055, %v1126
  %v1133 = vadd.f32 %v1056, %v1126
  %v1134 = vadd.f32 %v1057, %v1126
  %v1135 = vadd.f32 %v1058, %v1126
  %v1136 = vadd.f32 %v1059, %v1126
  %v1137 = vadd.f32 %v1060, %v1126
  %v1138 = vadd.f32 %v1061, %v1126
  %v1139 = vadd.f32 %v1062, %v1126
  %v1140 = vadd.f32 %v1063, %v1126
  %v1141 = vadd.f32 %v1064, %v1126
  %v1142 = vadd.f32 %v1065, %v1126
  %v1143 = vadd.f32 %v1066, %v1126
  %v1144 = vadd.f32 %v1067, %v1126
  %v1145 = vadd.f32 %v1068, %v1126
  %v1146 = vadd.f32 %v1069, %v1126
  %v1147 = vadd.f32 %v1070, %v1126
  %v1148 = vadd.f32 %v1071, %v1126
  %v1149 = vadd.f32 %v1072, %v1126
  %v1150 = vadd.f32 %v1073, %v1126
  %v1151 = vadd.f32 %v1074, %v1126
  %v1152 = vadd.f32 %v1075, %v1126
  %v1153 = vadd.f32 %v1076, %v1126
  %v1154 = vadd.f32 %v1077, %v1126
  %v1155 = vadd.f32 %v1078, %v1126
  %v1156 = vadd.f32 %v1079, %v1126
  %v1157 = vadd.f32 %v1080, %v1126
  %v1158 = vadd.f32 %v1081, %v1126
  %v1159 = vadd.f32 %v1082, %v1126
  %v1160 = vadd.f32 %v1083, %v1126
  %v1161 = vadd.f32 %v1084, %v1126
  %v1162 = vadd.f32 %v1085, %v1126
  %v1163 = vadd.f32 %v1086, %v1126
  %v1164 = vadd.f32 %v1087, %v1126
  %v1165 = vadd.f32 %v1088, %v1126
  %v1166 = vadd.f32 %v1089, %v1126
  %v1167 = vadd.f32 %v1090, %v1126
  %v1168 = vadd.f32 %v1091, %v1126
  %v1169 = vadd.f32 %v1092, %v1126
  %v1170 = vadd.f32 %v1093, %v1126
  %v1171 = vadd.f32 %v1094, %v1126
  %v1172 = vadd.f32 %v1095, %v1126
  %v1173 = vadd.f32 %v1096, %v1126
  %v1174 = vadd.f32 %v1097, %v1126
  %v1175 = vadd.f32 %v1098, %v1126
  %v1176 = vadd.f32 %v1099, %v1126
  %v1177 = vadd.f32 %v1100, %v1126
  %v1178 = vadd.f32 %v1101, %v1126
  %v1179 = vadd.f32 %v1102, %v1126
  %v1180 = vadd.f32 %v1103, %v1126
  %v1181 = vadd.f32 %v1104, %v1126
  %v1182 = vadd.f32 %v1105, %v1126
  %v1183 = vadd.f32 %v1106, %v1126
  %v1184 = vadd.f32 %v1107, %v1126
  %v1185 = vadd.f32 %v1108, %v1126
  %v1186 = vadd.f32 %v1109, %v1126
  %v1187 = vadd.f32 %v1110, %v1126
  %v1188 = vadd.f32 %v1111, %v1126
  %v1189 = vadd.f32 %v1112, %v1126
  %v1190 = vadd.f32 %v1113, %v1126
  %v1191 = vadd.f32 %v1114, %v1126
  %v1192 = vadd.f32 %v1115, %v1126
  %v1193 = vadd.f32 %v1116, %v1126
  %v1194 = vadd.f32 %v1117, %v1126
  %v1195 = vadd.f32 %v1118, %v1126
  %v1196 = vadd.f32 %v1119, %v1126
  %v1197 = vadd.f32 %v1120, %v1126
  %v1198 = vmax.f32 %v1128, 0.0
  %v1199 = vmax.f32 %v1129, 0.0
  %v1200 = vmax.f32 %v1130, 0.0
  %v1201 = vmax.f32 %v1131, 0.0
  %v1202 = vmax.f32 %v1132, 0.0
  %v1203 = vmax.f32 %v1133, 0.0
  %v1204 = vmax.f32 %v1134, 0.0
  %v1205 = vmax.f32 %v1135, 0.0
  %v1206 = vmax.f32 %v1136, 0.0
  %v1207 = vmax.f32 %v1137, 0.0
  %v1208 = vmax.f32 %v1138, 0.0
  %v1209 = vmax.f32 %v1139, 0.0
  %v1210 = vmax.f32 %v1140, 0.0
  %v1211 = vmax.f32 %v1141, 0.0
  %v1212 = vmax.f32 %v1142, 0.0
  %v1213 = vmax.f32 %v1143, 0.0
  %v1214 = vmax.f32 %v1144, 0.0
  %v1215 = vmax.f32 %v1145, 0.0
  %v1216 = vmax.f32 %v1146, 0.0
  %v1217 = vmax.f32 %v1147, 0.0
  %v1218 = vmax.f32 %v1148, 0.0
  %v1219 = vmax.f32 %v1149, 0.0
  %v1220 = vmax.f32 %v1150, 0.0
  %v1221 = vmax.f32 %v1151, 0.0
  %v1222 = vmax.f32 %v1152, 0.0
  %v1223 = vmax.f32 %v1153, 0.0
  %v1224 = vmax.f32 %v1154, 0.0
  %v1225 = vmax.f32 %v1155, 0.0
  %v1226 = vmax.f32 %v1156, 0.0
  %v1227 = vmax.f32 %v1157, 0.0
  %v1228 = vmax.f32 %v1158, 0.0
  %v1229 = vmax.f32 %v1159, 0.0
  %v1230 = vmax.f32 %v1160, 0.0
  %v1231 = vmax.f32 %v1161, 0.0
  %v1232 = vmax.f32 %v1162, 0.0
  %v1233 = vmax.f32 %v1163, 0.0
  %v1234 = vmax.f32 %v1164, 0.0
  %v1235 = vmax.f32 %v1165, 0.0
  %v1236 = vmax.f32 %v1166, 0.0
  %v1237 = vmax.f32 %v1167, 0.0
  %v1238 = vmax.f32 %v1168, 0.0
  %v1239 = vmax.f32 %v1169, 0.0
  %v1240 = vmax.f32 %v1170, 0.0
  %v1241 = vmax.f32 %v1171, 0.0
  %v1242 = vmax.f32 %v1172, 0.0
  %v1243 = vmax.f32 %v1173, 0.0
  %v1244 = vmax.f32 %v1174, 0.0
  %v1245 = vmax.f32 %v1175, 0.0
  %v1246 = vmax.f32 %v1176, 0.0
  %v1247 = vmax.f32 %v1177, 0.0
  %v1248 = vmax.f32 %v1178, 0.0
  %v1249 = vmax.f32 %v1179, 0.0
  %v1250 = vmax.f32 %v1180, 0.0
  %v1251 = vmax.f32 %v1181, 0.0
  %v1252 = vmax.f32 %v1182, 0.0
  %v1253 = vmax.f32 %v1183, 0.0
  %v1254 = vmax.f32 %v1184, 0.0
  %v1255 = vmax.f32 %v1185, 0.0
  %v1256 = vmax.f32 %v1186, 0.0
  %v1257 = vmax.f32 %v1187, 0.0
  %v1258 = vmax.f32 %v1188, 0.0
  %v1259 = vmax.f32 %v1189, 0.0
  %v1260 = vmax.f32 %v1190, 0.0
  %v1261 = vmax.f32 %v1191, 0.0
  %v1262 = vmax.f32 %v1192, 0.0
  %v1263 = vmax.f32 %v1193, 0.0
  %v1264 = vmax.f32 %v1194, 0.0
  %v1265 = vmax.f32 %v1195, 0.0
  %v1266 = vmax.f32 %v1196, 0.0
  %v1267 = vmax.f32 %v1197, 0.0
  %1268 = vst [vmem:[%s5] sm:$0xff] %v1198
  %1269 = vst [vmem:[%s5 + $0x8] sm:$0xff] %v1199
  %1270 = vst [vmem:[%s5 + $0x10] sm:$0xff] %v1200
  %1271 = vst [vmem:[%s5 + $0x18] sm:$0xff] %v1201
  %1272 = vst [vmem:[%s5 + $0x20] sm:$0xff] %v1202
  %1273 = vst [vmem:[%s5 + $0x28] sm:$0xff] %v1203
  %1274 = vst [vmem:[%s5 + $0x30] sm:$0xff] %v1204
  %1275 = vst [vmem:[%s5 + $0x38] sm:$0xff] %v1205
  %1276 = vst [vmem:[%s5 + $0x40] sm:$0xff] %v1206
  %1277 = vst [vmem:[%s5 + $0x48] sm:$0xff] %v1207
  %1278 = vst [vmem:[%s5 + $0x50] sm:$0xff] %v1208
  %1279 = vst [vmem:[%s5 + $0x58] sm:$0xff] %v1209
  %1280 = vst [vmem:[%s5 + $0x60] sm:$0xff] %v1210
  %1281 = vst [vmem:[%s5 + $0x68] sm:$0xff] %v1211
  %1282 = vst [vmem:[%s5 + $0x70] sm:$0xff] %v1212
  %1283 = vst [vmem:[%s5 + $0x78] sm:$0xff] %v1213
  %1284 = vst [vmem:[%s5 + $0x80] sm:$0xff] %v1214
  %1285 = vst [vmem:[%s5 + $0x88] sm:$0xff] %v1215
  %1286 = vst [vmem:[%s5 + $0x90] sm:$0xff] %v1216
  %1287 = vst [vmem:[%s5 + $0x98] sm:$0xff] %v1217
  %1288 = vst [vmem:[%s5 + $0xa0] sm:$0xff] %v1218
  %1289 = vst [vmem:[%s5 + $0xa8] sm:$0xff] %v1219
  %1290 = vst [vmem:[%s5 + $0xb0] sm:$0xff] %v1220
  %1291 = vst [vmem:[%s5 + $0xb8] sm:$0xff] %v1221
  %1292 = vst [vmem:[%s5 + $0xc0] sm:$0xff] %v1222
  %1293 = vst [vmem:[%s5 + $0xc8] sm:$0xff] %v1223
  %1294 = vst [vmem:[%s5 + $0xd0] sm:$0xff] %v1224
  %1295 = vst [vmem:[%s5 + $0xd8] sm:$0xff] %v1225
  %1296 = vst [vmem:[%s5 + $0xe0] sm:$0xff] %v1226
  %1297 = vst [vmem:[%s5 + $0xe8] sm:$0xff] %v1227
  %1298 = vst [vmem:[%s5 + $0xf0] sm:$0xff] %v1228
  %1299 = vst [vmem:[%s5 + $0xf8] sm:$0xff] %v1229
  %1300 = vst [vmem:[%s5 + $0x100] sm:$0xff] %v1230
  %1301 = vst [vmem:[%s5 + $0x108] sm:$0xff] %v1231
  %1302 = vst [vmem:[%s5 + $0x110] sm:$0xff] %v1232
  %1303 = vst [vmem:[%s5 + $0x118] sm:$0xff] %v1233
  %1304 = vst [vmem:[%s5 + $0x120] sm:$0xff] %v1234
  %1305 = vst [vmem:[%s5 + $0x128] sm:$0xff] %v1235
  %1306 = vst [vmem:[%s5 + $0x130] sm:$0xff] %v1236
  %1307 = vst [vmem:[%s5 + $0x138] sm:$0xff] %v1237
  %1308 = vst [vmem:[%s5 + $0x140] sm:$0xff] %v1238
  %1309 = vst [vmem:[%s5 + $0x148] sm:$0xff] %v1239
  %1310 = vst [vmem:[%s5 + $0x150] sm:$0xff] %v1240
  %1311 = vst [vmem:[%s5 + $0x158] sm:$0xff] %v1241
  %1312 = vst [vmem:[%s5 + $0x160] sm:$0xff] %v1242
  %1313 = vst [vmem:[%s5 + $0x168] sm:$0xff] %v1243
  %1314 = vst [vmem:[%s5 + $0x170] sm:$0xff] %v1244
  %1315 = vst [vmem:[%s5 + $0x178] sm:$0xff] %v1245
  %1316 = vst [vmem:[%s5 + $0x180] sm:$0xff] %v1246
  %1317 = vst [vmem:[%s5 + $0x188] sm:$0xff] %v1247
  %1318 = vst [vmem:[%s5 + $0x190] sm:$0xff] %v1248
  %1319 = vst [vmem:[%s5 + $0x198] sm:$0xff] %v1249
  %1320 = vst [vmem:[%s5 + $0x1a0] sm:$0xff] %v1250
  %1321 = vst [vmem:[%s5 + $0x1a8] sm:$0xff] %v1251
  %1322 = vst [vmem:[%s5 + $0x1b0] sm:$0xff] %v1252
  %1323 = vst [vmem:[%s5 + $0x1b8] sm:$0xff] %v1253
  %1324 = vst [vmem:[%s5 + $0x1c0] sm:$0xff] %v1254
  %1325 = vst [vmem:[%s5 + $0x1c8] sm:$0xff] %v1255
  %1326 = vst [vmem:[%s5 + $0x1d0] sm:$0xff] %v1256
  %1327 = vst [vmem:[%s5 + $0x1d8] sm:$0xff] %v1257
  %1328 = vst [vmem:[%s5 + $0x1e0] sm:$0xff] %v1258
  %1329 = vst [vmem:[%s5 + $0x1e8] sm:$0xff] %v1259
  %1330 = vst [vmem:[%s5 + $0x1f0] sm:$0xff] %v1260
  %1331 = vst [vmem:[%s5 + $0x1f8] sm:$0xff] %v1261
  %1332 = vst [vmem:[%s5 + $0x200] sm:$0xff] %v1262
  %1333 = vst [vmem:[%s5 + $0x208] sm:$0xff] %v1263
  %1334 = vst [vmem:[%s5 + $0x210] sm:$0xff] %v1264
  %1335 = vst [vmem:[%s5 + $0x218] sm:$0xff] %v1265
  %1336 = vst [vmem:[%s5 + $0x220] sm:$0xff] %v1266
  %1337 = vst [vmem:[%s5 + $0x228] sm:$0xff] %v1267
  // Predicated region
  $region22: #{cnn_forward.4} parent=0 // pred_check
    _
  $region23: #{cnn_forward.4} parent=0 // pred_check_branch
    %1339 = sbr.rel (0) target = $region25
  $region24: #{cnn_forward.4} parent=0 // pred_region
    _
  $region25: #{cnn_forward.4} parent=0 // pred_fallthru
    _
  // Predicated region
  $region26: #{cnn_forward.4} parent=0 // pred_check
    _
  $region27: #{cnn_forward.4} parent=0 // pred_check_branch
    %1341 = sbr.rel (0) target = $region29
  $region28: #{cnn_forward.4} parent=0 // pred_region
    _
  $region29: #{cnn_forward.4} parent=0 // pred_fallthru
    _

// kernel: cnn_forward.5
$region0: #{cnn_forward.5}
  #allocation0 [shape = 'u32[]', space=smem, size = 0x4, offset = 0x4, fixed_abs, tag = 'smem constant byte address 0x4 - core index']
  #allocation1 [shape = 'u32[144,128]{1,0:T(1,128)}', space=vmem, size = 0x12000, scoped, tag = 'internal scratch']
  %s0 = inlined_call_operand.vmem [shape: f32[108,2048], index: 0, kind: input, shape index: {}]
  %s1 = inlined_call_operand.vmem [shape: bf16[2048,128], index: 1, kind: input, shape index: {}]
  %s2 = inlined_call_operand.vmem [shape: f32[1,128], index: 2, kind: input, shape index: {}]
  %s3 = inlined_call_operand.vmem [shape: f32[1,128], index: 3, kind: input, shape index: {}]
  %s4 = inlined_call_operand.vmem [shape: f32[1,128], index: 4, kind: input, shape index: {}]
  %s5 = inlined_call_operand.vmem [shape: f32[108,128], index: 5, kind: output, shape index: {}]
  %s6 = sld [smem:[#allocation0]]
  $region30: #{cnn_forward.5} parent=0
    _
  %s8 = ssub.s32 1, %s6
  %s9 = scalar_select 0, %s8, %s6
  // Predicated region
  $region2: #{cnn_forward.5} parent=0 // pred_check
    _
  $region3: #{cnn_forward.5} parent=0 // pred_check_branch
    %11 = sbr.rel (0) target = $region5
  $region4: #{cnn_forward.5} parent=0 // pred_region
    _
  $region5: #{cnn_forward.5} parent=0 // pred_fallthru
    _
  // Predicated region
  $region6: #{cnn_forward.5} parent=0 // pred_check
    _
  $region7: #{cnn_forward.5} parent=0 // pred_check_branch
    %13 = sbr.rel (0) target = $region9
  $region8: #{cnn_forward.5} parent=0 // pred_region
    _
  $region9: #{cnn_forward.5} parent=0 // pred_fallthru
    _
  // Predicated region
  $region10: #{cnn_forward.5} parent=0 // pred_check
    _
  $region11: #{cnn_forward.5} parent=0 // pred_check_branch
    %15 = sbr.rel (0) target = $region13
  $region12: #{cnn_forward.5} parent=0 // pred_region
    _
  $region13: #{cnn_forward.5} parent=0 // pred_fallthru
    _
  // Predicated region
  $region14: #{cnn_forward.5} parent=0 // pred_check
    _
  $region15: #{cnn_forward.5} parent=0 // pred_check_branch
    %17 = sbr.rel (0) target = $region17
  $region16: #{cnn_forward.5} parent=0 // pred_region
    _
  $region17: #{cnn_forward.5} parent=0 // pred_fallthru
    _
  // Predicated region
  $region18: #{cnn_forward.5} parent=0 // pred_check
    _
  $region19: #{cnn_forward.5} parent=0 // pred_check_branch
    %19 = sbr.rel (0) target = $region21
  $region20: #{cnn_forward.5} parent=0 // pred_region
    _
  $region21: #{cnn_forward.5} parent=0 // pred_fallthru
    _
  %v21 = vld [vmem:[%s0] sm:$0xff]
  %v22 = vld [vmem:[%s0 + $0x8] sm:$0xff]
  %v23 = vld [vmem:[%s0 + $0x10] sm:$0xff]
  %v24 = vld [vmem:[%s0 + $0x18] sm:$0xff]
  %v25 = vld [vmem:[%s0 + $0x20] sm:$0xff]
  %v26 = vld [vmem:[%s0 + $0x28] sm:$0xff]
  %v27 = vld [vmem:[%s0 + $0x30] sm:$0xff]
  %v28 = vld [vmem:[%s0 + $0x38] sm:$0xff]
  %v29 = vld [vmem:[%s0 + $0x40] sm:$0xff]
  %v30 = vld [vmem:[%s0 + $0x48] sm:$0xff]
  %v31 = vld [vmem:[%s0 + $0x50] sm:$0xff]
  %v32 = vld [vmem:[%s0 + $0x58] sm:$0xff]
  %v33 = vld [vmem:[%s0 + $0x60] sm:$0xff]
  %v34 = vld [vmem:[%s0 + $0x68] sm:$0xff]
  %v35 = vld [vmem:[%s0 + $0x70] sm:$0xff]
  %v36 = vld [vmem:[%s0 + $0x78] sm:$0xff]
  %v37 = vld [vmem:[%s0 + $0x80] sm:$0xff]
  %v38 = vld [vmem:[%s0 + $0x88] sm:$0xff]
  %v39 = vld [vmem:[%s0 + $0x90] sm:$0xff]
  %v40 = vld [vmem:[%s0 + $0x98] sm:$0xff]
  %v41 = vld [vmem:[%s0 + $0xa0] sm:$0xff]
  %v42 = vld [vmem:[%s0 + $0xa8] sm:$0xff]
  %v43 = vld [vmem:[%s0 + $0xb0] sm:$0xff]
  %v44 = vld [vmem:[%s0 + $0xb8] sm:$0xff]
  %v45 = vld [vmem:[%s0 + $0xc0] sm:$0xff]
  %v46 = vld [vmem:[%s0 + $0xc8] sm:$0xff]
  %v47 = vld [vmem:[%s0 + $0xd0] sm:$0xff]
  %v48 = vld [vmem:[%s0 + $0xd8] sm:$0xff]
  %v49 = vld [vmem:[%s0 + $0xe0] sm:$0xff]
  %v50 = vld [vmem:[%s0 + $0xe8] sm:$0xff]
  %v51 = vld [vmem:[%s0 + $0xf0] sm:$0xff]
  %v52 = vld [vmem:[%s0 + $0xf8] sm:$0xff]
  %v53 = vld [vmem:[%s0 + $0x100] sm:$0xff]
  %v54 = vld [vmem:[%s0 + $0x108] sm:$0xff]
  %v55 = vld [vmem:[%s0 + $0x110] sm:$0xff]
  %v56 = vld [vmem:[%s0 + $0x118] sm:$0xff]
  %v57 = vld [vmem:[%s0 + $0x120] sm:$0xff]
  %v58 = vld [vmem:[%s0 + $0x128] sm:$0xff]
  %v59 = vld [vmem:[%s0 + $0x130] sm:$0xff]
  %v60 = vld [vmem:[%s0 + $0x138] sm:$0xff]
  %v61 = vld [vmem:[%s0 + $0x140] sm:$0xff]
  %v62 = vld [vmem:[%s0 + $0x148] sm:$0xff]
  %v63 = vld [vmem:[%s0 + $0x150] sm:$0xff]
  %v64 = vld [vmem:[%s0 + $0x158] sm:$0xff]
  %v65 = vld [vmem:[%s0 + $0x160] sm:$0xff]
  %v66 = vld [vmem:[%s0 + $0x168] sm:$0xff]
  %v67 = vld [vmem:[%s0 + $0x170] sm:$0xff]
  %v68 = vld [vmem:[%s0 + $0x178] sm:$0xff]
  %v69 = vld [vmem:[%s0 + $0x180] sm:$0xff]
  %v70 = vld [vmem:[%s0 + $0x188] sm:$0xff]
  %v71 = vld [vmem:[%s0 + $0x190] sm:$0xff]
  %v72 = vld [vmem:[%s0 + $0x198] sm:$0xff]
  %v73 = vld [vmem:[%s0 + $0x1a0] sm:$0xff]
  %v74 = vld [vmem:[%s0 + $0x1a8] sm:$0xff]
  %v75 = vld [vmem:[%s0 + $0x1b0] sm:$0xff]
  %v76 = vld [vmem:[%s0 + $0x1b8] sm:$0xff]
  %v77 = vld [vmem:[%s0 + $0x1c0] sm:$0xff]
  %v78 = vld [vmem:[%s0 + $0x1c8] sm:$0xff]
  %v79 = vld [vmem:[%s0 + $0x1d0] sm:$0xff]
  %v80 = vld [vmem:[%s0 + $0x1d8] sm:$0xff]
  %v81 = vld [vmem:[%s0 + $0x1e0] sm:$0xff]
  %v82 = vld [vmem:[%s0 + $0x1e8] sm:$0xff]
  %v83 = vld [vmem:[%s0 + $0x1f0] sm:$0xff]
  %v84 = vld [vmem:[%s0 + $0x1f8] sm:$0xff]
  %v85 = vld [vmem:[%s0 + $0x200] sm:$0xff]
  %v86 = vld [vmem:[%s0 + $0x208] sm:$0xff]
  %v87 = vld [vmem:[%s0 + $0x210] sm:$0xff]
  %v88 = vld [vmem:[%s0 + $0x218] sm:$0xff]
  %v89 = vld [vmem:[%s0 + $0x220] sm:$0xff]
  %v90 = vld [vmem:[%s0 + $0x228] sm:$0xff]
  %v91 = vld [vmem:[%s0 + $0x230] sm:$0xff]
  %v92 = vld [vmem:[%s0 + $0x238] sm:$0xff]
  %v93 = vld [vmem:[%s0 + $0x240] sm:$0xff]
  %v94 = vld [vmem:[%s0 + $0x248] sm:$0xff]
  %v95 = vld [vmem:[%s0 + $0x250] sm:$0xff]
  %v96 = vld [vmem:[%s0 + $0x258] sm:$0xff]
  %v97 = vld [vmem:[%s0 + $0x260] sm:$0xff]
  %v98 = vld [vmem:[%s0 + $0x268] sm:$0xff]
  %v99 = vld [vmem:[%s0 + $0x270] sm:$0xff]
  %v100 = vld [vmem:[%s0 + $0x278] sm:$0xff]
  %v101 = vld [vmem:[%s0 + $0x280] sm:$0xff]
  %v102 = vld [vmem:[%s0 + $0x288] sm:$0xff]
  %v103 = vld [vmem:[%s0 + $0x290] sm:$0xff]
  %v104 = vld [vmem:[%s0 + $0x298] sm:$0xff]
  %v105 = vld [vmem:[%s0 + $0x2a0] sm:$0xff]
  %v106 = vld [vmem:[%s0 + $0x2a8] sm:$0xff]
  %v107 = vld [vmem:[%s0 + $0x2b0] sm:$0xff]
  %v108 = vld [vmem:[%s0 + $0x2b8] sm:$0xff]
  %v109 = vld [vmem:[%s0 + $0x2c0] sm:$0xff]
  %v110 = vld [vmem:[%s0 + $0x2c8] sm:$0xff]
  %v111 = vld [vmem:[%s0 + $0x2d0] sm:$0xff]
  %v112 = vld [vmem:[%s0 + $0x2d8] sm:$0xff]
  %v113 = vld [vmem:[%s0 + $0x2e0] sm:$0xff]
  %v114 = vld [vmem:[%s0 + $0x2e8] sm:$0xff]
  %v115 = vld [vmem:[%s0 + $0x2f0] sm:$0xff]
  %v116 = vld [vmem:[%s0 + $0x2f8] sm:$0xff]
  %v117 = vld [vmem:[%s0 + $0x300] sm:$0xff]
  %v118 = vld [vmem:[%s0 + $0x308] sm:$0xff]
  %v119 = vld [vmem:[%s0 + $0x310] sm:$0xff]
  %v120 = vld [vmem:[%s0 + $0x318] sm:$0xff]
  %v121 = vld [vmem:[%s0 + $0x320] sm:$0xff]
  %v122 = vld [vmem:[%s0 + $0x328] sm:$0xff]
  %v123 = vld [vmem:[%s0 + $0x330] sm:$0xff]
  %v124 = vld [vmem:[%s0 + $0x338] sm:$0xff]
  %v125 = vld [vmem:[%s0 + $0x340] sm:$0xff]
  %v126 = vld [vmem:[%s0 + $0x348] sm:$0xff]
  %v127 = vld [vmem:[%s0 + $0x350] sm:$0xff]
  %v128 = vld [vmem:[%s0 + $0x358] sm:$0xff]
  %v129 = vld [vmem:[%s0 + $0x360] sm:$0xff]
  %v130 = vld [vmem:[%s0 + $0x368] sm:$0xff]
  %v131 = vld [vmem:[%s0 + $0x370] sm:$0xff]
  %v132 = vld [vmem:[%s0 + $0x378] sm:$0xff]
  %v133 = vld [vmem:[%s0 + $0x380] sm:$0xff]
  %v134 = vld [vmem:[%s0 + $0x388] sm:$0xff]
  %v135 = vld [vmem:[%s0 + $0x390] sm:$0xff]
  %v136 = vld [vmem:[%s0 + $0x398] sm:$0xff]
  %v137 = vld [vmem:[%s0 + $0x3a0] sm:$0xff]
  %v138 = vld [vmem:[%s0 + $0x3a8] sm:$0xff]
  %v139 = vld [vmem:[%s0 + $0x3b0] sm:$0xff]
  %v140 = vld [vmem:[%s0 + $0x3b8] sm:$0xff]
  %v141 = vld [vmem:[%s0 + $0x3c0] sm:$0xff]
  %v142 = vld [vmem:[%s0 + $0x3c8] sm:$0xff]
  %v143 = vld [vmem:[%s0 + $0x3d0] sm:$0xff]
  %v144 = vld [vmem:[%s0 + $0x3d8] sm:$0xff]
  %v145 = vld [vmem:[%s0 + $0x3e0] sm:$0xff]
  %v146 = vld [vmem:[%s0 + $0x3e8] sm:$0xff]
  %v147 = vld [vmem:[%s0 + $0x3f0] sm:$0xff]
  %v148 = vld [vmem:[%s0 + $0x3f8] sm:$0xff]
  %v149 = vld [vmem:[%s0 + $0x400] sm:$0xff]
  %v150 = vld [vmem:[%s0 + $0x408] sm:$0xff]
  %v151 = vld [vmem:[%s0 + $0x410] sm:$0xff]
  %v152 = vld [vmem:[%s0 + $0x418] sm:$0xff]
  %v153 = vld [vmem:[%s0 + $0x420] sm:$0xff]
  %v154 = vld [vmem:[%s0 + $0x428] sm:$0xff]
  %v155 = vld [vmem:[%s0 + $0x430] sm:$0xff]
  %v156 = vld [vmem:[%s0 + $0x438] sm:$0xff]
  %v157 = vld [vmem:[%s0 + $0x440] sm:$0xff]
  %v158 = vld [vmem:[%s0 + $0x448] sm:$0xff]
  %v159 = vld [vmem:[%s0 + $0x450] sm:$0xff]
  %v160 = vld [vmem:[%s0 + $0x458] sm:$0xff]
  %v161 = vld [vmem:[%s0 + $0x460] sm:$0xff]
  %v162 = vld [vmem:[%s0 + $0x468] sm:$0xff]
  %v163 = vld [vmem:[%s0 + $0x470] sm:$0xff]
  %v164 = vld [vmem:[%s0 + $0x478] sm:$0xff]
  %v165 = vld [vmem:[%s0 + $0x480] sm:$0xff]
  %v166 = vld [vmem:[%s0 + $0x488] sm:$0xff]
  %v167 = vld [vmem:[%s0 + $0x490] sm:$0xff]
  %v168 = vld [vmem:[%s0 + $0x498] sm:$0xff]
  %v169 = vld [vmem:[%s0 + $0x4a0] sm:$0xff]
  %v170 = vld [vmem:[%s0 + $0x4a8] sm:$0xff]
  %v171 = vld [vmem:[%s0 + $0x4b0] sm:$0xff]
  %v172 = vld [vmem:[%s0 + $0x4b8] sm:$0xff]
  %v173 = vld [vmem:[%s0 + $0x4c0] sm:$0xff]
  %v174 = vld [vmem:[%s0 + $0x4c8] sm:$0xff]
  %v175 = vld [vmem:[%s0 + $0x4d0] sm:$0xff]
  %v176 = vld [vmem:[%s0 + $0x4d8] sm:$0xff]
  %v177 = vld [vmem:[%s0 + $0x4e0] sm:$0xff]
  %v178 = vld [vmem:[%s0 + $0x4e8] sm:$0xff]
  %v179 = vld [vmem:[%s0 + $0x4f0] sm:$0xff]
  %v180 = vld [vmem:[%s0 + $0x4f8] sm:$0xff]
  %v181 = vld [vmem:[%s0 + $0x500] sm:$0xff]
  %v182 = vld [vmem:[%s0 + $0x508] sm:$0xff]
  %v183 = vld [vmem:[%s0 + $0x510] sm:$0xff]
  %v184 = vld [vmem:[%s0 + $0x518] sm:$0xff]
  %v185 = vld [vmem:[%s0 + $0x520] sm:$0xff]
  %v186 = vld [vmem:[%s0 + $0x528] sm:$0xff]
  %v187 = vld [vmem:[%s0 + $0x530] sm:$0xff]
  %v188 = vld [vmem:[%s0 + $0x538] sm:$0xff]
  %v189 = vld [vmem:[%s0 + $0x540] sm:$0xff]
  %v190 = vld [vmem:[%s0 + $0x548] sm:$0xff]
  %v191 = vld [vmem:[%s0 + $0x550] sm:$0xff]
  %v192 = vld [vmem:[%s0 + $0x558] sm:$0xff]
  %v193 = vld [vmem:[%s0 + $0x560] sm:$0xff]
  %v194 = vld [vmem:[%s0 + $0x568] sm:$0xff]
  %v195 = vld [vmem:[%s0 + $0x570] sm:$0xff]
  %v196 = vld [vmem:[%s0 + $0x578] sm:$0xff]
  %v197 = vld [vmem:[%s0 + $0x580] sm:$0xff]
  %v198 = vld [vmem:[%s0 + $0x588] sm:$0xff]
  %v199 = vld [vmem:[%s0 + $0x590] sm:$0xff]
  %v200 = vld [vmem:[%s0 + $0x598] sm:$0xff]
  %v201 = vld [vmem:[%s0 + $0x5a0] sm:$0xff]
  %v202 = vld [vmem:[%s0 + $0x5a8] sm:$0xff]
  %v203 = vld [vmem:[%s0 + $0x5b0] sm:$0xff]
  %v204 = vld [vmem:[%s0 + $0x5b8] sm:$0xff]
  %v205 = vld [vmem:[%s0 + $0x5c0] sm:$0xff]
  %v206 = vld [vmem:[%s0 + $0x5c8] sm:$0xff]
  %v207 = vld [vmem:[%s0 + $0x5d0] sm:$0xff]
  %v208 = vld [vmem:[%s0 + $0x5d8] sm:$0xff]
  %v209 = vld [vmem:[%s0 + $0x5e0] sm:$0xff]
  %v210 = vld [vmem:[%s0 + $0x5e8] sm:$0xff]
  %v211 = vld [vmem:[%s0 + $0x5f0] sm:$0xff]
  %v212 = vld [vmem:[%s0 + $0x5f8] sm:$0xff]
  %v213 = vld [vmem:[%s0 + $0x600] sm:$0xff]
  %v214 = vld [vmem:[%s0 + $0x608] sm:$0xff]
  %v215 = vld [vmem:[%s0 + $0x610] sm:$0xff]
  %v216 = vld [vmem:[%s0 + $0x618] sm:$0xff]
  %v217 = vld [vmem:[%s0 + $0x620] sm:$0xff]
  %v218 = vld [vmem:[%s0 + $0x628] sm:$0xff]
  %v219 = vld [vmem:[%s0 + $0x630] sm:$0xff]
  %v220 = vld [vmem:[%s0 + $0x638] sm:$0xff]
  %v221 = vld [vmem:[%s0 + $0x640] sm:$0xff]
  %v222 = vld [vmem:[%s0 + $0x648] sm:$0xff]
  %v223 = vld [vmem:[%s0 + $0x650] sm:$0xff]
  %v224 = vld [vmem:[%s0 + $0x658] sm:$0xff]
  %v225 = vld [vmem:[%s0 + $0x660] sm:$0xff]
  %v226 = vld [vmem:[%s0 + $0x668] sm:$0xff]
  %v227 = vld [vmem:[%s0 + $0x670] sm:$0xff]
  %v228 = vld [vmem:[%s0 + $0x678] sm:$0xff]
  %v229 = vld [vmem:[%s0 + $0x680] sm:$0xf]
  %v230 = vld [vmem:[%s0 + $0x688] sm:$0xf]
  %v231 = vld [vmem:[%s0 + $0x690] sm:$0xf]
  %v232 = vld [vmem:[%s0 + $0x698] sm:$0xf]
  %v233 = vld [vmem:[%s0 + $0x6a0] sm:$0xf]
  %v234 = vld [vmem:[%s0 + $0x6a8] sm:$0xf]
  %v235 = vld [vmem:[%s0 + $0x6b0] sm:$0xf]
  %v236 = vld [vmem:[%s0 + $0x6b8] sm:$0xf]
  %v237 = vld [vmem:[%s0 + $0x6c0] sm:$0xf]
  %v238 = vld [vmem:[%s0 + $0x6c8] sm:$0xf]
  %v239 = vld [vmem:[%s0 + $0x6d0] sm:$0xf]
  %v240 = vld [vmem:[%s0 + $0x6d8] sm:$0xf]
  %v241 = vld [vmem:[%s0 + $0x6e0] sm:$0xf]
  %v242 = vld [vmem:[%s0 + $0x6e8] sm:$0xf]
  %v243 = vld [vmem:[%s0 + $0x6f0] sm:$0xf]
  %v244 = vld [vmem:[%s0 + $0x6f8] sm:$0xf]
  %v245 = vpack.c.bf16 %v37, %v21
  %v246 = vpack.c.bf16 %v38, %v22
  %v247 = vpack.c.bf16 %v39, %v23
  %v248 = vpack.c.bf16 %v40, %v24
  %v249 = vpack.c.bf16 %v41, %v25
  %v250 = vpack.c.bf16 %v42, %v26
  %v251 = vpack.c.bf16 %v43, %v27
  %v252 = vpack.c.bf16 %v44, %v28
  %v253 = vpack.c.bf16 %v45, %v29
  %v254 = vpack.c.bf16 %v46, %v30
  %v255 = vpack.c.bf16 %v47, %v31
  %v256 = vpack.c.bf16 %v48, %v32
  %v257 = vpack.c.bf16 %v49, %v33
  %v258 = vpack.c.bf16 %v50, %v34
  %v259 = vpack.c.bf16 %v51, %v35
  %v260 = vpack.c.bf16 %v52, %v36
  %v261 = vpack.c.bf16 %v69, %v53
  %v262 = vpack.c.bf16 %v70, %v54
  %v263 = vpack.c.bf16 %v71, %v55
  %v264 = vpack.c.bf16 %v72, %v56
  %v265 = vpack.c.bf16 %v73, %v57
  %v266 = vpack.c.bf16 %v74, %v58
  %v267 = vpack.c.bf16 %v75, %v59
  %v268 = vpack.c.bf16 %v76, %v60
  %v269 = vpack.c.bf16 %v77, %v61
  %v270 = vpack.c.bf16 %v78, %v62
  %v271 = vpack.c.bf16 %v79, %v63
  %v272 = vpack.c.bf16 %v80, %v64
  %v273 = vpack.c.bf16 %v81, %v65
  %v274 = vpack.c.bf16 %v82, %v66
  %v275 = vpack.c.bf16 %v83, %v67
  %v276 = vpack.c.bf16 %v84, %v68
  %v277 = vpack.c.bf16 %v101, %v85
  %v278 = vpack.c.bf16 %v102, %v86
  %v279 = vpack.c.bf16 %v103, %v87
  %v280 = vpack.c.bf16 %v104, %v88
  %v281 = vpack.c.bf16 %v105, %v89
  %v282 = vpack.c.bf16 %v106, %v90
  %v283 = vpack.c.bf16 %v107, %v91
  %v284 = vpack.c.bf16 %v108, %v92
  %v285 = vpack.c.bf16 %v109, %v93
  %v286 = vpack.c.bf16 %v110, %v94
  %v287 = vpack.c.bf16 %v111, %v95
  %v288 = vpack.c.bf16 %v112, %v96
  %v289 = vpack.c.bf16 %v113, %v97
  %v290 = vpack.c.bf16 %v114, %v98
  %v291 = vpack.c.bf16 %v115, %v99
  %v292 = vpack.c.bf16 %v116, %v100
  %v293 = vpack.c.bf16 %v133, %v117
  %v294 = vpack.c.bf16 %v134, %v118
  %v295 = vpack.c.bf16 %v135, %v119
  %v296 = vpack.c.bf16 %v136, %v120
  %v297 = vpack.c.bf16 %v137, %v121
  %v298 = vpack.c.bf16 %v138, %v122
  %v299 = vpack.c.bf16 %v139, %v123
  %v300 = vpack.c.bf16 %v140, %v124
  %v301 = vpack.c.bf16 %v141, %v125
  %v302 = vpack.c.bf16 %v142, %v126
  %v303 = vpack.c.bf16 %v143, %v127
  %v304 = vpack.c.bf16 %v144, %v128
  %v305 = vpack.c.bf16 %v145, %v129
  %v306 = vpack.c.bf16 %v146, %v130
  %v307 = vpack.c.bf16 %v147, %v131
  %v308 = vpack.c.bf16 %v148, %v132
  %v309 = vpack.c.bf16 %v165, %v149
  %v310 = vpack.c.bf16 %v166, %v150
  %v311 = vpack.c.bf16 %v167, %v151
  %v312 = vpack.c.bf16 %v168, %v152
  %v313 = vpack.c.bf16 %v169, %v153
  %v314 = vpack.c.bf16 %v170, %v154
  %v315 = vpack.c.bf16 %v171, %v155
  %v316 = vpack.c.bf16 %v172, %v156
  %v317 = vpack.c.bf16 %v173, %v157
  %v318 = vpack.c.bf16 %v174, %v158
  %v319 = vpack.c.bf16 %v175, %v159
  %v320 = vpack.c.bf16 %v176, %v160
  %v321 = vpack.c.bf16 %v177, %v161
  %v322 = vpack.c.bf16 %v178, %v162
  %v323 = vpack.c.bf16 %v179, %v163
  %v324 = vpack.c.bf16 %v180, %v164
  %v325 = vpack.c.bf16 %v197, %v181
  %v326 = vpack.c.bf16 %v198, %v182
  %v327 = vpack.c.bf16 %v199, %v183
  %v328 = vpack.c.bf16 %v200, %v184
  %v329 = vpack.c.bf16 %v201, %v185
  %v330 = vpack.c.bf16 %v202, %v186
  %v331 = vpack.c.bf16 %v203, %v187
  %v332 = vpack.c.bf16 %v204, %v188
  %v333 = vpack.c.bf16 %v205, %v189
  %v334 = vpack.c.bf16 %v206, %v190
  %v335 = vpack.c.bf16 %v207, %v191
  %v336 = vpack.c.bf16 %v208, %v192
  %v337 = vpack.c.bf16 %v209, %v193
  %v338 = vpack.c.bf16 %v210, %v194
  %v339 = vpack.c.bf16 %v211, %v195
  %v340 = vpack.c.bf16 %v212, %v196
  %v341 = vpack.c.bf16 %v229, %v213
  %v342 = vpack.c.bf16 %v230, %v214
  %v343 = vpack.c.bf16 %v231, %v215
  %v344 = vpack.c.bf16 %v232, %v216
  %v345 = vpack.c.bf16 %v233, %v217
  %v346 = vpack.c.bf16 %v234, %v218
  %v347 = vpack.c.bf16 %v235, %v219
  %v348 = vpack.c.bf16 %v236, %v220
  %v349 = vpack.c.bf16 %v237, %v221
  %v350 = vpack.c.bf16 %v238, %v222
  %v351 = vpack.c.bf16 %v239, %v223
  %v352 = vpack.c.bf16 %v240, %v224
  %v353 = vpack.c.bf16 %v241, %v225
  %v354 = vpack.c.bf16 %v242, %v226
  %v355 = vpack.c.bf16 %v243, %v227
  %v356 = vpack.c.bf16 %v244, %v228
  %v357 = vld [vmem:[%s1] sm:$0xf]
  %v358 = vld [vmem:[%s1 + $0x4] sm:$0xf]
  %v359 = vld [vmem:[%s1 + $0x8] sm:$0xf]
  %v360 = vld [vmem:[%s1 + $0xc] sm:$0xf]
  %v361 = vld [vmem:[%s1 + $0x10] sm:$0xf]
  %v362 = vld [vmem:[%s1 + $0x14] sm:$0xf]
  %v363 = vld [vmem:[%s1 + $0x18] sm:$0xf]
  %v364 = vld [vmem:[%s1 + $0x1c] sm:$0xf]
  %v365 = vld [vmem:[%s1 + $0x20] sm:$0xf]
  %v366 = vld [vmem:[%s1 + $0x24] sm:$0xf]
  %v367 = vld [vmem:[%s1 + $0x28] sm:$0xf]
  %v368 = vld [vmem:[%s1 + $0x2c] sm:$0xf]
  %v369 = vld [vmem:[%s1 + $0x30] sm:$0xf]
  %v370 = vld [vmem:[%s1 + $0x34] sm:$0xf]
  %v371 = vld [vmem:[%s1 + $0x38] sm:$0xf]
  %v372 = vld [vmem:[%s1 + $0x3c] sm:$0xf]
  %v373 = vld [vmem:[%s1 + $0x40] sm:$0xf]
  %v374 = vld [vmem:[%s1 + $0x44] sm:$0xf]
  %v375 = vld [vmem:[%s1 + $0x48] sm:$0xf]
  %v376 = vld [vmem:[%s1 + $0x4c] sm:$0xf]
  %v377 = vld [vmem:[%s1 + $0x50] sm:$0xf]
  %v378 = vld [vmem:[%s1 + $0x54] sm:$0xf]
  %v379 = vld [vmem:[%s1 + $0x58] sm:$0xf]
  %v380 = vld [vmem:[%s1 + $0x5c] sm:$0xf]
  %v381 = vld [vmem:[%s1 + $0x60] sm:$0xf]
  %v382 = vld [vmem:[%s1 + $0x64] sm:$0xf]
  %v383 = vld [vmem:[%s1 + $0x68] sm:$0xf]
  %v384 = vld [vmem:[%s1 + $0x6c] sm:$0xf]
  %v385 = vld [vmem:[%s1 + $0x70] sm:$0xf]
  %v386 = vld [vmem:[%s1 + $0x74] sm:$0xf]
  %v387 = vld [vmem:[%s1 + $0x78] sm:$0xf]
  %v388 = vld [vmem:[%s1 + $0x7c] sm:$0xf]
  %v389 = vld [vmem:[%s1 + $0x80] sm:$0xf]
  %v390 = vld [vmem:[%s1 + $0x84] sm:$0xf]
  %v391 = vld [vmem:[%s1 + $0x88] sm:$0xf]
  %v392 = vld [vmem:[%s1 + $0x8c] sm:$0xf]
  %v393 = vld [vmem:[%s1 + $0x90] sm:$0xf]
  %v394 = vld [vmem:[%s1 + $0x94] sm:$0xf]
  %v395 = vld [vmem:[%s1 + $0x98] sm:$0xf]
  %v396 = vld [vmem:[%s1 + $0x9c] sm:$0xf]
  %v397 = vld [vmem:[%s1 + $0xa0] sm:$0xf]
  %v398 = vld [vmem:[%s1 + $0xa4] sm:$0xf]
  %v399 = vld [vmem:[%s1 + $0xa8] sm:$0xf]
  %v400 = vld [vmem:[%s1 + $0xac] sm:$0xf]
  %v401 = vld [vmem:[%s1 + $0xb0] sm:$0xf]
  %v402 = vld [vmem:[%s1 + $0xb4] sm:$0xf]
  %v403 = vld [vmem:[%s1 + $0xb8] sm:$0xf]
  %v404 = vld [vmem:[%s1 + $0xbc] sm:$0xf]
  %v405 = vld [vmem:[%s1 + $0xc0] sm:$0xf]
  %v406 = vld [vmem:[%s1 + $0xc4] sm:$0xf]
  %v407 = vld [vmem:[%s1 + $0xc8] sm:$0xf]
  %v408 = vld [vmem:[%s1 + $0xcc] sm:$0xf]
  %v409 = vld [vmem:[%s1 + $0xd0] sm:$0xf]
  %v410 = vld [vmem:[%s1 + $0xd4] sm:$0xf]
  %v411 = vld [vmem:[%s1 + $0xd8] sm:$0xf]
  %v412 = vld [vmem:[%s1 + $0xdc] sm:$0xf]
  %v413 = vld [vmem:[%s1 + $0xe0] sm:$0xf]
  %v414 = vld [vmem:[%s1 + $0xe4] sm:$0xf]
  %v415 = vld [vmem:[%s1 + $0xe8] sm:$0xf]
  %v416 = vld [vmem:[%s1 + $0xec] sm:$0xf]
  %v417 = vld [vmem:[%s1 + $0xf0] sm:$0xf]
  %v418 = vld [vmem:[%s1 + $0xf4] sm:$0xf]
  %v419 = vld [vmem:[%s1 + $0xf8] sm:$0xf]
  %v420 = vld [vmem:[%s1 + $0xfc] sm:$0xf]
  %v421 = vld [vmem:[%s1 + $0x100] sm:$0xf]
  %v422 = vld [vmem:[%s1 + $0x104] sm:$0xf]
  %v423 = vld [vmem:[%s1 + $0x108] sm:$0xf]
  %v424 = vld [vmem:[%s1 + $0x10c] sm:$0xf]
  %v425 = vld [vmem:[%s1 + $0x110] sm:$0xf]
  %v426 = vld [vmem:[%s1 + $0x114] sm:$0xf]
  %v427 = vld [vmem:[%s1 + $0x118] sm:$0xf]
  %v428 = vld [vmem:[%s1 + $0x11c] sm:$0xf]
  %v429 = vld [vmem:[%s1 + $0x120] sm:$0xf]
  %v430 = vld [vmem:[%s1 + $0x124] sm:$0xf]
  %v431 = vld [vmem:[%s1 + $0x128] sm:$0xf]
  %v432 = vld [vmem:[%s1 + $0x12c] sm:$0xf]
  %v433 = vld [vmem:[%s1 + $0x130] sm:$0xf]
  %v434 = vld [vmem:[%s1 + $0x134] sm:$0xf]
  %v435 = vld [vmem:[%s1 + $0x138] sm:$0xf]
  %v436 = vld [vmem:[%s1 + $0x13c] sm:$0xf]
  %v437 = vld [vmem:[%s1 + $0x140] sm:$0xf]
  %v438 = vld [vmem:[%s1 + $0x144] sm:$0xf]
  %v439 = vld [vmem:[%s1 + $0x148] sm:$0xf]
  %v440 = vld [vmem:[%s1 + $0x14c] sm:$0xf]
  %v441 = vld [vmem:[%s1 + $0x150] sm:$0xf]
  %v442 = vld [vmem:[%s1 + $0x154] sm:$0xf]
  %v443 = vld [vmem:[%s1 + $0x158] sm:$0xf]
  %v444 = vld [vmem:[%s1 + $0x15c] sm:$0xf]
  %v445 = vld [vmem:[%s1 + $0x160] sm:$0xf]
  %v446 = vld [vmem:[%s1 + $0x164] sm:$0xf]
  %v447 = vld [vmem:[%s1 + $0x168] sm:$0xf]
  %v448 = vld [vmem:[%s1 + $0x16c] sm:$0xf]
  %v449 = vld [vmem:[%s1 + $0x170] sm:$0xf]
  %v450 = vld [vmem:[%s1 + $0x174] sm:$0xf]
  %v451 = vld [vmem:[%s1 + $0x178] sm:$0xf]
  %v452 = vld [vmem:[%s1 + $0x17c] sm:$0xf]
  %v453 = vld [vmem:[%s1 + $0x180] sm:$0xf]
  %v454 = vld [vmem:[%s1 + $0x184] sm:$0xf]
  %v455 = vld [vmem:[%s1 + $0x188] sm:$0xf]
  %v456 = vld [vmem:[%s1 + $0x18c] sm:$0xf]
  %v457 = vld [vmem:[%s1 + $0x190] sm:$0xf]
  %v458 = vld [vmem:[%s1 + $0x194] sm:$0xf]
  %v459 = vld [vmem:[%s1 + $0x198] sm:$0xf]
  %v460 = vld [vmem:[%s1 + $0x19c] sm:$0xf]
  %v461 = vld [vmem:[%s1 + $0x1a0] sm:$0xf]
  %v462 = vld [vmem:[%s1 + $0x1a4] sm:$0xf]
  %v463 = vld [vmem:[%s1 + $0x1a8] sm:$0xf]
  %v464 = vld [vmem:[%s1 + $0x1ac] sm:$0xf]
  %v465 = vld [vmem:[%s1 + $0x1b0] sm:$0xf]
  %v466 = vld [vmem:[%s1 + $0x1b4] sm:$0xf]
  %v467 = vld [vmem:[%s1 + $0x1b8] sm:$0xf]
  %v468 = vld [vmem:[%s1 + $0x1bc] sm:$0xf]
  %v469 = vld [vmem:[%s1 + $0x1c0] sm:$0xf]
  %v470 = vld [vmem:[%s1 + $0x1c4] sm:$0xf]
  %v471 = vld [vmem:[%s1 + $0x1c8] sm:$0xf]
  %v472 = vld [vmem:[%s1 + $0x1cc] sm:$0xf]
  %v473 = vld [vmem:[%s1 + $0x1d0] sm:$0xf]
  %v474 = vld [vmem:[%s1 + $0x1d4] sm:$0xf]
  %v475 = vld [vmem:[%s1 + $0x1d8] sm:$0xf]
  %v476 = vld [vmem:[%s1 + $0x1dc] sm:$0xf]
  %v477 = vld [vmem:[%s1 + $0x1e0] sm:$0xf]
  %v478 = vld [vmem:[%s1 + $0x1e4] sm:$0xf]
  %v479 = vld [vmem:[%s1 + $0x1e8] sm:$0xf]
  %v480 = vld [vmem:[%s1 + $0x1ec] sm:$0xf]
  %v481 = vld [vmem:[%s1 + $0x1f0] sm:$0xf]
  %v482 = vld [vmem:[%s1 + $0x1f4] sm:$0xf]
  %v483 = vld [vmem:[%s1 + $0x1f8] sm:$0xf]
  %v484 = vld [vmem:[%s1 + $0x1fc] sm:$0xf]
  %v485 = vld [vmem:[%s1 + $0x200] sm:$0xf]
  %v486 = vld [vmem:[%s1 + $0x204] sm:$0xf]
  %v487 = vld [vmem:[%s1 + $0x208] sm:$0xf]
  %v488 = vld [vmem:[%s1 + $0x20c] sm:$0xf]
  %v489 = vld [vmem:[%s1 + $0x210] sm:$0xf]
  %v490 = vld [vmem:[%s1 + $0x214] sm:$0xf]
  %v491 = vld [vmem:[%s1 + $0x218] sm:$0xf]
  %v492 = vld [vmem:[%s1 + $0x21c] sm:$0xf]
  %v493 = vld [vmem:[%s1 + $0x220] sm:$0xf]
  %v494 = vld [vmem:[%s1 + $0x224] sm:$0xf]
  %v495 = vld [vmem:[%s1 + $0x228] sm:$0xf]
  %v496 = vld [vmem:[%s1 + $0x22c] sm:$0xf]
  %v497 = vld [vmem:[%s1 + $0x230] sm:$0xf]
  %v498 = vld [vmem:[%s1 + $0x234] sm:$0xf]
  %v499 = vld [vmem:[%s1 + $0x238] sm:$0xf]
  %v500 = vld [vmem:[%s1 + $0x23c] sm:$0xf]
  %v501 = vld [vmem:[%s1 + $0x240] sm:$0xf]
  %v502 = vld [vmem:[%s1 + $0x244] sm:$0xf]
  %v503 = vld [vmem:[%s1 + $0x248] sm:$0xf]
  %v504 = vld [vmem:[%s1 + $0x24c] sm:$0xf]
  %v505 = vld [vmem:[%s1 + $0x250] sm:$0xf]
  %v506 = vld [vmem:[%s1 + $0x254] sm:$0xf]
  %v507 = vld [vmem:[%s1 + $0x258] sm:$0xf]
  %v508 = vld [vmem:[%s1 + $0x25c] sm:$0xf]
  %v509 = vld [vmem:[%s1 + $0x260] sm:$0xf]
  %v510 = vld [vmem:[%s1 + $0x264] sm:$0xf]
  %v511 = vld [vmem:[%s1 + $0x268] sm:$0xf]
  %v512 = vld [vmem:[%s1 + $0x26c] sm:$0xf]
  %v513 = vld [vmem:[%s1 + $0x270] sm:$0xf]
  %v514 = vld [vmem:[%s1 + $0x274] sm:$0xf]
  %v515 = vld [vmem:[%s1 + $0x278] sm:$0xf]
  %v516 = vld [vmem:[%s1 + $0x27c] sm:$0xf]
  %v517 = vld [vmem:[%s1 + $0x280] sm:$0xf]
  %v518 = vld [vmem:[%s1 + $0x284] sm:$0xf]
  %v519 = vld [vmem:[%s1 + $0x288] sm:$0xf]
  %v520 = vld [vmem:[%s1 + $0x28c] sm:$0xf]
  %v521 = vld [vmem:[%s1 + $0x290] sm:$0xf]
  %v522 = vld [vmem:[%s1 + $0x294] sm:$0xf]
  %v523 = vld [vmem:[%s1 + $0x298] sm:$0xf]
  %v524 = vld [vmem:[%s1 + $0x29c] sm:$0xf]
  %v525 = vld [vmem:[%s1 + $0x2a0] sm:$0xf]
  %v526 = vld [vmem:[%s1 + $0x2a4] sm:$0xf]
  %v527 = vld [vmem:[%s1 + $0x2a8] sm:$0xf]
  %v528 = vld [vmem:[%s1 + $0x2ac] sm:$0xf]
  %v529 = vld [vmem:[%s1 + $0x2b0] sm:$0xf]
  %v530 = vld [vmem:[%s1 + $0x2b4] sm:$0xf]
  %v531 = vld [vmem:[%s1 + $0x2b8] sm:$0xf]
  %v532 = vld [vmem:[%s1 + $0x2bc] sm:$0xf]
  %v533 = vld [vmem:[%s1 + $0x2c0] sm:$0xf]
  %v534 = vld [vmem:[%s1 + $0x2c4] sm:$0xf]
  %v535 = vld [vmem:[%s1 + $0x2c8] sm:$0xf]
  %v536 = vld [vmem:[%s1 + $0x2cc] sm:$0xf]
  %v537 = vld [vmem:[%s1 + $0x2d0] sm:$0xf]
  %v538 = vld [vmem:[%s1 + $0x2d4] sm:$0xf]
  %v539 = vld [vmem:[%s1 + $0x2d8] sm:$0xf]
  %v540 = vld [vmem:[%s1 + $0x2dc] sm:$0xf]
  %v541 = vld [vmem:[%s1 + $0x2e0] sm:$0xf]
  %v542 = vld [vmem:[%s1 + $0x2e4] sm:$0xf]
  %v543 = vld [vmem:[%s1 + $0x2e8] sm:$0xf]
  %v544 = vld [vmem:[%s1 + $0x2ec] sm:$0xf]
  %v545 = vld [vmem:[%s1 + $0x2f0] sm:$0xf]
  %v546 = vld [vmem:[%s1 + $0x2f4] sm:$0xf]
  %v547 = vld [vmem:[%s1 + $0x2f8] sm:$0xf]
  %v548 = vld [vmem:[%s1 + $0x2fc] sm:$0xf]
  %v549 = vld [vmem:[%s1 + $0x300] sm:$0xf]
  %v550 = vld [vmem:[%s1 + $0x304] sm:$0xf]
  %v551 = vld [vmem:[%s1 + $0x308] sm:$0xf]
  %v552 = vld [vmem:[%s1 + $0x30c] sm:$0xf]
  %v553 = vld [vmem:[%s1 + $0x310] sm:$0xf]
  %v554 = vld [vmem:[%s1 + $0x314] sm:$0xf]
  %v555 = vld [vmem:[%s1 + $0x318] sm:$0xf]
  %v556 = vld [vmem:[%s1 + $0x31c] sm:$0xf]
  %v557 = vld [vmem:[%s1 + $0x320] sm:$0xf]
  %v558 = vld [vmem:[%s1 + $0x324] sm:$0xf]
  %v559 = vld [vmem:[%s1 + $0x328] sm:$0xf]
  %v560 = vld [vmem:[%s1 + $0x32c] sm:$0xf]
  %v561 = vld [vmem:[%s1 + $0x330] sm:$0xf]
  %v562 = vld [vmem:[%s1 + $0x334] sm:$0xf]
  %v563 = vld [vmem:[%s1 + $0x338] sm:$0xf]
  %v564 = vld [vmem:[%s1 + $0x33c] sm:$0xf]
  %v565 = vld [vmem:[%s1 + $0x340] sm:$0xf]
  %v566 = vld [vmem:[%s1 + $0x344] sm:$0xf]
  %v567 = vld [vmem:[%s1 + $0x348] sm:$0xf]
  %v568 = vld [vmem:[%s1 + $0x34c] sm:$0xf]
  %v569 = vld [vmem:[%s1 + $0x350] sm:$0xf]
  %v570 = vld [vmem:[%s1 + $0x354] sm:$0xf]
  %v571 = vld [vmem:[%s1 + $0x358] sm:$0xf]
  %v572 = vld [vmem:[%s1 + $0x35c] sm:$0xf]
  %v573 = vld [vmem:[%s1 + $0x360] sm:$0xf]
  %v574 = vld [vmem:[%s1 + $0x364] sm:$0xf]
  %v575 = vld [vmem:[%s1 + $0x368] sm:$0xf]
  %v576 = vld [vmem:[%s1 + $0x36c] sm:$0xf]
  %v577 = vld [vmem:[%s1 + $0x370] sm:$0xf]
  %v578 = vld [vmem:[%s1 + $0x374] sm:$0xf]
  %v579 = vld [vmem:[%s1 + $0x378] sm:$0xf]
  %v580 = vld [vmem:[%s1 + $0x37c] sm:$0xf]
  %v581 = vld [vmem:[%s1 + $0x380] sm:$0xf]
  %v582 = vld [vmem:[%s1 + $0x384] sm:$0xf]
  %v583 = vld [vmem:[%s1 + $0x388] sm:$0xf]
  %v584 = vld [vmem:[%s1 + $0x38c] sm:$0xf]
  %v585 = vld [vmem:[%s1 + $0x390] sm:$0xf]
  %v586 = vld [vmem:[%s1 + $0x394] sm:$0xf]
  %v587 = vld [vmem:[%s1 + $0x398] sm:$0xf]
  %v588 = vld [vmem:[%s1 + $0x39c] sm:$0xf]
  %v589 = vld [vmem:[%s1 + $0x3a0] sm:$0xf]
  %v590 = vld [vmem:[%s1 + $0x3a4] sm:$0xf]
  %v591 = vld [vmem:[%s1 + $0x3a8] sm:$0xf]
  %v592 = vld [vmem:[%s1 + $0x3ac] sm:$0xf]
  %v593 = vld [vmem:[%s1 + $0x3b0] sm:$0xf]
  %v594 = vld [vmem:[%s1 + $0x3b4] sm:$0xf]
  %v595 = vld [vmem:[%s1 + $0x3b8] sm:$0xf]
  %v596 = vld [vmem:[%s1 + $0x3bc] sm:$0xf]
  %v597 = vld [vmem:[%s1 + $0x3c0] sm:$0xf]
  %v598 = vld [vmem:[%s1 + $0x3c4] sm:$0xf]
  %v599 = vld [vmem:[%s1 + $0x3c8] sm:$0xf]
  %v600 = vld [vmem:[%s1 + $0x3cc] sm:$0xf]
  %v601 = vld [vmem:[%s1 + $0x3d0] sm:$0xf]
  %v602 = vld [vmem:[%s1 + $0x3d4] sm:$0xf]
  %v603 = vld [vmem:[%s1 + $0x3d8] sm:$0xf]
  %v604 = vld [vmem:[%s1 + $0x3dc] sm:$0xf]
  %v605 = vld [vmem:[%s1 + $0x3e0] sm:$0xf]
  %v606 = vld [vmem:[%s1 + $0x3e4] sm:$0xf]
  %v607 = vld [vmem:[%s1 + $0x3e8] sm:$0xf]
  %v608 = vld [vmem:[%s1 + $0x3ec] sm:$0xf]
  %v609 = vld [vmem:[%s1 + $0x3f0] sm:$0xf]
  %v610 = vld [vmem:[%s1 + $0x3f4] sm:$0xf]
  %v611 = vld [vmem:[%s1 + $0x3f8] sm:$0xf]
  %v612 = vld [vmem:[%s1 + $0x3fc] sm:$0xf]
  %v613 = vld [vmem:[%s2] sm:$0x1]
  %v615 = vlaneseq
  %v616 = vshrl.u32 %v615, 7
  %v617 = vsub.s32 0, %v616
  %v618 = vrot.slane %v613, %v617
  %v876 = vunpack.c.l.b16 %v357
  %v877 = vunpack.c.l.b16 %v358
  %v878 = vunpack.c.l.b16 %v359
  %v879 = vunpack.c.l.b16 %v360
  %v880 = vunpack.c.l.b16 %v361
  %v881 = vunpack.c.l.b16 %v362
  %v882 = vunpack.c.l.b16 %v363
  %v883 = vunpack.c.l.b16 %v364
  %v884 = vunpack.c.l.b16 %v365
  %v885 = vunpack.c.l.b16 %v366
  %v886 = vunpack.c.l.b16 %v367
  %v887 = vunpack.c.l.b16 %v368
  %v888 = vunpack.c.l.b16 %v369
  %v889 = vunpack.c.l.b16 %v370
  %v890 = vunpack.c.l.b16 %v371
  %v891 = vunpack.c.l.b16 %v372
  %v892 = vunpack.c.l.b16 %v373
  %v893 = vunpack.c.l.b16 %v374
  %v894 = vunpack.c.l.b16 %v375
  %v895 = vunpack.c.l.b16 %v376
  %v896 = vunpack.c.l.b16 %v377
  %v897 = vunpack.c.l.b16 %v378
  %v898 = vunpack.c.l.b16 %v379
  %v899 = vunpack.c.l.b16 %v380
  %v900 = vunpack.c.l.b16 %v381
  %v901 = vunpack.c.l.b16 %v382
  %v902 = vunpack.c.l.b16 %v383
  %v903 = vunpack.c.l.b16 %v384
  %v904 = vunpack.c.l.b16 %v385
  %v905 = vunpack.c.l.b16 %v386
  %v906 = vunpack.c.l.b16 %v387
  %v907 = vunpack.c.l.b16 %v388
  %v908 = vunpack.c.l.b16 %v389
  %v909 = vunpack.c.l.b16 %v390
  %v910 = vunpack.c.l.b16 %v391
  %v911 = vunpack.c.l.b16 %v392
  %v912 = vunpack.c.l.b16 %v393
  %v913 = vunpack.c.l.b16 %v394
  %v914 = vunpack.c.l.b16 %v395
  %v915 = vunpack.c.l.b16 %v396
  %v916 = vunpack.c.l.b16 %v397
  %v917 = vunpack.c.l.b16 %v398
  %v918 = vunpack.c.l.b16 %v399
  %v919 = vunpack.c.l.b16 %v400
  %v920 = vunpack.c.l.b16 %v401
  %v921 = vunpack.c.l.b16 %v402
  %v922 = vunpack.c.l.b16 %v403
  %v923 = vunpack.c.l.b16 %v404
  %v924 = vunpack.c.l.b16 %v405
  %v925 = vunpack.c.l.b16 %v406
  %v926 = vunpack.c.l.b16 %v407
  %v927 = vunpack.c.l.b16 %v408
  %v928 = vunpack.c.l.b16 %v409
  %v929 = vunpack.c.l.b16 %v410
  %v930 = vunpack.c.l.b16 %v411
  %v931 = vunpack.c.l.b16 %v412
  %v932 = vunpack.c.l.b16 %v413
  %v933 = vunpack.c.l.b16 %v414
  %v934 = vunpack.c.l.b16 %v415
  %v935 = vunpack.c.l.b16 %v416
  %v936 = vunpack.c.l.b16 %v417
  %v937 = vunpack.c.l.b16 %v418
  %v938 = vunpack.c.l.b16 %v419
  %v939 = vunpack.c.l.b16 %v420
  %v940 = vunpack.c.l.b16 %v421
  %v941 = vunpack.c.l.b16 %v422
  %v942 = vunpack.c.l.b16 %v423
  %v943 = vunpack.c.l.b16 %v424
  %v944 = vunpack.c.l.b16 %v425
  %v945 = vunpack.c.l.b16 %v426
  %v946 = vunpack.c.l.b16 %v427
  %v947 = vunpack.c.l.b16 %v428
  %v948 = vunpack.c.l.b16 %v429
  %v949 = vunpack.c.l.b16 %v430
  %v950 = vunpack.c.l.b16 %v431
  %v951 = vunpack.c.l.b16 %v432
  %v952 = vunpack.c.l.b16 %v433
  %v953 = vunpack.c.l.b16 %v434
  %v954 = vunpack.c.l.b16 %v435
  %v955 = vunpack.c.l.b16 %v436
  %v956 = vunpack.c.l.b16 %v437
  %v957 = vunpack.c.l.b16 %v438
  %v958 = vunpack.c.l.b16 %v439
  %v959 = vunpack.c.l.b16 %v440
  %v960 = vunpack.c.l.b16 %v441
  %v961 = vunpack.c.l.b16 %v442
  %v962 = vunpack.c.l.b16 %v443
  %v963 = vunpack.c.l.b16 %v444
  %v964 = vunpack.c.l.b16 %v445
  %v965 = vunpack.c.l.b16 %v446
  %v966 = vunpack.c.l.b16 %v447
  %v967 = vunpack.c.l.b16 %v448
  %v968 = vunpack.c.l.b16 %v449
  %v969 = vunpack.c.l.b16 %v450
  %v970 = vunpack.c.l.b16 %v451
  %v971 = vunpack.c.l.b16 %v452
  %v972 = vunpack.c.l.b16 %v453
  %v973 = vunpack.c.l.b16 %v454
  %v974 = vunpack.c.l.b16 %v455
  %v975 = vunpack.c.l.b16 %v456
  %v976 = vunpack.c.l.b16 %v457
  %v977 = vunpack.c.l.b16 %v458
  %v978 = vunpack.c.l.b16 %v459
  %v979 = vunpack.c.l.b16 %v460
  %v980 = vunpack.c.l.b16 %v461
  %v981 = vunpack.c.l.b16 %v462
  %v982 = vunpack.c.l.b16 %v463
  %v983 = vunpack.c.l.b16 %v464
  %v984 = vunpack.c.l.b16 %v465
  %v985 = vunpack.c.l.b16 %v466
  %v986 = vunpack.c.l.b16 %v467
  %v987 = vunpack.c.l.b16 %v468
  %v988 = vunpack.c.l.b16 %v469
  %v989 = vunpack.c.l.b16 %v470
  %v990 = vunpack.c.l.b16 %v471
  %v991 = vunpack.c.l.b16 %v472
  %v992 = vunpack.c.l.b16 %v473
  %v993 = vunpack.c.l.b16 %v474
  %v994 = vunpack.c.l.b16 %v475
  %v995 = vunpack.c.l.b16 %v476
  %v996 = vunpack.c.l.b16 %v477
  %v997 = vunpack.c.l.b16 %v478
  %v998 = vunpack.c.l.b16 %v479
  %v999 = vunpack.c.l.b16 %v480
  %v1000 = vunpack.c.l.b16 %v481
  %v1001 = vunpack.c.l.b16 %v482
  %v1002 = vunpack.c.l.b16 %v483
  %v1003 = vunpack.c.l.b16 %v484
  %v1004 = vunpack.c.l.b16 %v485
  %v1005 = vunpack.c.l.b16 %v486
  %v1006 = vunpack.c.l.b16 %v487
  %v1007 = vunpack.c.l.b16 %v488
  %v1008 = vunpack.c.l.b16 %v489
  %v1009 = vunpack.c.l.b16 %v490
  %v1010 = vunpack.c.l.b16 %v491
  %v1011 = vunpack.c.l.b16 %v492
  %v1012 = vunpack.c.l.b16 %v493
  %v1013 = vunpack.c.l.b16 %v494
  %v1014 = vunpack.c.l.b16 %v495
  %v1015 = vunpack.c.l.b16 %v496
  %v1016 = vunpack.c.l.b16 %v497
  %v1017 = vunpack.c.l.b16 %v498
  %v1018 = vunpack.c.l.b16 %v499
  %v1019 = vunpack.c.l.b16 %v500
  %v1020 = vunpack.c.l.b16 %v501
  %v1021 = vunpack.c.l.b16 %v502
  %v1022 = vunpack.c.l.b16 %v503
  %v1023 = vunpack.c.l.b16 %v504
  %v1024 = vunpack.c.l.b16 %v505
  %v1025 = vunpack.c.l.b16 %v506
  %v1026 = vunpack.c.l.b16 %v507
  %v1027 = vunpack.c.l.b16 %v508
  %v1028 = vunpack.c.l.b16 %v509
  %v1029 = vunpack.c.l.b16 %v510
  %v1030 = vunpack.c.l.b16 %v511
  %v1031 = vunpack.c.l.b16 %v512
  %v1032 = vunpack.c.l.b16 %v513
  %v1033 = vunpack.c.l.b16 %v514
  %v1034 = vunpack.c.l.b16 %v515
  %v1035 = vunpack.c.l.b16 %v516
  %v1036 = vunpack.c.l.b16 %v517
  %v1037 = vunpack.c.l.b16 %v518
  %v1038 = vunpack.c.l.b16 %v519
  %v1039 = vunpack.c.l.b16 %v520
  %v1040 = vunpack.c.l.b16 %v521
  %v1041 = vunpack.c.l.b16 %v522
  %v1042 = vunpack.c.l.b16 %v523
  %v1043 = vunpack.c.l.b16 %v524
  %v1044 = vunpack.c.l.b16 %v525
  %v1045 = vunpack.c.l.b16 %v526
  %v1046 = vunpack.c.l.b16 %v527
  %v1047 = vunpack.c.l.b16 %v528
  %v1048 = vunpack.c.l.b16 %v529
  %v1049 = vunpack.c.l.b16 %v530
  %v1050 = vunpack.c.l.b16 %v531
  %v1051 = vunpack.c.l.b16 %v532
  %v1052 = vunpack.c.l.b16 %v533
  %v1053 = vunpack.c.l.b16 %v534
  %v1054 = vunpack.c.l.b16 %v535
  %v1055 = vunpack.c.l.b16 %v536
  %v1056 = vunpack.c.l.b16 %v537
  %v1057 = vunpack.c.l.b16 %v538
  %v1058 = vunpack.c.l.b16 %v539
  %v1059 = vunpack.c.l.b16 %v540
  %v1060 = vunpack.c.l.b16 %v541
  %v1061 = vunpack.c.l.b16 %v542
  %v1062 = vunpack.c.l.b16 %v543
  %v1063 = vunpack.c.l.b16 %v544
  %v1064 = vunpack.c.l.b16 %v545
  %v1065 = vunpack.c.l.b16 %v546
  %v1066 = vunpack.c.l.b16 %v547
  %v1067 = vunpack.c.l.b16 %v548
  %v1068 = vunpack.c.l.b16 %v549
  %v1069 = vunpack.c.l.b16 %v550
  %v1070 = vunpack.c.l.b16 %v551
  %v1071 = vunpack.c.l.b16 %v552
  %v1072 = vunpack.c.l.b16 %v553
  %v1073 = vunpack.c.l.b16 %v554
  %v1074 = vunpack.c.l.b16 %v555
  %v1075 = vunpack.c.l.b16 %v556
  %v1076 = vunpack.c.l.b16 %v557
  %v1077 = vunpack.c.l.b16 %v558
  %v1078 = vunpack.c.l.b16 %v559
  %v1079 = vunpack.c.l.b16 %v560
  %v1080 = vunpack.c.l.b16 %v561
  %v1081 = vunpack.c.l.b16 %v562
  %v1082 = vunpack.c.l.b16 %v563
  %v1083 = vunpack.c.l.b16 %v564
  %v1084 = vunpack.c.l.b16 %v565
  %v1085 = vunpack.c.l.b16 %v566
  %v1086 = vunpack.c.l.b16 %v567
  %v1087 = vunpack.c.l.b16 %v568
  %v1088 = vunpack.c.l.b16 %v569
  %v1089 = vunpack.c.l.b16 %v570
  %v1090 = vunpack.c.l.b16 %v571
  %v1091 = vunpack.c.l.b16 %v572
  %v1092 = vunpack.c.l.b16 %v573
  %v1093 = vunpack.c.l.b16 %v574
  %v1094 = vunpack.c.l.b16 %v575
  %v1095 = vunpack.c.l.b16 %v576
  %v1096 = vunpack.c.l.b16 %v577
  %v1097 = vunpack.c.l.b16 %v578
  %v1098 = vunpack.c.l.b16 %v579
  %v1099 = vunpack.c.l.b16 %v580
  %v1100 = vunpack.c.l.b16 %v581
  %v1101 = vunpack.c.l.b16 %v582
  %v1102 = vunpack.c.l.b16 %v583
  %v1103 = vunpack.c.l.b16 %v584
  %v1104 = vunpack.c.l.b16 %v585
  %v1105 = vunpack.c.l.b16 %v586
  %v1106 = vunpack.c.l.b16 %v587
  %v1107 = vunpack.c.l.b16 %v588
  %v1108 = vunpack.c.l.b16 %v589
  %v1109 = vunpack.c.l.b16 %v590
  %v1110 = vunpack.c.l.b16 %v591
  %v1111 = vunpack.c.l.b16 %v592
  %v1112 = vunpack.c.l.b16 %v593
  %v1113 = vunpack.c.l.b16 %v594
  %v1114 = vunpack.c.l.b16 %v595
  %v1115 = vunpack.c.l.b16 %v596
  %v1116 = vunpack.c.l.b16 %v597
  %v1117 = vunpack.c.l.b16 %v598
  %v1118 = vunpack.c.l.b16 %v599
  %v1119 = vunpack.c.l.b16 %v600
  %v1120 = vunpack.c.l.b16 %v601
  %v1121 = vunpack.c.l.b16 %v602
  %v1122 = vunpack.c.l.b16 %v603
  %v1123 = vunpack.c.l.b16 %v604
  %v1124 = vunpack.c.l.b16 %v605
  %v1125 = vunpack.c.l.b16 %v606
  %v1126 = vunpack.c.l.b16 %v607
  %v1127 = vunpack.c.l.b16 %v608
  %v1128 = vunpack.c.l.b16 %v609
  %v1129 = vunpack.c.l.b16 %v610
  %v1130 = vunpack.c.l.b16 %v611
  %v1131 = vunpack.c.l.b16 %v612
  %v1132 = vpack.c.b16 %v877, %v876
  %v1133 = vpack.c.b16 %v879, %v878
  %v1134 = vpack.c.b16 %v881, %v880
  %v1135 = vpack.c.b16 %v883, %v882
  %v1136 = vpack.c.b16 %v885, %v884
  %v1137 = vpack.c.b16 %v887, %v886
  %v1138 = vpack.c.b16 %v889, %v888
  %v1139 = vpack.c.b16 %v891, %v890
  %v1140 = vpack.c.b16 %v893, %v892
  %v1141 = vpack.c.b16 %v895, %v894
  %v1142 = vpack.c.b16 %v897, %v896
  %v1143 = vpack.c.b16 %v899, %v898
  %v1144 = vpack.c.b16 %v901, %v900
  %v1145 = vpack.c.b16 %v903, %v902
  %v1146 = vpack.c.b16 %v905, %v904
  %v1147 = vpack.c.b16 %v907, %v906
  %v1148 = vpack.c.b16 %v909, %v908
  %v1149 = vpack.c.b16 %v911, %v910
  %v1150 = vpack.c.b16 %v913, %v912
  %v1151 = vpack.c.b16 %v915, %v914
  %v1152 = vpack.c.b16 %v917, %v916
  %v1153 = vpack.c.b16 %v919, %v918
  %v1154 = vpack.c.b16 %v921, %v920
  %v1155 = vpack.c.b16 %v923, %v922
  %v1156 = vpack.c.b16 %v925, %v924
  %v1157 = vpack.c.b16 %v927, %v926
  %v1158 = vpack.c.b16 %v929, %v928
  %v1159 = vpack.c.b16 %v931, %v930
  %v1160 = vpack.c.b16 %v933, %v932
  %v1161 = vpack.c.b16 %v935, %v934
  %v1162 = vpack.c.b16 %v937, %v936
  %v1163 = vpack.c.b16 %v939, %v938
  %v1164 = vpack.c.b16 %v941, %v940
  %v1165 = vpack.c.b16 %v943, %v942
  %v1166 = vpack.c.b16 %v945, %v944
  %v1167 = vpack.c.b16 %v947, %v946
  %v1168 = vpack.c.b16 %v949, %v948
  %v1169 = vpack.c.b16 %v951, %v950
  %v1170 = vpack.c.b16 %v953, %v952
  %v1171 = vpack.c.b16 %v955, %v954
  %v1172 = vpack.c.b16 %v957, %v956
  %v1173 = vpack.c.b16 %v959, %v958
  %v1174 = vpack.c.b16 %v961, %v960
  %v1175 = vpack.c.b16 %v963, %v962
  %v1176 = vpack.c.b16 %v965, %v964
  %v1177 = vpack.c.b16 %v967, %v966
  %v1178 = vpack.c.b16 %v969, %v968
  %v1179 = vpack.c.b16 %v971, %v970
  %v1180 = vpack.c.b16 %v973, %v972
  %v1181 = vpack.c.b16 %v975, %v974
  %v1182 = vpack.c.b16 %v977, %v976
  %v1183 = vpack.c.b16 %v979, %v978
  %v1184 = vpack.c.b16 %v981, %v980
  %v1185 = vpack.c.b16 %v983, %v982
  %v1186 = vpack.c.b16 %v985, %v984
  %v1187 = vpack.c.b16 %v987, %v986
  %v1188 = vpack.c.b16 %v989, %v988
  %v1189 = vpack.c.b16 %v991, %v990
  %v1190 = vpack.c.b16 %v993, %v992
  %v1191 = vpack.c.b16 %v995, %v994
  %v1192 = vpack.c.b16 %v997, %v996
  %v1193 = vpack.c.b16 %v999, %v998
  %v1194 = vpack.c.b16 %v1001, %v1000
  %v1195 = vpack.c.b16 %v1003, %v1002
  %v1196 = vpack.c.b16 %v1005, %v1004
  %v1197 = vpack.c.b16 %v1007, %v1006
  %v1198 = vpack.c.b16 %v1009, %v1008
  %v1199 = vpack.c.b16 %v1011, %v1010
  %v1200 = vpack.c.b16 %v1013, %v1012
  %v1201 = vpack.c.b16 %v1015, %v1014
  %v1202 = vpack.c.b16 %v1017, %v1016
  %v1203 = vpack.c.b16 %v1019, %v1018
  %v1204 = vpack.c.b16 %v1021, %v1020
  %v1205 = vpack.c.b16 %v1023, %v1022
  %v1206 = vpack.c.b16 %v1025, %v1024
  %v1207 = vpack.c.b16 %v1027, %v1026
  %v1208 = vpack.c.b16 %v1029, %v1028
  %v1209 = vpack.c.b16 %v1031, %v1030
  %v1210 = vpack.c.b16 %v1033, %v1032
  %v1211 = vpack.c.b16 %v1035, %v1034
  %v1212 = vpack.c.b16 %v1037, %v1036
  %v1213 = vpack.c.b16 %v1039, %v1038
  %v1214 = vpack.c.b16 %v1041, %v1040
  %v1215 = vpack.c.b16 %v1043, %v1042
  %v1216 = vpack.c.b16 %v1045, %v1044
  %v1217 = vpack.c.b16 %v1047, %v1046
  %v1218 = vpack.c.b16 %v1049, %v1048
  %v1219 = vpack.c.b16 %v1051, %v1050
  %v1220 = vpack.c.b16 %v1053, %v1052
  %v1221 = vpack.c.b16 %v1055, %v1054
  %v1222 = vpack.c.b16 %v1057, %v1056
  %v1223 = vpack.c.b16 %v1059, %v1058
  %v1224 = vpack.c.b16 %v1061, %v1060
  %v1225 = vpack.c.b16 %v1063, %v1062
  %v1226 = vpack.c.b16 %v1065, %v1064
  %v1227 = vpack.c.b16 %v1067, %v1066
  %v1228 = vpack.c.b16 %v1069, %v1068
  %v1229 = vpack.c.b16 %v1071, %v1070
  %v1230 = vpack.c.b16 %v1073, %v1072
  %v1231 = vpack.c.b16 %v1075, %v1074
  %v1232 = vpack.c.b16 %v1077, %v1076
  %v1233 = vpack.c.b16 %v1079, %v1078
  %v1234 = vpack.c.b16 %v1081, %v1080
  %v1235 = vpack.c.b16 %v1083, %v1082
  %v1236 = vpack.c.b16 %v1085, %v1084
  %v1237 = vpack.c.b16 %v1087, %v1086
  %v1238 = vpack.c.b16 %v1089, %v1088
  %v1239 = vpack.c.b16 %v1091, %v1090
  %v1240 = vpack.c.b16 %v1093, %v1092
  %v1241 = vpack.c.b16 %v1095, %v1094
  %v1242 = vpack.c.b16 %v1097, %v1096
  %v1243 = vpack.c.b16 %v1099, %v1098
  %v1244 = vpack.c.b16 %v1101, %v1100
  %v1245 = vpack.c.b16 %v1103, %v1102
  %v1246 = vpack.c.b16 %v1105, %v1104
  %v1247 = vpack.c.b16 %v1107, %v1106
  %v1248 = vpack.c.b16 %v1109, %v1108
  %v1249 = vpack.c.b16 %v1111, %v1110
  %v1250 = vpack.c.b16 %v1113, %v1112
  %v1251 = vpack.c.b16 %v1115, %v1114
  %v1252 = vpack.c.b16 %v1117, %v1116
  %v1253 = vpack.c.b16 %v1119, %v1118
  %v1254 = vpack.c.b16 %v1121, %v1120
  %v1255 = vpack.c.b16 %v1123, %v1122
  %v1256 = vpack.c.b16 %v1125, %v1124
  %v1257 = vpack.c.b16 %v1127, %v1126
  %v1258 = vpack.c.b16 %v1129, %v1128
  %v1259 = vpack.c.b16 %v1131, %v1130
  %1388 = vmatprep.subr.bf16.mxu0 0
  %1389 = vmatpush1.bf16.msra.mxu0 %v1132
  %1390 = vmatprep.subr.bf16.mxu0 0
  %1391 = vmatpush1.bf16.msra.mxu0 %v1133
  %1392 = vmatprep.subr.bf16.mxu0 0
  %1393 = vmatpush1.bf16.msra.mxu0 %v1134
  %1394 = vmatprep.subr.bf16.mxu0 0
  %1395 = vmatpush1.bf16.msra.mxu0 %v1135
  %1396 = vmatprep.subr.bf16.mxu0 0
  %1397 = vmatpush1.bf16.msra.mxu0 %v1136
  %1398 = vmatprep.subr.bf16.mxu0 0
  %1399 = vmatpush1.bf16.msra.mxu0 %v1137
  %1400 = vmatprep.subr.bf16.mxu0 0
  %1401 = vmatpush1.bf16.msra.mxu0 %v1138
  %1402 = vmatprep.subr.bf16.mxu0 0
  %1403 = vmatpush1.bf16.msra.mxu0 %v1139
  %1404 = vmatprep.subr.bf16.mxu0 0
  %1405 = vmatpush1.bf16.msra.mxu0 %v1140
  %1406 = vmatprep.subr.bf16.mxu0 0
  %1407 = vmatpush1.bf16.msra.mxu0 %v1141
  %1408 = vmatprep.subr.bf16.mxu0 0
  %1409 = vmatpush1.bf16.msra.mxu0 %v1142
  %1410 = vmatprep.subr.bf16.mxu0 0
  %1411 = vmatpush1.bf16.msra.mxu0 %v1143
  %1412 = vmatprep.subr.bf16.mxu0 0
  %1413 = vmatpush1.bf16.msra.mxu0 %v1144
  %1414 = vmatprep.subr.bf16.mxu0 0
  %1415 = vmatpush1.bf16.msra.mxu0 %v1145
  %1416 = vmatprep.subr.bf16.mxu0 0
  %1417 = vmatpush1.bf16.msra.mxu0 %v1146
  %1418 = vmatprep.subr.bf16.mxu0 0
  %1419 = vmatpush1.bf16.msra.mxu0 %v1147
  %1420 = vmatprep.mubr.bf16.mxu0 %v246
  %1421 = vmatmul.mubr.bf16.gmra.mrb[0].mxu0 %v245
  %v1422 = vpop.f32.mrb[0].mxu0
  %v1423 = vadd.f32 %v618, %v1422
  %v1424 = vpop.f32.mrb[0].mxu0
  %v1425 = vpop.f32.mrb[0].mxu0
  %v1426 = vadd.f32 %v618, %v1425
  %v1427 = vpop.f32.mrb[0].mxu0
  %1428 = vmatprep.mubr.bf16.mxu0 %v262
  %1429 = vmatmul.mubr.bf16.gmra.mrb[0].mxu0 %v261
  %v1430 = vpop.f32.mrb[0].mxu0
  %v1431 = vadd.f32 %v618, %v1430
  %v1432 = vpop.f32.mrb[0].mxu0
  %v1433 = vpop.f32.mrb[0].mxu0
  %v1434 = vadd.f32 %v618, %v1433
  %v1435 = vpop.f32.mrb[0].mxu0
  %1436 = vmatprep.mubr.bf16.mxu0 %v278
  %1437 = vmatmul.mubr.bf16.gmra.mrb[0].mxu0 %v277
  %v1438 = vpop.f32.mrb[0].mxu0
  %v1439 = vadd.f32 %v618, %v1438
  %v1440 = vpop.f32.mrb[0].mxu0
  %v1441 = vpop.f32.mrb[0].mxu0
  %v1442 = vadd.f32 %v618, %v1441
  %v1443 = vpop.f32.mrb[0].mxu0
  %1444 = vmatprep.mubr.bf16.mxu0 %v294
  %1445 = vmatmul.mubr.bf16.gmra.mrb[0].mxu0 %v293
  %v1446 = vpop.f32.mrb[0].mxu0
  %v1447 = vadd.f32 %v618, %v1446
  %v1448 = vpop.f32.mrb[0].mxu0
  %v1449 = vpop.f32.mrb[0].mxu0
  %v1450 = vadd.f32 %v618, %v1449
  %v1451 = vpop.f32.mrb[0].mxu0
  %1452 = vmatprep.mubr.bf16.mxu0 %v310
  %1453 = vmatmul.mubr.bf16.gmra.mrb[0].mxu0 %v309
  %v1454 = vpop.f32.mrb[0].mxu0
  %v1455 = vadd.f32 %v618, %v1454
  %v1456 = vpop.f32.mrb[0].mxu0
  %v1457 = vpop.f32.mrb[0].mxu0
  %v1458 = vadd.f32 %v618, %v1457
  %v1459 = vpop.f32.mrb[0].mxu0
  %1460 = vmatprep.mubr.bf16.mxu0 %v326
  %1461 = vmatmul.mubr.bf16.gmra.mrb[0].mxu0 %v325
  %v1462 = vpop.f32.mrb[0].mxu0
  %v1463 = vadd.f32 %v618, %v1462
  %v1464 = vpop.f32.mrb[0].mxu0
  %v1465 = vpop.f32.mrb[0].mxu0
  %v1466 = vadd.f32 %v618, %v1465
  %v1467 = vpop.f32.mrb[0].mxu0
  %1468 = vmatprep.mubr.bf16.mxu0 %v342
  %1469 = vmatmul.mubr.bf16.gmra.mrb[0].mxu0 %v341
  %v1470 = vpop.f32.mrb[0].mxu0
  %v1471 = vadd.f32 %v618, %v1470
  %v1472 = vpop.f32.mrb[0].mxu0
  %v1473 = vpop.f32.mrb[0].mxu0
  %v1474 = vadd.f32 %v618, %v1473
  %v1475 = vpop.f32.mrb[0].mxu0
  %1476 = vdwg.mxu0
  %1477 = vmatprep.subr.bf16.mxu0 0
  %1478 = vmatpush1.bf16.msra.mxu0 %v1148
  %1479 = vmatprep.subr.bf16.mxu0 0
  %1480 = vmatpush1.bf16.msra.mxu0 %v1149
  %1481 = vmatprep.subr.bf16.mxu0 0
  %1482 = vmatpush1.bf16.msra.mxu0 %v1150
  %1483 = vmatprep.subr.bf16.mxu0 0
  %1484 = vmatpush1.bf16.msra.mxu0 %v1151
  %1485 = vmatprep.subr.bf16.mxu0 0
  %1486 = vmatpush1.bf16.msra.mxu0 %v1152
  %1487 = vmatprep.subr.bf16.mxu0 0
  %1488 = vmatpush1.bf16.msra.mxu0 %v1153
  %1489 = vmatprep.subr.bf16.mxu0 0
  %1490 = vmatpush1.bf16.msra.mxu0 %v1154
  %1491 = vmatprep.subr.bf16.mxu0 0
  %1492 = vmatpush1.bf16.msra.mxu0 %v1155
  %1493 = vmatprep.subr.bf16.mxu0 0
  %1494 = vmatpush1.bf16.msra.mxu0 %v1156
  %1495 = vmatprep.subr.bf16.mxu0 0
  %1496 = vmatpush1.bf16.msra.mxu0 %v1157
  %1497 = vmatprep.subr.bf16.mxu0 0
  %1498 = vmatpush1.bf16.msra.mxu0 %v1158
  %1499 = vmatprep.subr.bf16.mxu0 0
  %1500 = vmatpush1.bf16.msra.mxu0 %v1159
  %1501 = vmatprep.subr.bf16.mxu0 0
  %1502 = vmatpush1.bf16.msra.mxu0 %v1160
  %1503 = vmatprep.subr.bf16.mxu0 0
  %1504 = vmatpush1.bf16.msra.mxu0 %v1161
  %1505 = vmatprep.subr.bf16.mxu0 0
  %1506 = vmatpush1.bf16.msra.mxu0 %v1162
  %1507 = vmatprep.subr.bf16.mxu0 0
  %1508 = vmatpush1.bf16.msra.mxu0 %v1163
  %1509 = vmatprep.mubr.bf16.mxu0 %v248
  %1510 = vmatmul.mubr.bf16.gmra.mrb[0].mxu0 %v247
  %v1511 = vpop.f32.mrb[0].mxu0
  %v1512 = vadd.f32 %v1423, %v1511
  %v1513 = vpop.f32.mrb[0].mxu0
  %v1514 = vpop.f32.mrb[0].mxu0
  %v1515 = vadd.f32 %v1426, %v1514
  %v1516 = vpop.f32.mrb[0].mxu0
  %1517 = vmatprep.mubr.bf16.mxu0 %v264
  %1518 = vmatmul.mubr.bf16.gmra.mrb[0].mxu0 %v263
  %v1519 = vpop.f32.mrb[0].mxu0
  %v1520 = vadd.f32 %v1431, %v1519
  %v1521 = vpop.f32.mrb[0].mxu0
  %v1522 = vpop.f32.mrb[0].mxu0
  %v1523 = vadd.f32 %v1434, %v1522
  %v1524 = vpop.f32.mrb[0].mxu0
  %1525 = vmatprep.mubr.bf16.mxu0 %v280
  %1526 = vmatmul.mubr.bf16.gmra.mrb[0].mxu0 %v279
  %v1527 = vpop.f32.mrb[0].mxu0
  %v1528 = vadd.f32 %v1439, %v1527
  %v1529 = vpop.f32.mrb[0].mxu0
  %v1530 = vpop.f32.mrb[0].mxu0
  %v1531 = vadd.f32 %v1442, %v1530
  %v1532 = vpop.f32.mrb[0].mxu0
  %1533 = vmatprep.mubr.bf16.mxu0 %v296
  %1534 = vmatmul.mubr.bf16.gmra.mrb[0].mxu0 %v295
  %v1535 = vpop.f32.mrb[0].mxu0
  %v1536 = vadd.f32 %v1447, %v1535
  %v1537 = vpop.f32.mrb[0].mxu0
  %v1538 = vpop.f32.mrb[0].mxu0
  %v1539 = vadd.f32 %v1450, %v1538
  %v1540 = vpop.f32.mrb[0].mxu0
  %1541 = vmatprep.mubr.bf16.mxu0 %v312
  %1542 = vmatmul.mubr.bf16.gmra.mrb[0].mxu0 %v311
  %v1543 = vpop.f32.mrb[0].mxu0
  %v1544 = vadd.f32 %v1455, %v1543
  %v1545 = vpop.f32.mrb[0].mxu0
  %v1546 = vpop.f32.mrb[0].mxu0
  %v1547 = vadd.f32 %v1458, %v1546
  %v1548 = vpop.f32.mrb[0].mxu0
  %1549 = vmatprep.mubr.bf16.mxu0 %v328
  %1550 = vmatmul.mubr.bf16.gmra.mrb[0].mxu0 %v327
  %v1551 = vpop.f32.mrb[0].mxu0
  %v1552 = vadd.f32 %v1463, %v1551
  %v1553 = vpop.f32.mrb[0].mxu0
  %v1554 = vpop.f32.mrb[0].mxu0
  %v1555 = vadd.f32 %v1466, %v1554
  %v1556 = vpop.f32.mrb[0].mxu0
  %1557 = vmatprep.mubr.bf16.mxu0 %v344
  %1558 = vmatmul.mubr.bf16.gmra.mrb[0].mxu0 %v343
  %v1559 = vpop.f32.mrb[0].mxu0
  %v1560 = vadd.f32 %v1471, %v1559
  %v1561 = vpop.f32.mrb[0].mxu0
  %v1562 = vpop.f32.mrb[0].mxu0
  %v1563 = vadd.f32 %v1474, %v1562
  %v1564 = vpop.f32.mrb[0].mxu0
  %1565 = vdwg.mxu0
  %1566 = vmatprep.subr.bf16.mxu0 0
  %1567 = vmatpush1.bf16.msra.mxu0 %v1164
  %1568 = vmatprep.subr.bf16.mxu0 0
  %1569 = vmatpush1.bf16.msra.mxu0 %v1165
  %1570 = vmatprep.subr.bf16.mxu0 0
  %1571 = vmatpush1.bf16.msra.mxu0 %v1166
  %1572 = vmatprep.subr.bf16.mxu0 0
  %1573 = vmatpush1.bf16.msra.mxu0 %v1167
  %1574 = vmatprep.subr.bf16.mxu0 0
  %1575 = vmatpush1.bf16.msra.mxu0 %v1168
  %1576 = vmatprep.subr.bf16.mxu0 0
  %1577 = vmatpush1.bf16.msra.mxu0 %v1169
  %1578 = vmatprep.subr.bf16.mxu0 0
  %1579 = vmatpush1.bf16.msra.mxu0 %v1170
  %1580 = vmatprep.subr.bf16.mxu0 0
  %1581 = vmatpush1.bf16.msra.mxu0 %v1171
  %1582 = vmatprep.subr.bf16.mxu0 0
  %1583 = vmatpush1.bf16.msra.mxu0 %v1172
  %1584 = vmatprep.subr.bf16.mxu0 0
  %1585 = vmatpush1.bf16.msra.mxu0 %v1173
  %1586 = vmatprep.subr.bf16.mxu0 0
  %1587 = vmatpush1.bf16.msra.mxu0 %v1174
  %1588 = vmatprep.subr.bf16.mxu0 0
  %1589 = vmatpush1.bf16.msra.mxu0 %v1175
  %1590 = vmatprep.subr.bf16.mxu0 0
  %1591 = vmatpush1.bf16.msra.mxu0 %v1176
  %1592 = vmatprep.subr.bf16.mxu0 0
  %1593 = vmatpush1.bf16.msra.mxu0 %v1177
  %1594 = vmatprep.subr.bf16.mxu0 0
  %1595 = vmatpush1.bf16.msra.mxu0 %v1178
  %1596 = vmatprep.subr.bf16.mxu0 0
  %1597 = vmatpush1.bf16.msra.mxu0 %v1179
  %1598 = vmatprep.mubr.bf16.mxu0 %v250
  %1599 = vmatmul.mubr.bf16.gmra.mrb[0].mxu0 %v249
  %v1600 = vpop.f32.mrb[0].mxu0
  %v1601 = vadd.f32 %v1512, %v1600
  %v1602 = vpop.f32.mrb[0].mxu0
  %v1603 = vpop.f32.mrb[0].mxu0
  %v1604 = vadd.f32 %v1515, %v1603
  %v1605 = vpop.f32.mrb[0].mxu0
  %1606 = vmatprep.mubr.bf16.mxu0 %v266
  %1607 = vmatmul.mubr.bf16.gmra.mrb[0].mxu0 %v265
  %v1608 = vpop.f32.mrb[0].mxu0
  %v1609 = vadd.f32 %v1520, %v1608
  %v1610 = vpop.f32.mrb[0].mxu0
  %v1611 = vpop.f32.mrb[0].mxu0
  %v1612 = vadd.f32 %v1523, %v1611
  %v1613 = vpop.f32.mrb[0].mxu0
  %1614 = vmatprep.mubr.bf16.mxu0 %v282
  %1615 = vmatmul.mubr.bf16.gmra.mrb[0].mxu0 %v281
  %v1616 = vpop.f32.mrb[0].mxu0
  %v1617 = vadd.f32 %v1528, %v1616
  %v1618 = vpop.f32.mrb[0].mxu0
  %v1619 = vpop.f32.mrb[0].mxu0
  %v1620 = vadd.f32 %v1531, %v1619
  %v1621 = vpop.f32.mrb[0].mxu0
  %1622 = vmatprep.mubr.bf16.mxu0 %v298
  %1623 = vmatmul.mubr.bf16.gmra.mrb[0].mxu0 %v297
  %v1624 = vpop.f32.mrb[0].mxu0
  %v1625 = vadd.f32 %v1536, %v1624
  %v1626 = vpop.f32.mrb[0].mxu0
  %v1627 = vpop.f32.mrb[0].mxu0
  %v1628 = vadd.f32 %v1539, %v1627
  %v1629 = vpop.f32.mrb[0].mxu0
  %1630 = vmatprep.mubr.bf16.mxu0 %v314
  %1631 = vmatmul.mubr.bf16.gmra.mrb[0].mxu0 %v313
  %v1632 = vpop.f32.mrb[0].mxu0
  %v1633 = vadd.f32 %v1544, %v1632
  %v1634 = vpop.f32.mrb[0].mxu0
  %v1635 = vpop.f32.mrb[0].mxu0
  %v1636 = vadd.f32 %v1547, %v1635
  %v1637 = vpop.f32.mrb[0].mxu0
  %1638 = vmatprep.mubr.bf16.mxu0 %v330
  %1639 = vmatmul.mubr.bf16.gmra.mrb[0].mxu0 %v329
  %v1640 = vpop.f32.mrb[0].mxu0
  %v1641 = vadd.f32 %v1552, %v1640
  %v1642 = vpop.f32.mrb[0].mxu0
  %v1643 = vpop.f32.mrb[0].mxu0
  %v1644 = vadd.f32 %v1555, %v1643
  %v1645 = vpop.f32.mrb[0].mxu0
  %1646 = vmatprep.mubr.bf16.mxu0 %v346
  %1647 = vmatmul.mubr.bf16.gmra.mrb[0].mxu0 %v345
  %v1648 = vpop.f32.mrb[0].mxu0
  %v1649 = vadd.f32 %v1560, %v1648
  %v1650 = vpop.f32.mrb[0].mxu0
  %v1651 = vpop.f32.mrb[0].mxu0
  %v1652 = vadd.f32 %v1563, %v1651
  %v1653 = vpop.f32.mrb[0].mxu0
  %1654 = vdwg.mxu0
  %1655 = vmatprep.subr.bf16.mxu0 0
  %1656 = vmatpush1.bf16.msra.mxu0 %v1180
  %1657 = vmatprep.subr.bf16.mxu0 0
  %1658 = vmatpush1.bf16.msra.mxu0 %v1181
  %1659 = vmatprep.subr.bf16.mxu0 0
  %1660 = vmatpush1.bf16.msra.mxu0 %v1182
  %1661 = vmatprep.subr.bf16.mxu0 0
  %1662 = vmatpush1.bf16.msra.mxu0 %v1183
  %1663 = vmatprep.subr.bf16.mxu0 0
  %1664 = vmatpush1.bf16.msra.mxu0 %v1184
  %1665 = vmatprep.subr.bf16.mxu0 0
  %1666 = vmatpush1.bf16.msra.mxu0 %v1185
  %1667 = vmatprep.subr.bf16.mxu0 0
  %1668 = vmatpush1.bf16.msra.mxu0 %v1186
  %1669 = vmatprep.subr.bf16.mxu0 0
  %1670 = vmatpush1.bf16.msra.mxu0 %v1187
  %1671 = vmatprep.subr.bf16.mxu0 0
  %1672 = vmatpush1.bf16.msra.mxu0 %v1188
  %1673 = vmatprep.subr.bf16.mxu0 0
  %1674 = vmatpush1.bf16.msra.mxu0 %v1189
  %1675 = vmatprep.subr.bf16.mxu0 0
  %1676 = vmatpush1.bf16.msra.mxu0 %v1190
  %1677 = vmatprep.subr.bf16.mxu0 0
  %1678 = vmatpush1.bf16.msra.mxu0 %v1191
  %1679 = vmatprep.subr.bf16.mxu0 0
  %1680 = vmatpush1.bf16.msra.mxu0 %v1192
  %1681 = vmatprep.subr.bf16.mxu0 0
  %1682 = vmatpush1.bf16.msra.mxu0 %v1193
  %1683 = vmatprep.subr.bf16.mxu0 0
  %1684 = vmatpush1.bf16.msra.mxu0 %v1194
  %1685 = vmatprep.subr.bf16.mxu0 0
  %1686 = vmatpush1.bf16.msra.mxu0 %v1195
  %1687 = vmatprep.mubr.bf16.mxu0 %v252
  %1688 = vmatmul.mubr.bf16.gmra.mrb[0].mxu0 %v251
  %v1689 = vpop.f32.mrb[0].mxu0
  %v1690 = vadd.f32 %v1601, %v1689
  %v1691 = vpop.f32.mrb[0].mxu0
  %v1692 = vpop.f32.mrb[0].mxu0
  %v1693 = vadd.f32 %v1604, %v1692
  %v1694 = vpop.f32.mrb[0].mxu0
  %1695 = vmatprep.mubr.bf16.mxu0 %v268
  %1696 = vmatmul.mubr.bf16.gmra.mrb[0].mxu0 %v267
  %v1697 = vpop.f32.mrb[0].mxu0
  %v1698 = vadd.f32 %v1609, %v1697
  %v1699 = vpop.f32.mrb[0].mxu0
  %v1700 = vpop.f32.mrb[0].mxu0
  %v1701 = vadd.f32 %v1612, %v1700
  %v1702 = vpop.f32.mrb[0].mxu0
  %1703 = vmatprep.mubr.bf16.mxu0 %v284
  %1704 = vmatmul.mubr.bf16.gmra.mrb[0].mxu0 %v283
  %v1705 = vpop.f32.mrb[0].mxu0
  %v1706 = vadd.f32 %v1617, %v1705
  %v1707 = vpop.f32.mrb[0].mxu0
  %v1708 = vpop.f32.mrb[0].mxu0
  %v1709 = vadd.f32 %v1620, %v1708
  %v1710 = vpop.f32.mrb[0].mxu0
  %1711 = vmatprep.mubr.bf16.mxu0 %v300
  %1712 = vmatmul.mubr.bf16.gmra.mrb[0].mxu0 %v299
  %v1713 = vpop.f32.mrb[0].mxu0
  %v1714 = vadd.f32 %v1625, %v1713
  %v1715 = vpop.f32.mrb[0].mxu0
  %v1716 = vpop.f32.mrb[0].mxu0
  %v1717 = vadd.f32 %v1628, %v1716
  %v1718 = vpop.f32.mrb[0].mxu0
  %1719 = vmatprep.mubr.bf16.mxu0 %v316
  %1720 = vmatmul.mubr.bf16.gmra.mrb[0].mxu0 %v315
  %v1721 = vpop.f32.mrb[0].mxu0
  %v1722 = vadd.f32 %v1633, %v1721
  %v1723 = vpop.f32.mrb[0].mxu0
  %v1724 = vpop.f32.mrb[0].mxu0
  %v1725 = vadd.f32 %v1636, %v1724
  %v1726 = vpop.f32.mrb[0].mxu0
  %1727 = vmatprep.mubr.bf16.mxu0 %v332
  %1728 = vmatmul.mubr.bf16.gmra.mrb[0].mxu0 %v331
  %v1729 = vpop.f32.mrb[0].mxu0
  %v1730 = vadd.f32 %v1641, %v1729
  %v1731 = vpop.f32.mrb[0].mxu0
  %v1732 = vpop.f32.mrb[0].mxu0
  %v1733 = vadd.f32 %v1644, %v1732
  %v1734 = vpop.f32.mrb[0].mxu0
  %1735 = vmatprep.mubr.bf16.mxu0 %v348
  %1736 = vmatmul.mubr.bf16.gmra.mrb[0].mxu0 %v347
  %v1737 = vpop.f32.mrb[0].mxu0
  %v1738 = vadd.f32 %v1649, %v1737
  %v1739 = vpop.f32.mrb[0].mxu0
  %v1740 = vpop.f32.mrb[0].mxu0
  %v1741 = vadd.f32 %v1652, %v1740
  %v1742 = vpop.f32.mrb[0].mxu0
  %1743 = vdwg.mxu0
  %1744 = vmatprep.subr.bf16.mxu0 0
  %1745 = vmatpush1.bf16.msra.mxu0 %v1196
  %1746 = vmatprep.subr.bf16.mxu0 0
  %1747 = vmatpush1.bf16.msra.mxu0 %v1197
  %1748 = vmatprep.subr.bf16.mxu0 0
  %1749 = vmatpush1.bf16.msra.mxu0 %v1198
  %1750 = vmatprep.subr.bf16.mxu0 0
  %1751 = vmatpush1.bf16.msra.mxu0 %v1199
  %1752 = vmatprep.subr.bf16.mxu0 0
  %1753 = vmatpush1.bf16.msra.mxu0 %v1200
  %1754 = vmatprep.subr.bf16.mxu0 0
  %1755 = vmatpush1.bf16.msra.mxu0 %v1201
  %1756 = vmatprep.subr.bf16.mxu0 0
  %1757 = vmatpush1.bf16.msra.mxu0 %v1202
  %1758 = vmatprep.subr.bf16.mxu0 0
  %1759 = vmatpush1.bf16.msra.mxu0 %v1203
  %1760 = vmatprep.subr.bf16.mxu0 0
  %1761 = vmatpush1.bf16.msra.mxu0 %v1204
  %1762 = vmatprep.subr.bf16.mxu0 0
  %1763 = vmatpush1.bf16.msra.mxu0 %v1205
  %1764 = vmatprep.subr.bf16.mxu0 0
  %1765 = vmatpush1.bf16.msra.mxu0 %v1206
  %1766 = vmatprep.subr.bf16.mxu0 0
  %1767 = vmatpush1.bf16.msra.mxu0 %v1207
  %1768 = vmatprep.subr.bf16.mxu0 0
  %1769 = vmatpush1.bf16.msra.mxu0 %v1208
  %1770 = vmatprep.subr.bf16.mxu0 0
  %1771 = vmatpush1.bf16.msra.mxu0 %v1209
  %1772 = vmatprep.subr.bf16.mxu0 0
  %1773 = vmatpush1.bf16.msra.mxu0 %v1210
  %1774 = vmatprep.subr.bf16.mxu0 0
  %1775 = vmatpush1.bf16.msra.mxu0 %v1211
  %1776 = vmatprep.mubr.bf16.mxu0 %v254
  %1777 = vmatmul.mubr.bf16.gmra.mrb[0].mxu0 %v253
  %v1778 = vpop.f32.mrb[0].mxu0
  %v1779 = vadd.f32 %v1690, %v1778
  %v1780 = vpop.f32.mrb[0].mxu0
  %v1781 = vpop.f32.mrb[0].mxu0
  %v1782 = vadd.f32 %v1693, %v1781
  %v1783 = vpop.f32.mrb[0].mxu0
  %1784 = vmatprep.mubr.bf16.mxu0 %v270
  %1785 = vmatmul.mubr.bf16.gmra.mrb[0].mxu0 %v269
  %v1786 = vpop.f32.mrb[0].mxu0
  %v1787 = vadd.f32 %v1698, %v1786
  %v1788 = vpop.f32.mrb[0].mxu0
  %v1789 = vpop.f32.mrb[0].mxu0
  %v1790 = vadd.f32 %v1701, %v1789
  %v1791 = vpop.f32.mrb[0].mxu0
  %1792 = vmatprep.mubr.bf16.mxu0 %v286
  %1793 = vmatmul.mubr.bf16.gmra.mrb[0].mxu0 %v285
  %v1794 = vpop.f32.mrb[0].mxu0
  %v1795 = vadd.f32 %v1706, %v1794
  %v1796 = vpop.f32.mrb[0].mxu0
  %v1797 = vpop.f32.mrb[0].mxu0
  %v1798 = vadd.f32 %v1709, %v1797
  %v1799 = vpop.f32.mrb[0].mxu0
  %1800 = vmatprep.mubr.bf16.mxu0 %v302
  %1801 = vmatmul.mubr.bf16.gmra.mrb[0].mxu0 %v301
  %v1802 = vpop.f32.mrb[0].mxu0
  %v1803 = vadd.f32 %v1714, %v1802
  %v1804 = vpop.f32.mrb[0].mxu0
  %v1805 = vpop.f32.mrb[0].mxu0
  %v1806 = vadd.f32 %v1717, %v1805
  %v1807 = vpop.f32.mrb[0].mxu0
  %1808 = vmatprep.mubr.bf16.mxu0 %v318
  %1809 = vmatmul.mubr.bf16.gmra.mrb[0].mxu0 %v317
  %v1810 = vpop.f32.mrb[0].mxu0
  %v1811 = vadd.f32 %v1722, %v1810
  %v1812 = vpop.f32.mrb[0].mxu0
  %v1813 = vpop.f32.mrb[0].mxu0
  %v1814 = vadd.f32 %v1725, %v1813
  %v1815 = vpop.f32.mrb[0].mxu0
  %1816 = vmatprep.mubr.bf16.mxu0 %v334
  %1817 = vmatmul.mubr.bf16.gmra.mrb[0].mxu0 %v333
  %v1818 = vpop.f32.mrb[0].mxu0
  %v1819 = vadd.f32 %v1730, %v1818
  %v1820 = vpop.f32.mrb[0].mxu0
  %v1821 = vpop.f32.mrb[0].mxu0
  %v1822 = vadd.f32 %v1733, %v1821
  %v1823 = vpop.f32.mrb[0].mxu0
  %1824 = vmatprep.mubr.bf16.mxu0 %v350
  %1825 = vmatmul.mubr.bf16.gmra.mrb[0].mxu0 %v349
  %v1826 = vpop.f32.mrb[0].mxu0
  %v1827 = vadd.f32 %v1738, %v1826
  %v1828 = vpop.f32.mrb[0].mxu0
  %v1829 = vpop.f32.mrb[0].mxu0
  %v1830 = vadd.f32 %v1741, %v1829
  %v1831 = vpop.f32.mrb[0].mxu0
  %1832 = vdwg.mxu0
  %1833 = vmatprep.subr.bf16.mxu0 0
  %1834 = vmatpush1.bf16.msra.mxu0 %v1212
  %1835 = vmatprep.subr.bf16.mxu0 0
  %1836 = vmatpush1.bf16.msra.mxu0 %v1213
  %1837 = vmatprep.subr.bf16.mxu0 0
  %1838 = vmatpush1.bf16.msra.mxu0 %v1214
  %1839 = vmatprep.subr.bf16.mxu0 0
  %1840 = vmatpush1.bf16.msra.mxu0 %v1215
  %1841 = vmatprep.subr.bf16.mxu0 0
  %1842 = vmatpush1.bf16.msra.mxu0 %v1216
  %1843 = vmatprep.subr.bf16.mxu0 0
  %1844 = vmatpush1.bf16.msra.mxu0 %v1217
  %1845 = vmatprep.subr.bf16.mxu0 0
  %1846 = vmatpush1.bf16.msra.mxu0 %v1218
  %1847 = vmatprep.subr.bf16.mxu0 0
  %1848 = vmatpush1.bf16.msra.mxu0 %v1219
  %1849 = vmatprep.subr.bf16.mxu0 0
  %1850 = vmatpush1.bf16.msra.mxu0 %v1220
  %1851 = vmatprep.subr.bf16.mxu0 0
  %1852 = vmatpush1.bf16.msra.mxu0 %v1221
  %1853 = vmatprep.subr.bf16.mxu0 0
  %1854 = vmatpush1.bf16.msra.mxu0 %v1222
  %1855 = vmatprep.subr.bf16.mxu0 0
  %1856 = vmatpush1.bf16.msra.mxu0 %v1223
  %1857 = vmatprep.subr.bf16.mxu0 0
  %1858 = vmatpush1.bf16.msra.mxu0 %v1224
  %1859 = vmatprep.subr.bf16.mxu0 0
  %1860 = vmatpush1.bf16.msra.mxu0 %v1225
  %1861 = vmatprep.subr.bf16.mxu0 0
  %1862 = vmatpush1.bf16.msra.mxu0 %v1226
  %1863 = vmatprep.subr.bf16.mxu0 0
  %1864 = vmatpush1.bf16.msra.mxu0 %v1227
  %1865 = vmatprep.mubr.bf16.mxu0 %v256
  %1866 = vmatmul.mubr.bf16.gmra.mrb[0].mxu0 %v255
  %v1867 = vpop.f32.mrb[0].mxu0
  %v1868 = vadd.f32 %v1779, %v1867
  %v1869 = vpop.f32.mrb[0].mxu0
  %v1870 = vpop.f32.mrb[0].mxu0
  %v1871 = vadd.f32 %v1782, %v1870
  %v1872 = vpop.f32.mrb[0].mxu0
  %1873 = vmatprep.mubr.bf16.mxu0 %v272
  %1874 = vmatmul.mubr.bf16.gmra.mrb[0].mxu0 %v271
  %v1875 = vpop.f32.mrb[0].mxu0
  %v1876 = vadd.f32 %v1787, %v1875
  %v1877 = vpop.f32.mrb[0].mxu0
  %v1878 = vpop.f32.mrb[0].mxu0
  %v1879 = vadd.f32 %v1790, %v1878
  %v1880 = vpop.f32.mrb[0].mxu0
  %1881 = vmatprep.mubr.bf16.mxu0 %v288
  %1882 = vmatmul.mubr.bf16.gmra.mrb[0].mxu0 %v287
  %v1883 = vpop.f32.mrb[0].mxu0
  %v1884 = vadd.f32 %v1795, %v1883
  %v1885 = vpop.f32.mrb[0].mxu0
  %v1886 = vpop.f32.mrb[0].mxu0
  %v1887 = vadd.f32 %v1798, %v1886
  %v1888 = vpop.f32.mrb[0].mxu0
  %1889 = vmatprep.mubr.bf16.mxu0 %v304
  %1890 = vmatmul.mubr.bf16.gmra.mrb[0].mxu0 %v303
  %v1891 = vpop.f32.mrb[0].mxu0
  %v1892 = vadd.f32 %v1803, %v1891
  %v1893 = vpop.f32.mrb[0].mxu0
  %v1894 = vpop.f32.mrb[0].mxu0
  %v1895 = vadd.f32 %v1806, %v1894
  %v1896 = vpop.f32.mrb[0].mxu0
  %1897 = vmatprep.mubr.bf16.mxu0 %v320
  %1898 = vmatmul.mubr.bf16.gmra.mrb[0].mxu0 %v319
  %v1899 = vpop.f32.mrb[0].mxu0
  %v1900 = vadd.f32 %v1811, %v1899
  %v1901 = vpop.f32.mrb[0].mxu0
  %v1902 = vpop.f32.mrb[0].mxu0
  %v1903 = vadd.f32 %v1814, %v1902
  %v1904 = vpop.f32.mrb[0].mxu0
  %1905 = vmatprep.mubr.bf16.mxu0 %v336
  %1906 = vmatmul.mubr.bf16.gmra.mrb[0].mxu0 %v335
  %v1907 = vpop.f32.mrb[0].mxu0
  %v1908 = vadd.f32 %v1819, %v1907
  %v1909 = vpop.f32.mrb[0].mxu0
  %v1910 = vpop.f32.mrb[0].mxu0
  %v1911 = vadd.f32 %v1822, %v1910
  %v1912 = vpop.f32.mrb[0].mxu0
  %1913 = vmatprep.mubr.bf16.mxu0 %v352
  %1914 = vmatmul.mubr.bf16.gmra.mrb[0].mxu0 %v351
  %v1915 = vpop.f32.mrb[0].mxu0
  %v1916 = vadd.f32 %v1827, %v1915
  %v1917 = vpop.f32.mrb[0].mxu0
  %v1918 = vpop.f32.mrb[0].mxu0
  %v1919 = vadd.f32 %v1830, %v1918
  %v1920 = vpop.f32.mrb[0].mxu0
  %1921 = vdwg.mxu0
  %1922 = vmatprep.subr.bf16.mxu0 0
  %1923 = vmatpush1.bf16.msra.mxu0 %v1228
  %1924 = vmatprep.subr.bf16.mxu0 0
  %1925 = vmatpush1.bf16.msra.mxu0 %v1229
  %1926 = vmatprep.subr.bf16.mxu0 0
  %1927 = vmatpush1.bf16.msra.mxu0 %v1230
  %1928 = vmatprep.subr.bf16.mxu0 0
  %1929 = vmatpush1.bf16.msra.mxu0 %v1231
  %1930 = vmatprep.subr.bf16.mxu0 0
  %1931 = vmatpush1.bf16.msra.mxu0 %v1232
  %1932 = vmatprep.subr.bf16.mxu0 0
  %1933 = vmatpush1.bf16.msra.mxu0 %v1233
  %1934 = vmatprep.subr.bf16.mxu0 0
  %1935 = vmatpush1.bf16.msra.mxu0 %v1234
  %1936 = vmatprep.subr.bf16.mxu0 0
  %1937 = vmatpush1.bf16.msra.mxu0 %v1235
  %1938 = vmatprep.subr.bf16.mxu0 0
  %1939 = vmatpush1.bf16.msra.mxu0 %v1236
  %1940 = vmatprep.subr.bf16.mxu0 0
  %1941 = vmatpush1.bf16.msra.mxu0 %v1237
  %1942 = vmatprep.subr.bf16.mxu0 0
  %1943 = vmatpush1.bf16.msra.mxu0 %v1238
  %1944 = vmatprep.subr.bf16.mxu0 0
  %1945 = vmatpush1.bf16.msra.mxu0 %v1239
  %1946 = vmatprep.subr.bf16.mxu0 0
  %1947 = vmatpush1.bf16.msra.mxu0 %v1240
  %1948 = vmatprep.subr.bf16.mxu0 0
  %1949 = vmatpush1.bf16.msra.mxu0 %v1241
  %1950 = vmatprep.subr.bf16.mxu0 0
  %1951 = vmatpush1.bf16.msra.mxu0 %v1242
  %1952 = vmatprep.subr.bf16.mxu0 0
  %1953 = vmatpush1.bf16.msra.mxu0 %v1243
  %1954 = vmatprep.mubr.bf16.mxu0 %v258
  %1955 = vmatmul.mubr.bf16.gmra.mrb[0].mxu0 %v257
  %v1956 = vpop.f32.mrb[0].mxu0
  %v1957 = vadd.f32 %v1868, %v1956
  %v1958 = vpop.f32.mrb[0].mxu0
  %v1959 = vpop.f32.mrb[0].mxu0
  %v1960 = vadd.f32 %v1871, %v1959
  %v1961 = vpop.f32.mrb[0].mxu0
  %1962 = vmatprep.mubr.bf16.mxu0 %v274
  %1963 = vmatmul.mubr.bf16.gmra.mrb[0].mxu0 %v273
  %v1964 = vpop.f32.mrb[0].mxu0
  %v1965 = vadd.f32 %v1876, %v1964
  %v1966 = vpop.f32.mrb[0].mxu0
  %v1967 = vpop.f32.mrb[0].mxu0
  %v1968 = vadd.f32 %v1879, %v1967
  %v1969 = vpop.f32.mrb[0].mxu0
  %1970 = vmatprep.mubr.bf16.mxu0 %v290
  %1971 = vmatmul.mubr.bf16.gmra.mrb[0].mxu0 %v289
  %v1972 = vpop.f32.mrb[0].mxu0
  %v1973 = vadd.f32 %v1884, %v1972
  %v1974 = vpop.f32.mrb[0].mxu0
  %v1975 = vpop.f32.mrb[0].mxu0
  %v1976 = vadd.f32 %v1887, %v1975
  %v1977 = vpop.f32.mrb[0].mxu0
  %1978 = vmatprep.mubr.bf16.mxu0 %v306
  %1979 = vmatmul.mubr.bf16.gmra.mrb[0].mxu0 %v305
  %v1980 = vpop.f32.mrb[0].mxu0
  %v1981 = vadd.f32 %v1892, %v1980
  %v1982 = vpop.f32.mrb[0].mxu0
  %v1983 = vpop.f32.mrb[0].mxu0
  %v1984 = vadd.f32 %v1895, %v1983
  %v1985 = vpop.f32.mrb[0].mxu0
  %1986 = vmatprep.mubr.bf16.mxu0 %v322
  %1987 = vmatmul.mubr.bf16.gmra.mrb[0].mxu0 %v321
  %v1988 = vpop.f32.mrb[0].mxu0
  %v1989 = vadd.f32 %v1900, %v1988
  %v1990 = vpop.f32.mrb[0].mxu0
  %v1991 = vpop.f32.mrb[0].mxu0
  %v1992 = vadd.f32 %v1903, %v1991
  %v1993 = vpop.f32.mrb[0].mxu0
  %1994 = vmatprep.mubr.bf16.mxu0 %v338
  %1995 = vmatmul.mubr.bf16.gmra.mrb[0].mxu0 %v337
  %v1996 = vpop.f32.mrb[0].mxu0
  %v1997 = vadd.f32 %v1908, %v1996
  %v1998 = vpop.f32.mrb[0].mxu0
  %v1999 = vpop.f32.mrb[0].mxu0
  %v2000 = vadd.f32 %v1911, %v1999
  %v2001 = vpop.f32.mrb[0].mxu0
  %2002 = vmatprep.mubr.bf16.mxu0 %v354
  %2003 = vmatmul.mubr.bf16.gmra.mrb[0].mxu0 %v353
  %v2004 = vpop.f32.mrb[0].mxu0
  %v2005 = vadd.f32 %v1916, %v2004
  %v2006 = vpop.f32.mrb[0].mxu0
  %v2007 = vpop.f32.mrb[0].mxu0
  %v2008 = vadd.f32 %v1919, %v2007
  %v2009 = vpop.f32.mrb[0].mxu0
  %2010 = vdwg.mxu0
  %2011 = vmatprep.subr.bf16.mxu0 0
  %2012 = vmatpush1.bf16.msra.mxu0 %v1244
  %2013 = vmatprep.subr.bf16.mxu0 0
  %2014 = vmatpush1.bf16.msra.mxu0 %v1245
  %2015 = vmatprep.subr.bf16.mxu0 0
  %2016 = vmatpush1.bf16.msra.mxu0 %v1246
  %2017 = vmatprep.subr.bf16.mxu0 0
  %2018 = vmatpush1.bf16.msra.mxu0 %v1247
  %2019 = vmatprep.subr.bf16.mxu0 0
  %2020 = vmatpush1.bf16.msra.mxu0 %v1248
  %2021 = vmatprep.subr.bf16.mxu0 0
  %2022 = vmatpush1.bf16.msra.mxu0 %v1249
  %2023 = vmatprep.subr.bf16.mxu0 0
  %2024 = vmatpush1.bf16.msra.mxu0 %v1250
  %2025 = vmatprep.subr.bf16.mxu0 0
  %2026 = vmatpush1.bf16.msra.mxu0 %v1251
  %2027 = vmatprep.subr.bf16.mxu0 0
  %2028 = vmatpush1.bf16.msra.mxu0 %v1252
  %2029 = vmatprep.subr.bf16.mxu0 0
  %2030 = vmatpush1.bf16.msra.mxu0 %v1253
  %2031 = vmatprep.subr.bf16.mxu0 0
  %2032 = vmatpush1.bf16.msra.mxu0 %v1254
  %2033 = vmatprep.subr.bf16.mxu0 0
  %2034 = vmatpush1.bf16.msra.mxu0 %v1255
  %2035 = vmatprep.subr.bf16.mxu0 0
  %2036 = vmatpush1.bf16.msra.mxu0 %v1256
  %2037 = vmatprep.subr.bf16.mxu0 0
  %2038 = vmatpush1.bf16.msra.mxu0 %v1257
  %2039 = vmatprep.subr.bf16.mxu0 0
  %2040 = vmatpush1.bf16.msra.mxu0 %v1258
  %2041 = vmatprep.subr.bf16.mxu0 0
  %2042 = vmatpush1.bf16.msra.mxu0 %v1259
  %2043 = vmatprep.mubr.bf16.mxu0 %v260
  %2044 = vmatmul.mubr.bf16.gmra.mrb[0].mxu0 %v259
  %v2045 = vpop.f32.mrb[0].mxu0
  %v2046 = vadd.f32 %v1957, %v2045
  %v2047 = vpop.f32.mrb[0].mxu0
  %v2048 = vpop.f32.mrb[0].mxu0
  %v2049 = vadd.f32 %v1960, %v2048
  %v2050 = vpop.f32.mrb[0].mxu0
  %2051 = vmatprep.mubr.bf16.mxu0 %v276
  %2052 = vmatmul.mubr.bf16.gmra.mrb[0].mxu0 %v275
  %v2053 = vpop.f32.mrb[0].mxu0
  %v2054 = vadd.f32 %v1965, %v2053
  %v2055 = vpop.f32.mrb[0].mxu0
  %v2056 = vpop.f32.mrb[0].mxu0
  %v2057 = vadd.f32 %v1968, %v2056
  %v2058 = vpop.f32.mrb[0].mxu0
  %2059 = vmatprep.mubr.bf16.mxu0 %v292
  %2060 = vmatmul.mubr.bf16.gmra.mrb[0].mxu0 %v291
  %v2061 = vpop.f32.mrb[0].mxu0
  %v2062 = vadd.f32 %v1973, %v2061
  %v2063 = vpop.f32.mrb[0].mxu0
  %v2064 = vpop.f32.mrb[0].mxu0
  %v2065 = vadd.f32 %v1976, %v2064
  %v2066 = vpop.f32.mrb[0].mxu0
  %2067 = vmatprep.mubr.bf16.mxu0 %v308
  %2068 = vmatmul.mubr.bf16.gmra.mrb[0].mxu0 %v307
  %v2069 = vpop.f32.mrb[0].mxu0
  %v2070 = vadd.f32 %v1981, %v2069
  %v2071 = vpop.f32.mrb[0].mxu0
  %v2072 = vpop.f32.mrb[0].mxu0
  %v2073 = vadd.f32 %v1984, %v2072
  %v2074 = vpop.f32.mrb[0].mxu0
  %2075 = vmatprep.mubr.bf16.mxu0 %v324
  %2076 = vmatmul.mubr.bf16.gmra.mrb[0].mxu0 %v323
  %v2077 = vpop.f32.mrb[0].mxu0
  %v2078 = vadd.f32 %v1989, %v2077
  %v2079 = vpop.f32.mrb[0].mxu0
  %v2080 = vpop.f32.mrb[0].mxu0
  %v2081 = vadd.f32 %v1992, %v2080
  %v2082 = vpop.f32.mrb[0].mxu0
  %2083 = vmatprep.mubr.bf16.mxu0 %v340
  %2084 = vmatmul.mubr.bf16.gmra.mrb[0].mxu0 %v339
  %v2085 = vpop.f32.mrb[0].mxu0
  %v2086 = vadd.f32 %v1997, %v2085
  %v2087 = vpop.f32.mrb[0].mxu0
  %v2088 = vpop.f32.mrb[0].mxu0
  %v2089 = vadd.f32 %v2000, %v2088
  %v2090 = vpop.f32.mrb[0].mxu0
  %2091 = vmatprep.mubr.bf16.mxu0 %v356
  %2092 = vmatmul.mubr.bf16.gmra.mrb[0].mxu0 %v355
  %v2093 = vpop.f32.mrb[0].mxu0
  %v2094 = vadd.f32 %v2005, %v2093
  %v2095 = vpop.f32.mrb[0].mxu0
  %v2096 = vpop.f32.mrb[0].mxu0
  %v2097 = vadd.f32 %v2008, %v2096
  %v2098 = vpop.f32.mrb[0].mxu0
  %2099 = vdwg.mxu0
  %v2100 = vadd.f32 %v2046, %v2049
  %v2101 = vadd.f32 %v2100, %v2054
  %v2102 = vadd.f32 %v2101, %v2057
  %v2103 = vadd.f32 %v2102, %v2062
  %v2104 = vadd.f32 %v2103, %v2065
  %v2105 = vadd.f32 %v2104, %v2070
  %v2106 = vadd.f32 %v2105, %v2073
  %v2107 = vadd.f32 %v2106, %v2078
  %v2108 = vadd.f32 %v2107, %v2081
  %v2109 = vadd.f32 %v2108, %v2086
  %v2110 = vadd.f32 %v2109, %v2089
  %v2111 = vadd.f32 %v2110, %v2094
  %vm2112 = vcmask 1043456
  %v2113 = vsel %vm2112, %v2097, 0.0
  %v2114 = vadd.f32 %v2111, %v2113
  %v2115 = vrot.slane %v2114, 4
  %v2116 = vadd.f32 %v2114, %v2115
  %v2117 = vrot.slane %v2116, 2
  %v2118 = vadd.f32 %v2116, %v2117
  %v2119 = vrot.slane %v2118, 1
  %v2120 = vadd.f32 %v2118, %v2119
  %v2121 = vrcp.pop 108.0
  %v2122 = vmul.f32 %v2120, %v2121
  %v2123 = vsub.f32 %v2046, %v2122
  %v2124 = vsub.f32 %v2049, %v2122
  %v2125 = vsub.f32 %v2054, %v2122
  %v2126 = vsub.f32 %v2057, %v2122
  %v2127 = vsub.f32 %v2062, %v2122
  %v2128 = vsub.f32 %v2065, %v2122
  %v2129 = vsub.f32 %v2070, %v2122
  %v2130 = vsub.f32 %v2073, %v2122
  %v2131 = vsub.f32 %v2078, %v2122
  %v2132 = vsub.f32 %v2081, %v2122
  %v2133 = vsub.f32 %v2086, %v2122
  %v2134 = vsub.f32 %v2089, %v2122
  %v2135 = vsub.f32 %v2094, %v2122
  %v2136 = vsub.f32 %v2097, %v2122
  %v2137 = vmul.f32 %v2123, %v2123
  %v2138 = vmul.f32 %v2124, %v2124
  %v2139 = vmul.f32 %v2125, %v2125
  %v2140 = vmul.f32 %v2126, %v2126
  %v2141 = vmul.f32 %v2127, %v2127
  %v2142 = vmul.f32 %v2128, %v2128
  %v2143 = vmul.f32 %v2129, %v2129
  %v2144 = vmul.f32 %v2130, %v2130
  %v2145 = vmul.f32 %v2131, %v2131
  %v2146 = vmul.f32 %v2132, %v2132
  %v2147 = vmul.f32 %v2133, %v2133
  %v2148 = vmul.f32 %v2134, %v2134
  %v2149 = vmul.f32 %v2135, %v2135
  %v2150 = vmul.f32 %v2136, %v2136
  %v2151 = vadd.f32 %v2137, %v2138
  %v2152 = vadd.f32 %v2151, %v2139
  %v2153 = vadd.f32 %v2152, %v2140
  %v2154 = vadd.f32 %v2153, %v2141
  %v2155 = vadd.f32 %v2154, %v2142
  %v2156 = vadd.f32 %v2155, %v2143
  %v2157 = vadd.f32 %v2156, %v2144
  %v2158 = vadd.f32 %v2157, %v2145
  %v2159 = vadd.f32 %v2158, %v2146
  %v2160 = vadd.f32 %v2159, %v2147
  %v2161 = vadd.f32 %v2160, %v2148
  %v2162 = vadd.f32 %v2161, %v2149
  %v2163 = vsel %vm2112, %v2150, 0.0
  %v2164 = vadd.f32 %v2162, %v2163
  %v2165 = vrot.slane %v2164, 4
  %v2166 = vadd.f32 %v2164, %v2165
  %v2167 = vrot.slane %v2166, 2
  %v2168 = vadd.f32 %v2166, %v2167
  %v2169 = vrot.slane %v2168, 1
  %v2170 = vadd.f32 %v2168, %v2169
  %v2171 = vmul.f32 %v2170, %v2121
  %v2172 = vadd.f32 %v2171, 1e-05
  %v2173 = vrsqrt.pop %v2172
  %v2174 = vmul.f32 %v2123, %v2173
  %v2175 = vmul.f32 %v2124, %v2173
  %v2176 = vmul.f32 %v2125, %v2173
  %v2177 = vmul.f32 %v2126, %v2173
  %v2178 = vmul.f32 %v2127, %v2173
  %v2179 = vmul.f32 %v2128, %v2173
  %v2180 = vmul.f32 %v2129, %v2173
  %v2181 = vmul.f32 %v2130, %v2173
  %v2182 = vmul.f32 %v2131, %v2173
  %v2183 = vmul.f32 %v2132, %v2173
  %v2184 = vmul.f32 %v2133, %v2173
  %v2185 = vmul.f32 %v2134, %v2173
  %v2186 = vmul.f32 %v2135, %v2173
  %v2187 = vmul.f32 %v2136, %v2173
  %v2188 = vld [vmem:[%s3] sm:$0x1]
  %v2190 = vlaneseq
  %v2191 = vshrl.u32 %v2190, 7
  %v2192 = vsub.s32 0, %v2191
  %v2193 = vrot.slane %v2188, %v2192
  %v2195 = vmul.f32 %v2174, %v2193
  %v2196 = vmul.f32 %v2175, %v2193
  %v2197 = vmul.f32 %v2176, %v2193
  %v2198 = vmul.f32 %v2177, %v2193
  %v2199 = vmul.f32 %v2178, %v2193
  %v2200 = vmul.f32 %v2179, %v2193
  %v2201 = vmul.f32 %v2180, %v2193
  %v2202 = vmul.f32 %v2181, %v2193
  %v2203 = vmul.f32 %v2182, %v2193
  %v2204 = vmul.f32 %v2183, %v2193
  %v2205 = vmul.f32 %v2184, %v2193
  %v2206 = vmul.f32 %v2185, %v2193
  %v2207 = vmul.f32 %v2186, %v2193
  %v2208 = vmul.f32 %v2187, %v2193
  %v2209 = vld [vmem:[%s4] sm:$0x1]
  %v2211 = vlaneseq
  %v2212 = vshrl.u32 %v2211, 7
  %v2213 = vsub.s32 0, %v2212
  %v2214 = vrot.slane %v2209, %v2213
  %v2216 = vadd.f32 %v2195, %v2214
  %v2217 = vadd.f32 %v2196, %v2214
  %v2218 = vadd.f32 %v2197, %v2214
  %v2219 = vadd.f32 %v2198, %v2214
  %v2220 = vadd.f32 %v2199, %v2214
  %v2221 = vadd.f32 %v2200, %v2214
  %v2222 = vadd.f32 %v2201, %v2214
  %v2223 = vadd.f32 %v2202, %v2214
  %v2224 = vadd.f32 %v2203, %v2214
  %v2225 = vadd.f32 %v2204, %v2214
  %v2226 = vadd.f32 %v2205, %v2214
  %v2227 = vadd.f32 %v2206, %v2214
  %v2228 = vadd.f32 %v2207, %v2214
  %v2229 = vadd.f32 %v2208, %v2214
  %v2230 = vmax.f32 %v2216, 0.0
  %v2231 = vmax.f32 %v2217, 0.0
  %v2232 = vmax.f32 %v2218, 0.0
  %v2233 = vmax.f32 %v2219, 0.0
  %v2234 = vmax.f32 %v2220, 0.0
  %v2235 = vmax.f32 %v2221, 0.0
  %v2236 = vmax.f32 %v2222, 0.0
  %v2237 = vmax.f32 %v2223, 0.0
  %v2238 = vmax.f32 %v2224, 0.0
  %v2239 = vmax.f32 %v2225, 0.0
  %v2240 = vmax.f32 %v2226, 0.0
  %v2241 = vmax.f32 %v2227, 0.0
  %v2242 = vmax.f32 %v2228, 0.0
  %v2243 = vmax.f32 %v2229, 0.0
  %2244 = vst [vmem:[%s5] sm:$0xff] %v2230
  %2245 = vst [vmem:[%s5 + $0x8] sm:$0xff] %v2231
  %2246 = vst [vmem:[%s5 + $0x10] sm:$0xff] %v2232
  %2247 = vst [vmem:[%s5 + $0x18] sm:$0xff] %v2233
  %2248 = vst [vmem:[%s5 + $0x20] sm:$0xff] %v2234
  %2249 = vst [vmem:[%s5 + $0x28] sm:$0xff] %v2235
  %2250 = vst [vmem:[%s5 + $0x30] sm:$0xff] %v2236
  %2251 = vst [vmem:[%s5 + $0x38] sm:$0xff] %v2237
  %2252 = vst [vmem:[%s5 + $0x40] sm:$0xff] %v2238
  %2253 = vst [vmem:[%s5 + $0x48] sm:$0xff] %v2239
  %2254 = vst [vmem:[%s5 + $0x50] sm:$0xff] %v2240
  %2255 = vst [vmem:[%s5 + $0x58] sm:$0xff] %v2241
  %2256 = vst [vmem:[%s5 + $0x60] sm:$0xff] %v2242
  %2257 = vst [vmem:[%s5 + $0x68] sm:$0xf] %v2243
  // Predicated region
  $region22: #{cnn_forward.5} parent=0 // pred_check
    _
  $region23: #{cnn_forward.5} parent=0 // pred_check_branch
    %2259 = sbr.rel (0) target = $region25
  $region24: #{cnn_forward.5} parent=0 // pred_region
    _
  $region25: #{cnn_forward.5} parent=0 // pred_fallthru
    _
  // Predicated region
  $region26: #{cnn_forward.5} parent=0 // pred_check
    _
  $region27: #{cnn_forward.5} parent=0 // pred_check_branch
    %2261 = sbr.rel (0) target = $region29
  $region28: #{cnn_forward.5} parent=0 // pred_region
    _
  $region29: #{cnn_forward.5} parent=0 // pred_fallthru
    _

// kernel: cnn_forward.6
$region0: #{cnn_forward.6}
  #allocation0 [shape = 'u32[]', space=smem, size = 0x4, offset = 0x4, fixed_abs, tag = 'smem constant byte address 0x4 - core index']
  #allocation1 [shape = 'u32[144,128]{1,0:T(1,128)}', space=vmem, size = 0x12000, scoped, tag = 'internal scratch']
  %s0 = inlined_call_operand.vmem [shape: f32[56,1152], index: 0, kind: input, shape index: {}]
  %s1 = inlined_call_operand.vmem [shape: bf16[1152,128], index: 1, kind: input, shape index: {}]
  %s2 = inlined_call_operand.vmem [shape: f32[1,128], index: 2, kind: input, shape index: {}]
  %s3 = inlined_call_operand.vmem [shape: f32[1,128], index: 3, kind: input, shape index: {}]
  %s4 = inlined_call_operand.vmem [shape: f32[1,128], index: 4, kind: input, shape index: {}]
  %s5 = inlined_call_operand.vmem [shape: f32[56,128], index: 5, kind: output, shape index: {}]
  %s6 = sld [smem:[#allocation0]]
  $region30: #{cnn_forward.6} parent=0
    _
  %s8 = ssub.s32 1, %s6
  %s9 = scalar_select 0, %s8, %s6
  // Predicated region
  $region2: #{cnn_forward.6} parent=0 // pred_check
    _
  $region3: #{cnn_forward.6} parent=0 // pred_check_branch
    %11 = sbr.rel (0) target = $region5
  $region4: #{cnn_forward.6} parent=0 // pred_region
    _
  $region5: #{cnn_forward.6} parent=0 // pred_fallthru
    _
  // Predicated region
  $region6: #{cnn_forward.6} parent=0 // pred_check
    _
  $region7: #{cnn_forward.6} parent=0 // pred_check_branch
    %13 = sbr.rel (0) target = $region9
  $region8: #{cnn_forward.6} parent=0 // pred_region
    _
  $region9: #{cnn_forward.6} parent=0 // pred_fallthru
    _
  // Predicated region
  $region10: #{cnn_forward.6} parent=0 // pred_check
    _
  $region11: #{cnn_forward.6} parent=0 // pred_check_branch
    %15 = sbr.rel (0) target = $region13
  $region12: #{cnn_forward.6} parent=0 // pred_region
    _
  $region13: #{cnn_forward.6} parent=0 // pred_fallthru
    _
  // Predicated region
  $region14: #{cnn_forward.6} parent=0 // pred_check
    _
  $region15: #{cnn_forward.6} parent=0 // pred_check_branch
    %17 = sbr.rel (0) target = $region17
  $region16: #{cnn_forward.6} parent=0 // pred_region
    _
  $region17: #{cnn_forward.6} parent=0 // pred_fallthru
    _
  // Predicated region
  $region18: #{cnn_forward.6} parent=0 // pred_check
    _
  $region19: #{cnn_forward.6} parent=0 // pred_check_branch
    %19 = sbr.rel (0) target = $region21
  $region20: #{cnn_forward.6} parent=0 // pred_region
    _
  $region21: #{cnn_forward.6} parent=0 // pred_fallthru
    _
  %v21 = vld [vmem:[%s0] sm:$0xff]
  %v22 = vld [vmem:[%s0 + $0x8] sm:$0xff]
  %v23 = vld [vmem:[%s0 + $0x10] sm:$0xff]
  %v24 = vld [vmem:[%s0 + $0x18] sm:$0xff]
  %v25 = vld [vmem:[%s0 + $0x20] sm:$0xff]
  %v26 = vld [vmem:[%s0 + $0x28] sm:$0xff]
  %v27 = vld [vmem:[%s0 + $0x30] sm:$0xff]
  %v28 = vld [vmem:[%s0 + $0x38] sm:$0xff]
  %v29 = vld [vmem:[%s0 + $0x40] sm:$0xff]
  %v30 = vld [vmem:[%s0 + $0x48] sm:$0xff]
  %v31 = vld [vmem:[%s0 + $0x50] sm:$0xff]
  %v32 = vld [vmem:[%s0 + $0x58] sm:$0xff]
  %v33 = vld [vmem:[%s0 + $0x60] sm:$0xff]
  %v34 = vld [vmem:[%s0 + $0x68] sm:$0xff]
  %v35 = vld [vmem:[%s0 + $0x70] sm:$0xff]
  %v36 = vld [vmem:[%s0 + $0x78] sm:$0xff]
  %v37 = vld [vmem:[%s0 + $0x80] sm:$0xff]
  %v38 = vld [vmem:[%s0 + $0x88] sm:$0xff]
  %v39 = vld [vmem:[%s0 + $0x90] sm:$0xff]
  %v40 = vld [vmem:[%s0 + $0x98] sm:$0xff]
  %v41 = vld [vmem:[%s0 + $0xa0] sm:$0xff]
  %v42 = vld [vmem:[%s0 + $0xa8] sm:$0xff]
  %v43 = vld [vmem:[%s0 + $0xb0] sm:$0xff]
  %v44 = vld [vmem:[%s0 + $0xb8] sm:$0xff]
  %v45 = vld [vmem:[%s0 + $0xc0] sm:$0xff]
  %v46 = vld [vmem:[%s0 + $0xc8] sm:$0xff]
  %v47 = vld [vmem:[%s0 + $0xd0] sm:$0xff]
  %v48 = vld [vmem:[%s0 + $0xd8] sm:$0xff]
  %v49 = vld [vmem:[%s0 + $0xe0] sm:$0xff]
  %v50 = vld [vmem:[%s0 + $0xe8] sm:$0xff]
  %v51 = vld [vmem:[%s0 + $0xf0] sm:$0xff]
  %v52 = vld [vmem:[%s0 + $0xf8] sm:$0xff]
  %v53 = vld [vmem:[%s0 + $0x100] sm:$0xff]
  %v54 = vld [vmem:[%s0 + $0x108] sm:$0xff]
  %v55 = vld [vmem:[%s0 + $0x110] sm:$0xff]
  %v56 = vld [vmem:[%s0 + $0x118] sm:$0xff]
  %v57 = vld [vmem:[%s0 + $0x120] sm:$0xff]
  %v58 = vld [vmem:[%s0 + $0x128] sm:$0xff]
  %v59 = vld [vmem:[%s0 + $0x130] sm:$0xff]
  %v60 = vld [vmem:[%s0 + $0x138] sm:$0xff]
  %v61 = vld [vmem:[%s0 + $0x140] sm:$0xff]
  %v62 = vld [vmem:[%s0 + $0x148] sm:$0xff]
  %v63 = vld [vmem:[%s0 + $0x150] sm:$0xff]
  %v64 = vld [vmem:[%s0 + $0x158] sm:$0xff]
  %v65 = vld [vmem:[%s0 + $0x160] sm:$0xff]
  %v66 = vld [vmem:[%s0 + $0x168] sm:$0xff]
  %v67 = vld [vmem:[%s0 + $0x170] sm:$0xff]
  %v68 = vld [vmem:[%s0 + $0x178] sm:$0xff]
  %v69 = vld [vmem:[%s0 + $0x180] sm:$0xff]
  %v70 = vld [vmem:[%s0 + $0x188] sm:$0xff]
  %v71 = vld [vmem:[%s0 + $0x190] sm:$0xff]
  %v72 = vld [vmem:[%s0 + $0x198] sm:$0xff]
  %v73 = vld [vmem:[%s0 + $0x1a0] sm:$0xff]
  %v74 = vld [vmem:[%s0 + $0x1a8] sm:$0xff]
  %v75 = vld [vmem:[%s0 + $0x1b0] sm:$0xff]
  %v76 = vld [vmem:[%s0 + $0x1b8] sm:$0xff]
  %v77 = vld [vmem:[%s0 + $0x1c0] sm:$0xff]
  %v78 = vld [vmem:[%s0 + $0x1c8] sm:$0xff]
  %v79 = vld [vmem:[%s0 + $0x1d0] sm:$0xff]
  %v80 = vld [vmem:[%s0 + $0x1d8] sm:$0xff]
  %v81 = vld [vmem:[%s0 + $0x1e0] sm:$0xff]
  %v82 = vld [vmem:[%s0 + $0x1e8] sm:$0xff]
  %v83 = vld [vmem:[%s0 + $0x1f0] sm:$0xff]
  %v84 = vpack.c.bf16 %v30, %v21
  %v85 = vpack.c.bf16 %v31, %v22
  %v86 = vpack.c.bf16 %v32, %v23
  %v87 = vpack.c.bf16 %v33, %v24
  %v88 = vpack.c.bf16 %v34, %v25
  %v89 = vpack.c.bf16 %v35, %v26
  %v90 = vpack.c.bf16 %v36, %v27
  %v91 = vpack.c.bf16 %v37, %v28
  %v92 = vpack.c.bf16 %v38, %v29
  %v93 = vpack.c.bf16 %v48, %v39
  %v94 = vpack.c.bf16 %v49, %v40
  %v95 = vpack.c.bf16 %v50, %v41
  %v96 = vpack.c.bf16 %v51, %v42
  %v97 = vpack.c.bf16 %v52, %v43
  %v98 = vpack.c.bf16 %v53, %v44
  %v99 = vpack.c.bf16 %v54, %v45
  %v100 = vpack.c.bf16 %v55, %v46
  %v101 = vpack.c.bf16 %v56, %v47
  %v102 = vpack.c.bf16 %v66, %v57
  %v103 = vpack.c.bf16 %v67, %v58
  %v104 = vpack.c.bf16 %v68, %v59
  %v105 = vpack.c.bf16 %v69, %v60
  %v106 = vpack.c.bf16 %v70, %v61
  %v107 = vpack.c.bf16 %v71, %v62
  %v108 = vpack.c.bf16 %v72, %v63
  %v109 = vpack.c.bf16 %v73, %v64
  %v110 = vpack.c.bf16 %v74, %v65
  %v111 = vpack.c.bf16 %v75, %v75
  %v112 = vpack.c.bf16 %v76, %v76
  %v113 = vpack.c.bf16 %v77, %v77
  %v114 = vpack.c.bf16 %v78, %v78
  %v115 = vpack.c.bf16 %v79, %v79
  %v116 = vpack.c.bf16 %v80, %v80
  %v117 = vpack.c.bf16 %v81, %v81
  %v118 = vpack.c.bf16 %v82, %v82
  %v119 = vpack.c.bf16 %v83, %v83
  %v120 = vld [vmem:[%s1] sm:$0xf]
  %v121 = vld [vmem:[%s1 + $0x4] sm:$0xf]
  %v122 = vld [vmem:[%s1 + $0x8] sm:$0xf]
  %v123 = vld [vmem:[%s1 + $0xc] sm:$0xf]
  %v124 = vld [vmem:[%s1 + $0x10] sm:$0xf]
  %v125 = vld [vmem:[%s1 + $0x14] sm:$0xf]
  %v126 = vld [vmem:[%s1 + $0x18] sm:$0xf]
  %v127 = vld [vmem:[%s1 + $0x1c] sm:$0xf]
  %v128 = vld [vmem:[%s1 + $0x20] sm:$0xf]
  %v129 = vld [vmem:[%s1 + $0x24] sm:$0xf]
  %v130 = vld [vmem:[%s1 + $0x28] sm:$0xf]
  %v131 = vld [vmem:[%s1 + $0x2c] sm:$0xf]
  %v132 = vld [vmem:[%s1 + $0x30] sm:$0xf]
  %v133 = vld [vmem:[%s1 + $0x34] sm:$0xf]
  %v134 = vld [vmem:[%s1 + $0x38] sm:$0xf]
  %v135 = vld [vmem:[%s1 + $0x3c] sm:$0xf]
  %v136 = vld [vmem:[%s1 + $0x40] sm:$0xf]
  %v137 = vld [vmem:[%s1 + $0x44] sm:$0xf]
  %v138 = vld [vmem:[%s1 + $0x48] sm:$0xf]
  %v139 = vld [vmem:[%s1 + $0x4c] sm:$0xf]
  %v140 = vld [vmem:[%s1 + $0x50] sm:$0xf]
  %v141 = vld [vmem:[%s1 + $0x54] sm:$0xf]
  %v142 = vld [vmem:[%s1 + $0x58] sm:$0xf]
  %v143 = vld [vmem:[%s1 + $0x5c] sm:$0xf]
  %v144 = vld [vmem:[%s1 + $0x60] sm:$0xf]
  %v145 = vld [vmem:[%s1 + $0x64] sm:$0xf]
  %v146 = vld [vmem:[%s1 + $0x68] sm:$0xf]
  %v147 = vld [vmem:[%s1 + $0x6c] sm:$0xf]
  %v148 = vld [vmem:[%s1 + $0x70] sm:$0xf]
  %v149 = vld [vmem:[%s1 + $0x74] sm:$0xf]
  %v150 = vld [vmem:[%s1 + $0x78] sm:$0xf]
  %v151 = vld [vmem:[%s1 + $0x7c] sm:$0xf]
  %v152 = vld [vmem:[%s1 + $0x80] sm:$0xf]
  %v153 = vld [vmem:[%s1 + $0x84] sm:$0xf]
  %v154 = vld [vmem:[%s1 + $0x88] sm:$0xf]
  %v155 = vld [vmem:[%s1 + $0x8c] sm:$0xf]
  %v156 = vld [vmem:[%s1 + $0x90] sm:$0xf]
  %v157 = vld [vmem:[%s1 + $0x94] sm:$0xf]
  %v158 = vld [vmem:[%s1 + $0x98] sm:$0xf]
  %v159 = vld [vmem:[%s1 + $0x9c] sm:$0xf]
  %v160 = vld [vmem:[%s1 + $0xa0] sm:$0xf]
  %v161 = vld [vmem:[%s1 + $0xa4] sm:$0xf]
  %v162 = vld [vmem:[%s1 + $0xa8] sm:$0xf]
  %v163 = vld [vmem:[%s1 + $0xac] sm:$0xf]
  %v164 = vld [vmem:[%s1 + $0xb0] sm:$0xf]
  %v165 = vld [vmem:[%s1 + $0xb4] sm:$0xf]
  %v166 = vld [vmem:[%s1 + $0xb8] sm:$0xf]
  %v167 = vld [vmem:[%s1 + $0xbc] sm:$0xf]
  %v168 = vld [vmem:[%s1 + $0xc0] sm:$0xf]
  %v169 = vld [vmem:[%s1 + $0xc4] sm:$0xf]
  %v170 = vld [vmem:[%s1 + $0xc8] sm:$0xf]
  %v171 = vld [vmem:[%s1 + $0xcc] sm:$0xf]
  %v172 = vld [vmem:[%s1 + $0xd0] sm:$0xf]
  %v173 = vld [vmem:[%s1 + $0xd4] sm:$0xf]
  %v174 = vld [vmem:[%s1 + $0xd8] sm:$0xf]
  %v175 = vld [vmem:[%s1 + $0xdc] sm:$0xf]
  %v176 = vld [vmem:[%s1 + $0xe0] sm:$0xf]
  %v177 = vld [vmem:[%s1 + $0xe4] sm:$0xf]
  %v178 = vld [vmem:[%s1 + $0xe8] sm:$0xf]
  %v179 = vld [vmem:[%s1 + $0xec] sm:$0xf]
  %v180 = vld [vmem:[%s1 + $0xf0] sm:$0xf]
  %v181 = vld [vmem:[%s1 + $0xf4] sm:$0xf]
  %v182 = vld [vmem:[%s1 + $0xf8] sm:$0xf]
  %v183 = vld [vmem:[%s1 + $0xfc] sm:$0xf]
  %v184 = vld [vmem:[%s1 + $0x100] sm:$0xf]
  %v185 = vld [vmem:[%s1 + $0x104] sm:$0xf]
  %v186 = vld [vmem:[%s1 + $0x108] sm:$0xf]
  %v187 = vld [vmem:[%s1 + $0x10c] sm:$0xf]
  %v188 = vld [vmem:[%s1 + $0x110] sm:$0xf]
  %v189 = vld [vmem:[%s1 + $0x114] sm:$0xf]
  %v190 = vld [vmem:[%s1 + $0x118] sm:$0xf]
  %v191 = vld [vmem:[%s1 + $0x11c] sm:$0xf]
  %v192 = vld [vmem:[%s1 + $0x120] sm:$0xf]
  %v193 = vld [vmem:[%s1 + $0x124] sm:$0xf]
  %v194 = vld [vmem:[%s1 + $0x128] sm:$0xf]
  %v195 = vld [vmem:[%s1 + $0x12c] sm:$0xf]
  %v196 = vld [vmem:[%s1 + $0x130] sm:$0xf]
  %v197 = vld [vmem:[%s1 + $0x134] sm:$0xf]
  %v198 = vld [vmem:[%s1 + $0x138] sm:$0xf]
  %v199 = vld [vmem:[%s1 + $0x13c] sm:$0xf]
  %v200 = vld [vmem:[%s1 + $0x140] sm:$0xf]
  %v201 = vld [vmem:[%s1 + $0x144] sm:$0xf]
  %v202 = vld [vmem:[%s1 + $0x148] sm:$0xf]
  %v203 = vld [vmem:[%s1 + $0x14c] sm:$0xf]
  %v204 = vld [vmem:[%s1 + $0x150] sm:$0xf]
  %v205 = vld [vmem:[%s1 + $0x154] sm:$0xf]
  %v206 = vld [vmem:[%s1 + $0x158] sm:$0xf]
  %v207 = vld [vmem:[%s1 + $0x15c] sm:$0xf]
  %v208 = vld [vmem:[%s1 + $0x160] sm:$0xf]
  %v209 = vld [vmem:[%s1 + $0x164] sm:$0xf]
  %v210 = vld [vmem:[%s1 + $0x168] sm:$0xf]
  %v211 = vld [vmem:[%s1 + $0x16c] sm:$0xf]
  %v212 = vld [vmem:[%s1 + $0x170] sm:$0xf]
  %v213 = vld [vmem:[%s1 + $0x174] sm:$0xf]
  %v214 = vld [vmem:[%s1 + $0x178] sm:$0xf]
  %v215 = vld [vmem:[%s1 + $0x17c] sm:$0xf]
  %v216 = vld [vmem:[%s1 + $0x180] sm:$0xf]
  %v217 = vld [vmem:[%s1 + $0x184] sm:$0xf]
  %v218 = vld [vmem:[%s1 + $0x188] sm:$0xf]
  %v219 = vld [vmem:[%s1 + $0x18c] sm:$0xf]
  %v220 = vld [vmem:[%s1 + $0x190] sm:$0xf]
  %v221 = vld [vmem:[%s1 + $0x194] sm:$0xf]
  %v222 = vld [vmem:[%s1 + $0x198] sm:$0xf]
  %v223 = vld [vmem:[%s1 + $0x19c] sm:$0xf]
  %v224 = vld [vmem:[%s1 + $0x1a0] sm:$0xf]
  %v225 = vld [vmem:[%s1 + $0x1a4] sm:$0xf]
  %v226 = vld [vmem:[%s1 + $0x1a8] sm:$0xf]
  %v227 = vld [vmem:[%s1 + $0x1ac] sm:$0xf]
  %v228 = vld [vmem:[%s1 + $0x1b0] sm:$0xf]
  %v229 = vld [vmem:[%s1 + $0x1b4] sm:$0xf]
  %v230 = vld [vmem:[%s1 + $0x1b8] sm:$0xf]
  %v231 = vld [vmem:[%s1 + $0x1bc] sm:$0xf]
  %v232 = vld [vmem:[%s1 + $0x1c0] sm:$0xf]
  %v233 = vld [vmem:[%s1 + $0x1c4] sm:$0xf]
  %v234 = vld [vmem:[%s1 + $0x1c8] sm:$0xf]
  %v235 = vld [vmem:[%s1 + $0x1cc] sm:$0xf]
  %v236 = vld [vmem:[%s1 + $0x1d0] sm:$0xf]
  %v237 = vld [vmem:[%s1 + $0x1d4] sm:$0xf]
  %v238 = vld [vmem:[%s1 + $0x1d8] sm:$0xf]
  %v239 = vld [vmem:[%s1 + $0x1dc] sm:$0xf]
  %v240 = vld [vmem:[%s1 + $0x1e0] sm:$0xf]
  %v241 = vld [vmem:[%s1 + $0x1e4] sm:$0xf]
  %v242 = vld [vmem:[%s1 + $0x1e8] sm:$0xf]
  %v243 = vld [vmem:[%s1 + $0x1ec] sm:$0xf]
  %v244 = vld [vmem:[%s1 + $0x1f0] sm:$0xf]
  %v245 = vld [vmem:[%s1 + $0x1f4] sm:$0xf]
  %v246 = vld [vmem:[%s1 + $0x1f8] sm:$0xf]
  %v247 = vld [vmem:[%s1 + $0x1fc] sm:$0xf]
  %v248 = vld [vmem:[%s1 + $0x200] sm:$0xf]
  %v249 = vld [vmem:[%s1 + $0x204] sm:$0xf]
  %v250 = vld [vmem:[%s1 + $0x208] sm:$0xf]
  %v251 = vld [vmem:[%s1 + $0x20c] sm:$0xf]
  %v252 = vld [vmem:[%s1 + $0x210] sm:$0xf]
  %v253 = vld [vmem:[%s1 + $0x214] sm:$0xf]
  %v254 = vld [vmem:[%s1 + $0x218] sm:$0xf]
  %v255 = vld [vmem:[%s1 + $0x21c] sm:$0xf]
  %v256 = vld [vmem:[%s1 + $0x220] sm:$0xf]
  %v257 = vld [vmem:[%s1 + $0x224] sm:$0xf]
  %v258 = vld [vmem:[%s1 + $0x228] sm:$0xf]
  %v259 = vld [vmem:[%s1 + $0x22c] sm:$0xf]
  %v260 = vld [vmem:[%s1 + $0x230] sm:$0xf]
  %v261 = vld [vmem:[%s1 + $0x234] sm:$0xf]
  %v262 = vld [vmem:[%s1 + $0x238] sm:$0xf]
  %v263 = vld [vmem:[%s1 + $0x23c] sm:$0xf]
  %v264 = vld [vmem:[%s2] sm:$0x1]
  %v266 = vlaneseq
  %v267 = vshrl.u32 %v266, 7
  %v268 = vsub.s32 0, %v267
  %v269 = vrot.slane %v264, %v268
  %v415 = vunpack.c.l.b16 %v120
  %v416 = vunpack.c.l.b16 %v121
  %v417 = vunpack.c.l.b16 %v122
  %v418 = vunpack.c.l.b16 %v123
  %v419 = vunpack.c.l.b16 %v124
  %v420 = vunpack.c.l.b16 %v125
  %v421 = vunpack.c.l.b16 %v126
  %v422 = vunpack.c.l.b16 %v127
  %v423 = vunpack.c.l.b16 %v128
  %v424 = vunpack.c.l.b16 %v129
  %v425 = vunpack.c.l.b16 %v130
  %v426 = vunpack.c.l.b16 %v131
  %v427 = vunpack.c.l.b16 %v132
  %v428 = vunpack.c.l.b16 %v133
  %v429 = vunpack.c.l.b16 %v134
  %v430 = vunpack.c.l.b16 %v135
  %v431 = vunpack.c.l.b16 %v136
  %v432 = vunpack.c.l.b16 %v137
  %v433 = vunpack.c.l.b16 %v138
  %v434 = vunpack.c.l.b16 %v139
  %v435 = vunpack.c.l.b16 %v140
  %v436 = vunpack.c.l.b16 %v141
  %v437 = vunpack.c.l.b16 %v142
  %v438 = vunpack.c.l.b16 %v143
  %v439 = vunpack.c.l.b16 %v144
  %v440 = vunpack.c.l.b16 %v145
  %v441 = vunpack.c.l.b16 %v146
  %v442 = vunpack.c.l.b16 %v147
  %v443 = vunpack.c.l.b16 %v148
  %v444 = vunpack.c.l.b16 %v149
  %v445 = vunpack.c.l.b16 %v150
  %v446 = vunpack.c.l.b16 %v151
  %v447 = vunpack.c.l.b16 %v152
  %v448 = vunpack.c.l.b16 %v153
  %v449 = vunpack.c.l.b16 %v154
  %v450 = vunpack.c.l.b16 %v155
  %v451 = vunpack.c.l.b16 %v156
  %v452 = vunpack.c.l.b16 %v157
  %v453 = vunpack.c.l.b16 %v158
  %v454 = vunpack.c.l.b16 %v159
  %v455 = vunpack.c.l.b16 %v160
  %v456 = vunpack.c.l.b16 %v161
  %v457 = vunpack.c.l.b16 %v162
  %v458 = vunpack.c.l.b16 %v163
  %v459 = vunpack.c.l.b16 %v164
  %v460 = vunpack.c.l.b16 %v165
  %v461 = vunpack.c.l.b16 %v166
  %v462 = vunpack.c.l.b16 %v167
  %v463 = vunpack.c.l.b16 %v168
  %v464 = vunpack.c.l.b16 %v169
  %v465 = vunpack.c.l.b16 %v170
  %v466 = vunpack.c.l.b16 %v171
  %v467 = vunpack.c.l.b16 %v172
  %v468 = vunpack.c.l.b16 %v173
  %v469 = vunpack.c.l.b16 %v174
  %v470 = vunpack.c.l.b16 %v175
  %v471 = vunpack.c.l.b16 %v176
  %v472 = vunpack.c.l.b16 %v177
  %v473 = vunpack.c.l.b16 %v178
  %v474 = vunpack.c.l.b16 %v179
  %v475 = vunpack.c.l.b16 %v180
  %v476 = vunpack.c.l.b16 %v181
  %v477 = vunpack.c.l.b16 %v182
  %v478 = vunpack.c.l.b16 %v183
  %v479 = vunpack.c.l.b16 %v184
  %v480 = vunpack.c.l.b16 %v185
  %v481 = vunpack.c.l.b16 %v186
  %v482 = vunpack.c.l.b16 %v187
  %v483 = vunpack.c.l.b16 %v188
  %v484 = vunpack.c.l.b16 %v189
  %v485 = vunpack.c.l.b16 %v190
  %v486 = vunpack.c.l.b16 %v191
  %v487 = vunpack.c.l.b16 %v192
  %v488 = vunpack.c.l.b16 %v193
  %v489 = vunpack.c.l.b16 %v194
  %v490 = vunpack.c.l.b16 %v195
  %v491 = vunpack.c.l.b16 %v196
  %v492 = vunpack.c.l.b16 %v197
  %v493 = vunpack.c.l.b16 %v198
  %v494 = vunpack.c.l.b16 %v199
  %v495 = vunpack.c.l.b16 %v200
  %v496 = vunpack.c.l.b16 %v201
  %v497 = vunpack.c.l.b16 %v202
  %v498 = vunpack.c.l.b16 %v203
  %v499 = vunpack.c.l.b16 %v204
  %v500 = vunpack.c.l.b16 %v205
  %v501 = vunpack.c.l.b16 %v206
  %v502 = vunpack.c.l.b16 %v207
  %v503 = vunpack.c.l.b16 %v208
  %v504 = vunpack.c.l.b16 %v209
  %v505 = vunpack.c.l.b16 %v210
  %v506 = vunpack.c.l.b16 %v211
  %v507 = vunpack.c.l.b16 %v212
  %v508 = vunpack.c.l.b16 %v213
  %v509 = vunpack.c.l.b16 %v214
  %v510 = vunpack.c.l.b16 %v215
  %v511 = vunpack.c.l.b16 %v216
  %v512 = vunpack.c.l.b16 %v217
  %v513 = vunpack.c.l.b16 %v218
  %v514 = vunpack.c.l.b16 %v219
  %v515 = vunpack.c.l.b16 %v220
  %v516 = vunpack.c.l.b16 %v221
  %v517 = vunpack.c.l.b16 %v222
  %v518 = vunpack.c.l.b16 %v223
  %v519 = vunpack.c.l.b16 %v224
  %v520 = vunpack.c.l.b16 %v225
  %v521 = vunpack.c.l.b16 %v226
  %v522 = vunpack.c.l.b16 %v227
  %v523 = vunpack.c.l.b16 %v228
  %v524 = vunpack.c.l.b16 %v229
  %v525 = vunpack.c.l.b16 %v230
  %v526 = vunpack.c.l.b16 %v231
  %v527 = vunpack.c.l.b16 %v232
  %v528 = vunpack.c.l.b16 %v233
  %v529 = vunpack.c.l.b16 %v234
  %v530 = vunpack.c.l.b16 %v235
  %v531 = vunpack.c.l.b16 %v236
  %v532 = vunpack.c.l.b16 %v237
  %v533 = vunpack.c.l.b16 %v238
  %v534 = vunpack.c.l.b16 %v239
  %v535 = vunpack.c.l.b16 %v240
  %v536 = vunpack.c.l.b16 %v241
  %v537 = vunpack.c.l.b16 %v242
  %v538 = vunpack.c.l.b16 %v243
  %v539 = vunpack.c.l.b16 %v244
  %v540 = vunpack.c.l.b16 %v245
  %v541 = vunpack.c.l.b16 %v246
  %v542 = vunpack.c.l.b16 %v247
  %v543 = vunpack.c.l.b16 %v248
  %v544 = vunpack.c.l.b16 %v249
  %v545 = vunpack.c.l.b16 %v250
  %v546 = vunpack.c.l.b16 %v251
  %v547 = vunpack.c.l.b16 %v252
  %v548 = vunpack.c.l.b16 %v253
  %v549 = vunpack.c.l.b16 %v254
  %v550 = vunpack.c.l.b16 %v255
  %v551 = vunpack.c.l.b16 %v256
  %v552 = vunpack.c.l.b16 %v257
  %v553 = vunpack.c.l.b16 %v258
  %v554 = vunpack.c.l.b16 %v259
  %v555 = vunpack.c.l.b16 %v260
  %v556 = vunpack.c.l.b16 %v261
  %v557 = vunpack.c.l.b16 %v262
  %v558 = vunpack.c.l.b16 %v263
  %v559 = vpack.c.b16 %v416, %v415
  %v560 = vpack.c.b16 %v418, %v417
  %v561 = vpack.c.b16 %v420, %v419
  %v562 = vpack.c.b16 %v422, %v421
  %v563 = vpack.c.b16 %v424, %v423
  %v564 = vpack.c.b16 %v426, %v425
  %v565 = vpack.c.b16 %v428, %v427
  %v566 = vpack.c.b16 %v430, %v429
  %v567 = vpack.c.b16 %v432, %v431
  %v568 = vpack.c.b16 %v434, %v433
  %v569 = vpack.c.b16 %v436, %v435
  %v570 = vpack.c.b16 %v438, %v437
  %v571 = vpack.c.b16 %v440, %v439
  %v572 = vpack.c.b16 %v442, %v441
  %v573 = vpack.c.b16 %v444, %v443
  %v574 = vpack.c.b16 %v446, %v445
  %v575 = vpack.c.b16 %v448, %v447
  %v576 = vpack.c.b16 %v450, %v449
  %v577 = vpack.c.b16 %v452, %v451
  %v578 = vpack.c.b16 %v454, %v453
  %v579 = vpack.c.b16 %v456, %v455
  %v580 = vpack.c.b16 %v458, %v457
  %v581 = vpack.c.b16 %v460, %v459
  %v582 = vpack.c.b16 %v462, %v461
  %v583 = vpack.c.b16 %v464, %v463
  %v584 = vpack.c.b16 %v466, %v465
  %v585 = vpack.c.b16 %v468, %v467
  %v586 = vpack.c.b16 %v470, %v469
  %v587 = vpack.c.b16 %v472, %v471
  %v588 = vpack.c.b16 %v474, %v473
  %v589 = vpack.c.b16 %v476, %v475
  %v590 = vpack.c.b16 %v478, %v477
  %v591 = vpack.c.b16 %v480, %v479
  %v592 = vpack.c.b16 %v482, %v481
  %v593 = vpack.c.b16 %v484, %v483
  %v594 = vpack.c.b16 %v486, %v485
  %v595 = vpack.c.b16 %v488, %v487
  %v596 = vpack.c.b16 %v490, %v489
  %v597 = vpack.c.b16 %v492, %v491
  %v598 = vpack.c.b16 %v494, %v493
  %v599 = vpack.c.b16 %v496, %v495
  %v600 = vpack.c.b16 %v498, %v497
  %v601 = vpack.c.b16 %v500, %v499
  %v602 = vpack.c.b16 %v502, %v501
  %v603 = vpack.c.b16 %v504, %v503
  %v604 = vpack.c.b16 %v506, %v505
  %v605 = vpack.c.b16 %v508, %v507
  %v606 = vpack.c.b16 %v510, %v509
  %v607 = vpack.c.b16 %v512, %v511
  %v608 = vpack.c.b16 %v514, %v513
  %v609 = vpack.c.b16 %v516, %v515
  %v610 = vpack.c.b16 %v518, %v517
  %v611 = vpack.c.b16 %v520, %v519
  %v612 = vpack.c.b16 %v522, %v521
  %v613 = vpack.c.b16 %v524, %v523
  %v614 = vpack.c.b16 %v526, %v525
  %v615 = vpack.c.b16 %v528, %v527
  %v616 = vpack.c.b16 %v530, %v529
  %v617 = vpack.c.b16 %v532, %v531
  %v618 = vpack.c.b16 %v534, %v533
  %v619 = vpack.c.b16 %v536, %v535
  %v620 = vpack.c.b16 %v538, %v537
  %v621 = vpack.c.b16 %v540, %v539
  %v622 = vpack.c.b16 %v542, %v541
  %v623 = vpack.c.b16 %v544, %v543
  %v624 = vpack.c.b16 %v546, %v545
  %v625 = vpack.c.b16 %v548, %v547
  %v626 = vpack.c.b16 %v550, %v549
  %v627 = vpack.c.b16 %v552, %v551
  %v628 = vpack.c.b16 %v554, %v553
  %v629 = vpack.c.b16 %v556, %v555
  %v630 = vpack.c.b16 %v558, %v557
  %703 = vmatprep.subr.bf16.mxu0 0
  %704 = vmatpush1.bf16.msra.mxu0 %v559
  %705 = vmatprep.subr.bf16.mxu0 0
  %706 = vmatpush1.bf16.msra.mxu0 %v560
  %707 = vmatprep.subr.bf16.mxu0 0
  %708 = vmatpush1.bf16.msra.mxu0 %v561
  %709 = vmatprep.subr.bf16.mxu0 0
  %710 = vmatpush1.bf16.msra.mxu0 %v562
  %711 = vmatprep.subr.bf16.mxu0 0
  %712 = vmatpush1.bf16.msra.mxu0 %v563
  %713 = vmatprep.subr.bf16.mxu0 0
  %714 = vmatpush1.bf16.msra.mxu0 %v564
  %715 = vmatprep.subr.bf16.mxu0 0
  %716 = vmatpush1.bf16.msra.mxu0 %v565
  %717 = vmatprep.subr.bf16.mxu0 0
  %718 = vmatpush1.bf16.msra.mxu0 %v566
  %719 = vmatprep.subr.bf16.mxu0 0
  %720 = vmatpush1.bf16.msra.mxu0 %v567
  %721 = vmatprep.subr.bf16.mxu0 0
  %722 = vmatpush1.bf16.msra.mxu0 %v568
  %723 = vmatprep.subr.bf16.mxu0 0
  %724 = vmatpush1.bf16.msra.mxu0 %v569
  %725 = vmatprep.subr.bf16.mxu0 0
  %726 = vmatpush1.bf16.msra.mxu0 %v570
  %727 = vmatprep.subr.bf16.mxu0 0
  %728 = vmatpush1.bf16.msra.mxu0 %v571
  %729 = vmatprep.subr.bf16.mxu0 0
  %730 = vmatpush1.bf16.msra.mxu0 %v572
  %731 = vmatprep.subr.bf16.mxu0 0
  %732 = vmatpush1.bf16.msra.mxu0 %v573
  %733 = vmatprep.subr.bf16.mxu0 0
  %734 = vmatpush1.bf16.msra.mxu0 %v574
  %735 = vmatprep.mubr.bf16.mxu0 %v85
  %736 = vmatmul.mubr.bf16.gmra.mrb[0].mxu0 %v84
  %v737 = vpop.f32.mrb[0].mxu0
  %v738 = vadd.f32 %v269, %v737
  %v739 = vpop.f32.mrb[0].mxu0
  %v740 = vpop.f32.mrb[0].mxu0
  %v741 = vadd.f32 %v269, %v740
  %v742 = vpop.f32.mrb[0].mxu0
  %743 = vmatprep.mubr.bf16.mxu0 %v94
  %744 = vmatmul.mubr.bf16.gmra.mrb[0].mxu0 %v93
  %v745 = vpop.f32.mrb[0].mxu0
  %v746 = vadd.f32 %v269, %v745
  %v747 = vpop.f32.mrb[0].mxu0
  %v748 = vpop.f32.mrb[0].mxu0
  %v749 = vadd.f32 %v269, %v748
  %v750 = vpop.f32.mrb[0].mxu0
  %751 = vmatprep.mubr.bf16.mxu0 %v103
  %752 = vmatmul.mubr.bf16.gmra.mrb[0].mxu0 %v102
  %v753 = vpop.f32.mrb[0].mxu0
  %v754 = vadd.f32 %v269, %v753
  %v755 = vpop.f32.mrb[0].mxu0
  %v756 = vpop.f32.mrb[0].mxu0
  %v757 = vadd.f32 %v269, %v756
  %v758 = vpop.f32.mrb[0].mxu0
  %759 = vmatprep.mubr.bf16.mxu0 %v112
  %760 = vmatmul.mubr.bf16.gmra.mrb[0].mxu0 %v111
  %v761 = vpop.f32.mrb[0].mxu0
  %v762 = vadd.f32 %v269, %v761
  %v763 = vpop.f32.mrb[0].mxu0
  %v764 = vpop.f32.mrb[0].mxu0
  %v765 = vpop.f32.mrb[0].mxu0
  %766 = vdwg.mxu0
  %767 = vmatprep.subr.bf16.mxu0 0
  %768 = vmatpush1.bf16.msra.mxu0 %v575
  %769 = vmatprep.subr.bf16.mxu0 0
  %770 = vmatpush1.bf16.msra.mxu0 %v576
  %771 = vmatprep.subr.bf16.mxu0 0
  %772 = vmatpush1.bf16.msra.mxu0 %v577
  %773 = vmatprep.subr.bf16.mxu0 0
  %774 = vmatpush1.bf16.msra.mxu0 %v578
  %775 = vmatprep.subr.bf16.mxu0 0
  %776 = vmatpush1.bf16.msra.mxu0 %v579
  %777 = vmatprep.subr.bf16.mxu0 0
  %778 = vmatpush1.bf16.msra.mxu0 %v580
  %779 = vmatprep.subr.bf16.mxu0 0
  %780 = vmatpush1.bf16.msra.mxu0 %v581
  %781 = vmatprep.subr.bf16.mxu0 0
  %782 = vmatpush1.bf16.msra.mxu0 %v582
  %783 = vmatprep.subr.bf16.mxu0 0
  %784 = vmatpush1.bf16.msra.mxu0 %v583
  %785 = vmatprep.subr.bf16.mxu0 0
  %786 = vmatpush1.bf16.msra.mxu0 %v584
  %787 = vmatprep.subr.bf16.mxu0 0
  %788 = vmatpush1.bf16.msra.mxu0 %v585
  %789 = vmatprep.subr.bf16.mxu0 0
  %790 = vmatpush1.bf16.msra.mxu0 %v586
  %791 = vmatprep.subr.bf16.mxu0 0
  %792 = vmatpush1.bf16.msra.mxu0 %v587
  %793 = vmatprep.subr.bf16.mxu0 0
  %794 = vmatpush1.bf16.msra.mxu0 %v588
  %795 = vmatprep.subr.bf16.mxu0 0
  %796 = vmatpush1.bf16.msra.mxu0 %v589
  %797 = vmatprep.subr.bf16.mxu0 0
  %798 = vmatpush1.bf16.msra.mxu0 %v590
  %799 = vmatprep.mubr.bf16.mxu0 %v87
  %800 = vmatmul.mubr.bf16.gmra.mrb[0].mxu0 %v86
  %v801 = vpop.f32.mrb[0].mxu0
  %v802 = vadd.f32 %v738, %v801
  %v803 = vpop.f32.mrb[0].mxu0
  %v804 = vpop.f32.mrb[0].mxu0
  %v805 = vadd.f32 %v741, %v804
  %v806 = vpop.f32.mrb[0].mxu0
  %807 = vmatprep.mubr.bf16.mxu0 %v96
  %808 = vmatmul.mubr.bf16.gmra.mrb[0].mxu0 %v95
  %v809 = vpop.f32.mrb[0].mxu0
  %v810 = vadd.f32 %v746, %v809
  %v811 = vpop.f32.mrb[0].mxu0
  %v812 = vpop.f32.mrb[0].mxu0
  %v813 = vadd.f32 %v749, %v812
  %v814 = vpop.f32.mrb[0].mxu0
  %815 = vmatprep.mubr.bf16.mxu0 %v105
  %816 = vmatmul.mubr.bf16.gmra.mrb[0].mxu0 %v104
  %v817 = vpop.f32.mrb[0].mxu0
  %v818 = vadd.f32 %v754, %v817
  %v819 = vpop.f32.mrb[0].mxu0
  %v820 = vpop.f32.mrb[0].mxu0
  %v821 = vadd.f32 %v757, %v820
  %v822 = vpop.f32.mrb[0].mxu0
  %823 = vmatprep.mubr.bf16.mxu0 %v114
  %824 = vmatmul.mubr.bf16.gmra.mrb[0].mxu0 %v113
  %v825 = vpop.f32.mrb[0].mxu0
  %v826 = vadd.f32 %v762, %v825
  %v827 = vpop.f32.mrb[0].mxu0
  %v828 = vpop.f32.mrb[0].mxu0
  %v829 = vpop.f32.mrb[0].mxu0
  %830 = vdwg.mxu0
  %831 = vmatprep.subr.bf16.mxu0 0
  %832 = vmatpush1.bf16.msra.mxu0 %v591
  %833 = vmatprep.subr.bf16.mxu0 0
  %834 = vmatpush1.bf16.msra.mxu0 %v592
  %835 = vmatprep.subr.bf16.mxu0 0
  %836 = vmatpush1.bf16.msra.mxu0 %v593
  %837 = vmatprep.subr.bf16.mxu0 0
  %838 = vmatpush1.bf16.msra.mxu0 %v594
  %839 = vmatprep.subr.bf16.mxu0 0
  %840 = vmatpush1.bf16.msra.mxu0 %v595
  %841 = vmatprep.subr.bf16.mxu0 0
  %842 = vmatpush1.bf16.msra.mxu0 %v596
  %843 = vmatprep.subr.bf16.mxu0 0
  %844 = vmatpush1.bf16.msra.mxu0 %v597
  %845 = vmatprep.subr.bf16.mxu0 0
  %846 = vmatpush1.bf16.msra.mxu0 %v598
  %847 = vmatprep.subr.bf16.mxu0 0
  %848 = vmatpush1.bf16.msra.mxu0 %v599
  %849 = vmatprep.subr.bf16.mxu0 0
  %850 = vmatpush1.bf16.msra.mxu0 %v600
  %851 = vmatprep.subr.bf16.mxu0 0
  %852 = vmatpush1.bf16.msra.mxu0 %v601
  %853 = vmatprep.subr.bf16.mxu0 0
  %854 = vmatpush1.bf16.msra.mxu0 %v602
  %855 = vmatprep.subr.bf16.mxu0 0
  %856 = vmatpush1.bf16.msra.mxu0 %v603
  %857 = vmatprep.subr.bf16.mxu0 0
  %858 = vmatpush1.bf16.msra.mxu0 %v604
  %859 = vmatprep.subr.bf16.mxu0 0
  %860 = vmatpush1.bf16.msra.mxu0 %v605
  %861 = vmatprep.subr.bf16.mxu0 0
  %862 = vmatpush1.bf16.msra.mxu0 %v606
  %863 = vmatprep.mubr.bf16.mxu0 %v89
  %864 = vmatmul.mubr.bf16.gmra.mrb[0].mxu0 %v88
  %v865 = vpop.f32.mrb[0].mxu0
  %v866 = vadd.f32 %v802, %v865
  %v867 = vpop.f32.mrb[0].mxu0
  %v868 = vpop.f32.mrb[0].mxu0
  %v869 = vadd.f32 %v805, %v868
  %v870 = vpop.f32.mrb[0].mxu0
  %871 = vmatprep.mubr.bf16.mxu0 %v98
  %872 = vmatmul.mubr.bf16.gmra.mrb[0].mxu0 %v97
  %v873 = vpop.f32.mrb[0].mxu0
  %v874 = vadd.f32 %v810, %v873
  %v875 = vpop.f32.mrb[0].mxu0
  %v876 = vpop.f32.mrb[0].mxu0
  %v877 = vadd.f32 %v813, %v876
  %v878 = vpop.f32.mrb[0].mxu0
  %879 = vmatprep.mubr.bf16.mxu0 %v107
  %880 = vmatmul.mubr.bf16.gmra.mrb[0].mxu0 %v106
  %v881 = vpop.f32.mrb[0].mxu0
  %v882 = vadd.f32 %v818, %v881
  %v883 = vpop.f32.mrb[0].mxu0
  %v884 = vpop.f32.mrb[0].mxu0
  %v885 = vadd.f32 %v821, %v884
  %v886 = vpop.f32.mrb[0].mxu0
  %887 = vmatprep.mubr.bf16.mxu0 %v116
  %888 = vmatmul.mubr.bf16.gmra.mrb[0].mxu0 %v115
  %v889 = vpop.f32.mrb[0].mxu0
  %v890 = vadd.f32 %v826, %v889
  %v891 = vpop.f32.mrb[0].mxu0
  %v892 = vpop.f32.mrb[0].mxu0
  %v893 = vpop.f32.mrb[0].mxu0
  %894 = vdwg.mxu0
  %895 = vmatprep.subr.bf16.mxu0 0
  %896 = vmatpush1.bf16.msra.mxu0 %v607
  %897 = vmatprep.subr.bf16.mxu0 0
  %898 = vmatpush1.bf16.msra.mxu0 %v608
  %899 = vmatprep.subr.bf16.mxu0 0
  %900 = vmatpush1.bf16.msra.mxu0 %v609
  %901 = vmatprep.subr.bf16.mxu0 0
  %902 = vmatpush1.bf16.msra.mxu0 %v610
  %903 = vmatprep.subr.bf16.mxu0 0
  %904 = vmatpush1.bf16.msra.mxu0 %v611
  %905 = vmatprep.subr.bf16.mxu0 0
  %906 = vmatpush1.bf16.msra.mxu0 %v612
  %907 = vmatprep.subr.bf16.mxu0 0
  %908 = vmatpush1.bf16.msra.mxu0 %v613
  %909 = vmatprep.subr.bf16.mxu0 0
  %910 = vmatpush1.bf16.msra.mxu0 %v614
  %911 = vmatprep.subr.bf16.mxu0 0
  %912 = vmatpush1.bf16.msra.mxu0 %v615
  %913 = vmatprep.subr.bf16.mxu0 0
  %914 = vmatpush1.bf16.msra.mxu0 %v616
  %915 = vmatprep.subr.bf16.mxu0 0
  %916 = vmatpush1.bf16.msra.mxu0 %v617
  %917 = vmatprep.subr.bf16.mxu0 0
  %918 = vmatpush1.bf16.msra.mxu0 %v618
  %919 = vmatprep.subr.bf16.mxu0 0
  %920 = vmatpush1.bf16.msra.mxu0 %v619
  %921 = vmatprep.subr.bf16.mxu0 0
  %922 = vmatpush1.bf16.msra.mxu0 %v620
  %923 = vmatprep.subr.bf16.mxu0 0
  %924 = vmatpush1.bf16.msra.mxu0 %v621
  %925 = vmatprep.subr.bf16.mxu0 0
  %926 = vmatpush1.bf16.msra.mxu0 %v622
  %927 = vmatprep.mubr.bf16.mxu0 %v91
  %928 = vmatmul.mubr.bf16.gmra.mrb[0].mxu0 %v90
  %v929 = vpop.f32.mrb[0].mxu0
  %v930 = vadd.f32 %v866, %v929
  %v931 = vpop.f32.mrb[0].mxu0
  %v932 = vpop.f32.mrb[0].mxu0
  %v933 = vadd.f32 %v869, %v932
  %v934 = vpop.f32.mrb[0].mxu0
  %935 = vmatprep.mubr.bf16.mxu0 %v100
  %936 = vmatmul.mubr.bf16.gmra.mrb[0].mxu0 %v99
  %v937 = vpop.f32.mrb[0].mxu0
  %v938 = vadd.f32 %v874, %v937
  %v939 = vpop.f32.mrb[0].mxu0
  %v940 = vpop.f32.mrb[0].mxu0
  %v941 = vadd.f32 %v877, %v940
  %v942 = vpop.f32.mrb[0].mxu0
  %943 = vmatprep.mubr.bf16.mxu0 %v109
  %944 = vmatmul.mubr.bf16.gmra.mrb[0].mxu0 %v108
  %v945 = vpop.f32.mrb[0].mxu0
  %v946 = vadd.f32 %v882, %v945
  %v947 = vpop.f32.mrb[0].mxu0
  %v948 = vpop.f32.mrb[0].mxu0
  %v949 = vadd.f32 %v885, %v948
  %v950 = vpop.f32.mrb[0].mxu0
  %951 = vmatprep.mubr.bf16.mxu0 %v118
  %952 = vmatmul.mubr.bf16.gmra.mrb[0].mxu0 %v117
  %v953 = vpop.f32.mrb[0].mxu0
  %v954 = vadd.f32 %v890, %v953
  %v955 = vpop.f32.mrb[0].mxu0
  %v956 = vpop.f32.mrb[0].mxu0
  %v957 = vpop.f32.mrb[0].mxu0
  %958 = vdwg.mxu0
  %959 = vmatprep.subr.bf16.mxu0 0
  %960 = vmatpush1.bf16.msra.mxu0 %v623
  %961 = vmatprep.subr.bf16.mxu0 0
  %962 = vmatpush1.bf16.msra.mxu0 %v624
  %963 = vmatprep.subr.bf16.mxu0 0
  %964 = vmatpush1.bf16.msra.mxu0 %v625
  %965 = vmatprep.subr.bf16.mxu0 0
  %966 = vmatpush1.bf16.msra.mxu0 %v626
  %967 = vmatprep.subr.bf16.mxu0 0
  %968 = vmatpush1.bf16.msra.mxu0 %v627
  %969 = vmatprep.subr.bf16.mxu0 0
  %970 = vmatpush1.bf16.msra.mxu0 %v628
  %971 = vmatprep.subr.bf16.mxu0 0
  %972 = vmatpush1.bf16.msra.mxu0 %v629
  %973 = vmatprep.subr.bf16.mxu0 0
  %974 = vmatpush1.bf16.msra.mxu0 %v630
  %975 = vmatprep.subr.bf16.mxu0 0
  %976 = vmatpush1.bf16.msra.mxu0 0
  %977 = vmatprep.subr.bf16.mxu0 0
  %978 = vmatpush1.bf16.msra.mxu0 0
  %979 = vmatprep.subr.bf16.mxu0 0
  %980 = vmatpush1.bf16.msra.mxu0 0
  %981 = vmatprep.subr.bf16.mxu0 0
  %982 = vmatpush1.bf16.msra.mxu0 0
  %983 = vmatprep.subr.bf16.mxu0 0
  %984 = vmatpush1.bf16.msra.mxu0 0
  %985 = vmatprep.subr.bf16.mxu0 0
  %986 = vmatpush1.bf16.msra.mxu0 0
  %987 = vmatprep.subr.bf16.mxu0 0
  %988 = vmatpush1.bf16.msra.mxu0 0
  %989 = vmatprep.subr.bf16.mxu0 0
  %990 = vmatpush1.bf16.msra.mxu0 0
  %991 = vmatprep.mubr.bf16.mxu0 0
  %992 = vmatmul.mubr.bf16.gmra.mrb[0].mxu0 %v92
  %v993 = vpop.f32.mrb[0].mxu0
  %v994 = vadd.f32 %v930, %v993
  %v995 = vpop.f32.mrb[0].mxu0
  %v996 = vpop.f32.mrb[0].mxu0
  %v997 = vadd.f32 %v933, %v996
  %v998 = vpop.f32.mrb[0].mxu0
  %999 = vmatprep.mubr.bf16.mxu0 0
  %1000 = vmatmul.mubr.bf16.gmra.mrb[0].mxu0 %v101
  %v1001 = vpop.f32.mrb[0].mxu0
  %v1002 = vadd.f32 %v938, %v1001
  %v1003 = vpop.f32.mrb[0].mxu0
  %v1004 = vpop.f32.mrb[0].mxu0
  %v1005 = vadd.f32 %v941, %v1004
  %v1006 = vpop.f32.mrb[0].mxu0
  %1007 = vmatprep.mubr.bf16.mxu0 0
  %1008 = vmatmul.mubr.bf16.gmra.mrb[0].mxu0 %v110
  %v1009 = vpop.f32.mrb[0].mxu0
  %v1010 = vadd.f32 %v946, %v1009
  %v1011 = vpop.f32.mrb[0].mxu0
  %v1012 = vpop.f32.mrb[0].mxu0
  %v1013 = vadd.f32 %v949, %v1012
  %v1014 = vpop.f32.mrb[0].mxu0
  %1015 = vmatprep.mubr.bf16.mxu0 0
  %1016 = vmatmul.mubr.bf16.gmra.mrb[0].mxu0 %v119
  %v1017 = vpop.f32.mrb[0].mxu0
  %v1018 = vadd.f32 %v954, %v1017
  %v1019 = vpop.f32.mrb[0].mxu0
  %v1020 = vpop.f32.mrb[0].mxu0
  %v1021 = vpop.f32.mrb[0].mxu0
  %1022 = vdwg.mxu0
  %v1023 = vadd.f32 %v994, %v997
  %v1024 = vadd.f32 %v1023, %v1002
  %v1025 = vadd.f32 %v1024, %v1005
  %v1026 = vadd.f32 %v1025, %v1010
  %v1027 = vadd.f32 %v1026, %v1013
  %v1028 = vadd.f32 %v1027, %v1018
  %v1029 = vrot.slane %v1028, 4
  %v1030 = vadd.f32 %v1028, %v1029
  %v1031 = vrot.slane %v1030, 2
  %v1032 = vadd.f32 %v1030, %v1031
  %v1033 = vrot.slane %v1032, 1
  %v1034 = vadd.f32 %v1032, %v1033
  %v1035 = vrcp.pop 56.0
  %v1036 = vmul.f32 %v1034, %v1035
  %v1037 = vsub.f32 %v994, %v1036
  %v1038 = vsub.f32 %v997, %v1036
  %v1039 = vsub.f32 %v1002, %v1036
  %v1040 = vsub.f32 %v1005, %v1036
  %v1041 = vsub.f32 %v1010, %v1036
  %v1042 = vsub.f32 %v1013, %v1036
  %v1043 = vsub.f32 %v1018, %v1036
  %v1044 = vmul.f32 %v1037, %v1037
  %v1045 = vmul.f32 %v1038, %v1038
  %v1046 = vmul.f32 %v1039, %v1039
  %v1047 = vmul.f32 %v1040, %v1040
  %v1048 = vmul.f32 %v1041, %v1041
  %v1049 = vmul.f32 %v1042, %v1042
  %v1050 = vmul.f32 %v1043, %v1043
  %v1051 = vadd.f32 %v1044, %v1045
  %v1052 = vadd.f32 %v1051, %v1046
  %v1053 = vadd.f32 %v1052, %v1047
  %v1054 = vadd.f32 %v1053, %v1048
  %v1055 = vadd.f32 %v1054, %v1049
  %v1056 = vadd.f32 %v1055, %v1050
  %v1057 = vrot.slane %v1056, 4
  %v1058 = vadd.f32 %v1056, %v1057
  %v1059 = vrot.slane %v1058, 2
  %v1060 = vadd.f32 %v1058, %v1059
  %v1061 = vrot.slane %v1060, 1
  %v1062 = vadd.f32 %v1060, %v1061
  %v1063 = vmul.f32 %v1062, %v1035
  %v1064 = vadd.f32 %v1063, 1e-05
  %v1065 = vrsqrt.pop %v1064
  %v1066 = vmul.f32 %v1037, %v1065
  %v1067 = vmul.f32 %v1038, %v1065
  %v1068 = vmul.f32 %v1039, %v1065
  %v1069 = vmul.f32 %v1040, %v1065
  %v1070 = vmul.f32 %v1041, %v1065
  %v1071 = vmul.f32 %v1042, %v1065
  %v1072 = vmul.f32 %v1043, %v1065
  %v1073 = vld [vmem:[%s3] sm:$0x1]
  %v1075 = vlaneseq
  %v1076 = vshrl.u32 %v1075, 7
  %v1077 = vsub.s32 0, %v1076
  %v1078 = vrot.slane %v1073, %v1077
  %v1080 = vmul.f32 %v1066, %v1078
  %v1081 = vmul.f32 %v1067, %v1078
  %v1082 = vmul.f32 %v1068, %v1078
  %v1083 = vmul.f32 %v1069, %v1078
  %v1084 = vmul.f32 %v1070, %v1078
  %v1085 = vmul.f32 %v1071, %v1078
  %v1086 = vmul.f32 %v1072, %v1078
  %v1087 = vld [vmem:[%s4] sm:$0x1]
  %v1089 = vlaneseq
  %v1090 = vshrl.u32 %v1089, 7
  %v1091 = vsub.s32 0, %v1090
  %v1092 = vrot.slane %v1087, %v1091
  %v1094 = vadd.f32 %v1080, %v1092
  %v1095 = vadd.f32 %v1081, %v1092
  %v1096 = vadd.f32 %v1082, %v1092
  %v1097 = vadd.f32 %v1083, %v1092
  %v1098 = vadd.f32 %v1084, %v1092
  %v1099 = vadd.f32 %v1085, %v1092
  %v1100 = vadd.f32 %v1086, %v1092
  %v1101 = vmax.f32 %v1094, 0.0
  %v1102 = vmax.f32 %v1095, 0.0
  %v1103 = vmax.f32 %v1096, 0.0
  %v1104 = vmax.f32 %v1097, 0.0
  %v1105 = vmax.f32 %v1098, 0.0
  %v1106 = vmax.f32 %v1099, 0.0
  %v1107 = vmax.f32 %v1100, 0.0
  %1108 = vst [vmem:[%s5] sm:$0xff] %v1101
  %1109 = vst [vmem:[%s5 + $0x8] sm:$0xff] %v1102
  %1110 = vst [vmem:[%s5 + $0x10] sm:$0xff] %v1103
  %1111 = vst [vmem:[%s5 + $0x18] sm:$0xff] %v1104
  %1112 = vst [vmem:[%s5 + $0x20] sm:$0xff] %v1105
  %1113 = vst [vmem:[%s5 + $0x28] sm:$0xff] %v1106
  %1114 = vst [vmem:[%s5 + $0x30] sm:$0xff] %v1107
  // Predicated region
  $region22: #{cnn_forward.6} parent=0 // pred_check
    _
  $region23: #{cnn_forward.6} parent=0 // pred_check_branch
    %1116 = sbr.rel (0) target = $region25
  $region24: #{cnn_forward.6} parent=0 // pred_region
    _
  $region25: #{cnn_forward.6} parent=0 // pred_fallthru
    _
  // Predicated region
  $region26: #{cnn_forward.6} parent=0 // pred_check
    _
  $region27: #{cnn_forward.6} parent=0 // pred_check_branch
    %1118 = sbr.rel (0) target = $region29
  $region28: #{cnn_forward.6} parent=0 // pred_region
    _
  $region29: #{cnn_forward.6} parent=0 // pred_fallthru
    _

// kernel: cnn_forward.7
$region0: #{cnn_forward.7}
  #allocation0 [shape = 'u32[]', space=smem, size = 0x4, offset = 0x4, fixed_abs, tag = 'smem constant byte address 0x4 - core index']
  #allocation1 [shape = 'u32[144,128]{1,0:T(1,128)}', space=vmem, size = 0x12000, scoped, tag = 'internal scratch']
  %s0 = inlined_call_operand.vmem [shape: f32[2,3584], index: 0, kind: input, shape index: {}]
  %s1 = inlined_call_operand.vmem [shape: bf16[3584,512], index: 1, kind: input, shape index: {}]
  %s2 = inlined_call_operand.vmem [shape: f32[1,512], index: 2, kind: input, shape index: {}]
  %s3 = inlined_call_operand.vmem [shape: bf16[512,128], index: 3, kind: input, shape index: {}]
  %s4 = inlined_call_operand.vmem [shape: f32[1,128], index: 4, kind: input, shape index: {}]
  %s5 = inlined_call_operand.hbm [shape: f32[2,128], index: 5, kind: output, shape index: {}]
  %s6 = sld [smem:[#allocation0]]
  $region30: #{cnn_forward.7} parent=0
    _
  %s8 = ssub.s32 1, %s6
  %s9 = scalar_select 0, %s8, %s6
  $region1: #{cnn_forward.7} parent=0
    #allocation2 [shape = 'u8[1024]{0}', space=vmem, size = 0x400, scoped, tag = 'output window, operand 0, single buffered']
    #allocation3 [shape = 's32[1]{0}', space=sflag, size = 0x4, scoped, tag = 'scoped memory for cnn_forward.7']
    %10 = vsyncpa [#allocation3], 0
    // Predicated region
    $region2: #{cnn_forward.7} parent=1 // pred_check
      _
    $region3: #{cnn_forward.7} parent=1 // pred_check_branch
      %12 = sbr.rel (0) target = $region5
    $region4: #{cnn_forward.7} parent=1 // pred_region
      _
    $region5: #{cnn_forward.7} parent=1 // pred_fallthru
      _
    // Predicated region
    $region6: #{cnn_forward.7} parent=1 // pred_check
      _
    $region7: #{cnn_forward.7} parent=1 // pred_check_branch
      %14 = sbr.rel (0) target = $region9
    $region8: #{cnn_forward.7} parent=1 // pred_region
      _
    $region9: #{cnn_forward.7} parent=1 // pred_fallthru
      _
    // Predicated region
    $region10: #{cnn_forward.7} parent=1 // pred_check
      _
    $region11: #{cnn_forward.7} parent=1 // pred_check_branch
      %16 = sbr.rel (0) target = $region13
    $region12: #{cnn_forward.7} parent=1 // pred_region
      _
    $region13: #{cnn_forward.7} parent=1 // pred_fallthru
      _
    // Predicated region
    $region14: #{cnn_forward.7} parent=1 // pred_check
      _
    $region15: #{cnn_forward.7} parent=1 // pred_check_branch
      %18 = sbr.rel (0) target = $region17
    $region16: #{cnn_forward.7} parent=1 // pred_region
      _
    $region17: #{cnn_forward.7} parent=1 // pred_fallthru
      _
    // Predicated region
    $region18: #{cnn_forward.7} parent=1 // pred_check
      _
    $region19: #{cnn_forward.7} parent=1 // pred_check_branch
      %20 = sbr.rel (0) target = $region21
    $region20: #{cnn_forward.7} parent=1 // pred_region
      _
    $region21: #{cnn_forward.7} parent=1 // pred_fallthru
      _
    %v22 = vld [vmem:[%s0] sm:$0xff]
    %v23 = vld [vmem:[%s0 + $0x8] sm:$0xff]
    %v24 = vld [vmem:[%s0 + $0x10] sm:$0xff]
    %v25 = vld [vmem:[%s0 + $0x18] sm:$0xff]
    %v26 = vld [vmem:[%s0 + $0x20] sm:$0xff]
    %v27 = vld [vmem:[%s0 + $0x28] sm:$0xff]
    %v28 = vld [vmem:[%s0 + $0x30] sm:$0xff]
    %v36 = vcombine.high %v22, %v22
    %v38 = vunpack.c.l.s4 1983009808
    %v39 = vunpack.c.0.s8 %v38
    %v40 = vlaneseq
    %v41 = vshrl.u32 %v40, 7
    %v42 = vsub.s32 %v39, %v41
    %v43 = vrot.slane %v22, %v42
    %v45 = vunpack.c.l.s4 1983009808
    %v46 = vunpack.c.0.s8 %v45
    %v47 = vlaneseq
    %v48 = vshrl.u32 %v47, 7
    %v49 = vsub.s32 %v46, %v48
    %v50 = vrot.slane %v36, %v49
    %v51 = vcombine.high %v43, %v43
    %v52 = vcombine.high %v50, %v50
    %v53 = vcombine.high %v23, %v23
    %v55 = vunpack.c.l.s4 1983009808
    %v56 = vunpack.c.0.s8 %v55
    %v57 = vlaneseq
    %v58 = vshrl.u32 %v57, 7
    %v59 = vsub.s32 %v56, %v58
    %v60 = vrot.slane %v23, %v59
    %v62 = vunpack.c.l.s4 1983009808
    %v63 = vunpack.c.0.s8 %v62
    %v64 = vlaneseq
    %v65 = vshrl.u32 %v64, 7
    %v66 = vsub.s32 %v63, %v65
    %v67 = vrot.slane %v53, %v66
    %v68 = vcombine.high %v60, %v60
    %v69 = vcombine.high %v67, %v67
    %v70 = vcombine.high %v24, %v24
    %v72 = vunpack.c.l.s4 1983009808
    %v73 = vunpack.c.0.s8 %v72
    %v74 = vlaneseq
    %v75 = vshrl.u32 %v74, 7
    %v76 = vsub.s32 %v73, %v75
    %v77 = vrot.slane %v24, %v76
    %v79 = vunpack.c.l.s4 1983009808
    %v80 = vunpack.c.0.s8 %v79
    %v81 = vlaneseq
    %v82 = vshrl.u32 %v81, 7
    %v83 = vsub.s32 %v80, %v82
    %v84 = vrot.slane %v70, %v83
    %v85 = vcombine.high %v77, %v77
    %v86 = vcombine.high %v84, %v84
    %v87 = vcombine.high %v25, %v25
    %v89 = vunpack.c.l.s4 1983009808
    %v90 = vunpack.c.0.s8 %v89
    %v91 = vlaneseq
    %v92 = vshrl.u32 %v91, 7
    %v93 = vsub.s32 %v90, %v92
    %v94 = vrot.slane %v25, %v93
    %v96 = vunpack.c.l.s4 1983009808
    %v97 = vunpack.c.0.s8 %v96
    %v98 = vlaneseq
    %v99 = vshrl.u32 %v98, 7
    %v100 = vsub.s32 %v97, %v99
    %v101 = vrot.slane %v87, %v100
    %v102 = vcombine.high %v94, %v94
    %v103 = vcombine.high %v101, %v101
    %v104 = vcombine.high %v26, %v26
    %v106 = vunpack.c.l.s4 1983009808
    %v107 = vunpack.c.0.s8 %v106
    %v108 = vlaneseq
    %v109 = vshrl.u32 %v108, 7
    %v110 = vsub.s32 %v107, %v109
    %v111 = vrot.slane %v26, %v110
    %v113 = vunpack.c.l.s4 1983009808
    %v114 = vunpack.c.0.s8 %v113
    %v115 = vlaneseq
    %v116 = vshrl.u32 %v115, 7
    %v117 = vsub.s32 %v114, %v116
    %v118 = vrot.slane %v104, %v117
    %v119 = vcombine.high %v111, %v111
    %v120 = vcombine.high %v118, %v118
    %v121 = vcombine.high %v27, %v27
    %v123 = vunpack.c.l.s4 1983009808
    %v124 = vunpack.c.0.s8 %v123
    %v125 = vlaneseq
    %v126 = vshrl.u32 %v125, 7
    %v127 = vsub.s32 %v124, %v126
    %v128 = vrot.slane %v27, %v127
    %v130 = vunpack.c.l.s4 1983009808
    %v131 = vunpack.c.0.s8 %v130
    %v132 = vlaneseq
    %v133 = vshrl.u32 %v132, 7
    %v134 = vsub.s32 %v131, %v133
    %v135 = vrot.slane %v121, %v134
    %v136 = vcombine.high %v128, %v128
    %v137 = vcombine.high %v135, %v135
    %v138 = vcombine.high %v28, %v28
    %v140 = vunpack.c.l.s4 1983009808
    %v141 = vunpack.c.0.s8 %v140
    %v142 = vlaneseq
    %v143 = vshrl.u32 %v142, 7
    %v144 = vsub.s32 %v141, %v143
    %v145 = vrot.slane %v28, %v144
    %v147 = vunpack.c.l.s4 1983009808
    %v148 = vunpack.c.0.s8 %v147
    %v149 = vlaneseq
    %v150 = vshrl.u32 %v149, 7
    %v151 = vsub.s32 %v148, %v150
    %v152 = vrot.slane %v138, %v151
    %v153 = vcombine.high %v145, %v145
    %v154 = vcombine.high %v152, %v152
    %v183 = vpack.c.bf16 %v43, %v43
    %v184 = vpack.c.bf16 %v51, %v51
    %v185 = vpack.c.bf16 %v50, %v50
    %v186 = vpack.c.bf16 %v52, %v52
    %v187 = vpack.c.bf16 %v60, %v60
    %v188 = vpack.c.bf16 %v68, %v68
    %v189 = vpack.c.bf16 %v67, %v67
    %v190 = vpack.c.bf16 %v69, %v69
    %v191 = vpack.c.bf16 %v77, %v77
    %v192 = vpack.c.bf16 %v85, %v85
    %v193 = vpack.c.bf16 %v84, %v84
    %v194 = vpack.c.bf16 %v86, %v86
    %v195 = vpack.c.bf16 %v94, %v94
    %v196 = vpack.c.bf16 %v102, %v102
    %v197 = vpack.c.bf16 %v101, %v101
    %v198 = vpack.c.bf16 %v103, %v103
    %v199 = vpack.c.bf16 %v111, %v111
    %v200 = vpack.c.bf16 %v119, %v119
    %v201 = vpack.c.bf16 %v118, %v118
    %v202 = vpack.c.bf16 %v120, %v120
    %v203 = vpack.c.bf16 %v128, %v128
    %v204 = vpack.c.bf16 %v136, %v136
    %v205 = vpack.c.bf16 %v135, %v135
    %v206 = vpack.c.bf16 %v137, %v137
    %v207 = vpack.c.bf16 %v145, %v145
    %v208 = vpack.c.bf16 %v153, %v153
    %v209 = vpack.c.bf16 %v152, %v152
    %v210 = vpack.c.bf16 %v154, %v154
    %v211 = vld [vmem:[%s1] sm:$0xff]
    %v212 = vld [vmem:[%s1 + $0x8] sm:$0xff]
    %v213 = vld [vmem:[%s1 + $0x10] sm:$0xff]
    %v214 = vld [vmem:[%s1 + $0x18] sm:$0xff]
    %v215 = vld [vmem:[%s1 + $0x20] sm:$0xff]
    %v216 = vld [vmem:[%s1 + $0x28] sm:$0xff]
    %v217 = vld [vmem:[%s1 + $0x30] sm:$0xff]
    %v218 = vld [vmem:[%s1 + $0x38] sm:$0xff]
    %v219 = vld [vmem:[%s1 + $0x40] sm:$0xff]
    %v220 = vld [vmem:[%s1 + $0x48] sm:$0xff]
    %v221 = vld [vmem:[%s1 + $0x50] sm:$0xff]
    %v222 = vld [vmem:[%s1 + $0x58] sm:$0xff]
    %v223 = vld [vmem:[%s1 + $0x60] sm:$0xff]
    %v224 = vld [vmem:[%s1 + $0x68] sm:$0xff]
    %v225 = vld [vmem:[%s1 + $0x70] sm:$0xff]
    %v226 = vld [vmem:[%s1 + $0x78] sm:$0xff]
    %v227 = vld [vmem:[%s1 + $0x80] sm:$0xff]
    %v228 = vld [vmem:[%s1 + $0x88] sm:$0xff]
    %v229 = vld [vmem:[%s1 + $0x90] sm:$0xff]
    %v230 = vld [vmem:[%s1 + $0x98] sm:$0xff]
    %v231 = vld [vmem:[%s1 + $0xa0] sm:$0xff]
    %v232 = vld [vmem:[%s1 + $0xa8] sm:$0xff]
    %v233 = vld [vmem:[%s1 + $0xb0] sm:$0xff]
    %v234 = vld [vmem:[%s1 + $0xb8] sm:$0xff]
    %v235 = vld [vmem:[%s1 + $0xc0] sm:$0xff]
    %v236 = vld [vmem:[%s1 + $0xc8] sm:$0xff]
    %v237 = vld [vmem:[%s1 + $0xd0] sm:$0xff]
    %v238 = vld [vmem:[%s1 + $0xd8] sm:$0xff]
    %v239 = vld [vmem:[%s1 + $0xe0] sm:$0xff]
    %v240 = vld [vmem:[%s1 + $0xe8] sm:$0xff]
    %v241 = vld [vmem:[%s1 + $0xf0] sm:$0xff]
    %v242 = vld [vmem:[%s1 + $0xf8] sm:$0xff]
    %v243 = vld [vmem:[%s1 + $0x100] sm:$0xff]
    %v244 = vld [vmem:[%s1 + $0x108] sm:$0xff]
    %v245 = vld [vmem:[%s1 + $0x110] sm:$0xff]
    %v246 = vld [vmem:[%s1 + $0x118] sm:$0xff]
    %v247 = vld [vmem:[%s1 + $0x120] sm:$0xff]
    %v248 = vld [vmem:[%s1 + $0x128] sm:$0xff]
    %v249 = vld [vmem:[%s1 + $0x130] sm:$0xff]
    %v250 = vld [vmem:[%s1 + $0x138] sm:$0xff]
    %v251 = vld [vmem:[%s1 + $0x140] sm:$0xff]
    %v252 = vld [vmem:[%s1 + $0x148] sm:$0xff]
    %v253 = vld [vmem:[%s1 + $0x150] sm:$0xff]
    %v254 = vld [vmem:[%s1 + $0x158] sm:$0xff]
    %v255 = vld [vmem:[%s1 + $0x160] sm:$0xff]
    %v256 = vld [vmem:[%s1 + $0x168] sm:$0xff]
    %v257 = vld [vmem:[%s1 + $0x170] sm:$0xff]
    %v258 = vld [vmem:[%s1 + $0x178] sm:$0xff]
    %v259 = vld [vmem:[%s1 + $0x180] sm:$0xff]
    %v260 = vld [vmem:[%s1 + $0x188] sm:$0xff]
    %v261 = vld [vmem:[%s1 + $0x190] sm:$0xff]
    %v262 = vld [vmem:[%s1 + $0x198] sm:$0xff]
    %v263 = vld [vmem:[%s1 + $0x1a0] sm:$0xff]
    %v264 = vld [vmem:[%s1 + $0x1a8] sm:$0xff]
    %v265 = vld [vmem:[%s1 + $0x1b0] sm:$0xff]
    %v266 = vld [vmem:[%s1 + $0x1b8] sm:$0xff]
    %v267 = vld [vmem:[%s1 + $0x1c0] sm:$0xff]
    %v268 = vld [vmem:[%s1 + $0x1c8] sm:$0xff]
    %v269 = vld [vmem:[%s1 + $0x1d0] sm:$0xff]
    %v270 = vld [vmem:[%s1 + $0x1d8] sm:$0xff]
    %v271 = vld [vmem:[%s1 + $0x1e0] sm:$0xff]
    %v272 = vld [vmem:[%s1 + $0x1e8] sm:$0xff]
    %v273 = vld [vmem:[%s1 + $0x1f0] sm:$0xff]
    %v274 = vld [vmem:[%s1 + $0x1f8] sm:$0xff]
    %v275 = vld [vmem:[%s1 + $0x200] sm:$0xff]
    %v276 = vld [vmem:[%s1 + $0x208] sm:$0xff]
    %v277 = vld [vmem:[%s1 + $0x210] sm:$0xff]
    %v278 = vld [vmem:[%s1 + $0x218] sm:$0xff]
    %v279 = vld [vmem:[%s1 + $0x220] sm:$0xff]
    %v280 = vld [vmem:[%s1 + $0x228] sm:$0xff]
    %v281 = vld [vmem:[%s1 + $0x230] sm:$0xff]
    %v282 = vld [vmem:[%s1 + $0x238] sm:$0xff]
    %v283 = vld [vmem:[%s1 + $0x240] sm:$0xff]
    %v284 = vld [vmem:[%s1 + $0x248] sm:$0xff]
    %v285 = vld [vmem:[%s1 + $0x250] sm:$0xff]
    %v286 = vld [vmem:[%s1 + $0x258] sm:$0xff]
    %v287 = vld [vmem:[%s1 + $0x260] sm:$0xff]
    %v288 = vld [vmem:[%s1 + $0x268] sm:$0xff]
    %v289 = vld [vmem:[%s1 + $0x270] sm:$0xff]
    %v290 = vld [vmem:[%s1 + $0x278] sm:$0xff]
    %v291 = vld [vmem:[%s1 + $0x280] sm:$0xff]
    %v292 = vld [vmem:[%s1 + $0x288] sm:$0xff]
    %v293 = vld [vmem:[%s1 + $0x290] sm:$0xff]
    %v294 = vld [vmem:[%s1 + $0x298] sm:$0xff]
    %v295 = vld [vmem:[%s1 + $0x2a0] sm:$0xff]
    %v296 = vld [vmem:[%s1 + $0x2a8] sm:$0xff]
    %v297 = vld [vmem:[%s1 + $0x2b0] sm:$0xff]
    %v298 = vld [vmem:[%s1 + $0x2b8] sm:$0xff]
    %v299 = vld [vmem:[%s1 + $0x2c0] sm:$0xff]
    %v300 = vld [vmem:[%s1 + $0x2c8] sm:$0xff]
    %v301 = vld [vmem:[%s1 + $0x2d0] sm:$0xff]
    %v302 = vld [vmem:[%s1 + $0x2d8] sm:$0xff]
    %v303 = vld [vmem:[%s1 + $0x2e0] sm:$0xff]
    %v304 = vld [vmem:[%s1 + $0x2e8] sm:$0xff]
    %v305 = vld [vmem:[%s1 + $0x2f0] sm:$0xff]
    %v306 = vld [vmem:[%s1 + $0x2f8] sm:$0xff]
    %v307 = vld [vmem:[%s1 + $0x300] sm:$0xff]
    %v308 = vld [vmem:[%s1 + $0x308] sm:$0xff]
    %v309 = vld [vmem:[%s1 + $0x310] sm:$0xff]
    %v310 = vld [vmem:[%s1 + $0x318] sm:$0xff]
    %v311 = vld [vmem:[%s1 + $0x320] sm:$0xff]
    %v312 = vld [vmem:[%s1 + $0x328] sm:$0xff]
    %v313 = vld [vmem:[%s1 + $0x330] sm:$0xff]
    %v314 = vld [vmem:[%s1 + $0x338] sm:$0xff]
    %v315 = vld [vmem:[%s1 + $0x340] sm:$0xff]
    %v316 = vld [vmem:[%s1 + $0x348] sm:$0xff]
    %v317 = vld [vmem:[%s1 + $0x350] sm:$0xff]
    %v318 = vld [vmem:[%s1 + $0x358] sm:$0xff]
    %v319 = vld [vmem:[%s1 + $0x360] sm:$0xff]
    %v320 = vld [vmem:[%s1 + $0x368] sm:$0xff]
    %v321 = vld [vmem:[%s1 + $0x370] sm:$0xff]
    %v322 = vld [vmem:[%s1 + $0x378] sm:$0xff]
    %v323 = vld [vmem:[%s1 + $0x380] sm:$0xff]
    %v324 = vld [vmem:[%s1 + $0x388] sm:$0xff]
    %v325 = vld [vmem:[%s1 + $0x390] sm:$0xff]
    %v326 = vld [vmem:[%s1 + $0x398] sm:$0xff]
    %v327 = vld [vmem:[%s1 + $0x3a0] sm:$0xff]
    %v328 = vld [vmem:[%s1 + $0x3a8] sm:$0xff]
    %v329 = vld [vmem:[%s1 + $0x3b0] sm:$0xff]
    %v330 = vld [vmem:[%s1 + $0x3b8] sm:$0xff]
    %v331 = vld [vmem:[%s1 + $0x3c0] sm:$0xff]
    %v332 = vld [vmem:[%s1 + $0x3c8] sm:$0xff]
    %v333 = vld [vmem:[%s1 + $0x3d0] sm:$0xff]
    %v334 = vld [vmem:[%s1 + $0x3d8] sm:$0xff]
    %v335 = vld [vmem:[%s1 + $0x3e0] sm:$0xff]
    %v336 = vld [vmem:[%s1 + $0x3e8] sm:$0xff]
    %v337 = vld [vmem:[%s1 + $0x3f0] sm:$0xff]
    %v338 = vld [vmem:[%s1 + $0x3f8] sm:$0xff]
    %v339 = vld [vmem:[%s1 + $0x400] sm:$0xff]
    %v340 = vld [vmem:[%s1 + $0x408] sm:$0xff]
    %v341 = vld [vmem:[%s1 + $0x410] sm:$0xff]
    %v342 = vld [vmem:[%s1 + $0x418] sm:$0xff]
    %v343 = vld [vmem:[%s1 + $0x420] sm:$0xff]
    %v344 = vld [vmem:[%s1 + $0x428] sm:$0xff]
    %v345 = vld [vmem:[%s1 + $0x430] sm:$0xff]
    %v346 = vld [vmem:[%s1 + $0x438] sm:$0xff]
    %v347 = vld [vmem:[%s1 + $0x440] sm:$0xff]
    %v348 = vld [vmem:[%s1 + $0x448] sm:$0xff]
    %v349 = vld [vmem:[%s1 + $0x450] sm:$0xff]
    %v350 = vld [vmem:[%s1 + $0x458] sm:$0xff]
    %v351 = vld [vmem:[%s1 + $0x460] sm:$0xff]
    %v352 = vld [vmem:[%s1 + $0x468] sm:$0xff]
    %v353 = vld [vmem:[%s1 + $0x470] sm:$0xff]
    %v354 = vld [vmem:[%s1 + $0x478] sm:$0xff]
    %v355 = vld [vmem:[%s1 + $0x480] sm:$0xff]
    %v356 = vld [vmem:[%s1 + $0x488] sm:$0xff]
    %v357 = vld [vmem:[%s1 + $0x490] sm:$0xff]
    %v358 = vld [vmem:[%s1 + $0x498] sm:$0xff]
    %v359 = vld [vmem:[%s1 + $0x4a0] sm:$0xff]
    %v360 = vld [vmem:[%s1 + $0x4a8] sm:$0xff]
    %v361 = vld [vmem:[%s1 + $0x4b0] sm:$0xff]
    %v362 = vld [vmem:[%s1 + $0x4b8] sm:$0xff]
    %v363 = vld [vmem:[%s1 + $0x4c0] sm:$0xff]
    %v364 = vld [vmem:[%s1 + $0x4c8] sm:$0xff]
    %v365 = vld [vmem:[%s1 + $0x4d0] sm:$0xff]
    %v366 = vld [vmem:[%s1 + $0x4d8] sm:$0xff]
    %v367 = vld [vmem:[%s1 + $0x4e0] sm:$0xff]
    %v368 = vld [vmem:[%s1 + $0x4e8] sm:$0xff]
    %v369 = vld [vmem:[%s1 + $0x4f0] sm:$0xff]
    %v370 = vld [vmem:[%s1 + $0x4f8] sm:$0xff]
    %v371 = vld [vmem:[%s1 + $0x500] sm:$0xff]
    %v372 = vld [vmem:[%s1 + $0x508] sm:$0xff]
    %v373 = vld [vmem:[%s1 + $0x510] sm:$0xff]
    %v374 = vld [vmem:[%s1 + $0x518] sm:$0xff]
    %v375 = vld [vmem:[%s1 + $0x520] sm:$0xff]
    %v376 = vld [vmem:[%s1 + $0x528] sm:$0xff]
    %v377 = vld [vmem:[%s1 + $0x530] sm:$0xff]
    %v378 = vld [vmem:[%s1 + $0x538] sm:$0xff]
    %v379 = vld [vmem:[%s1 + $0x540] sm:$0xff]
    %v380 = vld [vmem:[%s1 + $0x548] sm:$0xff]
    %v381 = vld [vmem:[%s1 + $0x550] sm:$0xff]
    %v382 = vld [vmem:[%s1 + $0x558] sm:$0xff]
    %v383 = vld [vmem:[%s1 + $0x560] sm:$0xff]
    %v384 = vld [vmem:[%s1 + $0x568] sm:$0xff]
    %v385 = vld [vmem:[%s1 + $0x570] sm:$0xff]
    %v386 = vld [vmem:[%s1 + $0x578] sm:$0xff]
    %v387 = vld [vmem:[%s1 + $0x580] sm:$0xff]
    %v388 = vld [vmem:[%s1 + $0x588] sm:$0xff]
    %v389 = vld [vmem:[%s1 + $0x590] sm:$0xff]
    %v390 = vld [vmem:[%s1 + $0x598] sm:$0xff]
    %v391 = vld [vmem:[%s1 + $0x5a0] sm:$0xff]
    %v392 = vld [vmem:[%s1 + $0x5a8] sm:$0xff]
    %v393 = vld [vmem:[%s1 + $0x5b0] sm:$0xff]
    %v394 = vld [vmem:[%s1 + $0x5b8] sm:$0xff]
    %v395 = vld [vmem:[%s1 + $0x5c0] sm:$0xff]
    %v396 = vld [vmem:[%s1 + $0x5c8] sm:$0xff]
    %v397 = vld [vmem:[%s1 + $0x5d0] sm:$0xff]
    %v398 = vld [vmem:[%s1 + $0x5d8] sm:$0xff]
    %v399 = vld [vmem:[%s1 + $0x5e0] sm:$0xff]
    %v400 = vld [vmem:[%s1 + $0x5e8] sm:$0xff]
    %v401 = vld [vmem:[%s1 + $0x5f0] sm:$0xff]
    %v402 = vld [vmem:[%s1 + $0x5f8] sm:$0xff]
    %v403 = vld [vmem:[%s1 + $0x600] sm:$0xff]
    %v404 = vld [vmem:[%s1 + $0x608] sm:$0xff]
    %v405 = vld [vmem:[%s1 + $0x610] sm:$0xff]
    %v406 = vld [vmem:[%s1 + $0x618] sm:$0xff]
    %v407 = vld [vmem:[%s1 + $0x620] sm:$0xff]
    %v408 = vld [vmem:[%s1 + $0x628] sm:$0xff]
    %v409 = vld [vmem:[%s1 + $0x630] sm:$0xff]
    %v410 = vld [vmem:[%s1 + $0x638] sm:$0xff]
    %v411 = vld [vmem:[%s1 + $0x640] sm:$0xff]
    %v412 = vld [vmem:[%s1 + $0x648] sm:$0xff]
    %v413 = vld [vmem:[%s1 + $0x650] sm:$0xff]
    %v414 = vld [vmem:[%s1 + $0x658] sm:$0xff]
    %v415 = vld [vmem:[%s1 + $0x660] sm:$0xff]
    %v416 = vld [vmem:[%s1 + $0x668] sm:$0xff]
    %v417 = vld [vmem:[%s1 + $0x670] sm:$0xff]
    %v418 = vld [vmem:[%s1 + $0x678] sm:$0xff]
    %v419 = vld [vmem:[%s1 + $0x680] sm:$0xff]
    %v420 = vld [vmem:[%s1 + $0x688] sm:$0xff]
    %v421 = vld [vmem:[%s1 + $0x690] sm:$0xff]
    %v422 = vld [vmem:[%s1 + $0x698] sm:$0xff]
    %v423 = vld [vmem:[%s1 + $0x6a0] sm:$0xff]
    %v424 = vld [vmem:[%s1 + $0x6a8] sm:$0xff]
    %v425 = vld [vmem:[%s1 + $0x6b0] sm:$0xff]
    %v426 = vld [vmem:[%s1 + $0x6b8] sm:$0xff]
    %v427 = vld [vmem:[%s1 + $0x6c0] sm:$0xff]
    %v428 = vld [vmem:[%s1 + $0x6c8] sm:$0xff]
    %v429 = vld [vmem:[%s1 + $0x6d0] sm:$0xff]
    %v430 = vld [vmem:[%s1 + $0x6d8] sm:$0xff]
    %v431 = vld [vmem:[%s1 + $0x6e0] sm:$0xff]
    %v432 = vld [vmem:[%s1 + $0x6e8] sm:$0xff]
    %v433 = vld [vmem:[%s1 + $0x6f0] sm:$0xff]
    %v434 = vld [vmem:[%s1 + $0x6f8] sm:$0xff]
    %v435 = vld [vmem:[%s1 + $0x700] sm:$0xff]
    %v436 = vld [vmem:[%s1 + $0x708] sm:$0xff]
    %v437 = vld [vmem:[%s1 + $0x710] sm:$0xff]
    %v438 = vld [vmem:[%s1 + $0x718] sm:$0xff]
    %v439 = vld [vmem:[%s1 + $0x720] sm:$0xff]
    %v440 = vld [vmem:[%s1 + $0x728] sm:$0xff]
    %v441 = vld [vmem:[%s1 + $0x730] sm:$0xff]
    %v442 = vld [vmem:[%s1 + $0x738] sm:$0xff]
    %v443 = vld [vmem:[%s1 + $0x740] sm:$0xff]
    %v444 = vld [vmem:[%s1 + $0x748] sm:$0xff]
    %v445 = vld [vmem:[%s1 + $0x750] sm:$0xff]
    %v446 = vld [vmem:[%s1 + $0x758] sm:$0xff]
    %v447 = vld [vmem:[%s1 + $0x760] sm:$0xff]
    %v448 = vld [vmem:[%s1 + $0x768] sm:$0xff]
    %v449 = vld [vmem:[%s1 + $0x770] sm:$0xff]
    %v450 = vld [vmem:[%s1 + $0x778] sm:$0xff]
    %v451 = vld [vmem:[%s1 + $0x780] sm:$0xff]
    %v452 = vld [vmem:[%s1 + $0x788] sm:$0xff]
    %v453 = vld [vmem:[%s1 + $0x790] sm:$0xff]
    %v454 = vld [vmem:[%s1 + $0x798] sm:$0xff]
    %v455 = vld [vmem:[%s1 + $0x7a0] sm:$0xff]
    %v456 = vld [vmem:[%s1 + $0x7a8] sm:$0xff]
    %v457 = vld [vmem:[%s1 + $0x7b0] sm:$0xff]
    %v458 = vld [vmem:[%s1 + $0x7b8] sm:$0xff]
    %v459 = vld [vmem:[%s1 + $0x7c0] sm:$0xff]
    %v460 = vld [vmem:[%s1 + $0x7c8] sm:$0xff]
    %v461 = vld [vmem:[%s1 + $0x7d0] sm:$0xff]
    %v462 = vld [vmem:[%s1 + $0x7d8] sm:$0xff]
    %v463 = vld [vmem:[%s1 + $0x7e0] sm:$0xff]
    %v464 = vld [vmem:[%s1 + $0x7e8] sm:$0xff]
    %v465 = vld [vmem:[%s1 + $0x7f0] sm:$0xff]
    %v466 = vld [vmem:[%s1 + $0x7f8] sm:$0xff]
    %v467 = vld [vmem:[%s1 + $0x800] sm:$0xff]
    %v468 = vld [vmem:[%s1 + $0x808] sm:$0xff]
    %v469 = vld [vmem:[%s1 + $0x810] sm:$0xff]
    %v470 = vld [vmem:[%s1 + $0x818] sm:$0xff]
    %v471 = vld [vmem:[%s1 + $0x820] sm:$0xff]
    %v472 = vld [vmem:[%s1 + $0x828] sm:$0xff]
    %v473 = vld [vmem:[%s1 + $0x830] sm:$0xff]
    %v474 = vld [vmem:[%s1 + $0x838] sm:$0xff]
    %v475 = vld [vmem:[%s1 + $0x840] sm:$0xff]
    %v476 = vld [vmem:[%s1 + $0x848] sm:$0xff]
    %v477 = vld [vmem:[%s1 + $0x850] sm:$0xff]
    %v478 = vld [vmem:[%s1 + $0x858] sm:$0xff]
    %v479 = vld [vmem:[%s1 + $0x860] sm:$0xff]
    %v480 = vld [vmem:[%s1 + $0x868] sm:$0xff]
    %v481 = vld [vmem:[%s1 + $0x870] sm:$0xff]
    %v482 = vld [vmem:[%s1 + $0x878] sm:$0xff]
    %v483 = vld [vmem:[%s1 + $0x880] sm:$0xff]
    %v484 = vld [vmem:[%s1 + $0x888] sm:$0xff]
    %v485 = vld [vmem:[%s1 + $0x890] sm:$0xff]
    %v486 = vld [vmem:[%s1 + $0x898] sm:$0xff]
    %v487 = vld [vmem:[%s1 + $0x8a0] sm:$0xff]
    %v488 = vld [vmem:[%s1 + $0x8a8] sm:$0xff]
    %v489 = vld [vmem:[%s1 + $0x8b0] sm:$0xff]
    %v490 = vld [vmem:[%s1 + $0x8b8] sm:$0xff]
    %v491 = vld [vmem:[%s1 + $0x8c0] sm:$0xff]
    %v492 = vld [vmem:[%s1 + $0x8c8] sm:$0xff]
    %v493 = vld [vmem:[%s1 + $0x8d0] sm:$0xff]
    %v494 = vld [vmem:[%s1 + $0x8d8] sm:$0xff]
    %v495 = vld [vmem:[%s1 + $0x8e0] sm:$0xff]
    %v496 = vld [vmem:[%s1 + $0x8e8] sm:$0xff]
    %v497 = vld [vmem:[%s1 + $0x8f0] sm:$0xff]
    %v498 = vld [vmem:[%s1 + $0x8f8] sm:$0xff]
    %v499 = vld [vmem:[%s1 + $0x900] sm:$0xff]
    %v500 = vld [vmem:[%s1 + $0x908] sm:$0xff]
    %v501 = vld [vmem:[%s1 + $0x910] sm:$0xff]
    %v502 = vld [vmem:[%s1 + $0x918] sm:$0xff]
    %v503 = vld [vmem:[%s1 + $0x920] sm:$0xff]
    %v504 = vld [vmem:[%s1 + $0x928] sm:$0xff]
    %v505 = vld [vmem:[%s1 + $0x930] sm:$0xff]
    %v506 = vld [vmem:[%s1 + $0x938] sm:$0xff]
    %v507 = vld [vmem:[%s1 + $0x940] sm:$0xff]
    %v508 = vld [vmem:[%s1 + $0x948] sm:$0xff]
    %v509 = vld [vmem:[%s1 + $0x950] sm:$0xff]
    %v510 = vld [vmem:[%s1 + $0x958] sm:$0xff]
    %v511 = vld [vmem:[%s1 + $0x960] sm:$0xff]
    %v512 = vld [vmem:[%s1 + $0x968] sm:$0xff]
    %v513 = vld [vmem:[%s1 + $0x970] sm:$0xff]
    %v514 = vld [vmem:[%s1 + $0x978] sm:$0xff]
    %v515 = vld [vmem:[%s1 + $0x980] sm:$0xff]
    %v516 = vld [vmem:[%s1 + $0x988] sm:$0xff]
    %v517 = vld [vmem:[%s1 + $0x990] sm:$0xff]
    %v518 = vld [vmem:[%s1 + $0x998] sm:$0xff]
    %v519 = vld [vmem:[%s1 + $0x9a0] sm:$0xff]
    %v520 = vld [vmem:[%s1 + $0x9a8] sm:$0xff]
    %v521 = vld [vmem:[%s1 + $0x9b0] sm:$0xff]
    %v522 = vld [vmem:[%s1 + $0x9b8] sm:$0xff]
    %v523 = vld [vmem:[%s1 + $0x9c0] sm:$0xff]
    %v524 = vld [vmem:[%s1 + $0x9c8] sm:$0xff]
    %v525 = vld [vmem:[%s1 + $0x9d0] sm:$0xff]
    %v526 = vld [vmem:[%s1 + $0x9d8] sm:$0xff]
    %v527 = vld [vmem:[%s1 + $0x9e0] sm:$0xff]
    %v528 = vld [vmem:[%s1 + $0x9e8] sm:$0xff]
    %v529 = vld [vmem:[%s1 + $0x9f0] sm:$0xff]
    %v530 = vld [vmem:[%s1 + $0x9f8] sm:$0xff]
    %v531 = vld [vmem:[%s1 + $0xa00] sm:$0xff]
    %v532 = vld [vmem:[%s1 + $0xa08] sm:$0xff]
    %v533 = vld [vmem:[%s1 + $0xa10] sm:$0xff]
    %v534 = vld [vmem:[%s1 + $0xa18] sm:$0xff]
    %v535 = vld [vmem:[%s1 + $0xa20] sm:$0xff]
    %v536 = vld [vmem:[%s1 + $0xa28] sm:$0xff]
    %v537 = vld [vmem:[%s1 + $0xa30] sm:$0xff]
    %v538 = vld [vmem:[%s1 + $0xa38] sm:$0xff]
    %v539 = vld [vmem:[%s1 + $0xa40] sm:$0xff]
    %v540 = vld [vmem:[%s1 + $0xa48] sm:$0xff]
    %v541 = vld [vmem:[%s1 + $0xa50] sm:$0xff]
    %v542 = vld [vmem:[%s1 + $0xa58] sm:$0xff]
    %v543 = vld [vmem:[%s1 + $0xa60] sm:$0xff]
    %v544 = vld [vmem:[%s1 + $0xa68] sm:$0xff]
    %v545 = vld [vmem:[%s1 + $0xa70] sm:$0xff]
    %v546 = vld [vmem:[%s1 + $0xa78] sm:$0xff]
    %v547 = vld [vmem:[%s1 + $0xa80] sm:$0xff]
    %v548 = vld [vmem:[%s1 + $0xa88] sm:$0xff]
    %v549 = vld [vmem:[%s1 + $0xa90] sm:$0xff]
    %v550 = vld [vmem:[%s1 + $0xa98] sm:$0xff]
    %v551 = vld [vmem:[%s1 + $0xaa0] sm:$0xff]
    %v552 = vld [vmem:[%s1 + $0xaa8] sm:$0xff]
    %v553 = vld [vmem:[%s1 + $0xab0] sm:$0xff]
    %v554 = vld [vmem:[%s1 + $0xab8] sm:$0xff]
    %v555 = vld [vmem:[%s1 + $0xac0] sm:$0xff]
    %v556 = vld [vmem:[%s1 + $0xac8] sm:$0xff]
    %v557 = vld [vmem:[%s1 + $0xad0] sm:$0xff]
    %v558 = vld [vmem:[%s1 + $0xad8] sm:$0xff]
    %v559 = vld [vmem:[%s1 + $0xae0] sm:$0xff]
    %v560 = vld [vmem:[%s1 + $0xae8] sm:$0xff]
    %v561 = vld [vmem:[%s1 + $0xaf0] sm:$0xff]
    %v562 = vld [vmem:[%s1 + $0xaf8] sm:$0xff]
    %v563 = vld [vmem:[%s1 + $0xb00] sm:$0xff]
    %v564 = vld [vmem:[%s1 + $0xb08] sm:$0xff]
    %v565 = vld [vmem:[%s1 + $0xb10] sm:$0xff]
    %v566 = vld [vmem:[%s1 + $0xb18] sm:$0xff]
    %v567 = vld [vmem:[%s1 + $0xb20] sm:$0xff]
    %v568 = vld [vmem:[%s1 + $0xb28] sm:$0xff]
    %v569 = vld [vmem:[%s1 + $0xb30] sm:$0xff]
    %v570 = vld [vmem:[%s1 + $0xb38] sm:$0xff]
    %v571 = vld [vmem:[%s1 + $0xb40] sm:$0xff]
    %v572 = vld [vmem:[%s1 + $0xb48] sm:$0xff]
    %v573 = vld [vmem:[%s1 + $0xb50] sm:$0xff]
    %v574 = vld [vmem:[%s1 + $0xb58] sm:$0xff]
    %v575 = vld [vmem:[%s1 + $0xb60] sm:$0xff]
    %v576 = vld [vmem:[%s1 + $0xb68] sm:$0xff]
    %v577 = vld [vmem:[%s1 + $0xb70] sm:$0xff]
    %v578 = vld [vmem:[%s1 + $0xb78] sm:$0xff]
    %v579 = vld [vmem:[%s1 + $0xb80] sm:$0xff]
    %v580 = vld [vmem:[%s1 + $0xb88] sm:$0xff]
    %v581 = vld [vmem:[%s1 + $0xb90] sm:$0xff]
    %v582 = vld [vmem:[%s1 + $0xb98] sm:$0xff]
    %v583 = vld [vmem:[%s1 + $0xba0] sm:$0xff]
    %v584 = vld [vmem:[%s1 + $0xba8] sm:$0xff]
    %v585 = vld [vmem:[%s1 + $0xbb0] sm:$0xff]
    %v586 = vld [vmem:[%s1 + $0xbb8] sm:$0xff]
    %v587 = vld [vmem:[%s1 + $0xbc0] sm:$0xff]
    %v588 = vld [vmem:[%s1 + $0xbc8] sm:$0xff]
    %v589 = vld [vmem:[%s1 + $0xbd0] sm:$0xff]
    %v590 = vld [vmem:[%s1 + $0xbd8] sm:$0xff]
    %v591 = vld [vmem:[%s1 + $0xbe0] sm:$0xff]
    %v592 = vld [vmem:[%s1 + $0xbe8] sm:$0xff]
    %v593 = vld [vmem:[%s1 + $0xbf0] sm:$0xff]
    %v594 = vld [vmem:[%s1 + $0xbf8] sm:$0xff]
    %v595 = vld [vmem:[%s1 + $0xc00] sm:$0xff]
    %v596 = vld [vmem:[%s1 + $0xc08] sm:$0xff]
    %v597 = vld [vmem:[%s1 + $0xc10] sm:$0xff]
    %v598 = vld [vmem:[%s1 + $0xc18] sm:$0xff]
    %v599 = vld [vmem:[%s1 + $0xc20] sm:$0xff]
    %v600 = vld [vmem:[%s1 + $0xc28] sm:$0xff]
    %v601 = vld [vmem:[%s1 + $0xc30] sm:$0xff]
    %v602 = vld [vmem:[%s1 + $0xc38] sm:$0xff]
    %v603 = vld [vmem:[%s1 + $0xc40] sm:$0xff]
    %v604 = vld [vmem:[%s1 + $0xc48] sm:$0xff]
    %v605 = vld [vmem:[%s1 + $0xc50] sm:$0xff]
    %v606 = vld [vmem:[%s1 + $0xc58] sm:$0xff]
    %v607 = vld [vmem:[%s1 + $0xc60] sm:$0xff]
    %v608 = vld [vmem:[%s1 + $0xc68] sm:$0xff]
    %v609 = vld [vmem:[%s1 + $0xc70] sm:$0xff]
    %v610 = vld [vmem:[%s1 + $0xc78] sm:$0xff]
    %v611 = vld [vmem:[%s1 + $0xc80] sm:$0xff]
    %v612 = vld [vmem:[%s1 + $0xc88] sm:$0xff]
    %v613 = vld [vmem:[%s1 + $0xc90] sm:$0xff]
    %v614 = vld [vmem:[%s1 + $0xc98] sm:$0xff]
    %v615 = vld [vmem:[%s1 + $0xca0] sm:$0xff]
    %v616 = vld [vmem:[%s1 + $0xca8] sm:$0xff]
    %v617 = vld [vmem:[%s1 + $0xcb0] sm:$0xff]
    %v618 = vld [vmem:[%s1 + $0xcb8] sm:$0xff]
    %v619 = vld [vmem:[%s1 + $0xcc0] sm:$0xff]
    %v620 = vld [vmem:[%s1 + $0xcc8] sm:$0xff]
    %v621 = vld [vmem:[%s1 + $0xcd0] sm:$0xff]
    %v622 = vld [vmem:[%s1 + $0xcd8] sm:$0xff]
    %v623 = vld [vmem:[%s1 + $0xce0] sm:$0xff]
    %v624 = vld [vmem:[%s1 + $0xce8] sm:$0xff]
    %v625 = vld [vmem:[%s1 + $0xcf0] sm:$0xff]
    %v626 = vld [vmem:[%s1 + $0xcf8] sm:$0xff]
    %v627 = vld [vmem:[%s1 + $0xd00] sm:$0xff]
    %v628 = vld [vmem:[%s1 + $0xd08] sm:$0xff]
    %v629 = vld [vmem:[%s1 + $0xd10] sm:$0xff]
    %v630 = vld [vmem:[%s1 + $0xd18] sm:$0xff]
    %v631 = vld [vmem:[%s1 + $0xd20] sm:$0xff]
    %v632 = vld [vmem:[%s1 + $0xd28] sm:$0xff]
    %v633 = vld [vmem:[%s1 + $0xd30] sm:$0xff]
    %v634 = vld [vmem:[%s1 + $0xd38] sm:$0xff]
    %v635 = vld [vmem:[%s1 + $0xd40] sm:$0xff]
    %v636 = vld [vmem:[%s1 + $0xd48] sm:$0xff]
    %v637 = vld [vmem:[%s1 + $0xd50] sm:$0xff]
    %v638 = vld [vmem:[%s1 + $0xd58] sm:$0xff]
    %v639 = vld [vmem:[%s1 + $0xd60] sm:$0xff]
    %v640 = vld [vmem:[%s1 + $0xd68] sm:$0xff]
    %v641 = vld [vmem:[%s1 + $0xd70] sm:$0xff]
    %v642 = vld [vmem:[%s1 + $0xd78] sm:$0xff]
    %v643 = vld [vmem:[%s1 + $0xd80] sm:$0xff]
    %v644 = vld [vmem:[%s1 + $0xd88] sm:$0xff]
    %v645 = vld [vmem:[%s1 + $0xd90] sm:$0xff]
    %v646 = vld [vmem:[%s1 + $0xd98] sm:$0xff]
    %v647 = vld [vmem:[%s1 + $0xda0] sm:$0xff]
    %v648 = vld [vmem:[%s1 + $0xda8] sm:$0xff]
    %v649 = vld [vmem:[%s1 + $0xdb0] sm:$0xff]
    %v650 = vld [vmem:[%s1 + $0xdb8] sm:$0xff]
    %v651 = vld [vmem:[%s1 + $0xdc0] sm:$0xff]
    %v652 = vld [vmem:[%s1 + $0xdc8] sm:$0xff]
    %v653 = vld [vmem:[%s1 + $0xdd0] sm:$0xff]
    %v654 = vld [vmem:[%s1 + $0xdd8] sm:$0xff]
    %v655 = vld [vmem:[%s1 + $0xde0] sm:$0xff]
    %v656 = vld [vmem:[%s1 + $0xde8] sm:$0xff]
    %v657 = vld [vmem:[%s1 + $0xdf0] sm:$0xff]
    %v658 = vld [vmem:[%s1 + $0xdf8] sm:$0xff]
    %v659 = vld [vmem:[%s1 + $0xe00] sm:$0xff]
    %v660 = vld [vmem:[%s1 + $0xe08] sm:$0xff]
    %v661 = vld [vmem:[%s1 + $0xe10] sm:$0xff]
    %v662 = vld [vmem:[%s1 + $0xe18] sm:$0xff]
    %v663 = vld [vmem:[%s1 + $0xe20] sm:$0xff]
    %v664 = vld [vmem:[%s1 + $0xe28] sm:$0xff]
    %v665 = vld [vmem:[%s1 + $0xe30] sm:$0xff]
    %v666 = vld [vmem:[%s1 + $0xe38] sm:$0xff]
    %v667 = vld [vmem:[%s1 + $0xe40] sm:$0xff]
    %v668 = vld [vmem:[%s1 + $0xe48] sm:$0xff]
    %v669 = vld [vmem:[%s1 + $0xe50] sm:$0xff]
    %v670 = vld [vmem:[%s1 + $0xe58] sm:$0xff]
    %v671 = vld [vmem:[%s1 + $0xe60] sm:$0xff]
    %v672 = vld [vmem:[%s1 + $0xe68] sm:$0xff]
    %v673 = vld [vmem:[%s1 + $0xe70] sm:$0xff]
    %v674 = vld [vmem:[%s1 + $0xe78] sm:$0xff]
    %v675 = vld [vmem:[%s1 + $0xe80] sm:$0xff]
    %v676 = vld [vmem:[%s1 + $0xe88] sm:$0xff]
    %v677 = vld [vmem:[%s1 + $0xe90] sm:$0xff]
    %v678 = vld [vmem:[%s1 + $0xe98] sm:$0xff]
    %v679 = vld [vmem:[%s1 + $0xea0] sm:$0xff]
    %v680 = vld [vmem:[%s1 + $0xea8] sm:$0xff]
    %v681 = vld [vmem:[%s1 + $0xeb0] sm:$0xff]
    %v682 = vld [vmem:[%s1 + $0xeb8] sm:$0xff]
    %v683 = vld [vmem:[%s1 + $0xec0] sm:$0xff]
    %v684 = vld [vmem:[%s1 + $0xec8] sm:$0xff]
    %v685 = vld [vmem:[%s1 + $0xed0] sm:$0xff]
    %v686 = vld [vmem:[%s1 + $0xed8] sm:$0xff]
    %v687 = vld [vmem:[%s1 + $0xee0] sm:$0xff]
    %v688 = vld [vmem:[%s1 + $0xee8] sm:$0xff]
    %v689 = vld [vmem:[%s1 + $0xef0] sm:$0xff]
    %v690 = vld [vmem:[%s1 + $0xef8] sm:$0xff]
    %v691 = vld [vmem:[%s1 + $0xf00] sm:$0xff]
    %v692 = vld [vmem:[%s1 + $0xf08] sm:$0xff]
    %v693 = vld [vmem:[%s1 + $0xf10] sm:$0xff]
    %v694 = vld [vmem:[%s1 + $0xf18] sm:$0xff]
    %v695 = vld [vmem:[%s1 + $0xf20] sm:$0xff]
    %v696 = vld [vmem:[%s1 + $0xf28] sm:$0xff]
    %v697 = vld [vmem:[%s1 + $0xf30] sm:$0xff]
    %v698 = vld [vmem:[%s1 + $0xf38] sm:$0xff]
    %v699 = vld [vmem:[%s1 + $0xf40] sm:$0xff]
    %v700 = vld [vmem:[%s1 + $0xf48] sm:$0xff]
    %v701 = vld [vmem:[%s1 + $0xf50] sm:$0xff]
    %v702 = vld [vmem:[%s1 + $0xf58] sm:$0xff]
    %v703 = vld [vmem:[%s1 + $0xf60] sm:$0xff]
    %v704 = vld [vmem:[%s1 + $0xf68] sm:$0xff]
    %v705 = vld [vmem:[%s1 + $0xf70] sm:$0xff]
    %v706 = vld [vmem:[%s1 + $0xf78] sm:$0xff]
    %v707 = vld [vmem:[%s1 + $0xf80] sm:$0xff]
    %v708 = vld [vmem:[%s1 + $0xf88] sm:$0xff]
    %v709 = vld [vmem:[%s1 + $0xf90] sm:$0xff]
    %v710 = vld [vmem:[%s1 + $0xf98] sm:$0xff]
    %v711 = vld [vmem:[%s1 + $0xfa0] sm:$0xff]
    %v712 = vld [vmem:[%s1 + $0xfa8] sm:$0xff]
    %v713 = vld [vmem:[%s1 + $0xfb0] sm:$0xff]
    %v714 = vld [vmem:[%s1 + $0xfb8] sm:$0xff]
    %v715 = vld [vmem:[%s1 + $0xfc0] sm:$0xff]
    %v716 = vld [vmem:[%s1 + $0xfc8] sm:$0xff]
    %v717 = vld [vmem:[%s1 + $0xfd0] sm:$0xff]
    %v718 = vld [vmem:[%s1 + $0xfd8] sm:$0xff]
    %v719 = vld [vmem:[%s1 + $0xfe0] sm:$0xff]
    %v720 = vld [vmem:[%s1 + $0xfe8] sm:$0xff]
    %v721 = vld [vmem:[%s1 + $0xff0] sm:$0xff]
    %v722 = vld [vmem:[%s1 + $0xff8] sm:$0xff]
    %v723 = vld [vmem:[%s1 + $0x1000] sm:$0xff]
    %v724 = vld [vmem:[%s1 + $0x1008] sm:$0xff]
    %v725 = vld [vmem:[%s1 + $0x1010] sm:$0xff]
    %v726 = vld [vmem:[%s1 + $0x1018] sm:$0xff]
    %v727 = vld [vmem:[%s1 + $0x1020] sm:$0xff]
    %v728 = vld [vmem:[%s1 + $0x1028] sm:$0xff]
    %v729 = vld [vmem:[%s1 + $0x1030] sm:$0xff]
    %v730 = vld [vmem:[%s1 + $0x1038] sm:$0xff]
    %v731 = vld [vmem:[%s1 + $0x1040] sm:$0xff]
    %v732 = vld [vmem:[%s1 + $0x1048] sm:$0xff]
    %v733 = vld [vmem:[%s1 + $0x1050] sm:$0xff]
    %v734 = vld [vmem:[%s1 + $0x1058] sm:$0xff]
    %v735 = vld [vmem:[%s1 + $0x1060] sm:$0xff]
    %v736 = vld [vmem:[%s1 + $0x1068] sm:$0xff]
    %v737 = vld [vmem:[%s1 + $0x1070] sm:$0xff]
    %v738 = vld [vmem:[%s1 + $0x1078] sm:$0xff]
    %v739 = vld [vmem:[%s1 + $0x1080] sm:$0xff]
    %v740 = vld [vmem:[%s1 + $0x1088] sm:$0xff]
    %v741 = vld [vmem:[%s1 + $0x1090] sm:$0xff]
    %v742 = vld [vmem:[%s1 + $0x1098] sm:$0xff]
    %v743 = vld [vmem:[%s1 + $0x10a0] sm:$0xff]
    %v744 = vld [vmem:[%s1 + $0x10a8] sm:$0xff]
    %v745 = vld [vmem:[%s1 + $0x10b0] sm:$0xff]
    %v746 = vld [vmem:[%s1 + $0x10b8] sm:$0xff]
    %v747 = vld [vmem:[%s1 + $0x10c0] sm:$0xff]
    %v748 = vld [vmem:[%s1 + $0x10c8] sm:$0xff]
    %v749 = vld [vmem:[%s1 + $0x10d0] sm:$0xff]
    %v750 = vld [vmem:[%s1 + $0x10d8] sm:$0xff]
    %v751 = vld [vmem:[%s1 + $0x10e0] sm:$0xff]
    %v752 = vld [vmem:[%s1 + $0x10e8] sm:$0xff]
    %v753 = vld [vmem:[%s1 + $0x10f0] sm:$0xff]
    %v754 = vld [vmem:[%s1 + $0x10f8] sm:$0xff]
    %v755 = vld [vmem:[%s1 + $0x1100] sm:$0xff]
    %v756 = vld [vmem:[%s1 + $0x1108] sm:$0xff]
    %v757 = vld [vmem:[%s1 + $0x1110] sm:$0xff]
    %v758 = vld [vmem:[%s1 + $0x1118] sm:$0xff]
    %v759 = vld [vmem:[%s1 + $0x1120] sm:$0xff]
    %v760 = vld [vmem:[%s1 + $0x1128] sm:$0xff]
    %v761 = vld [vmem:[%s1 + $0x1130] sm:$0xff]
    %v762 = vld [vmem:[%s1 + $0x1138] sm:$0xff]
    %v763 = vld [vmem:[%s1 + $0x1140] sm:$0xff]
    %v764 = vld [vmem:[%s1 + $0x1148] sm:$0xff]
    %v765 = vld [vmem:[%s1 + $0x1150] sm:$0xff]
    %v766 = vld [vmem:[%s1 + $0x1158] sm:$0xff]
    %v767 = vld [vmem:[%s1 + $0x1160] sm:$0xff]
    %v768 = vld [vmem:[%s1 + $0x1168] sm:$0xff]
    %v769 = vld [vmem:[%s1 + $0x1170] sm:$0xff]
    %v770 = vld [vmem:[%s1 + $0x1178] sm:$0xff]
    %v771 = vld [vmem:[%s1 + $0x1180] sm:$0xff]
    %v772 = vld [vmem:[%s1 + $0x1188] sm:$0xff]
    %v773 = vld [vmem:[%s1 + $0x1190] sm:$0xff]
    %v774 = vld [vmem:[%s1 + $0x1198] sm:$0xff]
    %v775 = vld [vmem:[%s1 + $0x11a0] sm:$0xff]
    %v776 = vld [vmem:[%s1 + $0x11a8] sm:$0xff]
    %v777 = vld [vmem:[%s1 + $0x11b0] sm:$0xff]
    %v778 = vld [vmem:[%s1 + $0x11b8] sm:$0xff]
    %v779 = vld [vmem:[%s1 + $0x11c0] sm:$0xff]
    %v780 = vld [vmem:[%s1 + $0x11c8] sm:$0xff]
    %v781 = vld [vmem:[%s1 + $0x11d0] sm:$0xff]
    %v782 = vld [vmem:[%s1 + $0x11d8] sm:$0xff]
    %v783 = vld [vmem:[%s1 + $0x11e0] sm:$0xff]
    %v784 = vld [vmem:[%s1 + $0x11e8] sm:$0xff]
    %v785 = vld [vmem:[%s1 + $0x11f0] sm:$0xff]
    %v786 = vld [vmem:[%s1 + $0x11f8] sm:$0xff]
    %v787 = vld [vmem:[%s1 + $0x1200] sm:$0xff]
    %v788 = vld [vmem:[%s1 + $0x1208] sm:$0xff]
    %v789 = vld [vmem:[%s1 + $0x1210] sm:$0xff]
    %v790 = vld [vmem:[%s1 + $0x1218] sm:$0xff]
    %v791 = vld [vmem:[%s1 + $0x1220] sm:$0xff]
    %v792 = vld [vmem:[%s1 + $0x1228] sm:$0xff]
    %v793 = vld [vmem:[%s1 + $0x1230] sm:$0xff]
    %v794 = vld [vmem:[%s1 + $0x1238] sm:$0xff]
    %v795 = vld [vmem:[%s1 + $0x1240] sm:$0xff]
    %v796 = vld [vmem:[%s1 + $0x1248] sm:$0xff]
    %v797 = vld [vmem:[%s1 + $0x1250] sm:$0xff]
    %v798 = vld [vmem:[%s1 + $0x1258] sm:$0xff]
    %v799 = vld [vmem:[%s1 + $0x1260] sm:$0xff]
    %v800 = vld [vmem:[%s1 + $0x1268] sm:$0xff]
    %v801 = vld [vmem:[%s1 + $0x1270] sm:$0xff]
    %v802 = vld [vmem:[%s1 + $0x1278] sm:$0xff]
    %v803 = vld [vmem:[%s1 + $0x1280] sm:$0xff]
    %v804 = vld [vmem:[%s1 + $0x1288] sm:$0xff]
    %v805 = vld [vmem:[%s1 + $0x1290] sm:$0xff]
    %v806 = vld [vmem:[%s1 + $0x1298] sm:$0xff]
    %v807 = vld [vmem:[%s1 + $0x12a0] sm:$0xff]
    %v808 = vld [vmem:[%s1 + $0x12a8] sm:$0xff]
    %v809 = vld [vmem:[%s1 + $0x12b0] sm:$0xff]
    %v810 = vld [vmem:[%s1 + $0x12b8] sm:$0xff]
    %v811 = vld [vmem:[%s1 + $0x12c0] sm:$0xff]
    %v812 = vld [vmem:[%s1 + $0x12c8] sm:$0xff]
    %v813 = vld [vmem:[%s1 + $0x12d0] sm:$0xff]
    %v814 = vld [vmem:[%s1 + $0x12d8] sm:$0xff]
    %v815 = vld [vmem:[%s1 + $0x12e0] sm:$0xff]
    %v816 = vld [vmem:[%s1 + $0x12e8] sm:$0xff]
    %v817 = vld [vmem:[%s1 + $0x12f0] sm:$0xff]
    %v818 = vld [vmem:[%s1 + $0x12f8] sm:$0xff]
    %v819 = vld [vmem:[%s1 + $0x1300] sm:$0xff]
    %v820 = vld [vmem:[%s1 + $0x1308] sm:$0xff]
    %v821 = vld [vmem:[%s1 + $0x1310] sm:$0xff]
    %v822 = vld [vmem:[%s1 + $0x1318] sm:$0xff]
    %v823 = vld [vmem:[%s1 + $0x1320] sm:$0xff]
    %v824 = vld [vmem:[%s1 + $0x1328] sm:$0xff]
    %v825 = vld [vmem:[%s1 + $0x1330] sm:$0xff]
    %v826 = vld [vmem:[%s1 + $0x1338] sm:$0xff]
    %v827 = vld [vmem:[%s1 + $0x1340] sm:$0xff]
    %v828 = vld [vmem:[%s1 + $0x1348] sm:$0xff]
    %v829 = vld [vmem:[%s1 + $0x1350] sm:$0xff]
    %v830 = vld [vmem:[%s1 + $0x1358] sm:$0xff]
    %v831 = vld [vmem:[%s1 + $0x1360] sm:$0xff]
    %v832 = vld [vmem:[%s1 + $0x1368] sm:$0xff]
    %v833 = vld [vmem:[%s1 + $0x1370] sm:$0xff]
    %v834 = vld [vmem:[%s1 + $0x1378] sm:$0xff]
    %v835 = vld [vmem:[%s1 + $0x1380] sm:$0xff]
    %v836 = vld [vmem:[%s1 + $0x1388] sm:$0xff]
    %v837 = vld [vmem:[%s1 + $0x1390] sm:$0xff]
    %v838 = vld [vmem:[%s1 + $0x1398] sm:$0xff]
    %v839 = vld [vmem:[%s1 + $0x13a0] sm:$0xff]
    %v840 = vld [vmem:[%s1 + $0x13a8] sm:$0xff]
    %v841 = vld [vmem:[%s1 + $0x13b0] sm:$0xff]
    %v842 = vld [vmem:[%s1 + $0x13b8] sm:$0xff]
    %v843 = vld [vmem:[%s1 + $0x13c0] sm:$0xff]
    %v844 = vld [vmem:[%s1 + $0x13c8] sm:$0xff]
    %v845 = vld [vmem:[%s1 + $0x13d0] sm:$0xff]
    %v846 = vld [vmem:[%s1 + $0x13d8] sm:$0xff]
    %v847 = vld [vmem:[%s1 + $0x13e0] sm:$0xff]
    %v848 = vld [vmem:[%s1 + $0x13e8] sm:$0xff]
    %v849 = vld [vmem:[%s1 + $0x13f0] sm:$0xff]
    %v850 = vld [vmem:[%s1 + $0x13f8] sm:$0xff]
    %v851 = vld [vmem:[%s1 + $0x1400] sm:$0xff]
    %v852 = vld [vmem:[%s1 + $0x1408] sm:$0xff]
    %v853 = vld [vmem:[%s1 + $0x1410] sm:$0xff]
    %v854 = vld [vmem:[%s1 + $0x1418] sm:$0xff]
    %v855 = vld [vmem:[%s1 + $0x1420] sm:$0xff]
    %v856 = vld [vmem:[%s1 + $0x1428] sm:$0xff]
    %v857 = vld [vmem:[%s1 + $0x1430] sm:$0xff]
    %v858 = vld [vmem:[%s1 + $0x1438] sm:$0xff]
    %v859 = vld [vmem:[%s1 + $0x1440] sm:$0xff]
    %v860 = vld [vmem:[%s1 + $0x1448] sm:$0xff]
    %v861 = vld [vmem:[%s1 + $0x1450] sm:$0xff]
    %v862 = vld [vmem:[%s1 + $0x1458] sm:$0xff]
    %v863 = vld [vmem:[%s1 + $0x1460] sm:$0xff]
    %v864 = vld [vmem:[%s1 + $0x1468] sm:$0xff]
    %v865 = vld [vmem:[%s1 + $0x1470] sm:$0xff]
    %v866 = vld [vmem:[%s1 + $0x1478] sm:$0xff]
    %v867 = vld [vmem:[%s1 + $0x1480] sm:$0xff]
    %v868 = vld [vmem:[%s1 + $0x1488] sm:$0xff]
    %v869 = vld [vmem:[%s1 + $0x1490] sm:$0xff]
    %v870 = vld [vmem:[%s1 + $0x1498] sm:$0xff]
    %v871 = vld [vmem:[%s1 + $0x14a0] sm:$0xff]
    %v872 = vld [vmem:[%s1 + $0x14a8] sm:$0xff]
    %v873 = vld [vmem:[%s1 + $0x14b0] sm:$0xff]
    %v874 = vld [vmem:[%s1 + $0x14b8] sm:$0xff]
    %v875 = vld [vmem:[%s1 + $0x14c0] sm:$0xff]
    %v876 = vld [vmem:[%s1 + $0x14c8] sm:$0xff]
    %v877 = vld [vmem:[%s1 + $0x14d0] sm:$0xff]
    %v878 = vld [vmem:[%s1 + $0x14d8] sm:$0xff]
    %v879 = vld [vmem:[%s1 + $0x14e0] sm:$0xff]
    %v880 = vld [vmem:[%s1 + $0x14e8] sm:$0xff]
    %v881 = vld [vmem:[%s1 + $0x14f0] sm:$0xff]
    %v882 = vld [vmem:[%s1 + $0x14f8] sm:$0xff]
    %v883 = vld [vmem:[%s1 + $0x1500] sm:$0xff]
    %v884 = vld [vmem:[%s1 + $0x1508] sm:$0xff]
    %v885 = vld [vmem:[%s1 + $0x1510] sm:$0xff]
    %v886 = vld [vmem:[%s1 + $0x1518] sm:$0xff]
    %v887 = vld [vmem:[%s1 + $0x1520] sm:$0xff]
    %v888 = vld [vmem:[%s1 + $0x1528] sm:$0xff]
    %v889 = vld [vmem:[%s1 + $0x1530] sm:$0xff]
    %v890 = vld [vmem:[%s1 + $0x1538] sm:$0xff]
    %v891 = vld [vmem:[%s1 + $0x1540] sm:$0xff]
    %v892 = vld [vmem:[%s1 + $0x1548] sm:$0xff]
    %v893 = vld [vmem:[%s1 + $0x1550] sm:$0xff]
    %v894 = vld [vmem:[%s1 + $0x1558] sm:$0xff]
    %v895 = vld [vmem:[%s1 + $0x1560] sm:$0xff]
    %v896 = vld [vmem:[%s1 + $0x1568] sm:$0xff]
    %v897 = vld [vmem:[%s1 + $0x1570] sm:$0xff]
    %v898 = vld [vmem:[%s1 + $0x1578] sm:$0xff]
    %v899 = vld [vmem:[%s1 + $0x1580] sm:$0xff]
    %v900 = vld [vmem:[%s1 + $0x1588] sm:$0xff]
    %v901 = vld [vmem:[%s1 + $0x1590] sm:$0xff]
    %v902 = vld [vmem:[%s1 + $0x1598] sm:$0xff]
    %v903 = vld [vmem:[%s1 + $0x15a0] sm:$0xff]
    %v904 = vld [vmem:[%s1 + $0x15a8] sm:$0xff]
    %v905 = vld [vmem:[%s1 + $0x15b0] sm:$0xff]
    %v906 = vld [vmem:[%s1 + $0x15b8] sm:$0xff]
    %v907 = vld [vmem:[%s1 + $0x15c0] sm:$0xff]
    %v908 = vld [vmem:[%s1 + $0x15c8] sm:$0xff]
    %v909 = vld [vmem:[%s1 + $0x15d0] sm:$0xff]
    %v910 = vld [vmem:[%s1 + $0x15d8] sm:$0xff]
    %v911 = vld [vmem:[%s1 + $0x15e0] sm:$0xff]
    %v912 = vld [vmem:[%s1 + $0x15e8] sm:$0xff]
    %v913 = vld [vmem:[%s1 + $0x15f0] sm:$0xff]
    %v914 = vld [vmem:[%s1 + $0x15f8] sm:$0xff]
    %v915 = vld [vmem:[%s1 + $0x1600] sm:$0xff]
    %v916 = vld [vmem:[%s1 + $0x1608] sm:$0xff]
    %v917 = vld [vmem:[%s1 + $0x1610] sm:$0xff]
    %v918 = vld [vmem:[%s1 + $0x1618] sm:$0xff]
    %v919 = vld [vmem:[%s1 + $0x1620] sm:$0xff]
    %v920 = vld [vmem:[%s1 + $0x1628] sm:$0xff]
    %v921 = vld [vmem:[%s1 + $0x1630] sm:$0xff]
    %v922 = vld [vmem:[%s1 + $0x1638] sm:$0xff]
    %v923 = vld [vmem:[%s1 + $0x1640] sm:$0xff]
    %v924 = vld [vmem:[%s1 + $0x1648] sm:$0xff]
    %v925 = vld [vmem:[%s1 + $0x1650] sm:$0xff]
    %v926 = vld [vmem:[%s1 + $0x1658] sm:$0xff]
    %v927 = vld [vmem:[%s1 + $0x1660] sm:$0xff]
    %v928 = vld [vmem:[%s1 + $0x1668] sm:$0xff]
    %v929 = vld [vmem:[%s1 + $0x1670] sm:$0xff]
    %v930 = vld [vmem:[%s1 + $0x1678] sm:$0xff]
    %v931 = vld [vmem:[%s1 + $0x1680] sm:$0xff]
    %v932 = vld [vmem:[%s1 + $0x1688] sm:$0xff]
    %v933 = vld [vmem:[%s1 + $0x1690] sm:$0xff]
    %v934 = vld [vmem:[%s1 + $0x1698] sm:$0xff]
    %v935 = vld [vmem:[%s1 + $0x16a0] sm:$0xff]
    %v936 = vld [vmem:[%s1 + $0x16a8] sm:$0xff]
    %v937 = vld [vmem:[%s1 + $0x16b0] sm:$0xff]
    %v938 = vld [vmem:[%s1 + $0x16b8] sm:$0xff]
    %v939 = vld [vmem:[%s1 + $0x16c0] sm:$0xff]
    %v940 = vld [vmem:[%s1 + $0x16c8] sm:$0xff]
    %v941 = vld [vmem:[%s1 + $0x16d0] sm:$0xff]
    %v942 = vld [vmem:[%s1 + $0x16d8] sm:$0xff]
    %v943 = vld [vmem:[%s1 + $0x16e0] sm:$0xff]
    %v944 = vld [vmem:[%s1 + $0x16e8] sm:$0xff]
    %v945 = vld [vmem:[%s1 + $0x16f0] sm:$0xff]
    %v946 = vld [vmem:[%s1 + $0x16f8] sm:$0xff]
    %v947 = vld [vmem:[%s1 + $0x1700] sm:$0xff]
    %v948 = vld [vmem:[%s1 + $0x1708] sm:$0xff]
    %v949 = vld [vmem:[%s1 + $0x1710] sm:$0xff]
    %v950 = vld [vmem:[%s1 + $0x1718] sm:$0xff]
    %v951 = vld [vmem:[%s1 + $0x1720] sm:$0xff]
    %v952 = vld [vmem:[%s1 + $0x1728] sm:$0xff]
    %v953 = vld [vmem:[%s1 + $0x1730] sm:$0xff]
    %v954 = vld [vmem:[%s1 + $0x1738] sm:$0xff]
    %v955 = vld [vmem:[%s1 + $0x1740] sm:$0xff]
    %v956 = vld [vmem:[%s1 + $0x1748] sm:$0xff]
    %v957 = vld [vmem:[%s1 + $0x1750] sm:$0xff]
    %v958 = vld [vmem:[%s1 + $0x1758] sm:$0xff]
    %v959 = vld [vmem:[%s1 + $0x1760] sm:$0xff]
    %v960 = vld [vmem:[%s1 + $0x1768] sm:$0xff]
    %v961 = vld [vmem:[%s1 + $0x1770] sm:$0xff]
    %v962 = vld [vmem:[%s1 + $0x1778] sm:$0xff]
    %v963 = vld [vmem:[%s1 + $0x1780] sm:$0xff]
    %v964 = vld [vmem:[%s1 + $0x1788] sm:$0xff]
    %v965 = vld [vmem:[%s1 + $0x1790] sm:$0xff]
    %v966 = vld [vmem:[%s1 + $0x1798] sm:$0xff]
    %v967 = vld [vmem:[%s1 + $0x17a0] sm:$0xff]
    %v968 = vld [vmem:[%s1 + $0x17a8] sm:$0xff]
    %v969 = vld [vmem:[%s1 + $0x17b0] sm:$0xff]
    %v970 = vld [vmem:[%s1 + $0x17b8] sm:$0xff]
    %v971 = vld [vmem:[%s1 + $0x17c0] sm:$0xff]
    %v972 = vld [vmem:[%s1 + $0x17c8] sm:$0xff]
    %v973 = vld [vmem:[%s1 + $0x17d0] sm:$0xff]
    %v974 = vld [vmem:[%s1 + $0x17d8] sm:$0xff]
    %v975 = vld [vmem:[%s1 + $0x17e0] sm:$0xff]
    %v976 = vld [vmem:[%s1 + $0x17e8] sm:$0xff]
    %v977 = vld [vmem:[%s1 + $0x17f0] sm:$0xff]
    %v978 = vld [vmem:[%s1 + $0x17f8] sm:$0xff]
    %v979 = vld [vmem:[%s1 + $0x1800] sm:$0xff]
    %v980 = vld [vmem:[%s1 + $0x1808] sm:$0xff]
    %v981 = vld [vmem:[%s1 + $0x1810] sm:$0xff]
    %v982 = vld [vmem:[%s1 + $0x1818] sm:$0xff]
    %v983 = vld [vmem:[%s1 + $0x1820] sm:$0xff]
    %v984 = vld [vmem:[%s1 + $0x1828] sm:$0xff]
    %v985 = vld [vmem:[%s1 + $0x1830] sm:$0xff]
    %v986 = vld [vmem:[%s1 + $0x1838] sm:$0xff]
    %v987 = vld [vmem:[%s1 + $0x1840] sm:$0xff]
    %v988 = vld [vmem:[%s1 + $0x1848] sm:$0xff]
    %v989 = vld [vmem:[%s1 + $0x1850] sm:$0xff]
    %v990 = vld [vmem:[%s1 + $0x1858] sm:$0xff]
    %v991 = vld [vmem:[%s1 + $0x1860] sm:$0xff]
    %v992 = vld [vmem:[%s1 + $0x1868] sm:$0xff]
    %v993 = vld [vmem:[%s1 + $0x1870] sm:$0xff]
    %v994 = vld [vmem:[%s1 + $0x1878] sm:$0xff]
    %v995 = vld [vmem:[%s1 + $0x1880] sm:$0xff]
    %v996 = vld [vmem:[%s1 + $0x1888] sm:$0xff]
    %v997 = vld [vmem:[%s1 + $0x1890] sm:$0xff]
    %v998 = vld [vmem:[%s1 + $0x1898] sm:$0xff]
    %v999 = vld [vmem:[%s1 + $0x18a0] sm:$0xff]
    %v1000 = vld [vmem:[%s1 + $0x18a8] sm:$0xff]
    %v1001 = vld [vmem:[%s1 + $0x18b0] sm:$0xff]
    %v1002 = vld [vmem:[%s1 + $0x18b8] sm:$0xff]
    %v1003 = vld [vmem:[%s1 + $0x18c0] sm:$0xff]
    %v1004 = vld [vmem:[%s1 + $0x18c8] sm:$0xff]
    %v1005 = vld [vmem:[%s1 + $0x18d0] sm:$0xff]
    %v1006 = vld [vmem:[%s1 + $0x18d8] sm:$0xff]
    %v1007 = vld [vmem:[%s1 + $0x18e0] sm:$0xff]
    %v1008 = vld [vmem:[%s1 + $0x18e8] sm:$0xff]
    %v1009 = vld [vmem:[%s1 + $0x18f0] sm:$0xff]
    %v1010 = vld [vmem:[%s1 + $0x18f8] sm:$0xff]
    %v1011 = vld [vmem:[%s1 + $0x1900] sm:$0xff]
    %v1012 = vld [vmem:[%s1 + $0x1908] sm:$0xff]
    %v1013 = vld [vmem:[%s1 + $0x1910] sm:$0xff]
    %v1014 = vld [vmem:[%s1 + $0x1918] sm:$0xff]
    %v1015 = vld [vmem:[%s1 + $0x1920] sm:$0xff]
    %v1016 = vld [vmem:[%s1 + $0x1928] sm:$0xff]
    %v1017 = vld [vmem:[%s1 + $0x1930] sm:$0xff]
    %v1018 = vld [vmem:[%s1 + $0x1938] sm:$0xff]
    %v1019 = vld [vmem:[%s1 + $0x1940] sm:$0xff]
    %v1020 = vld [vmem:[%s1 + $0x1948] sm:$0xff]
    %v1021 = vld [vmem:[%s1 + $0x1950] sm:$0xff]
    %v1022 = vld [vmem:[%s1 + $0x1958] sm:$0xff]
    %v1023 = vld [vmem:[%s1 + $0x1960] sm:$0xff]
    %v1024 = vld [vmem:[%s1 + $0x1968] sm:$0xff]
    %v1025 = vld [vmem:[%s1 + $0x1970] sm:$0xff]
    %v1026 = vld [vmem:[%s1 + $0x1978] sm:$0xff]
    %v1027 = vld [vmem:[%s1 + $0x1980] sm:$0xff]
    %v1028 = vld [vmem:[%s1 + $0x1988] sm:$0xff]
    %v1029 = vld [vmem:[%s1 + $0x1990] sm:$0xff]
    %v1030 = vld [vmem:[%s1 + $0x1998] sm:$0xff]
    %v1031 = vld [vmem:[%s1 + $0x19a0] sm:$0xff]
    %v1032 = vld [vmem:[%s1 + $0x19a8] sm:$0xff]
    %v1033 = vld [vmem:[%s1 + $0x19b0] sm:$0xff]
    %v1034 = vld [vmem:[%s1 + $0x19b8] sm:$0xff]
    %v1035 = vld [vmem:[%s1 + $0x19c0] sm:$0xff]
    %v1036 = vld [vmem:[%s1 + $0x19c8] sm:$0xff]
    %v1037 = vld [vmem:[%s1 + $0x19d0] sm:$0xff]
    %v1038 = vld [vmem:[%s1 + $0x19d8] sm:$0xff]
    %v1039 = vld [vmem:[%s1 + $0x19e0] sm:$0xff]
    %v1040 = vld [vmem:[%s1 + $0x19e8] sm:$0xff]
    %v1041 = vld [vmem:[%s1 + $0x19f0] sm:$0xff]
    %v1042 = vld [vmem:[%s1 + $0x19f8] sm:$0xff]
    %v1043 = vld [vmem:[%s1 + $0x1a00] sm:$0xff]
    %v1044 = vld [vmem:[%s1 + $0x1a08] sm:$0xff]
    %v1045 = vld [vmem:[%s1 + $0x1a10] sm:$0xff]
    %v1046 = vld [vmem:[%s1 + $0x1a18] sm:$0xff]
    %v1047 = vld [vmem:[%s1 + $0x1a20] sm:$0xff]
    %v1048 = vld [vmem:[%s1 + $0x1a28] sm:$0xff]
    %v1049 = vld [vmem:[%s1 + $0x1a30] sm:$0xff]
    %v1050 = vld [vmem:[%s1 + $0x1a38] sm:$0xff]
    %v1051 = vld [vmem:[%s1 + $0x1a40] sm:$0xff]
    %v1052 = vld [vmem:[%s1 + $0x1a48] sm:$0xff]
    %v1053 = vld [vmem:[%s1 + $0x1a50] sm:$0xff]
    %v1054 = vld [vmem:[%s1 + $0x1a58] sm:$0xff]
    %v1055 = vld [vmem:[%s1 + $0x1a60] sm:$0xff]
    %v1056 = vld [vmem:[%s1 + $0x1a68] sm:$0xff]
    %v1057 = vld [vmem:[%s1 + $0x1a70] sm:$0xff]
    %v1058 = vld [vmem:[%s1 + $0x1a78] sm:$0xff]
    %v1059 = vld [vmem:[%s1 + $0x1a80] sm:$0xff]
    %v1060 = vld [vmem:[%s1 + $0x1a88] sm:$0xff]
    %v1061 = vld [vmem:[%s1 + $0x1a90] sm:$0xff]
    %v1062 = vld [vmem:[%s1 + $0x1a98] sm:$0xff]
    %v1063 = vld [vmem:[%s1 + $0x1aa0] sm:$0xff]
    %v1064 = vld [vmem:[%s1 + $0x1aa8] sm:$0xff]
    %v1065 = vld [vmem:[%s1 + $0x1ab0] sm:$0xff]
    %v1066 = vld [vmem:[%s1 + $0x1ab8] sm:$0xff]
    %v1067 = vld [vmem:[%s1 + $0x1ac0] sm:$0xff]
    %v1068 = vld [vmem:[%s1 + $0x1ac8] sm:$0xff]
    %v1069 = vld [vmem:[%s1 + $0x1ad0] sm:$0xff]
    %v1070 = vld [vmem:[%s1 + $0x1ad8] sm:$0xff]
    %v1071 = vld [vmem:[%s1 + $0x1ae0] sm:$0xff]
    %v1072 = vld [vmem:[%s1 + $0x1ae8] sm:$0xff]
    %v1073 = vld [vmem:[%s1 + $0x1af0] sm:$0xff]
    %v1074 = vld [vmem:[%s1 + $0x1af8] sm:$0xff]
    %v1075 = vld [vmem:[%s1 + $0x1b00] sm:$0xff]
    %v1076 = vld [vmem:[%s1 + $0x1b08] sm:$0xff]
    %v1077 = vld [vmem:[%s1 + $0x1b10] sm:$0xff]
    %v1078 = vld [vmem:[%s1 + $0x1b18] sm:$0xff]
    %v1079 = vld [vmem:[%s1 + $0x1b20] sm:$0xff]
    %v1080 = vld [vmem:[%s1 + $0x1b28] sm:$0xff]
    %v1081 = vld [vmem:[%s1 + $0x1b30] sm:$0xff]
    %v1082 = vld [vmem:[%s1 + $0x1b38] sm:$0xff]
    %v1083 = vld [vmem:[%s1 + $0x1b40] sm:$0xff]
    %v1084 = vld [vmem:[%s1 + $0x1b48] sm:$0xff]
    %v1085 = vld [vmem:[%s1 + $0x1b50] sm:$0xff]
    %v1086 = vld [vmem:[%s1 + $0x1b58] sm:$0xff]
    %v1087 = vld [vmem:[%s1 + $0x1b60] sm:$0xff]
    %v1088 = vld [vmem:[%s1 + $0x1b68] sm:$0xff]
    %v1089 = vld [vmem:[%s1 + $0x1b70] sm:$0xff]
    %v1090 = vld [vmem:[%s1 + $0x1b78] sm:$0xff]
    %v1091 = vld [vmem:[%s1 + $0x1b80] sm:$0xff]
    %v1092 = vld [vmem:[%s1 + $0x1b88] sm:$0xff]
    %v1093 = vld [vmem:[%s1 + $0x1b90] sm:$0xff]
    %v1094 = vld [vmem:[%s1 + $0x1b98] sm:$0xff]
    %v1095 = vld [vmem:[%s1 + $0x1ba0] sm:$0xff]
    %v1096 = vld [vmem:[%s1 + $0x1ba8] sm:$0xff]
    %v1097 = vld [vmem:[%s1 + $0x1bb0] sm:$0xff]
    %v1098 = vld [vmem:[%s1 + $0x1bb8] sm:$0xff]
    %v1099 = vld [vmem:[%s1 + $0x1bc0] sm:$0xff]
    %v1100 = vld [vmem:[%s1 + $0x1bc8] sm:$0xff]
    %v1101 = vld [vmem:[%s1 + $0x1bd0] sm:$0xff]
    %v1102 = vld [vmem:[%s1 + $0x1bd8] sm:$0xff]
    %v1103 = vld [vmem:[%s1 + $0x1be0] sm:$0xff]
    %v1104 = vld [vmem:[%s1 + $0x1be8] sm:$0xff]
    %v1105 = vld [vmem:[%s1 + $0x1bf0] sm:$0xff]
    %v1106 = vld [vmem:[%s1 + $0x1bf8] sm:$0xff]
    %v1107 = vld [vmem:[%s2] sm:$0xf]
    %v1109 = vlaneseq
    %v1110 = vshrl.u32 %v1109, 7
    %v1111 = vsub.s32 0, %v1110
    %v1112 = vrot.slane %v1107, %v1111
    %v1113 = vlaneseq
    %v1114 = vshrl.u32 %v1113, 7
    %v1115 = vsub.s32 1, %v1114
    %v1116 = vrot.slane %v1107, %v1115
    %v1117 = vlaneseq
    %v1118 = vshrl.u32 %v1117, 7
    %v1119 = vsub.s32 2, %v1118
    %v1120 = vrot.slane %v1107, %v1119
    %v1121 = vlaneseq
    %v1122 = vshrl.u32 %v1121, 7
    %v1123 = vsub.s32 3, %v1122
    %v1124 = vrot.slane %v1107, %v1123
    %v2025 = vunpack.c.l.b16 %v211
    %v2026 = vunpack.c.h.b16 %v211
    %v2027 = vunpack.c.l.b16 %v212
    %v2028 = vunpack.c.h.b16 %v212
    %v2029 = vunpack.c.l.b16 %v213
    %v2030 = vunpack.c.h.b16 %v213
    %v2031 = vunpack.c.l.b16 %v214
    %v2032 = vunpack.c.h.b16 %v214
    %v2033 = vunpack.c.l.b16 %v215
    %v2034 = vunpack.c.h.b16 %v215
    %v2035 = vunpack.c.l.b16 %v216
    %v2036 = vunpack.c.h.b16 %v216
    %v2037 = vunpack.c.l.b16 %v217
    %v2038 = vunpack.c.h.b16 %v217
    %v2039 = vunpack.c.l.b16 %v218
    %v2040 = vunpack.c.h.b16 %v218
    %v2041 = vunpack.c.l.b16 %v219
    %v2042 = vunpack.c.h.b16 %v219
    %v2043 = vunpack.c.l.b16 %v220
    %v2044 = vunpack.c.h.b16 %v220
    %v2045 = vunpack.c.l.b16 %v221
    %v2046 = vunpack.c.h.b16 %v221
    %v2047 = vunpack.c.l.b16 %v222
    %v2048 = vunpack.c.h.b16 %v222
    %v2049 = vunpack.c.l.b16 %v223
    %v2050 = vunpack.c.h.b16 %v223
    %v2051 = vunpack.c.l.b16 %v224
    %v2052 = vunpack.c.h.b16 %v224
    %v2053 = vunpack.c.l.b16 %v225
    %v2054 = vunpack.c.h.b16 %v225
    %v2055 = vunpack.c.l.b16 %v226
    %v2056 = vunpack.c.h.b16 %v226
    %v2057 = vunpack.c.l.b16 %v227
    %v2058 = vunpack.c.h.b16 %v227
    %v2059 = vunpack.c.l.b16 %v228
    %v2060 = vunpack.c.h.b16 %v228
    %v2061 = vunpack.c.l.b16 %v229
    %v2062 = vunpack.c.h.b16 %v229
    %v2063 = vunpack.c.l.b16 %v230
    %v2064 = vunpack.c.h.b16 %v230
    %v2065 = vunpack.c.l.b16 %v231
    %v2066 = vunpack.c.h.b16 %v231
    %v2067 = vunpack.c.l.b16 %v232
    %v2068 = vunpack.c.h.b16 %v232
    %v2069 = vunpack.c.l.b16 %v233
    %v2070 = vunpack.c.h.b16 %v233
    %v2071 = vunpack.c.l.b16 %v234
    %v2072 = vunpack.c.h.b16 %v234
    %v2073 = vunpack.c.l.b16 %v235
    %v2074 = vunpack.c.h.b16 %v235
    %v2075 = vunpack.c.l.b16 %v236
    %v2076 = vunpack.c.h.b16 %v236
    %v2077 = vunpack.c.l.b16 %v237
    %v2078 = vunpack.c.h.b16 %v237
    %v2079 = vunpack.c.l.b16 %v238
    %v2080 = vunpack.c.h.b16 %v238
    %v2081 = vunpack.c.l.b16 %v239
    %v2082 = vunpack.c.h.b16 %v239
    %v2083 = vunpack.c.l.b16 %v240
    %v2084 = vunpack.c.h.b16 %v240
    %v2085 = vunpack.c.l.b16 %v241
    %v2086 = vunpack.c.h.b16 %v241
    %v2087 = vunpack.c.l.b16 %v242
    %v2088 = vunpack.c.h.b16 %v242
    %v2089 = vunpack.c.l.b16 %v243
    %v2090 = vunpack.c.h.b16 %v243
    %v2091 = vunpack.c.l.b16 %v244
    %v2092 = vunpack.c.h.b16 %v244
    %v2093 = vunpack.c.l.b16 %v245
    %v2094 = vunpack.c.h.b16 %v245
    %v2095 = vunpack.c.l.b16 %v246
    %v2096 = vunpack.c.h.b16 %v246
    %v2097 = vunpack.c.l.b16 %v247
    %v2098 = vunpack.c.h.b16 %v247
    %v2099 = vunpack.c.l.b16 %v248
    %v2100 = vunpack.c.h.b16 %v248
    %v2101 = vunpack.c.l.b16 %v249
    %v2102 = vunpack.c.h.b16 %v249
    %v2103 = vunpack.c.l.b16 %v250
    %v2104 = vunpack.c.h.b16 %v250
    %v2105 = vunpack.c.l.b16 %v251
    %v2106 = vunpack.c.h.b16 %v251
    %v2107 = vunpack.c.l.b16 %v252
    %v2108 = vunpack.c.h.b16 %v252
    %v2109 = vunpack.c.l.b16 %v253
    %v2110 = vunpack.c.h.b16 %v253
    %v2111 = vunpack.c.l.b16 %v254
    %v2112 = vunpack.c.h.b16 %v254
    %v2113 = vunpack.c.l.b16 %v255
    %v2114 = vunpack.c.h.b16 %v255
    %v2115 = vunpack.c.l.b16 %v256
    %v2116 = vunpack.c.h.b16 %v256
    %v2117 = vunpack.c.l.b16 %v257
    %v2118 = vunpack.c.h.b16 %v257
    %v2119 = vunpack.c.l.b16 %v258
    %v2120 = vunpack.c.h.b16 %v258
    %v2121 = vunpack.c.l.b16 %v259
    %v2122 = vunpack.c.h.b16 %v259
    %v2123 = vunpack.c.l.b16 %v260
    %v2124 = vunpack.c.h.b16 %v260
    %v2125 = vunpack.c.l.b16 %v261
    %v2126 = vunpack.c.h.b16 %v261
    %v2127 = vunpack.c.l.b16 %v262
    %v2128 = vunpack.c.h.b16 %v262
    %v2129 = vunpack.c.l.b16 %v263
    %v2130 = vunpack.c.h.b16 %v263
    %v2131 = vunpack.c.l.b16 %v264
    %v2132 = vunpack.c.h.b16 %v264
    %v2133 = vunpack.c.l.b16 %v265
    %v2134 = vunpack.c.h.b16 %v265
    %v2135 = vunpack.c.l.b16 %v266
    %v2136 = vunpack.c.h.b16 %v266
    %v2137 = vunpack.c.l.b16 %v267
    %v2138 = vunpack.c.h.b16 %v267
    %v2139 = vunpack.c.l.b16 %v268
    %v2140 = vunpack.c.h.b16 %v268
    %v2141 = vunpack.c.l.b16 %v269
    %v2142 = vunpack.c.h.b16 %v269
    %v2143 = vunpack.c.l.b16 %v270
    %v2144 = vunpack.c.h.b16 %v270
    %v2145 = vunpack.c.l.b16 %v271
    %v2146 = vunpack.c.h.b16 %v271
    %v2147 = vunpack.c.l.b16 %v272
    %v2148 = vunpack.c.h.b16 %v272
    %v2149 = vunpack.c.l.b16 %v273
    %v2150 = vunpack.c.h.b16 %v273
    %v2151 = vunpack.c.l.b16 %v274
    %v2152 = vunpack.c.h.b16 %v274
    %v2153 = vunpack.c.l.b16 %v275
    %v2154 = vunpack.c.h.b16 %v275
    %v2155 = vunpack.c.l.b16 %v276
    %v2156 = vunpack.c.h.b16 %v276
    %v2157 = vunpack.c.l.b16 %v277
    %v2158 = vunpack.c.h.b16 %v277
    %v2159 = vunpack.c.l.b16 %v278
    %v2160 = vunpack.c.h.b16 %v278
    %v2161 = vunpack.c.l.b16 %v279
    %v2162 = vunpack.c.h.b16 %v279
    %v2163 = vunpack.c.l.b16 %v280
    %v2164 = vunpack.c.h.b16 %v280
    %v2165 = vunpack.c.l.b16 %v281
    %v2166 = vunpack.c.h.b16 %v281
    %v2167 = vunpack.c.l.b16 %v282
    %v2168 = vunpack.c.h.b16 %v282
    %v2169 = vunpack.c.l.b16 %v283
    %v2170 = vunpack.c.h.b16 %v283
    %v2171 = vunpack.c.l.b16 %v284
    %v2172 = vunpack.c.h.b16 %v284
    %v2173 = vunpack.c.l.b16 %v285
    %v2174 = vunpack.c.h.b16 %v285
    %v2175 = vunpack.c.l.b16 %v286
    %v2176 = vunpack.c.h.b16 %v286
    %v2177 = vunpack.c.l.b16 %v287
    %v2178 = vunpack.c.h.b16 %v287
    %v2179 = vunpack.c.l.b16 %v288
    %v2180 = vunpack.c.h.b16 %v288
    %v2181 = vunpack.c.l.b16 %v289
    %v2182 = vunpack.c.h.b16 %v289
    %v2183 = vunpack.c.l.b16 %v290
    %v2184 = vunpack.c.h.b16 %v290
    %v2185 = vunpack.c.l.b16 %v291
    %v2186 = vunpack.c.h.b16 %v291
    %v2187 = vunpack.c.l.b16 %v292
    %v2188 = vunpack.c.h.b16 %v292
    %v2189 = vunpack.c.l.b16 %v293
    %v2190 = vunpack.c.h.b16 %v293
    %v2191 = vunpack.c.l.b16 %v294
    %v2192 = vunpack.c.h.b16 %v294
    %v2193 = vunpack.c.l.b16 %v295
    %v2194 = vunpack.c.h.b16 %v295
    %v2195 = vunpack.c.l.b16 %v296
    %v2196 = vunpack.c.h.b16 %v296
    %v2197 = vunpack.c.l.b16 %v297
    %v2198 = vunpack.c.h.b16 %v297
    %v2199 = vunpack.c.l.b16 %v298
    %v2200 = vunpack.c.h.b16 %v298
    %v2201 = vunpack.c.l.b16 %v299
    %v2202 = vunpack.c.h.b16 %v299
    %v2203 = vunpack.c.l.b16 %v300
    %v2204 = vunpack.c.h.b16 %v300
    %v2205 = vunpack.c.l.b16 %v301
    %v2206 = vunpack.c.h.b16 %v301
    %v2207 = vunpack.c.l.b16 %v302
    %v2208 = vunpack.c.h.b16 %v302
    %v2209 = vunpack.c.l.b16 %v303
    %v2210 = vunpack.c.h.b16 %v303
    %v2211 = vunpack.c.l.b16 %v304
    %v2212 = vunpack.c.h.b16 %v304
    %v2213 = vunpack.c.l.b16 %v305
    %v2214 = vunpack.c.h.b16 %v305
    %v2215 = vunpack.c.l.b16 %v306
    %v2216 = vunpack.c.h.b16 %v306
    %v2217 = vunpack.c.l.b16 %v307
    %v2218 = vunpack.c.h.b16 %v307
    %v2219 = vunpack.c.l.b16 %v308
    %v2220 = vunpack.c.h.b16 %v308
    %v2221 = vunpack.c.l.b16 %v309
    %v2222 = vunpack.c.h.b16 %v309
    %v2223 = vunpack.c.l.b16 %v310
    %v2224 = vunpack.c.h.b16 %v310
    %v2225 = vunpack.c.l.b16 %v311
    %v2226 = vunpack.c.h.b16 %v311
    %v2227 = vunpack.c.l.b16 %v312
    %v2228 = vunpack.c.h.b16 %v312
    %v2229 = vunpack.c.l.b16 %v313
    %v2230 = vunpack.c.h.b16 %v313
    %v2231 = vunpack.c.l.b16 %v314
    %v2232 = vunpack.c.h.b16 %v314
    %v2233 = vunpack.c.l.b16 %v315
    %v2234 = vunpack.c.h.b16 %v315
    %v2235 = vunpack.c.l.b16 %v316
    %v2236 = vunpack.c.h.b16 %v316
    %v2237 = vunpack.c.l.b16 %v317
    %v2238 = vunpack.c.h.b16 %v317
    %v2239 = vunpack.c.l.b16 %v318
    %v2240 = vunpack.c.h.b16 %v318
    %v2241 = vunpack.c.l.b16 %v319
    %v2242 = vunpack.c.h.b16 %v319
    %v2243 = vunpack.c.l.b16 %v320
    %v2244 = vunpack.c.h.b16 %v320
    %v2245 = vunpack.c.l.b16 %v321
    %v2246 = vunpack.c.h.b16 %v321
    %v2247 = vunpack.c.l.b16 %v322
    %v2248 = vunpack.c.h.b16 %v322
    %v2249 = vunpack.c.l.b16 %v323
    %v2250 = vunpack.c.h.b16 %v323
    %v2251 = vunpack.c.l.b16 %v324
    %v2252 = vunpack.c.h.b16 %v324
    %v2253 = vunpack.c.l.b16 %v325
    %v2254 = vunpack.c.h.b16 %v325
    %v2255 = vunpack.c.l.b16 %v326
    %v2256 = vunpack.c.h.b16 %v326
    %v2257 = vunpack.c.l.b16 %v327
    %v2258 = vunpack.c.h.b16 %v327
    %v2259 = vunpack.c.l.b16 %v328
    %v2260 = vunpack.c.h.b16 %v328
    %v2261 = vunpack.c.l.b16 %v329
    %v2262 = vunpack.c.h.b16 %v329
    %v2263 = vunpack.c.l.b16 %v330
    %v2264 = vunpack.c.h.b16 %v330
    %v2265 = vunpack.c.l.b16 %v331
    %v2266 = vunpack.c.h.b16 %v331
    %v2267 = vunpack.c.l.b16 %v332
    %v2268 = vunpack.c.h.b16 %v332
    %v2269 = vunpack.c.l.b16 %v333
    %v2270 = vunpack.c.h.b16 %v333
    %v2271 = vunpack.c.l.b16 %v334
    %v2272 = vunpack.c.h.b16 %v334
    %v2273 = vunpack.c.l.b16 %v335
    %v2274 = vunpack.c.h.b16 %v335
    %v2275 = vunpack.c.l.b16 %v336
    %v2276 = vunpack.c.h.b16 %v336
    %v2277 = vunpack.c.l.b16 %v337
    %v2278 = vunpack.c.h.b16 %v337
    %v2279 = vunpack.c.l.b16 %v338
    %v2280 = vunpack.c.h.b16 %v338
    %v2281 = vunpack.c.l.b16 %v339
    %v2282 = vunpack.c.h.b16 %v339
    %v2283 = vunpack.c.l.b16 %v340
    %v2284 = vunpack.c.h.b16 %v340
    %v2285 = vunpack.c.l.b16 %v341
    %v2286 = vunpack.c.h.b16 %v341
    %v2287 = vunpack.c.l.b16 %v342
    %v2288 = vunpack.c.h.b16 %v342
    %v2289 = vunpack.c.l.b16 %v343
    %v2290 = vunpack.c.h.b16 %v343
    %v2291 = vunpack.c.l.b16 %v344
    %v2292 = vunpack.c.h.b16 %v344
    %v2293 = vunpack.c.l.b16 %v345
    %v2294 = vunpack.c.h.b16 %v345
    %v2295 = vunpack.c.l.b16 %v346
    %v2296 = vunpack.c.h.b16 %v346
    %v2297 = vunpack.c.l.b16 %v347
    %v2298 = vunpack.c.h.b16 %v347
    %v2299 = vunpack.c.l.b16 %v348
    %v2300 = vunpack.c.h.b16 %v348
    %v2301 = vunpack.c.l.b16 %v349
    %v2302 = vunpack.c.h.b16 %v349
    %v2303 = vunpack.c.l.b16 %v350
    %v2304 = vunpack.c.h.b16 %v350
    %v2305 = vunpack.c.l.b16 %v351
    %v2306 = vunpack.c.h.b16 %v351
    %v2307 = vunpack.c.l.b16 %v352
    %v2308 = vunpack.c.h.b16 %v352
    %v2309 = vunpack.c.l.b16 %v353
    %v2310 = vunpack.c.h.b16 %v353
    %v2311 = vunpack.c.l.b16 %v354
    %v2312 = vunpack.c.h.b16 %v354
    %v2313 = vunpack.c.l.b16 %v355
    %v2314 = vunpack.c.h.b16 %v355
    %v2315 = vunpack.c.l.b16 %v356
    %v2316 = vunpack.c.h.b16 %v356
    %v2317 = vunpack.c.l.b16 %v357
    %v2318 = vunpack.c.h.b16 %v357
    %v2319 = vunpack.c.l.b16 %v358
    %v2320 = vunpack.c.h.b16 %v358
    %v2321 = vunpack.c.l.b16 %v359
    %v2322 = vunpack.c.h.b16 %v359
    %v2323 = vunpack.c.l.b16 %v360
    %v2324 = vunpack.c.h.b16 %v360
    %v2325 = vunpack.c.l.b16 %v361
    %v2326 = vunpack.c.h.b16 %v361
    %v2327 = vunpack.c.l.b16 %v362
    %v2328 = vunpack.c.h.b16 %v362
    %v2329 = vunpack.c.l.b16 %v363
    %v2330 = vunpack.c.h.b16 %v363
    %v2331 = vunpack.c.l.b16 %v364
    %v2332 = vunpack.c.h.b16 %v364
    %v2333 = vunpack.c.l.b16 %v365
    %v2334 = vunpack.c.h.b16 %v365
    %v2335 = vunpack.c.l.b16 %v366
    %v2336 = vunpack.c.h.b16 %v366
    %v2337 = vunpack.c.l.b16 %v367
    %v2338 = vunpack.c.h.b16 %v367
    %v2339 = vunpack.c.l.b16 %v368
    %v2340 = vunpack.c.h.b16 %v368
    %v2341 = vunpack.c.l.b16 %v369
    %v2342 = vunpack.c.h.b16 %v369
    %v2343 = vunpack.c.l.b16 %v370
    %v2344 = vunpack.c.h.b16 %v370
    %v2345 = vunpack.c.l.b16 %v371
    %v2346 = vunpack.c.h.b16 %v371
    %v2347 = vunpack.c.l.b16 %v372
    %v2348 = vunpack.c.h.b16 %v372
    %v2349 = vunpack.c.l.b16 %v373
    %v2350 = vunpack.c.h.b16 %v373
    %v2351 = vunpack.c.l.b16 %v374
    %v2352 = vunpack.c.h.b16 %v374
    %v2353 = vunpack.c.l.b16 %v375
    %v2354 = vunpack.c.h.b16 %v375
    %v2355 = vunpack.c.l.b16 %v376
    %v2356 = vunpack.c.h.b16 %v376
    %v2357 = vunpack.c.l.b16 %v377
    %v2358 = vunpack.c.h.b16 %v377
    %v2359 = vunpack.c.l.b16 %v378
    %v2360 = vunpack.c.h.b16 %v378
    %v2361 = vunpack.c.l.b16 %v379
    %v2362 = vunpack.c.h.b16 %v379
    %v2363 = vunpack.c.l.b16 %v380
    %v2364 = vunpack.c.h.b16 %v380
    %v2365 = vunpack.c.l.b16 %v381
    %v2366 = vunpack.c.h.b16 %v381
    %v2367 = vunpack.c.l.b16 %v382
    %v2368 = vunpack.c.h.b16 %v382
    %v2369 = vunpack.c.l.b16 %v383
    %v2370 = vunpack.c.h.b16 %v383
    %v2371 = vunpack.c.l.b16 %v384
    %v2372 = vunpack.c.h.b16 %v384
    %v2373 = vunpack.c.l.b16 %v385
    %v2374 = vunpack.c.h.b16 %v385
    %v2375 = vunpack.c.l.b16 %v386
    %v2376 = vunpack.c.h.b16 %v386
    %v2377 = vunpack.c.l.b16 %v387
    %v2378 = vunpack.c.h.b16 %v387
    %v2379 = vunpack.c.l.b16 %v388
    %v2380 = vunpack.c.h.b16 %v388
    %v2381 = vunpack.c.l.b16 %v389
    %v2382 = vunpack.c.h.b16 %v389
    %v2383 = vunpack.c.l.b16 %v390
    %v2384 = vunpack.c.h.b16 %v390
    %v2385 = vunpack.c.l.b16 %v391
    %v2386 = vunpack.c.h.b16 %v391
    %v2387 = vunpack.c.l.b16 %v392
    %v2388 = vunpack.c.h.b16 %v392
    %v2389 = vunpack.c.l.b16 %v393
    %v2390 = vunpack.c.h.b16 %v393
    %v2391 = vunpack.c.l.b16 %v394
    %v2392 = vunpack.c.h.b16 %v394
    %v2393 = vunpack.c.l.b16 %v395
    %v2394 = vunpack.c.h.b16 %v395
    %v2395 = vunpack.c.l.b16 %v396
    %v2396 = vunpack.c.h.b16 %v396
    %v2397 = vunpack.c.l.b16 %v397
    %v2398 = vunpack.c.h.b16 %v397
    %v2399 = vunpack.c.l.b16 %v398
    %v2400 = vunpack.c.h.b16 %v398
    %v2401 = vunpack.c.l.b16 %v399
    %v2402 = vunpack.c.h.b16 %v399
    %v2403 = vunpack.c.l.b16 %v400
    %v2404 = vunpack.c.h.b16 %v400
    %v2405 = vunpack.c.l.b16 %v401
    %v2406 = vunpack.c.h.b16 %v401
    %v2407 = vunpack.c.l.b16 %v402
    %v2408 = vunpack.c.h.b16 %v402
    %v2409 = vunpack.c.l.b16 %v403
    %v2410 = vunpack.c.h.b16 %v403
    %v2411 = vunpack.c.l.b16 %v404
    %v2412 = vunpack.c.h.b16 %v404
    %v2413 = vunpack.c.l.b16 %v405
    %v2414 = vunpack.c.h.b16 %v405
    %v2415 = vunpack.c.l.b16 %v406
    %v2416 = vunpack.c.h.b16 %v406
    %v2417 = vunpack.c.l.b16 %v407
    %v2418 = vunpack.c.h.b16 %v407
    %v2419 = vunpack.c.l.b16 %v408
    %v2420 = vunpack.c.h.b16 %v408
    %v2421 = vunpack.c.l.b16 %v409
    %v2422 = vunpack.c.h.b16 %v409
    %v2423 = vunpack.c.l.b16 %v410
    %v2424 = vunpack.c.h.b16 %v410
    %v2425 = vunpack.c.l.b16 %v411
    %v2426 = vunpack.c.h.b16 %v411
    %v2427 = vunpack.c.l.b16 %v412
    %v2428 = vunpack.c.h.b16 %v412
    %v2429 = vunpack.c.l.b16 %v413
    %v2430 = vunpack.c.h.b16 %v413
    %v2431 = vunpack.c.l.b16 %v414
    %v2432 = vunpack.c.h.b16 %v414
    %v2433 = vunpack.c.l.b16 %v415
    %v2434 = vunpack.c.h.b16 %v415
    %v2435 = vunpack.c.l.b16 %v416
    %v2436 = vunpack.c.h.b16 %v416
    %v2437 = vunpack.c.l.b16 %v417
    %v2438 = vunpack.c.h.b16 %v417
    %v2439 = vunpack.c.l.b16 %v418
    %v2440 = vunpack.c.h.b16 %v418
    %v2441 = vunpack.c.l.b16 %v419
    %v2442 = vunpack.c.h.b16 %v419
    %v2443 = vunpack.c.l.b16 %v420
    %v2444 = vunpack.c.h.b16 %v420
    %v2445 = vunpack.c.l.b16 %v421
    %v2446 = vunpack.c.h.b16 %v421
    %v2447 = vunpack.c.l.b16 %v422
    %v2448 = vunpack.c.h.b16 %v422
    %v2449 = vunpack.c.l.b16 %v423
    %v2450 = vunpack.c.h.b16 %v423
    %v2451 = vunpack.c.l.b16 %v424
    %v2452 = vunpack.c.h.b16 %v424
    %v2453 = vunpack.c.l.b16 %v425
    %v2454 = vunpack.c.h.b16 %v425
    %v2455 = vunpack.c.l.b16 %v426
    %v2456 = vunpack.c.h.b16 %v426
    %v2457 = vunpack.c.l.b16 %v427
    %v2458 = vunpack.c.h.b16 %v427
    %v2459 = vunpack.c.l.b16 %v428
    %v2460 = vunpack.c.h.b16 %v428
    %v2461 = vunpack.c.l.b16 %v429
    %v2462 = vunpack.c.h.b16 %v429
    %v2463 = vunpack.c.l.b16 %v430
    %v2464 = vunpack.c.h.b16 %v430
    %v2465 = vunpack.c.l.b16 %v431
    %v2466 = vunpack.c.h.b16 %v431
    %v2467 = vunpack.c.l.b16 %v432
    %v2468 = vunpack.c.h.b16 %v432
    %v2469 = vunpack.c.l.b16 %v433
    %v2470 = vunpack.c.h.b16 %v433
    %v2471 = vunpack.c.l.b16 %v434
    %v2472 = vunpack.c.h.b16 %v434
    %v2473 = vunpack.c.l.b16 %v435
    %v2474 = vunpack.c.h.b16 %v435
    %v2475 = vunpack.c.l.b16 %v436
    %v2476 = vunpack.c.h.b16 %v436
    %v2477 = vunpack.c.l.b16 %v437
    %v2478 = vunpack.c.h.b16 %v437
    %v2479 = vunpack.c.l.b16 %v438
    %v2480 = vunpack.c.h.b16 %v438
    %v2481 = vunpack.c.l.b16 %v439
    %v2482 = vunpack.c.h.b16 %v439
    %v2483 = vunpack.c.l.b16 %v440
    %v2484 = vunpack.c.h.b16 %v440
    %v2485 = vunpack.c.l.b16 %v441
    %v2486 = vunpack.c.h.b16 %v441
    %v2487 = vunpack.c.l.b16 %v442
    %v2488 = vunpack.c.h.b16 %v442
    %v2489 = vunpack.c.l.b16 %v443
    %v2490 = vunpack.c.h.b16 %v443
    %v2491 = vunpack.c.l.b16 %v444
    %v2492 = vunpack.c.h.b16 %v444
    %v2493 = vunpack.c.l.b16 %v445
    %v2494 = vunpack.c.h.b16 %v445
    %v2495 = vunpack.c.l.b16 %v446
    %v2496 = vunpack.c.h.b16 %v446
    %v2497 = vunpack.c.l.b16 %v447
    %v2498 = vunpack.c.h.b16 %v447
    %v2499 = vunpack.c.l.b16 %v448
    %v2500 = vunpack.c.h.b16 %v448
    %v2501 = vunpack.c.l.b16 %v449
    %v2502 = vunpack.c.h.b16 %v449
    %v2503 = vunpack.c.l.b16 %v450
    %v2504 = vunpack.c.h.b16 %v450
    %v2505 = vunpack.c.l.b16 %v451
    %v2506 = vunpack.c.h.b16 %v451
    %v2507 = vunpack.c.l.b16 %v452
    %v2508 = vunpack.c.h.b16 %v452
    %v2509 = vunpack.c.l.b16 %v453
    %v2510 = vunpack.c.h.b16 %v453
    %v2511 = vunpack.c.l.b16 %v454
    %v2512 = vunpack.c.h.b16 %v454
    %v2513 = vunpack.c.l.b16 %v455
    %v2514 = vunpack.c.h.b16 %v455
    %v2515 = vunpack.c.l.b16 %v456
    %v2516 = vunpack.c.h.b16 %v456
    %v2517 = vunpack.c.l.b16 %v457
    %v2518 = vunpack.c.h.b16 %v457
    %v2519 = vunpack.c.l.b16 %v458
    %v2520 = vunpack.c.h.b16 %v458
    %v2521 = vunpack.c.l.b16 %v459
    %v2522 = vunpack.c.h.b16 %v459
    %v2523 = vunpack.c.l.b16 %v460
    %v2524 = vunpack.c.h.b16 %v460
    %v2525 = vunpack.c.l.b16 %v461
    %v2526 = vunpack.c.h.b16 %v461
    %v2527 = vunpack.c.l.b16 %v462
    %v2528 = vunpack.c.h.b16 %v462
    %v2529 = vunpack.c.l.b16 %v463
    %v2530 = vunpack.c.h.b16 %v463
    %v2531 = vunpack.c.l.b16 %v464
    %v2532 = vunpack.c.h.b16 %v464
    %v2533 = vunpack.c.l.b16 %v465
    %v2534 = vunpack.c.h.b16 %v465
    %v2535 = vunpack.c.l.b16 %v466
    %v2536 = vunpack.c.h.b16 %v466
    %v2537 = vunpack.c.l.b16 %v467
    %v2538 = vunpack.c.h.b16 %v467
    %v2539 = vunpack.c.l.b16 %v468
    %v2540 = vunpack.c.h.b16 %v468
    %v2541 = vunpack.c.l.b16 %v469
    %v2542 = vunpack.c.h.b16 %v469
    %v2543 = vunpack.c.l.b16 %v470
    %v2544 = vunpack.c.h.b16 %v470
    %v2545 = vunpack.c.l.b16 %v471
    %v2546 = vunpack.c.h.b16 %v471
    %v2547 = vunpack.c.l.b16 %v472
    %v2548 = vunpack.c.h.b16 %v472
    %v2549 = vunpack.c.l.b16 %v473
    %v2550 = vunpack.c.h.b16 %v473
    %v2551 = vunpack.c.l.b16 %v474
    %v2552 = vunpack.c.h.b16 %v474
    %v2553 = vunpack.c.l.b16 %v475
    %v2554 = vunpack.c.h.b16 %v475
    %v2555 = vunpack.c.l.b16 %v476
    %v2556 = vunpack.c.h.b16 %v476
    %v2557 = vunpack.c.l.b16 %v477
    %v2558 = vunpack.c.h.b16 %v477
    %v2559 = vunpack.c.l.b16 %v478
    %v2560 = vunpack.c.h.b16 %v478
    %v2561 = vunpack.c.l.b16 %v479
    %v2562 = vunpack.c.h.b16 %v479
    %v2563 = vunpack.c.l.b16 %v480
    %v2564 = vunpack.c.h.b16 %v480
    %v2565 = vunpack.c.l.b16 %v481
    %v2566 = vunpack.c.h.b16 %v481
    %v2567 = vunpack.c.l.b16 %v482
    %v2568 = vunpack.c.h.b16 %v482
    %v2569 = vunpack.c.l.b16 %v483
    %v2570 = vunpack.c.h.b16 %v483
    %v2571 = vunpack.c.l.b16 %v484
    %v2572 = vunpack.c.h.b16 %v484
    %v2573 = vunpack.c.l.b16 %v485
    %v2574 = vunpack.c.h.b16 %v485
    %v2575 = vunpack.c.l.b16 %v486
    %v2576 = vunpack.c.h.b16 %v486
    %v2577 = vunpack.c.l.b16 %v487
    %v2578 = vunpack.c.h.b16 %v487
    %v2579 = vunpack.c.l.b16 %v488
    %v2580 = vunpack.c.h.b16 %v488
    %v2581 = vunpack.c.l.b16 %v489
    %v2582 = vunpack.c.h.b16 %v489
    %v2583 = vunpack.c.l.b16 %v490
    %v2584 = vunpack.c.h.b16 %v490
    %v2585 = vunpack.c.l.b16 %v491
    %v2586 = vunpack.c.h.b16 %v491
    %v2587 = vunpack.c.l.b16 %v492
    %v2588 = vunpack.c.h.b16 %v492
    %v2589 = vunpack.c.l.b16 %v493
    %v2590 = vunpack.c.h.b16 %v493
    %v2591 = vunpack.c.l.b16 %v494
    %v2592 = vunpack.c.h.b16 %v494
    %v2593 = vunpack.c.l.b16 %v495
    %v2594 = vunpack.c.h.b16 %v495
    %v2595 = vunpack.c.l.b16 %v496
    %v2596 = vunpack.c.h.b16 %v496
    %v2597 = vunpack.c.l.b16 %v497
    %v2598 = vunpack.c.h.b16 %v497
    %v2599 = vunpack.c.l.b16 %v498
    %v2600 = vunpack.c.h.b16 %v498
    %v2601 = vunpack.c.l.b16 %v499
    %v2602 = vunpack.c.h.b16 %v499
    %v2603 = vunpack.c.l.b16 %v500
    %v2604 = vunpack.c.h.b16 %v500
    %v2605 = vunpack.c.l.b16 %v501
    %v2606 = vunpack.c.h.b16 %v501
    %v2607 = vunpack.c.l.b16 %v502
    %v2608 = vunpack.c.h.b16 %v502
    %v2609 = vunpack.c.l.b16 %v503
    %v2610 = vunpack.c.h.b16 %v503
    %v2611 = vunpack.c.l.b16 %v504
    %v2612 = vunpack.c.h.b16 %v504
    %v2613 = vunpack.c.l.b16 %v505
    %v2614 = vunpack.c.h.b16 %v505
    %v2615 = vunpack.c.l.b16 %v506
    %v2616 = vunpack.c.h.b16 %v506
    %v2617 = vunpack.c.l.b16 %v507
    %v2618 = vunpack.c.h.b16 %v507
    %v2619 = vunpack.c.l.b16 %v508
    %v2620 = vunpack.c.h.b16 %v508
    %v2621 = vunpack.c.l.b16 %v509
    %v2622 = vunpack.c.h.b16 %v509
    %v2623 = vunpack.c.l.b16 %v510
    %v2624 = vunpack.c.h.b16 %v510
    %v2625 = vunpack.c.l.b16 %v511
    %v2626 = vunpack.c.h.b16 %v511
    %v2627 = vunpack.c.l.b16 %v512
    %v2628 = vunpack.c.h.b16 %v512
    %v2629 = vunpack.c.l.b16 %v513
    %v2630 = vunpack.c.h.b16 %v513
    %v2631 = vunpack.c.l.b16 %v514
    %v2632 = vunpack.c.h.b16 %v514
    %v2633 = vunpack.c.l.b16 %v515
    %v2634 = vunpack.c.h.b16 %v515
    %v2635 = vunpack.c.l.b16 %v516
    %v2636 = vunpack.c.h.b16 %v516
    %v2637 = vunpack.c.l.b16 %v517
    %v2638 = vunpack.c.h.b16 %v517
    %v2639 = vunpack.c.l.b16 %v518
    %v2640 = vunpack.c.h.b16 %v518
    %v2641 = vunpack.c.l.b16 %v519
    %v2642 = vunpack.c.h.b16 %v519
    %v2643 = vunpack.c.l.b16 %v520
    %v2644 = vunpack.c.h.b16 %v520
    %v2645 = vunpack.c.l.b16 %v521
    %v2646 = vunpack.c.h.b16 %v521
    %v2647 = vunpack.c.l.b16 %v522
    %v2648 = vunpack.c.h.b16 %v522
    %v2649 = vunpack.c.l.b16 %v523
    %v2650 = vunpack.c.h.b16 %v523
    %v2651 = vunpack.c.l.b16 %v524
    %v2652 = vunpack.c.h.b16 %v524
    %v2653 = vunpack.c.l.b16 %v525
    %v2654 = vunpack.c.h.b16 %v525
    %v2655 = vunpack.c.l.b16 %v526
    %v2656 = vunpack.c.h.b16 %v526
    %v2657 = vunpack.c.l.b16 %v527
    %v2658 = vunpack.c.h.b16 %v527
    %v2659 = vunpack.c.l.b16 %v528
    %v2660 = vunpack.c.h.b16 %v528
    %v2661 = vunpack.c.l.b16 %v529
    %v2662 = vunpack.c.h.b16 %v529
    %v2663 = vunpack.c.l.b16 %v530
    %v2664 = vunpack.c.h.b16 %v530
    %v2665 = vunpack.c.l.b16 %v531
    %v2666 = vunpack.c.h.b16 %v531
    %v2667 = vunpack.c.l.b16 %v532
    %v2668 = vunpack.c.h.b16 %v532
    %v2669 = vunpack.c.l.b16 %v533
    %v2670 = vunpack.c.h.b16 %v533
    %v2671 = vunpack.c.l.b16 %v534
    %v2672 = vunpack.c.h.b16 %v534
    %v2673 = vunpack.c.l.b16 %v535
    %v2674 = vunpack.c.h.b16 %v535
    %v2675 = vunpack.c.l.b16 %v536
    %v2676 = vunpack.c.h.b16 %v536
    %v2677 = vunpack.c.l.b16 %v537
    %v2678 = vunpack.c.h.b16 %v537
    %v2679 = vunpack.c.l.b16 %v538
    %v2680 = vunpack.c.h.b16 %v538
    %v2681 = vunpack.c.l.b16 %v539
    %v2682 = vunpack.c.h.b16 %v539
    %v2683 = vunpack.c.l.b16 %v540
    %v2684 = vunpack.c.h.b16 %v540
    %v2685 = vunpack.c.l.b16 %v541
    %v2686 = vunpack.c.h.b16 %v541
    %v2687 = vunpack.c.l.b16 %v542
    %v2688 = vunpack.c.h.b16 %v542
    %v2689 = vunpack.c.l.b16 %v543
    %v2690 = vunpack.c.h.b16 %v543
    %v2691 = vunpack.c.l.b16 %v544
    %v2692 = vunpack.c.h.b16 %v544
    %v2693 = vunpack.c.l.b16 %v545
    %v2694 = vunpack.c.h.b16 %v545
    %v2695 = vunpack.c.l.b16 %v546
    %v2696 = vunpack.c.h.b16 %v546
    %v2697 = vunpack.c.l.b16 %v547
    %v2698 = vunpack.c.h.b16 %v547
    %v2699 = vunpack.c.l.b16 %v548
    %v2700 = vunpack.c.h.b16 %v548
    %v2701 = vunpack.c.l.b16 %v549
    %v2702 = vunpack.c.h.b16 %v549
    %v2703 = vunpack.c.l.b16 %v550
    %v2704 = vunpack.c.h.b16 %v550
    %v2705 = vunpack.c.l.b16 %v551
    %v2706 = vunpack.c.h.b16 %v551
    %v2707 = vunpack.c.l.b16 %v552
    %v2708 = vunpack.c.h.b16 %v552
    %v2709 = vunpack.c.l.b16 %v553
    %v2710 = vunpack.c.h.b16 %v553
    %v2711 = vunpack.c.l.b16 %v554
    %v2712 = vunpack.c.h.b16 %v554
    %v2713 = vunpack.c.l.b16 %v555
    %v2714 = vunpack.c.h.b16 %v555
    %v2715 = vunpack.c.l.b16 %v556
    %v2716 = vunpack.c.h.b16 %v556
    %v2717 = vunpack.c.l.b16 %v557
    %v2718 = vunpack.c.h.b16 %v557
    %v2719 = vunpack.c.l.b16 %v558
    %v2720 = vunpack.c.h.b16 %v558
    %v2721 = vunpack.c.l.b16 %v559
    %v2722 = vunpack.c.h.b16 %v559
    %v2723 = vunpack.c.l.b16 %v560
    %v2724 = vunpack.c.h.b16 %v560
    %v2725 = vunpack.c.l.b16 %v561
    %v2726 = vunpack.c.h.b16 %v561
    %v2727 = vunpack.c.l.b16 %v562
    %v2728 = vunpack.c.h.b16 %v562
    %v2729 = vunpack.c.l.b16 %v563
    %v2730 = vunpack.c.h.b16 %v563
    %v2731 = vunpack.c.l.b16 %v564
    %v2732 = vunpack.c.h.b16 %v564
    %v2733 = vunpack.c.l.b16 %v565
    %v2734 = vunpack.c.h.b16 %v565
    %v2735 = vunpack.c.l.b16 %v566
    %v2736 = vunpack.c.h.b16 %v566
    %v2737 = vunpack.c.l.b16 %v567
    %v2738 = vunpack.c.h.b16 %v567
    %v2739 = vunpack.c.l.b16 %v568
    %v2740 = vunpack.c.h.b16 %v568
    %v2741 = vunpack.c.l.b16 %v569
    %v2742 = vunpack.c.h.b16 %v569
    %v2743 = vunpack.c.l.b16 %v570
    %v2744 = vunpack.c.h.b16 %v570
    %v2745 = vunpack.c.l.b16 %v571
    %v2746 = vunpack.c.h.b16 %v571
    %v2747 = vunpack.c.l.b16 %v572
    %v2748 = vunpack.c.h.b16 %v572
    %v2749 = vunpack.c.l.b16 %v573
    %v2750 = vunpack.c.h.b16 %v573
    %v2751 = vunpack.c.l.b16 %v574
    %v2752 = vunpack.c.h.b16 %v574
    %v2753 = vunpack.c.l.b16 %v575
    %v2754 = vunpack.c.h.b16 %v575
    %v2755 = vunpack.c.l.b16 %v576
    %v2756 = vunpack.c.h.b16 %v576
    %v2757 = vunpack.c.l.b16 %v577
    %v2758 = vunpack.c.h.b16 %v577
    %v2759 = vunpack.c.l.b16 %v578
    %v2760 = vunpack.c.h.b16 %v578
    %v2761 = vunpack.c.l.b16 %v579
    %v2762 = vunpack.c.h.b16 %v579
    %v2763 = vunpack.c.l.b16 %v580
    %v2764 = vunpack.c.h.b16 %v580
    %v2765 = vunpack.c.l.b16 %v581
    %v2766 = vunpack.c.h.b16 %v581
    %v2767 = vunpack.c.l.b16 %v582
    %v2768 = vunpack.c.h.b16 %v582
    %v2769 = vunpack.c.l.b16 %v583
    %v2770 = vunpack.c.h.b16 %v583
    %v2771 = vunpack.c.l.b16 %v584
    %v2772 = vunpack.c.h.b16 %v584
    %v2773 = vunpack.c.l.b16 %v585
    %v2774 = vunpack.c.h.b16 %v585
    %v2775 = vunpack.c.l.b16 %v586
    %v2776 = vunpack.c.h.b16 %v586
    %v2777 = vunpack.c.l.b16 %v587
    %v2778 = vunpack.c.h.b16 %v587
    %v2779 = vunpack.c.l.b16 %v588
    %v2780 = vunpack.c.h.b16 %v588
    %v2781 = vunpack.c.l.b16 %v589
    %v2782 = vunpack.c.h.b16 %v589
    %v2783 = vunpack.c.l.b16 %v590
    %v2784 = vunpack.c.h.b16 %v590
    %v2785 = vunpack.c.l.b16 %v591
    %v2786 = vunpack.c.h.b16 %v591
    %v2787 = vunpack.c.l.b16 %v592
    %v2788 = vunpack.c.h.b16 %v592
    %v2789 = vunpack.c.l.b16 %v593
    %v2790 = vunpack.c.h.b16 %v593
    %v2791 = vunpack.c.l.b16 %v594
    %v2792 = vunpack.c.h.b16 %v594
    %v2793 = vunpack.c.l.b16 %v595
    %v2794 = vunpack.c.h.b16 %v595
    %v2795 = vunpack.c.l.b16 %v596
    %v2796 = vunpack.c.h.b16 %v596
    %v2797 = vunpack.c.l.b16 %v597
    %v2798 = vunpack.c.h.b16 %v597
    %v2799 = vunpack.c.l.b16 %v598
    %v2800 = vunpack.c.h.b16 %v598
    %v2801 = vunpack.c.l.b16 %v599
    %v2802 = vunpack.c.h.b16 %v599
    %v2803 = vunpack.c.l.b16 %v600
    %v2804 = vunpack.c.h.b16 %v600
    %v2805 = vunpack.c.l.b16 %v601
    %v2806 = vunpack.c.h.b16 %v601
    %v2807 = vunpack.c.l.b16 %v602
    %v2808 = vunpack.c.h.b16 %v602
    %v2809 = vunpack.c.l.b16 %v603
    %v2810 = vunpack.c.h.b16 %v603
    %v2811 = vunpack.c.l.b16 %v604
    %v2812 = vunpack.c.h.b16 %v604
    %v2813 = vunpack.c.l.b16 %v605
    %v2814 = vunpack.c.h.b16 %v605
    %v2815 = vunpack.c.l.b16 %v606
    %v2816 = vunpack.c.h.b16 %v606
    %v2817 = vunpack.c.l.b16 %v607
    %v2818 = vunpack.c.h.b16 %v607
    %v2819 = vunpack.c.l.b16 %v608
    %v2820 = vunpack.c.h.b16 %v608
    %v2821 = vunpack.c.l.b16 %v609
    %v2822 = vunpack.c.h.b16 %v609
    %v2823 = vunpack.c.l.b16 %v610
    %v2824 = vunpack.c.h.b16 %v610
    %v2825 = vunpack.c.l.b16 %v611
    %v2826 = vunpack.c.h.b16 %v611
    %v2827 = vunpack.c.l.b16 %v612
    %v2828 = vunpack.c.h.b16 %v612
    %v2829 = vunpack.c.l.b16 %v613
    %v2830 = vunpack.c.h.b16 %v613
    %v2831 = vunpack.c.l.b16 %v614
    %v2832 = vunpack.c.h.b16 %v614
    %v2833 = vunpack.c.l.b16 %v615
    %v2834 = vunpack.c.h.b16 %v615
    %v2835 = vunpack.c.l.b16 %v616
    %v2836 = vunpack.c.h.b16 %v616
    %v2837 = vunpack.c.l.b16 %v617
    %v2838 = vunpack.c.h.b16 %v617
    %v2839 = vunpack.c.l.b16 %v618
    %v2840 = vunpack.c.h.b16 %v618
    %v2841 = vunpack.c.l.b16 %v619
    %v2842 = vunpack.c.h.b16 %v619
    %v2843 = vunpack.c.l.b16 %v620
    %v2844 = vunpack.c.h.b16 %v620
    %v2845 = vunpack.c.l.b16 %v621
    %v2846 = vunpack.c.h.b16 %v621
    %v2847 = vunpack.c.l.b16 %v622
    %v2848 = vunpack.c.h.b16 %v622
    %v2849 = vunpack.c.l.b16 %v623
    %v2850 = vunpack.c.h.b16 %v623
    %v2851 = vunpack.c.l.b16 %v624
    %v2852 = vunpack.c.h.b16 %v624
    %v2853 = vunpack.c.l.b16 %v625
    %v2854 = vunpack.c.h.b16 %v625
    %v2855 = vunpack.c.l.b16 %v626
    %v2856 = vunpack.c.h.b16 %v626
    %v2857 = vunpack.c.l.b16 %v627
    %v2858 = vunpack.c.h.b16 %v627
    %v2859 = vunpack.c.l.b16 %v628
    %v2860 = vunpack.c.h.b16 %v628
    %v2861 = vunpack.c.l.b16 %v629
    %v2862 = vunpack.c.h.b16 %v629
    %v2863 = vunpack.c.l.b16 %v630
    %v2864 = vunpack.c.h.b16 %v630
    %v2865 = vunpack.c.l.b16 %v631
    %v2866 = vunpack.c.h.b16 %v631
    %v2867 = vunpack.c.l.b16 %v632
    %v2868 = vunpack.c.h.b16 %v632
    %v2869 = vunpack.c.l.b16 %v633
    %v2870 = vunpack.c.h.b16 %v633
    %v2871 = vunpack.c.l.b16 %v634
    %v2872 = vunpack.c.h.b16 %v634
    %v2873 = vunpack.c.l.b16 %v635
    %v2874 = vunpack.c.h.b16 %v635
    %v2875 = vunpack.c.l.b16 %v636
    %v2876 = vunpack.c.h.b16 %v636
    %v2877 = vunpack.c.l.b16 %v637
    %v2878 = vunpack.c.h.b16 %v637
    %v2879 = vunpack.c.l.b16 %v638
    %v2880 = vunpack.c.h.b16 %v638
    %v2881 = vunpack.c.l.b16 %v639
    %v2882 = vunpack.c.h.b16 %v639
    %v2883 = vunpack.c.l.b16 %v640
    %v2884 = vunpack.c.h.b16 %v640
    %v2885 = vunpack.c.l.b16 %v641
    %v2886 = vunpack.c.h.b16 %v641
    %v2887 = vunpack.c.l.b16 %v642
    %v2888 = vunpack.c.h.b16 %v642
    %v2889 = vunpack.c.l.b16 %v643
    %v2890 = vunpack.c.h.b16 %v643
    %v2891 = vunpack.c.l.b16 %v644
    %v2892 = vunpack.c.h.b16 %v644
    %v2893 = vunpack.c.l.b16 %v645
    %v2894 = vunpack.c.h.b16 %v645
    %v2895 = vunpack.c.l.b16 %v646
    %v2896 = vunpack.c.h.b16 %v646
    %v2897 = vunpack.c.l.b16 %v647
    %v2898 = vunpack.c.h.b16 %v647
    %v2899 = vunpack.c.l.b16 %v648
    %v2900 = vunpack.c.h.b16 %v648
    %v2901 = vunpack.c.l.b16 %v649
    %v2902 = vunpack.c.h.b16 %v649
    %v2903 = vunpack.c.l.b16 %v650
    %v2904 = vunpack.c.h.b16 %v650
    %v2905 = vunpack.c.l.b16 %v651
    %v2906 = vunpack.c.h.b16 %v651
    %v2907 = vunpack.c.l.b16 %v652
    %v2908 = vunpack.c.h.b16 %v652
    %v2909 = vunpack.c.l.b16 %v653
    %v2910 = vunpack.c.h.b16 %v653
    %v2911 = vunpack.c.l.b16 %v654
    %v2912 = vunpack.c.h.b16 %v654
    %v2913 = vunpack.c.l.b16 %v655
    %v2914 = vunpack.c.h.b16 %v655
    %v2915 = vunpack.c.l.b16 %v656
    %v2916 = vunpack.c.h.b16 %v656
    %v2917 = vunpack.c.l.b16 %v657
    %v2918 = vunpack.c.h.b16 %v657
    %v2919 = vunpack.c.l.b16 %v658
    %v2920 = vunpack.c.h.b16 %v658
    %v2921 = vunpack.c.l.b16 %v659
    %v2922 = vunpack.c.h.b16 %v659
    %v2923 = vunpack.c.l.b16 %v660
    %v2924 = vunpack.c.h.b16 %v660
    %v2925 = vunpack.c.l.b16 %v661
    %v2926 = vunpack.c.h.b16 %v661
    %v2927 = vunpack.c.l.b16 %v662
    %v2928 = vunpack.c.h.b16 %v662
    %v2929 = vunpack.c.l.b16 %v663
    %v2930 = vunpack.c.h.b16 %v663
    %v2931 = vunpack.c.l.b16 %v664
    %v2932 = vunpack.c.h.b16 %v664
    %v2933 = vunpack.c.l.b16 %v665
    %v2934 = vunpack.c.h.b16 %v665
    %v2935 = vunpack.c.l.b16 %v666
    %v2936 = vunpack.c.h.b16 %v666
    %v2937 = vunpack.c.l.b16 %v667
    %v2938 = vunpack.c.h.b16 %v667
    %v2939 = vunpack.c.l.b16 %v668
    %v2940 = vunpack.c.h.b16 %v668
    %v2941 = vunpack.c.l.b16 %v669
    %v2942 = vunpack.c.h.b16 %v669
    %v2943 = vunpack.c.l.b16 %v670
    %v2944 = vunpack.c.h.b16 %v670
    %v2945 = vunpack.c.l.b16 %v671
    %v2946 = vunpack.c.h.b16 %v671
    %v2947 = vunpack.c.l.b16 %v672
    %v2948 = vunpack.c.h.b16 %v672
    %v2949 = vunpack.c.l.b16 %v673
    %v2950 = vunpack.c.h.b16 %v673
    %v2951 = vunpack.c.l.b16 %v674
    %v2952 = vunpack.c.h.b16 %v674
    %v2953 = vunpack.c.l.b16 %v675
    %v2954 = vunpack.c.h.b16 %v675
    %v2955 = vunpack.c.l.b16 %v676
    %v2956 = vunpack.c.h.b16 %v676
    %v2957 = vunpack.c.l.b16 %v677
    %v2958 = vunpack.c.h.b16 %v677
    %v2959 = vunpack.c.l.b16 %v678
    %v2960 = vunpack.c.h.b16 %v678
    %v2961 = vunpack.c.l.b16 %v679
    %v2962 = vunpack.c.h.b16 %v679
    %v2963 = vunpack.c.l.b16 %v680
    %v2964 = vunpack.c.h.b16 %v680
    %v2965 = vunpack.c.l.b16 %v681
    %v2966 = vunpack.c.h.b16 %v681
    %v2967 = vunpack.c.l.b16 %v682
    %v2968 = vunpack.c.h.b16 %v682
    %v2969 = vunpack.c.l.b16 %v683
    %v2970 = vunpack.c.h.b16 %v683
    %v2971 = vunpack.c.l.b16 %v684
    %v2972 = vunpack.c.h.b16 %v684
    %v2973 = vunpack.c.l.b16 %v685
    %v2974 = vunpack.c.h.b16 %v685
    %v2975 = vunpack.c.l.b16 %v686
    %v2976 = vunpack.c.h.b16 %v686
    %v2977 = vunpack.c.l.b16 %v687
    %v2978 = vunpack.c.h.b16 %v687
    %v2979 = vunpack.c.l.b16 %v688
    %v2980 = vunpack.c.h.b16 %v688
    %v2981 = vunpack.c.l.b16 %v689
    %v2982 = vunpack.c.h.b16 %v689
    %v2983 = vunpack.c.l.b16 %v690
    %v2984 = vunpack.c.h.b16 %v690
    %v2985 = vunpack.c.l.b16 %v691
    %v2986 = vunpack.c.h.b16 %v691
    %v2987 = vunpack.c.l.b16 %v692
    %v2988 = vunpack.c.h.b16 %v692
    %v2989 = vunpack.c.l.b16 %v693
    %v2990 = vunpack.c.h.b16 %v693
    %v2991 = vunpack.c.l.b16 %v694
    %v2992 = vunpack.c.h.b16 %v694
    %v2993 = vunpack.c.l.b16 %v695
    %v2994 = vunpack.c.h.b16 %v695
    %v2995 = vunpack.c.l.b16 %v696
    %v2996 = vunpack.c.h.b16 %v696
    %v2997 = vunpack.c.l.b16 %v697
    %v2998 = vunpack.c.h.b16 %v697
    %v2999 = vunpack.c.l.b16 %v698
    %v3000 = vunpack.c.h.b16 %v698
    %v3001 = vunpack.c.l.b16 %v699
    %v3002 = vunpack.c.h.b16 %v699
    %v3003 = vunpack.c.l.b16 %v700
    %v3004 = vunpack.c.h.b16 %v700
    %v3005 = vunpack.c.l.b16 %v701
    %v3006 = vunpack.c.h.b16 %v701
    %v3007 = vunpack.c.l.b16 %v702
    %v3008 = vunpack.c.h.b16 %v702
    %v3009 = vunpack.c.l.b16 %v703
    %v3010 = vunpack.c.h.b16 %v703
    %v3011 = vunpack.c.l.b16 %v704
    %v3012 = vunpack.c.h.b16 %v704
    %v3013 = vunpack.c.l.b16 %v705
    %v3014 = vunpack.c.h.b16 %v705
    %v3015 = vunpack.c.l.b16 %v706
    %v3016 = vunpack.c.h.b16 %v706
    %v3017 = vunpack.c.l.b16 %v707
    %v3018 = vunpack.c.h.b16 %v707
    %v3019 = vunpack.c.l.b16 %v708
    %v3020 = vunpack.c.h.b16 %v708
    %v3021 = vunpack.c.l.b16 %v709
    %v3022 = vunpack.c.h.b16 %v709
    %v3023 = vunpack.c.l.b16 %v710
    %v3024 = vunpack.c.h.b16 %v710
    %v3025 = vunpack.c.l.b16 %v711
    %v3026 = vunpack.c.h.b16 %v711
    %v3027 = vunpack.c.l.b16 %v712
    %v3028 = vunpack.c.h.b16 %v712
    %v3029 = vunpack.c.l.b16 %v713
    %v3030 = vunpack.c.h.b16 %v713
    %v3031 = vunpack.c.l.b16 %v714
    %v3032 = vunpack.c.h.b16 %v714
    %v3033 = vunpack.c.l.b16 %v715
    %v3034 = vunpack.c.h.b16 %v715
    %v3035 = vunpack.c.l.b16 %v716
    %v3036 = vunpack.c.h.b16 %v716
    %v3037 = vunpack.c.l.b16 %v717
    %v3038 = vunpack.c.h.b16 %v717
    %v3039 = vunpack.c.l.b16 %v718
    %v3040 = vunpack.c.h.b16 %v718
    %v3041 = vunpack.c.l.b16 %v719
    %v3042 = vunpack.c.h.b16 %v719
    %v3043 = vunpack.c.l.b16 %v720
    %v3044 = vunpack.c.h.b16 %v720
    %v3045 = vunpack.c.l.b16 %v721
    %v3046 = vunpack.c.h.b16 %v721
    %v3047 = vunpack.c.l.b16 %v722
    %v3048 = vunpack.c.h.b16 %v722
    %v3049 = vunpack.c.l.b16 %v723
    %v3050 = vunpack.c.h.b16 %v723
    %v3051 = vunpack.c.l.b16 %v724
    %v3052 = vunpack.c.h.b16 %v724
    %v3053 = vunpack.c.l.b16 %v725
    %v3054 = vunpack.c.h.b16 %v725
    %v3055 = vunpack.c.l.b16 %v726
    %v3056 = vunpack.c.h.b16 %v726
    %v3057 = vunpack.c.l.b16 %v727
    %v3058 = vunpack.c.h.b16 %v727
    %v3059 = vunpack.c.l.b16 %v728
    %v3060 = vunpack.c.h.b16 %v728
    %v3061 = vunpack.c.l.b16 %v729
    %v3062 = vunpack.c.h.b16 %v729
    %v3063 = vunpack.c.l.b16 %v730
    %v3064 = vunpack.c.h.b16 %v730
    %v3065 = vunpack.c.l.b16 %v731
    %v3066 = vunpack.c.h.b16 %v731
    %v3067 = vunpack.c.l.b16 %v732
    %v3068 = vunpack.c.h.b16 %v732
    %v3069 = vunpack.c.l.b16 %v733
    %v3070 = vunpack.c.h.b16 %v733
    %v3071 = vunpack.c.l.b16 %v734
    %v3072 = vunpack.c.h.b16 %v734
    %v3073 = vunpack.c.l.b16 %v735
    %v3074 = vunpack.c.h.b16 %v735
    %v3075 = vunpack.c.l.b16 %v736
    %v3076 = vunpack.c.h.b16 %v736
    %v3077 = vunpack.c.l.b16 %v737
    %v3078 = vunpack.c.h.b16 %v737
    %v3079 = vunpack.c.l.b16 %v738
    %v3080 = vunpack.c.h.b16 %v738
    %v3081 = vunpack.c.l.b16 %v739
    %v3082 = vunpack.c.h.b16 %v739
    %v3083 = vunpack.c.l.b16 %v740
    %v3084 = vunpack.c.h.b16 %v740
    %v3085 = vunpack.c.l.b16 %v741
    %v3086 = vunpack.c.h.b16 %v741
    %v3087 = vunpack.c.l.b16 %v742
    %v3088 = vunpack.c.h.b16 %v742
    %v3089 = vunpack.c.l.b16 %v743
    %v3090 = vunpack.c.h.b16 %v743
    %v3091 = vunpack.c.l.b16 %v744
    %v3092 = vunpack.c.h.b16 %v744
    %v3093 = vunpack.c.l.b16 %v745
    %v3094 = vunpack.c.h.b16 %v745
    %v3095 = vunpack.c.l.b16 %v746
    %v3096 = vunpack.c.h.b16 %v746
    %v3097 = vunpack.c.l.b16 %v747
    %v3098 = vunpack.c.h.b16 %v747
    %v3099 = vunpack.c.l.b16 %v748
    %v3100 = vunpack.c.h.b16 %v748
    %v3101 = vunpack.c.l.b16 %v749
    %v3102 = vunpack.c.h.b16 %v749
    %v3103 = vunpack.c.l.b16 %v750
    %v3104 = vunpack.c.h.b16 %v750
    %v3105 = vunpack.c.l.b16 %v751
    %v3106 = vunpack.c.h.b16 %v751
    %v3107 = vunpack.c.l.b16 %v752
    %v3108 = vunpack.c.h.b16 %v752
    %v3109 = vunpack.c.l.b16 %v753
    %v3110 = vunpack.c.h.b16 %v753
    %v3111 = vunpack.c.l.b16 %v754
    %v3112 = vunpack.c.h.b16 %v754
    %v3113 = vunpack.c.l.b16 %v755
    %v3114 = vunpack.c.h.b16 %v755
    %v3115 = vunpack.c.l.b16 %v756
    %v3116 = vunpack.c.h.b16 %v756
    %v3117 = vunpack.c.l.b16 %v757
    %v3118 = vunpack.c.h.b16 %v757
    %v3119 = vunpack.c.l.b16 %v758
    %v3120 = vunpack.c.h.b16 %v758
    %v3121 = vunpack.c.l.b16 %v759
    %v3122 = vunpack.c.h.b16 %v759
    %v3123 = vunpack.c.l.b16 %v760
    %v3124 = vunpack.c.h.b16 %v760
    %v3125 = vunpack.c.l.b16 %v761
    %v3126 = vunpack.c.h.b16 %v761
    %v3127 = vunpack.c.l.b16 %v762
    %v3128 = vunpack.c.h.b16 %v762
    %v3129 = vunpack.c.l.b16 %v763
    %v3130 = vunpack.c.h.b16 %v763
    %v3131 = vunpack.c.l.b16 %v764
    %v3132 = vunpack.c.h.b16 %v764
    %v3133 = vunpack.c.l.b16 %v765
    %v3134 = vunpack.c.h.b16 %v765
    %v3135 = vunpack.c.l.b16 %v766
    %v3136 = vunpack.c.h.b16 %v766
    %v3137 = vunpack.c.l.b16 %v767
    %v3138 = vunpack.c.h.b16 %v767
    %v3139 = vunpack.c.l.b16 %v768
    %v3140 = vunpack.c.h.b16 %v768
    %v3141 = vunpack.c.l.b16 %v769
    %v3142 = vunpack.c.h.b16 %v769
    %v3143 = vunpack.c.l.b16 %v770
    %v3144 = vunpack.c.h.b16 %v770
    %v3145 = vunpack.c.l.b16 %v771
    %v3146 = vunpack.c.h.b16 %v771
    %v3147 = vunpack.c.l.b16 %v772
    %v3148 = vunpack.c.h.b16 %v772
    %v3149 = vunpack.c.l.b16 %v773
    %v3150 = vunpack.c.h.b16 %v773
    %v3151 = vunpack.c.l.b16 %v774
    %v3152 = vunpack.c.h.b16 %v774
    %v3153 = vunpack.c.l.b16 %v775
    %v3154 = vunpack.c.h.b16 %v775
    %v3155 = vunpack.c.l.b16 %v776
    %v3156 = vunpack.c.h.b16 %v776
    %v3157 = vunpack.c.l.b16 %v777
    %v3158 = vunpack.c.h.b16 %v777
    %v3159 = vunpack.c.l.b16 %v778
    %v3160 = vunpack.c.h.b16 %v778
    %v3161 = vunpack.c.l.b16 %v779
    %v3162 = vunpack.c.h.b16 %v779
    %v3163 = vunpack.c.l.b16 %v780
    %v3164 = vunpack.c.h.b16 %v780
    %v3165 = vunpack.c.l.b16 %v781
    %v3166 = vunpack.c.h.b16 %v781
    %v3167 = vunpack.c.l.b16 %v782
    %v3168 = vunpack.c.h.b16 %v782
    %v3169 = vunpack.c.l.b16 %v783
    %v3170 = vunpack.c.h.b16 %v783
    %v3171 = vunpack.c.l.b16 %v784
    %v3172 = vunpack.c.h.b16 %v784
    %v3173 = vunpack.c.l.b16 %v785
    %v3174 = vunpack.c.h.b16 %v785
    %v3175 = vunpack.c.l.b16 %v786
    %v3176 = vunpack.c.h.b16 %v786
    %v3177 = vunpack.c.l.b16 %v787
    %v3178 = vunpack.c.h.b16 %v787
    %v3179 = vunpack.c.l.b16 %v788
    %v3180 = vunpack.c.h.b16 %v788
    %v3181 = vunpack.c.l.b16 %v789
    %v3182 = vunpack.c.h.b16 %v789
    %v3183 = vunpack.c.l.b16 %v790
    %v3184 = vunpack.c.h.b16 %v790
    %v3185 = vunpack.c.l.b16 %v791
    %v3186 = vunpack.c.h.b16 %v791
    %v3187 = vunpack.c.l.b16 %v792
    %v3188 = vunpack.c.h.b16 %v792
    %v3189 = vunpack.c.l.b16 %v793
    %v3190 = vunpack.c.h.b16 %v793
    %v3191 = vunpack.c.l.b16 %v794
    %v3192 = vunpack.c.h.b16 %v794
    %v3193 = vunpack.c.l.b16 %v795
    %v3194 = vunpack.c.h.b16 %v795
    %v3195 = vunpack.c.l.b16 %v796
    %v3196 = vunpack.c.h.b16 %v796
    %v3197 = vunpack.c.l.b16 %v797
    %v3198 = vunpack.c.h.b16 %v797
    %v3199 = vunpack.c.l.b16 %v798
    %v3200 = vunpack.c.h.b16 %v798
    %v3201 = vunpack.c.l.b16 %v799
    %v3202 = vunpack.c.h.b16 %v799
    %v3203 = vunpack.c.l.b16 %v800
    %v3204 = vunpack.c.h.b16 %v800
    %v3205 = vunpack.c.l.b16 %v801
    %v3206 = vunpack.c.h.b16 %v801
    %v3207 = vunpack.c.l.b16 %v802
    %v3208 = vunpack.c.h.b16 %v802
    %v3209 = vunpack.c.l.b16 %v803
    %v3210 = vunpack.c.h.b16 %v803
    %v3211 = vunpack.c.l.b16 %v804
    %v3212 = vunpack.c.h.b16 %v804
    %v3213 = vunpack.c.l.b16 %v805
    %v3214 = vunpack.c.h.b16 %v805
    %v3215 = vunpack.c.l.b16 %v806
    %v3216 = vunpack.c.h.b16 %v806
    %v3217 = vunpack.c.l.b16 %v807
    %v3218 = vunpack.c.h.b16 %v807
    %v3219 = vunpack.c.l.b16 %v808
    %v3220 = vunpack.c.h.b16 %v808
    %v3221 = vunpack.c.l.b16 %v809
    %v3222 = vunpack.c.h.b16 %v809
    %v3223 = vunpack.c.l.b16 %v810
    %v3224 = vunpack.c.h.b16 %v810
    %v3225 = vunpack.c.l.b16 %v811
    %v3226 = vunpack.c.h.b16 %v811
    %v3227 = vunpack.c.l.b16 %v812
    %v3228 = vunpack.c.h.b16 %v812
    %v3229 = vunpack.c.l.b16 %v813
    %v3230 = vunpack.c.h.b16 %v813
    %v3231 = vunpack.c.l.b16 %v814
    %v3232 = vunpack.c.h.b16 %v814
    %v3233 = vunpack.c.l.b16 %v815
    %v3234 = vunpack.c.h.b16 %v815
    %v3235 = vunpack.c.l.b16 %v816
    %v3236 = vunpack.c.h.b16 %v816
    %v3237 = vunpack.c.l.b16 %v817
    %v3238 = vunpack.c.h.b16 %v817
    %v3239 = vunpack.c.l.b16 %v818
    %v3240 = vunpack.c.h.b16 %v818
    %v3241 = vunpack.c.l.b16 %v819
    %v3242 = vunpack.c.h.b16 %v819
    %v3243 = vunpack.c.l.b16 %v820
    %v3244 = vunpack.c.h.b16 %v820
    %v3245 = vunpack.c.l.b16 %v821
    %v3246 = vunpack.c.h.b16 %v821
    %v3247 = vunpack.c.l.b16 %v822
    %v3248 = vunpack.c.h.b16 %v822
    %v3249 = vunpack.c.l.b16 %v823
    %v3250 = vunpack.c.h.b16 %v823
    %v3251 = vunpack.c.l.b16 %v824
    %v3252 = vunpack.c.h.b16 %v824
    %v3253 = vunpack.c.l.b16 %v825
    %v3254 = vunpack.c.h.b16 %v825
    %v3255 = vunpack.c.l.b16 %v826
    %v3256 = vunpack.c.h.b16 %v826
    %v3257 = vunpack.c.l.b16 %v827
    %v3258 = vunpack.c.h.b16 %v827
    %v3259 = vunpack.c.l.b16 %v828
    %v3260 = vunpack.c.h.b16 %v828
    %v3261 = vunpack.c.l.b16 %v829
    %v3262 = vunpack.c.h.b16 %v829
    %v3263 = vunpack.c.l.b16 %v830
    %v3264 = vunpack.c.h.b16 %v830
    %v3265 = vunpack.c.l.b16 %v831
    %v3266 = vunpack.c.h.b16 %v831
    %v3267 = vunpack.c.l.b16 %v832
    %v3268 = vunpack.c.h.b16 %v832
    %v3269 = vunpack.c.l.b16 %v833
    %v3270 = vunpack.c.h.b16 %v833
    %v3271 = vunpack.c.l.b16 %v834
    %v3272 = vunpack.c.h.b16 %v834
    %v3273 = vunpack.c.l.b16 %v835
    %v3274 = vunpack.c.h.b16 %v835
    %v3275 = vunpack.c.l.b16 %v836
    %v3276 = vunpack.c.h.b16 %v836
    %v3277 = vunpack.c.l.b16 %v837
    %v3278 = vunpack.c.h.b16 %v837
    %v3279 = vunpack.c.l.b16 %v838
    %v3280 = vunpack.c.h.b16 %v838
    %v3281 = vunpack.c.l.b16 %v839
    %v3282 = vunpack.c.h.b16 %v839
    %v3283 = vunpack.c.l.b16 %v840
    %v3284 = vunpack.c.h.b16 %v840
    %v3285 = vunpack.c.l.b16 %v841
    %v3286 = vunpack.c.h.b16 %v841
    %v3287 = vunpack.c.l.b16 %v842
    %v3288 = vunpack.c.h.b16 %v842
    %v3289 = vunpack.c.l.b16 %v843
    %v3290 = vunpack.c.h.b16 %v843
    %v3291 = vunpack.c.l.b16 %v844
    %v3292 = vunpack.c.h.b16 %v844
    %v3293 = vunpack.c.l.b16 %v845
    %v3294 = vunpack.c.h.b16 %v845
    %v3295 = vunpack.c.l.b16 %v846
    %v3296 = vunpack.c.h.b16 %v846
    %v3297 = vunpack.c.l.b16 %v847
    %v3298 = vunpack.c.h.b16 %v847
    %v3299 = vunpack.c.l.b16 %v848
    %v3300 = vunpack.c.h.b16 %v848
    %v3301 = vunpack.c.l.b16 %v849
    %v3302 = vunpack.c.h.b16 %v849
    %v3303 = vunpack.c.l.b16 %v850
    %v3304 = vunpack.c.h.b16 %v850
    %v3305 = vunpack.c.l.b16 %v851
    %v3306 = vunpack.c.h.b16 %v851
    %v3307 = vunpack.c.l.b16 %v852
    %v3308 = vunpack.c.h.b16 %v852
    %v3309 = vunpack.c.l.b16 %v853
    %v3310 = vunpack.c.h.b16 %v853
    %v3311 = vunpack.c.l.b16 %v854
    %v3312 = vunpack.c.h.b16 %v854
    %v3313 = vunpack.c.l.b16 %v855
    %v3314 = vunpack.c.h.b16 %v855
    %v3315 = vunpack.c.l.b16 %v856
    %v3316 = vunpack.c.h.b16 %v856
    %v3317 = vunpack.c.l.b16 %v857
    %v3318 = vunpack.c.h.b16 %v857
    %v3319 = vunpack.c.l.b16 %v858
    %v3320 = vunpack.c.h.b16 %v858
    %v3321 = vunpack.c.l.b16 %v859
    %v3322 = vunpack.c.h.b16 %v859
    %v3323 = vunpack.c.l.b16 %v860
    %v3324 = vunpack.c.h.b16 %v860
    %v3325 = vunpack.c.l.b16 %v861
    %v3326 = vunpack.c.h.b16 %v861
    %v3327 = vunpack.c.l.b16 %v862
    %v3328 = vunpack.c.h.b16 %v862
    %v3329 = vunpack.c.l.b16 %v863
    %v3330 = vunpack.c.h.b16 %v863
    %v3331 = vunpack.c.l.b16 %v864
    %v3332 = vunpack.c.h.b16 %v864
    %v3333 = vunpack.c.l.b16 %v865
    %v3334 = vunpack.c.h.b16 %v865
    %v3335 = vunpack.c.l.b16 %v866
    %v3336 = vunpack.c.h.b16 %v866
    %v3337 = vunpack.c.l.b16 %v867
    %v3338 = vunpack.c.h.b16 %v867
    %v3339 = vunpack.c.l.b16 %v868
    %v3340 = vunpack.c.h.b16 %v868
    %v3341 = vunpack.c.l.b16 %v869
    %v3342 = vunpack.c.h.b16 %v869
    %v3343 = vunpack.c.l.b16 %v870
    %v3344 = vunpack.c.h.b16 %v870
    %v3345 = vunpack.c.l.b16 %v871
    %v3346 = vunpack.c.h.b16 %v871
    %v3347 = vunpack.c.l.b16 %v872
    %v3348 = vunpack.c.h.b16 %v872
    %v3349 = vunpack.c.l.b16 %v873
    %v3350 = vunpack.c.h.b16 %v873
    %v3351 = vunpack.c.l.b16 %v874
    %v3352 = vunpack.c.h.b16 %v874
    %v3353 = vunpack.c.l.b16 %v875
    %v3354 = vunpack.c.h.b16 %v875
    %v3355 = vunpack.c.l.b16 %v876
    %v3356 = vunpack.c.h.b16 %v876
    %v3357 = vunpack.c.l.b16 %v877
    %v3358 = vunpack.c.h.b16 %v877
    %v3359 = vunpack.c.l.b16 %v878
    %v3360 = vunpack.c.h.b16 %v878
    %v3361 = vunpack.c.l.b16 %v879
    %v3362 = vunpack.c.h.b16 %v879
    %v3363 = vunpack.c.l.b16 %v880
    %v3364 = vunpack.c.h.b16 %v880
    %v3365 = vunpack.c.l.b16 %v881
    %v3366 = vunpack.c.h.b16 %v881
    %v3367 = vunpack.c.l.b16 %v882
    %v3368 = vunpack.c.h.b16 %v882
    %v3369 = vunpack.c.l.b16 %v883
    %v3370 = vunpack.c.h.b16 %v883
    %v3371 = vunpack.c.l.b16 %v884
    %v3372 = vunpack.c.h.b16 %v884
    %v3373 = vunpack.c.l.b16 %v885
    %v3374 = vunpack.c.h.b16 %v885
    %v3375 = vunpack.c.l.b16 %v886
    %v3376 = vunpack.c.h.b16 %v886
    %v3377 = vunpack.c.l.b16 %v887
    %v3378 = vunpack.c.h.b16 %v887
    %v3379 = vunpack.c.l.b16 %v888
    %v3380 = vunpack.c.h.b16 %v888
    %v3381 = vunpack.c.l.b16 %v889
    %v3382 = vunpack.c.h.b16 %v889
    %v3383 = vunpack.c.l.b16 %v890
    %v3384 = vunpack.c.h.b16 %v890
    %v3385 = vunpack.c.l.b16 %v891
    %v3386 = vunpack.c.h.b16 %v891
    %v3387 = vunpack.c.l.b16 %v892
    %v3388 = vunpack.c.h.b16 %v892
    %v3389 = vunpack.c.l.b16 %v893
    %v3390 = vunpack.c.h.b16 %v893
    %v3391 = vunpack.c.l.b16 %v894
    %v3392 = vunpack.c.h.b16 %v894
    %v3393 = vunpack.c.l.b16 %v895
    %v3394 = vunpack.c.h.b16 %v895
    %v3395 = vunpack.c.l.b16 %v896
    %v3396 = vunpack.c.h.b16 %v896
    %v3397 = vunpack.c.l.b16 %v897
    %v3398 = vunpack.c.h.b16 %v897
    %v3399 = vunpack.c.l.b16 %v898
    %v3400 = vunpack.c.h.b16 %v898
    %v3401 = vunpack.c.l.b16 %v899
    %v3402 = vunpack.c.h.b16 %v899
    %v3403 = vunpack.c.l.b16 %v900
    %v3404 = vunpack.c.h.b16 %v900
    %v3405 = vunpack.c.l.b16 %v901
    %v3406 = vunpack.c.h.b16 %v901
    %v3407 = vunpack.c.l.b16 %v902
    %v3408 = vunpack.c.h.b16 %v902
    %v3409 = vunpack.c.l.b16 %v903
    %v3410 = vunpack.c.h.b16 %v903
    %v3411 = vunpack.c.l.b16 %v904
    %v3412 = vunpack.c.h.b16 %v904
    %v3413 = vunpack.c.l.b16 %v905
    %v3414 = vunpack.c.h.b16 %v905
    %v3415 = vunpack.c.l.b16 %v906
    %v3416 = vunpack.c.h.b16 %v906
    %v3417 = vunpack.c.l.b16 %v907
    %v3418 = vunpack.c.h.b16 %v907
    %v3419 = vunpack.c.l.b16 %v908
    %v3420 = vunpack.c.h.b16 %v908
    %v3421 = vunpack.c.l.b16 %v909
    %v3422 = vunpack.c.h.b16 %v909
    %v3423 = vunpack.c.l.b16 %v910
    %v3424 = vunpack.c.h.b16 %v910
    %v3425 = vunpack.c.l.b16 %v911
    %v3426 = vunpack.c.h.b16 %v911
    %v3427 = vunpack.c.l.b16 %v912
    %v3428 = vunpack.c.h.b16 %v912
    %v3429 = vunpack.c.l.b16 %v913
    %v3430 = vunpack.c.h.b16 %v913
    %v3431 = vunpack.c.l.b16 %v914
    %v3432 = vunpack.c.h.b16 %v914
    %v3433 = vunpack.c.l.b16 %v915
    %v3434 = vunpack.c.h.b16 %v915
    %v3435 = vunpack.c.l.b16 %v916
    %v3436 = vunpack.c.h.b16 %v916
    %v3437 = vunpack.c.l.b16 %v917
    %v3438 = vunpack.c.h.b16 %v917
    %v3439 = vunpack.c.l.b16 %v918
    %v3440 = vunpack.c.h.b16 %v918
    %v3441 = vunpack.c.l.b16 %v919
    %v3442 = vunpack.c.h.b16 %v919
    %v3443 = vunpack.c.l.b16 %v920
    %v3444 = vunpack.c.h.b16 %v920
    %v3445 = vunpack.c.l.b16 %v921
    %v3446 = vunpack.c.h.b16 %v921
    %v3447 = vunpack.c.l.b16 %v922
    %v3448 = vunpack.c.h.b16 %v922
    %v3449 = vunpack.c.l.b16 %v923
    %v3450 = vunpack.c.h.b16 %v923
    %v3451 = vunpack.c.l.b16 %v924
    %v3452 = vunpack.c.h.b16 %v924
    %v3453 = vunpack.c.l.b16 %v925
    %v3454 = vunpack.c.h.b16 %v925
    %v3455 = vunpack.c.l.b16 %v926
    %v3456 = vunpack.c.h.b16 %v926
    %v3457 = vunpack.c.l.b16 %v927
    %v3458 = vunpack.c.h.b16 %v927
    %v3459 = vunpack.c.l.b16 %v928
    %v3460 = vunpack.c.h.b16 %v928
    %v3461 = vunpack.c.l.b16 %v929
    %v3462 = vunpack.c.h.b16 %v929
    %v3463 = vunpack.c.l.b16 %v930
    %v3464 = vunpack.c.h.b16 %v930
    %v3465 = vunpack.c.l.b16 %v931
    %v3466 = vunpack.c.h.b16 %v931
    %v3467 = vunpack.c.l.b16 %v932
    %v3468 = vunpack.c.h.b16 %v932
    %v3469 = vunpack.c.l.b16 %v933
    %v3470 = vunpack.c.h.b16 %v933
    %v3471 = vunpack.c.l.b16 %v934
    %v3472 = vunpack.c.h.b16 %v934
    %v3473 = vunpack.c.l.b16 %v935
    %v3474 = vunpack.c.h.b16 %v935
    %v3475 = vunpack.c.l.b16 %v936
    %v3476 = vunpack.c.h.b16 %v936
    %v3477 = vunpack.c.l.b16 %v937
    %v3478 = vunpack.c.h.b16 %v937
    %v3479 = vunpack.c.l.b16 %v938
    %v3480 = vunpack.c.h.b16 %v938
    %v3481 = vunpack.c.l.b16 %v939
    %v3482 = vunpack.c.h.b16 %v939
    %v3483 = vunpack.c.l.b16 %v940
    %v3484 = vunpack.c.h.b16 %v940
    %v3485 = vunpack.c.l.b16 %v941
    %v3486 = vunpack.c.h.b16 %v941
    %v3487 = vunpack.c.l.b16 %v942
    %v3488 = vunpack.c.h.b16 %v942
    %v3489 = vunpack.c.l.b16 %v943
    %v3490 = vunpack.c.h.b16 %v943
    %v3491 = vunpack.c.l.b16 %v944
    %v3492 = vunpack.c.h.b16 %v944
    %v3493 = vunpack.c.l.b16 %v945
    %v3494 = vunpack.c.h.b16 %v945
    %v3495 = vunpack.c.l.b16 %v946
    %v3496 = vunpack.c.h.b16 %v946
    %v3497 = vunpack.c.l.b16 %v947
    %v3498 = vunpack.c.h.b16 %v947
    %v3499 = vunpack.c.l.b16 %v948
    %v3500 = vunpack.c.h.b16 %v948
    %v3501 = vunpack.c.l.b16 %v949
    %v3502 = vunpack.c.h.b16 %v949
    %v3503 = vunpack.c.l.b16 %v950
    %v3504 = vunpack.c.h.b16 %v950
    %v3505 = vunpack.c.l.b16 %v951
    %v3506 = vunpack.c.h.b16 %v951
    %v3507 = vunpack.c.l.b16 %v952
    %v3508 = vunpack.c.h.b16 %v952
    %v3509 = vunpack.c.l.b16 %v953
    %v3510 = vunpack.c.h.b16 %v953
    %v3511 = vunpack.c.l.b16 %v954
    %v3512 = vunpack.c.h.b16 %v954
    %v3513 = vunpack.c.l.b16 %v955
    %v3514 = vunpack.c.h.b16 %v955
    %v3515 = vunpack.c.l.b16 %v956
    %v3516 = vunpack.c.h.b16 %v956
    %v3517 = vunpack.c.l.b16 %v957
    %v3518 = vunpack.c.h.b16 %v957
    %v3519 = vunpack.c.l.b16 %v958
    %v3520 = vunpack.c.h.b16 %v958
    %v3521 = vunpack.c.l.b16 %v959
    %v3522 = vunpack.c.h.b16 %v959
    %v3523 = vunpack.c.l.b16 %v960
    %v3524 = vunpack.c.h.b16 %v960
    %v3525 = vunpack.c.l.b16 %v961
    %v3526 = vunpack.c.h.b16 %v961
    %v3527 = vunpack.c.l.b16 %v962
    %v3528 = vunpack.c.h.b16 %v962
    %v3529 = vunpack.c.l.b16 %v963
    %v3530 = vunpack.c.h.b16 %v963
    %v3531 = vunpack.c.l.b16 %v964
    %v3532 = vunpack.c.h.b16 %v964
    %v3533 = vunpack.c.l.b16 %v965
    %v3534 = vunpack.c.h.b16 %v965
    %v3535 = vunpack.c.l.b16 %v966
    %v3536 = vunpack.c.h.b16 %v966
    %v3537 = vunpack.c.l.b16 %v967
    %v3538 = vunpack.c.h.b16 %v967
    %v3539 = vunpack.c.l.b16 %v968
    %v3540 = vunpack.c.h.b16 %v968
    %v3541 = vunpack.c.l.b16 %v969
    %v3542 = vunpack.c.h.b16 %v969
    %v3543 = vunpack.c.l.b16 %v970
    %v3544 = vunpack.c.h.b16 %v970
    %v3545 = vunpack.c.l.b16 %v971
    %v3546 = vunpack.c.h.b16 %v971
    %v3547 = vunpack.c.l.b16 %v972
    %v3548 = vunpack.c.h.b16 %v972
    %v3549 = vunpack.c.l.b16 %v973
    %v3550 = vunpack.c.h.b16 %v973
    %v3551 = vunpack.c.l.b16 %v974
    %v3552 = vunpack.c.h.b16 %v974
    %v3553 = vunpack.c.l.b16 %v975
    %v3554 = vunpack.c.h.b16 %v975
    %v3555 = vunpack.c.l.b16 %v976
    %v3556 = vunpack.c.h.b16 %v976
    %v3557 = vunpack.c.l.b16 %v977
    %v3558 = vunpack.c.h.b16 %v977
    %v3559 = vunpack.c.l.b16 %v978
    %v3560 = vunpack.c.h.b16 %v978
    %v3561 = vunpack.c.l.b16 %v979
    %v3562 = vunpack.c.h.b16 %v979
    %v3563 = vunpack.c.l.b16 %v980
    %v3564 = vunpack.c.h.b16 %v980
    %v3565 = vunpack.c.l.b16 %v981
    %v3566 = vunpack.c.h.b16 %v981
    %v3567 = vunpack.c.l.b16 %v982
    %v3568 = vunpack.c.h.b16 %v982
    %v3569 = vunpack.c.l.b16 %v983
    %v3570 = vunpack.c.h.b16 %v983
    %v3571 = vunpack.c.l.b16 %v984
    %v3572 = vunpack.c.h.b16 %v984
    %v3573 = vunpack.c.l.b16 %v985
    %v3574 = vunpack.c.h.b16 %v985
    %v3575 = vunpack.c.l.b16 %v986
    %v3576 = vunpack.c.h.b16 %v986
    %v3577 = vunpack.c.l.b16 %v987
    %v3578 = vunpack.c.h.b16 %v987
    %v3579 = vunpack.c.l.b16 %v988
    %v3580 = vunpack.c.h.b16 %v988
    %v3581 = vunpack.c.l.b16 %v989
    %v3582 = vunpack.c.h.b16 %v989
    %v3583 = vunpack.c.l.b16 %v990
    %v3584 = vunpack.c.h.b16 %v990
    %v3585 = vunpack.c.l.b16 %v991
    %v3586 = vunpack.c.h.b16 %v991
    %v3587 = vunpack.c.l.b16 %v992
    %v3588 = vunpack.c.h.b16 %v992
    %v3589 = vunpack.c.l.b16 %v993
    %v3590 = vunpack.c.h.b16 %v993
    %v3591 = vunpack.c.l.b16 %v994
    %v3592 = vunpack.c.h.b16 %v994
    %v3593 = vunpack.c.l.b16 %v995
    %v3594 = vunpack.c.h.b16 %v995
    %v3595 = vunpack.c.l.b16 %v996
    %v3596 = vunpack.c.h.b16 %v996
    %v3597 = vunpack.c.l.b16 %v997
    %v3598 = vunpack.c.h.b16 %v997
    %v3599 = vunpack.c.l.b16 %v998
    %v3600 = vunpack.c.h.b16 %v998
    %v3601 = vunpack.c.l.b16 %v999
    %v3602 = vunpack.c.h.b16 %v999
    %v3603 = vunpack.c.l.b16 %v1000
    %v3604 = vunpack.c.h.b16 %v1000
    %v3605 = vunpack.c.l.b16 %v1001
    %v3606 = vunpack.c.h.b16 %v1001
    %v3607 = vunpack.c.l.b16 %v1002
    %v3608 = vunpack.c.h.b16 %v1002
    %v3609 = vunpack.c.l.b16 %v1003
    %v3610 = vunpack.c.h.b16 %v1003
    %v3611 = vunpack.c.l.b16 %v1004
    %v3612 = vunpack.c.h.b16 %v1004
    %v3613 = vunpack.c.l.b16 %v1005
    %v3614 = vunpack.c.h.b16 %v1005
    %v3615 = vunpack.c.l.b16 %v1006
    %v3616 = vunpack.c.h.b16 %v1006
    %v3617 = vunpack.c.l.b16 %v1007
    %v3618 = vunpack.c.h.b16 %v1007
    %v3619 = vunpack.c.l.b16 %v1008
    %v3620 = vunpack.c.h.b16 %v1008
    %v3621 = vunpack.c.l.b16 %v1009
    %v3622 = vunpack.c.h.b16 %v1009
    %v3623 = vunpack.c.l.b16 %v1010
    %v3624 = vunpack.c.h.b16 %v1010
    %v3625 = vunpack.c.l.b16 %v1011
    %v3626 = vunpack.c.h.b16 %v1011
    %v3627 = vunpack.c.l.b16 %v1012
    %v3628 = vunpack.c.h.b16 %v1012
    %v3629 = vunpack.c.l.b16 %v1013
    %v3630 = vunpack.c.h.b16 %v1013
    %v3631 = vunpack.c.l.b16 %v1014
    %v3632 = vunpack.c.h.b16 %v1014
    %v3633 = vunpack.c.l.b16 %v1015
    %v3634 = vunpack.c.h.b16 %v1015
    %v3635 = vunpack.c.l.b16 %v1016
    %v3636 = vunpack.c.h.b16 %v1016
    %v3637 = vunpack.c.l.b16 %v1017
    %v3638 = vunpack.c.h.b16 %v1017
    %v3639 = vunpack.c.l.b16 %v1018
    %v3640 = vunpack.c.h.b16 %v1018
    %v3641 = vunpack.c.l.b16 %v1019
    %v3642 = vunpack.c.h.b16 %v1019
    %v3643 = vunpack.c.l.b16 %v1020
    %v3644 = vunpack.c.h.b16 %v1020
    %v3645 = vunpack.c.l.b16 %v1021
    %v3646 = vunpack.c.h.b16 %v1021
    %v3647 = vunpack.c.l.b16 %v1022
    %v3648 = vunpack.c.h.b16 %v1022
    %v3649 = vunpack.c.l.b16 %v1023
    %v3650 = vunpack.c.h.b16 %v1023
    %v3651 = vunpack.c.l.b16 %v1024
    %v3652 = vunpack.c.h.b16 %v1024
    %v3653 = vunpack.c.l.b16 %v1025
    %v3654 = vunpack.c.h.b16 %v1025
    %v3655 = vunpack.c.l.b16 %v1026
    %v3656 = vunpack.c.h.b16 %v1026
    %v3657 = vunpack.c.l.b16 %v1027
    %v3658 = vunpack.c.h.b16 %v1027
    %v3659 = vunpack.c.l.b16 %v1028
    %v3660 = vunpack.c.h.b16 %v1028
    %v3661 = vunpack.c.l.b16 %v1029
    %v3662 = vunpack.c.h.b16 %v1029
    %v3663 = vunpack.c.l.b16 %v1030
    %v3664 = vunpack.c.h.b16 %v1030
    %v3665 = vunpack.c.l.b16 %v1031
    %v3666 = vunpack.c.h.b16 %v1031
    %v3667 = vunpack.c.l.b16 %v1032
    %v3668 = vunpack.c.h.b16 %v1032
    %v3669 = vunpack.c.l.b16 %v1033
    %v3670 = vunpack.c.h.b16 %v1033
    %v3671 = vunpack.c.l.b16 %v1034
    %v3672 = vunpack.c.h.b16 %v1034
    %v3673 = vunpack.c.l.b16 %v1035
    %v3674 = vunpack.c.h.b16 %v1035
    %v3675 = vunpack.c.l.b16 %v1036
    %v3676 = vunpack.c.h.b16 %v1036
    %v3677 = vunpack.c.l.b16 %v1037
    %v3678 = vunpack.c.h.b16 %v1037
    %v3679 = vunpack.c.l.b16 %v1038
    %v3680 = vunpack.c.h.b16 %v1038
    %v3681 = vunpack.c.l.b16 %v1039
    %v3682 = vunpack.c.h.b16 %v1039
    %v3683 = vunpack.c.l.b16 %v1040
    %v3684 = vunpack.c.h.b16 %v1040
    %v3685 = vunpack.c.l.b16 %v1041
    %v3686 = vunpack.c.h.b16 %v1041
    %v3687 = vunpack.c.l.b16 %v1042
    %v3688 = vunpack.c.h.b16 %v1042
    %v3689 = vunpack.c.l.b16 %v1043
    %v3690 = vunpack.c.h.b16 %v1043
    %v3691 = vunpack.c.l.b16 %v1044
    %v3692 = vunpack.c.h.b16 %v1044
    %v3693 = vunpack.c.l.b16 %v1045
    %v3694 = vunpack.c.h.b16 %v1045
    %v3695 = vunpack.c.l.b16 %v1046
    %v3696 = vunpack.c.h.b16 %v1046
    %v3697 = vunpack.c.l.b16 %v1047
    %v3698 = vunpack.c.h.b16 %v1047
    %v3699 = vunpack.c.l.b16 %v1048
    %v3700 = vunpack.c.h.b16 %v1048
    %v3701 = vunpack.c.l.b16 %v1049
    %v3702 = vunpack.c.h.b16 %v1049
    %v3703 = vunpack.c.l.b16 %v1050
    %v3704 = vunpack.c.h.b16 %v1050
    %v3705 = vunpack.c.l.b16 %v1051
    %v3706 = vunpack.c.h.b16 %v1051
    %v3707 = vunpack.c.l.b16 %v1052
    %v3708 = vunpack.c.h.b16 %v1052
    %v3709 = vunpack.c.l.b16 %v1053
    %v3710 = vunpack.c.h.b16 %v1053
    %v3711 = vunpack.c.l.b16 %v1054
    %v3712 = vunpack.c.h.b16 %v1054
    %v3713 = vunpack.c.l.b16 %v1055
    %v3714 = vunpack.c.h.b16 %v1055
    %v3715 = vunpack.c.l.b16 %v1056
    %v3716 = vunpack.c.h.b16 %v1056
    %v3717 = vunpack.c.l.b16 %v1057
    %v3718 = vunpack.c.h.b16 %v1057
    %v3719 = vunpack.c.l.b16 %v1058
    %v3720 = vunpack.c.h.b16 %v1058
    %v3721 = vunpack.c.l.b16 %v1059
    %v3722 = vunpack.c.h.b16 %v1059
    %v3723 = vunpack.c.l.b16 %v1060
    %v3724 = vunpack.c.h.b16 %v1060
    %v3725 = vunpack.c.l.b16 %v1061
    %v3726 = vunpack.c.h.b16 %v1061
    %v3727 = vunpack.c.l.b16 %v1062
    %v3728 = vunpack.c.h.b16 %v1062
    %v3729 = vunpack.c.l.b16 %v1063
    %v3730 = vunpack.c.h.b16 %v1063
    %v3731 = vunpack.c.l.b16 %v1064
    %v3732 = vunpack.c.h.b16 %v1064
    %v3733 = vunpack.c.l.b16 %v1065
    %v3734 = vunpack.c.h.b16 %v1065
    %v3735 = vunpack.c.l.b16 %v1066
    %v3736 = vunpack.c.h.b16 %v1066
    %v3737 = vunpack.c.l.b16 %v1067
    %v3738 = vunpack.c.h.b16 %v1067
    %v3739 = vunpack.c.l.b16 %v1068
    %v3740 = vunpack.c.h.b16 %v1068
    %v3741 = vunpack.c.l.b16 %v1069
    %v3742 = vunpack.c.h.b16 %v1069
    %v3743 = vunpack.c.l.b16 %v1070
    %v3744 = vunpack.c.h.b16 %v1070
    %v3745 = vunpack.c.l.b16 %v1071
    %v3746 = vunpack.c.h.b16 %v1071
    %v3747 = vunpack.c.l.b16 %v1072
    %v3748 = vunpack.c.h.b16 %v1072
    %v3749 = vunpack.c.l.b16 %v1073
    %v3750 = vunpack.c.h.b16 %v1073
    %v3751 = vunpack.c.l.b16 %v1074
    %v3752 = vunpack.c.h.b16 %v1074
    %v3753 = vunpack.c.l.b16 %v1075
    %v3754 = vunpack.c.h.b16 %v1075
    %v3755 = vunpack.c.l.b16 %v1076
    %v3756 = vunpack.c.h.b16 %v1076
    %v3757 = vunpack.c.l.b16 %v1077
    %v3758 = vunpack.c.h.b16 %v1077
    %v3759 = vunpack.c.l.b16 %v1078
    %v3760 = vunpack.c.h.b16 %v1078
    %v3761 = vunpack.c.l.b16 %v1079
    %v3762 = vunpack.c.h.b16 %v1079
    %v3763 = vunpack.c.l.b16 %v1080
    %v3764 = vunpack.c.h.b16 %v1080
    %v3765 = vunpack.c.l.b16 %v1081
    %v3766 = vunpack.c.h.b16 %v1081
    %v3767 = vunpack.c.l.b16 %v1082
    %v3768 = vunpack.c.h.b16 %v1082
    %v3769 = vunpack.c.l.b16 %v1083
    %v3770 = vunpack.c.h.b16 %v1083
    %v3771 = vunpack.c.l.b16 %v1084
    %v3772 = vunpack.c.h.b16 %v1084
    %v3773 = vunpack.c.l.b16 %v1085
    %v3774 = vunpack.c.h.b16 %v1085
    %v3775 = vunpack.c.l.b16 %v1086
    %v3776 = vunpack.c.h.b16 %v1086
    %v3777 = vunpack.c.l.b16 %v1087
    %v3778 = vunpack.c.h.b16 %v1087
    %v3779 = vunpack.c.l.b16 %v1088
    %v3780 = vunpack.c.h.b16 %v1088
    %v3781 = vunpack.c.l.b16 %v1089
    %v3782 = vunpack.c.h.b16 %v1089
    %v3783 = vunpack.c.l.b16 %v1090
    %v3784 = vunpack.c.h.b16 %v1090
    %v3785 = vunpack.c.l.b16 %v1091
    %v3786 = vunpack.c.h.b16 %v1091
    %v3787 = vunpack.c.l.b16 %v1092
    %v3788 = vunpack.c.h.b16 %v1092
    %v3789 = vunpack.c.l.b16 %v1093
    %v3790 = vunpack.c.h.b16 %v1093
    %v3791 = vunpack.c.l.b16 %v1094
    %v3792 = vunpack.c.h.b16 %v1094
    %v3793 = vunpack.c.l.b16 %v1095
    %v3794 = vunpack.c.h.b16 %v1095
    %v3795 = vunpack.c.l.b16 %v1096
    %v3796 = vunpack.c.h.b16 %v1096
    %v3797 = vunpack.c.l.b16 %v1097
    %v3798 = vunpack.c.h.b16 %v1097
    %v3799 = vunpack.c.l.b16 %v1098
    %v3800 = vunpack.c.h.b16 %v1098
    %v3801 = vunpack.c.l.b16 %v1099
    %v3802 = vunpack.c.h.b16 %v1099
    %v3803 = vunpack.c.l.b16 %v1100
    %v3804 = vunpack.c.h.b16 %v1100
    %v3805 = vunpack.c.l.b16 %v1101
    %v3806 = vunpack.c.h.b16 %v1101
    %v3807 = vunpack.c.l.b16 %v1102
    %v3808 = vunpack.c.h.b16 %v1102
    %v3809 = vunpack.c.l.b16 %v1103
    %v3810 = vunpack.c.h.b16 %v1103
    %v3811 = vunpack.c.l.b16 %v1104
    %v3812 = vunpack.c.h.b16 %v1104
    %v3813 = vunpack.c.l.b16 %v1105
    %v3814 = vunpack.c.h.b16 %v1105
    %v3815 = vunpack.c.l.b16 %v1106
    %v3816 = vunpack.c.h.b16 %v1106
    %v3817 = vpack.c.b16 %v2029, %v2025
    %v3818 = vpack.c.b16 %v2030, %v2026
    %v3819 = vpack.c.b16 %v2031, %v2027
    %v3820 = vpack.c.b16 %v2032, %v2028
    %v3821 = vpack.c.b16 %v2037, %v2033
    %v3822 = vpack.c.b16 %v2038, %v2034
    %v3823 = vpack.c.b16 %v2039, %v2035
    %v3824 = vpack.c.b16 %v2040, %v2036
    %v3825 = vpack.c.b16 %v2045, %v2041
    %v3826 = vpack.c.b16 %v2046, %v2042
    %v3827 = vpack.c.b16 %v2047, %v2043
    %v3828 = vpack.c.b16 %v2048, %v2044
    %v3829 = vpack.c.b16 %v2053, %v2049
    %v3830 = vpack.c.b16 %v2054, %v2050
    %v3831 = vpack.c.b16 %v2055, %v2051
    %v3832 = vpack.c.b16 %v2056, %v2052
    %v3833 = vpack.c.b16 %v2061, %v2057
    %v3834 = vpack.c.b16 %v2062, %v2058
    %v3835 = vpack.c.b16 %v2063, %v2059
    %v3836 = vpack.c.b16 %v2064, %v2060
    %v3837 = vpack.c.b16 %v2069, %v2065
    %v3838 = vpack.c.b16 %v2070, %v2066
    %v3839 = vpack.c.b16 %v2071, %v2067
    %v3840 = vpack.c.b16 %v2072, %v2068
    %v3841 = vpack.c.b16 %v2077, %v2073
    %v3842 = vpack.c.b16 %v2078, %v2074
    %v3843 = vpack.c.b16 %v2079, %v2075
    %v3844 = vpack.c.b16 %v2080, %v2076
    %v3845 = vpack.c.b16 %v2085, %v2081
    %v3846 = vpack.c.b16 %v2086, %v2082
    %v3847 = vpack.c.b16 %v2087, %v2083
    %v3848 = vpack.c.b16 %v2088, %v2084
    %v3849 = vpack.c.b16 %v2093, %v2089
    %v3850 = vpack.c.b16 %v2094, %v2090
    %v3851 = vpack.c.b16 %v2095, %v2091
    %v3852 = vpack.c.b16 %v2096, %v2092
    %v3853 = vpack.c.b16 %v2101, %v2097
    %v3854 = vpack.c.b16 %v2102, %v2098
    %v3855 = vpack.c.b16 %v2103, %v2099
    %v3856 = vpack.c.b16 %v2104, %v2100
    %v3857 = vpack.c.b16 %v2109, %v2105
    %v3858 = vpack.c.b16 %v2110, %v2106
    %v3859 = vpack.c.b16 %v2111, %v2107
    %v3860 = vpack.c.b16 %v2112, %v2108
    %v3861 = vpack.c.b16 %v2117, %v2113
    %v3862 = vpack.c.b16 %v2118, %v2114
    %v3863 = vpack.c.b16 %v2119, %v2115
    %v3864 = vpack.c.b16 %v2120, %v2116
    %v3865 = vpack.c.b16 %v2125, %v2121
    %v3866 = vpack.c.b16 %v2126, %v2122
    %v3867 = vpack.c.b16 %v2127, %v2123
    %v3868 = vpack.c.b16 %v2128, %v2124
    %v3869 = vpack.c.b16 %v2133, %v2129
    %v3870 = vpack.c.b16 %v2134, %v2130
    %v3871 = vpack.c.b16 %v2135, %v2131
    %v3872 = vpack.c.b16 %v2136, %v2132
    %v3873 = vpack.c.b16 %v2141, %v2137
    %v3874 = vpack.c.b16 %v2142, %v2138
    %v3875 = vpack.c.b16 %v2143, %v2139
    %v3876 = vpack.c.b16 %v2144, %v2140
    %v3877 = vpack.c.b16 %v2149, %v2145
    %v3878 = vpack.c.b16 %v2150, %v2146
    %v3879 = vpack.c.b16 %v2151, %v2147
    %v3880 = vpack.c.b16 %v2152, %v2148
    %v3881 = vpack.c.b16 %v2157, %v2153
    %v3882 = vpack.c.b16 %v2158, %v2154
    %v3883 = vpack.c.b16 %v2159, %v2155
    %v3884 = vpack.c.b16 %v2160, %v2156
    %v3885 = vpack.c.b16 %v2165, %v2161
    %v3886 = vpack.c.b16 %v2166, %v2162
    %v3887 = vpack.c.b16 %v2167, %v2163
    %v3888 = vpack.c.b16 %v2168, %v2164
    %v3889 = vpack.c.b16 %v2173, %v2169
    %v3890 = vpack.c.b16 %v2174, %v2170
    %v3891 = vpack.c.b16 %v2175, %v2171
    %v3892 = vpack.c.b16 %v2176, %v2172
    %v3893 = vpack.c.b16 %v2181, %v2177
    %v3894 = vpack.c.b16 %v2182, %v2178
    %v3895 = vpack.c.b16 %v2183, %v2179
    %v3896 = vpack.c.b16 %v2184, %v2180
    %v3897 = vpack.c.b16 %v2189, %v2185
    %v3898 = vpack.c.b16 %v2190, %v2186
    %v3899 = vpack.c.b16 %v2191, %v2187
    %v3900 = vpack.c.b16 %v2192, %v2188
    %v3901 = vpack.c.b16 %v2197, %v2193
    %v3902 = vpack.c.b16 %v2198, %v2194
    %v3903 = vpack.c.b16 %v2199, %v2195
    %v3904 = vpack.c.b16 %v2200, %v2196
    %v3905 = vpack.c.b16 %v2205, %v2201
    %v3906 = vpack.c.b16 %v2206, %v2202
    %v3907 = vpack.c.b16 %v2207, %v2203
    %v3908 = vpack.c.b16 %v2208, %v2204
    %v3909 = vpack.c.b16 %v2213, %v2209
    %v3910 = vpack.c.b16 %v2214, %v2210
    %v3911 = vpack.c.b16 %v2215, %v2211
    %v3912 = vpack.c.b16 %v2216, %v2212
    %v3913 = vpack.c.b16 %v2221, %v2217
    %v3914 = vpack.c.b16 %v2222, %v2218
    %v3915 = vpack.c.b16 %v2223, %v2219
    %v3916 = vpack.c.b16 %v2224, %v2220
    %v3917 = vpack.c.b16 %v2229, %v2225
    %v3918 = vpack.c.b16 %v2230, %v2226
    %v3919 = vpack.c.b16 %v2231, %v2227
    %v3920 = vpack.c.b16 %v2232, %v2228
    %v3921 = vpack.c.b16 %v2237, %v2233
    %v3922 = vpack.c.b16 %v2238, %v2234
    %v3923 = vpack.c.b16 %v2239, %v2235
    %v3924 = vpack.c.b16 %v2240, %v2236
    %v3925 = vpack.c.b16 %v2245, %v2241
    %v3926 = vpack.c.b16 %v2246, %v2242
    %v3927 = vpack.c.b16 %v2247, %v2243
    %v3928 = vpack.c.b16 %v2248, %v2244
    %v3929 = vpack.c.b16 %v2253, %v2249
    %v3930 = vpack.c.b16 %v2254, %v2250
    %v3931 = vpack.c.b16 %v2255, %v2251
    %v3932 = vpack.c.b16 %v2256, %v2252
    %v3933 = vpack.c.b16 %v2261, %v2257
    %v3934 = vpack.c.b16 %v2262, %v2258
    %v3935 = vpack.c.b16 %v2263, %v2259
    %v3936 = vpack.c.b16 %v2264, %v2260
    %v3937 = vpack.c.b16 %v2269, %v2265
    %v3938 = vpack.c.b16 %v2270, %v2266
    %v3939 = vpack.c.b16 %v2271, %v2267
    %v3940 = vpack.c.b16 %v2272, %v2268
    %v3941 = vpack.c.b16 %v2277, %v2273
    %v3942 = vpack.c.b16 %v2278, %v2274
    %v3943 = vpack.c.b16 %v2279, %v2275
    %v3944 = vpack.c.b16 %v2280, %v2276
    %v3945 = vpack.c.b16 %v2285, %v2281
    %v3946 = vpack.c.b16 %v2286, %v2282
    %v3947 = vpack.c.b16 %v2287, %v2283
    %v3948 = vpack.c.b16 %v2288, %v2284
    %v3949 = vpack.c.b16 %v2293, %v2289
    %v3950 = vpack.c.b16 %v2294, %v2290
    %v3951 = vpack.c.b16 %v2295, %v2291
    %v3952 = vpack.c.b16 %v2296, %v2292
    %v3953 = vpack.c.b16 %v2301, %v2297
    %v3954 = vpack.c.b16 %v2302, %v2298
    %v3955 = vpack.c.b16 %v2303, %v2299
    %v3956 = vpack.c.b16 %v2304, %v2300
    %v3957 = vpack.c.b16 %v2309, %v2305
    %v3958 = vpack.c.b16 %v2310, %v2306
    %v3959 = vpack.c.b16 %v2311, %v2307
    %v3960 = vpack.c.b16 %v2312, %v2308
    %v3961 = vpack.c.b16 %v2317, %v2313
    %v3962 = vpack.c.b16 %v2318, %v2314
    %v3963 = vpack.c.b16 %v2319, %v2315
    %v3964 = vpack.c.b16 %v2320, %v2316
    %v3965 = vpack.c.b16 %v2325, %v2321
    %v3966 = vpack.c.b16 %v2326, %v2322
    %v3967 = vpack.c.b16 %v2327, %v2323
    %v3968 = vpack.c.b16 %v2328, %v2324
    %v3969 = vpack.c.b16 %v2333, %v2329
    %v3970 = vpack.c.b16 %v2334, %v2330
    %v3971 = vpack.c.b16 %v2335, %v2331
    %v3972 = vpack.c.b16 %v2336, %v2332
    %v3973 = vpack.c.b16 %v2341, %v2337
    %v3974 = vpack.c.b16 %v2342, %v2338
    %v3975 = vpack.c.b16 %v2343, %v2339
    %v3976 = vpack.c.b16 %v2344, %v2340
    %v3977 = vpack.c.b16 %v2349, %v2345
    %v3978 = vpack.c.b16 %v2350, %v2346
    %v3979 = vpack.c.b16 %v2351, %v2347
    %v3980 = vpack.c.b16 %v2352, %v2348
    %v3981 = vpack.c.b16 %v2357, %v2353
    %v3982 = vpack.c.b16 %v2358, %v2354
    %v3983 = vpack.c.b16 %v2359, %v2355
    %v3984 = vpack.c.b16 %v2360, %v2356
    %v3985 = vpack.c.b16 %v2365, %v2361
    %v3986 = vpack.c.b16 %v2366, %v2362
    %v3987 = vpack.c.b16 %v2367, %v2363
    %v3988 = vpack.c.b16 %v2368, %v2364
    %v3989 = vpack.c.b16 %v2373, %v2369
    %v3990 = vpack.c.b16 %v2374, %v2370
    %v3991 = vpack.c.b16 %v2375, %v2371
    %v3992 = vpack.c.b16 %v2376, %v2372
    %v3993 = vpack.c.b16 %v2381, %v2377
    %v3994 = vpack.c.b16 %v2382, %v2378
    %v3995 = vpack.c.b16 %v2383, %v2379
    %v3996 = vpack.c.b16 %v2384, %v2380
    %v3997 = vpack.c.b16 %v2389, %v2385
    %v3998 = vpack.c.b16 %v2390, %v2386
    %v3999 = vpack.c.b16 %v2391, %v2387
    %v4000 = vpack.c.b16 %v2392, %v2388
    %v4001 = vpack.c.b16 %v2397, %v2393
    %v4002 = vpack.c.b16 %v2398, %v2394
    %v4003 = vpack.c.b16 %v2399, %v2395
    %v4004 = vpack.c.b16 %v2400, %v2396
    %v4005 = vpack.c.b16 %v2405, %v2401
    %v4006 = vpack.c.b16 %v2406, %v2402
    %v4007 = vpack.c.b16 %v2407, %v2403
    %v4008 = vpack.c.b16 %v2408, %v2404
    %v4009 = vpack.c.b16 %v2413, %v2409
    %v4010 = vpack.c.b16 %v2414, %v2410
    %v4011 = vpack.c.b16 %v2415, %v2411
    %v4012 = vpack.c.b16 %v2416, %v2412
    %v4013 = vpack.c.b16 %v2421, %v2417
    %v4014 = vpack.c.b16 %v2422, %v2418
    %v4015 = vpack.c.b16 %v2423, %v2419
    %v4016 = vpack.c.b16 %v2424, %v2420
    %v4017 = vpack.c.b16 %v2429, %v2425
    %v4018 = vpack.c.b16 %v2430, %v2426
    %v4019 = vpack.c.b16 %v2431, %v2427
    %v4020 = vpack.c.b16 %v2432, %v2428
    %v4021 = vpack.c.b16 %v2437, %v2433
    %v4022 = vpack.c.b16 %v2438, %v2434
    %v4023 = vpack.c.b16 %v2439, %v2435
    %v4024 = vpack.c.b16 %v2440, %v2436
    %v4025 = vpack.c.b16 %v2445, %v2441
    %v4026 = vpack.c.b16 %v2446, %v2442
    %v4027 = vpack.c.b16 %v2447, %v2443
    %v4028 = vpack.c.b16 %v2448, %v2444
    %v4029 = vpack.c.b16 %v2453, %v2449
    %v4030 = vpack.c.b16 %v2454, %v2450
    %v4031 = vpack.c.b16 %v2455, %v2451
    %v4032 = vpack.c.b16 %v2456, %v2452
    %v4033 = vpack.c.b16 %v2461, %v2457
    %v4034 = vpack.c.b16 %v2462, %v2458
    %v4035 = vpack.c.b16 %v2463, %v2459
    %v4036 = vpack.c.b16 %v2464, %v2460
    %v4037 = vpack.c.b16 %v2469, %v2465
    %v4038 = vpack.c.b16 %v2470, %v2466
    %v4039 = vpack.c.b16 %v2471, %v2467
    %v4040 = vpack.c.b16 %v2472, %v2468
    %v4041 = vpack.c.b16 %v2477, %v2473
    %v4042 = vpack.c.b16 %v2478, %v2474
    %v4043 = vpack.c.b16 %v2479, %v2475
    %v4044 = vpack.c.b16 %v2480, %v2476
    %v4045 = vpack.c.b16 %v2485, %v2481
    %v4046 = vpack.c.b16 %v2486, %v2482
    %v4047 = vpack.c.b16 %v2487, %v2483
    %v4048 = vpack.c.b16 %v2488, %v2484
    %v4049 = vpack.c.b16 %v2493, %v2489
    %v4050 = vpack.c.b16 %v2494, %v2490
    %v4051 = vpack.c.b16 %v2495, %v2491
    %v4052 = vpack.c.b16 %v2496, %v2492
    %v4053 = vpack.c.b16 %v2501, %v2497
    %v4054 = vpack.c.b16 %v2502, %v2498
    %v4055 = vpack.c.b16 %v2503, %v2499
    %v4056 = vpack.c.b16 %v2504, %v2500
    %v4057 = vpack.c.b16 %v2509, %v2505
    %v4058 = vpack.c.b16 %v2510, %v2506
    %v4059 = vpack.c.b16 %v2511, %v2507
    %v4060 = vpack.c.b16 %v2512, %v2508
    %v4061 = vpack.c.b16 %v2517, %v2513
    %v4062 = vpack.c.b16 %v2518, %v2514
    %v4063 = vpack.c.b16 %v2519, %v2515
    %v4064 = vpack.c.b16 %v2520, %v2516
    %v4065 = vpack.c.b16 %v2525, %v2521
    %v4066 = vpack.c.b16 %v2526, %v2522
    %v4067 = vpack.c.b16 %v2527, %v2523
    %v4068 = vpack.c.b16 %v2528, %v2524
    %v4069 = vpack.c.b16 %v2533, %v2529
    %v4070 = vpack.c.b16 %v2534, %v2530
    %v4071 = vpack.c.b16 %v2535, %v2531
    %v4072 = vpack.c.b16 %v2536, %v2532
    %v4073 = vpack.c.b16 %v2541, %v2537
    %v4074 = vpack.c.b16 %v2542, %v2538
    %v4075 = vpack.c.b16 %v2543, %v2539
    %v4076 = vpack.c.b16 %v2544, %v2540
    %v4077 = vpack.c.b16 %v2549, %v2545
    %v4078 = vpack.c.b16 %v2550, %v2546
    %v4079 = vpack.c.b16 %v2551, %v2547
    %v4080 = vpack.c.b16 %v2552, %v2548
    %v4081 = vpack.c.b16 %v2557, %v2553
    %v4082 = vpack.c.b16 %v2558, %v2554
    %v4083 = vpack.c.b16 %v2559, %v2555
    %v4084 = vpack.c.b16 %v2560, %v2556
    %v4085 = vpack.c.b16 %v2565, %v2561
    %v4086 = vpack.c.b16 %v2566, %v2562
    %v4087 = vpack.c.b16 %v2567, %v2563
    %v4088 = vpack.c.b16 %v2568, %v2564
    %v4089 = vpack.c.b16 %v2573, %v2569
    %v4090 = vpack.c.b16 %v2574, %v2570
    %v4091 = vpack.c.b16 %v2575, %v2571
    %v4092 = vpack.c.b16 %v2576, %v2572
    %v4093 = vpack.c.b16 %v2581, %v2577
    %v4094 = vpack.c.b16 %v2582, %v2578
    %v4095 = vpack.c.b16 %v2583, %v2579
    %v4096 = vpack.c.b16 %v2584, %v2580
    %v4097 = vpack.c.b16 %v2589, %v2585
    %v4098 = vpack.c.b16 %v2590, %v2586
    %v4099 = vpack.c.b16 %v2591, %v2587
    %v4100 = vpack.c.b16 %v2592, %v2588
    %v4101 = vpack.c.b16 %v2597, %v2593
    %v4102 = vpack.c.b16 %v2598, %v2594
    %v4103 = vpack.c.b16 %v2599, %v2595
    %v4104 = vpack.c.b16 %v2600, %v2596
    %v4105 = vpack.c.b16 %v2605, %v2601
    %v4106 = vpack.c.b16 %v2606, %v2602
    %v4107 = vpack.c.b16 %v2607, %v2603
    %v4108 = vpack.c.b16 %v2608, %v2604
    %v4109 = vpack.c.b16 %v2613, %v2609
    %v4110 = vpack.c.b16 %v2614, %v2610
    %v4111 = vpack.c.b16 %v2615, %v2611
    %v4112 = vpack.c.b16 %v2616, %v2612
    %v4113 = vpack.c.b16 %v2621, %v2617
    %v4114 = vpack.c.b16 %v2622, %v2618
    %v4115 = vpack.c.b16 %v2623, %v2619
    %v4116 = vpack.c.b16 %v2624, %v2620
    %v4117 = vpack.c.b16 %v2629, %v2625
    %v4118 = vpack.c.b16 %v2630, %v2626
    %v4119 = vpack.c.b16 %v2631, %v2627
    %v4120 = vpack.c.b16 %v2632, %v2628
    %v4121 = vpack.c.b16 %v2637, %v2633
    %v4122 = vpack.c.b16 %v2638, %v2634
    %v4123 = vpack.c.b16 %v2639, %v2635
    %v4124 = vpack.c.b16 %v2640, %v2636
    %v4125 = vpack.c.b16 %v2645, %v2641
    %v4126 = vpack.c.b16 %v2646, %v2642
    %v4127 = vpack.c.b16 %v2647, %v2643
    %v4128 = vpack.c.b16 %v2648, %v2644
    %v4129 = vpack.c.b16 %v2653, %v2649
    %v4130 = vpack.c.b16 %v2654, %v2650
    %v4131 = vpack.c.b16 %v2655, %v2651
    %v4132 = vpack.c.b16 %v2656, %v2652
    %v4133 = vpack.c.b16 %v2661, %v2657
    %v4134 = vpack.c.b16 %v2662, %v2658
    %v4135 = vpack.c.b16 %v2663, %v2659
    %v4136 = vpack.c.b16 %v2664, %v2660
    %v4137 = vpack.c.b16 %v2669, %v2665
    %v4138 = vpack.c.b16 %v2670, %v2666
    %v4139 = vpack.c.b16 %v2671, %v2667
    %v4140 = vpack.c.b16 %v2672, %v2668
    %v4141 = vpack.c.b16 %v2677, %v2673
    %v4142 = vpack.c.b16 %v2678, %v2674
    %v4143 = vpack.c.b16 %v2679, %v2675
    %v4144 = vpack.c.b16 %v2680, %v2676
    %v4145 = vpack.c.b16 %v2685, %v2681
    %v4146 = vpack.c.b16 %v2686, %v2682
    %v4147 = vpack.c.b16 %v2687, %v2683
    %v4148 = vpack.c.b16 %v2688, %v2684
    %v4149 = vpack.c.b16 %v2693, %v2689
    %v4150 = vpack.c.b16 %v2694, %v2690
    %v4151 = vpack.c.b16 %v2695, %v2691
    %v4152 = vpack.c.b16 %v2696, %v2692
    %v4153 = vpack.c.b16 %v2701, %v2697
    %v4154 = vpack.c.b16 %v2702, %v2698
    %v4155 = vpack.c.b16 %v2703, %v2699
    %v4156 = vpack.c.b16 %v2704, %v2700
    %v4157 = vpack.c.b16 %v2709, %v2705
    %v4158 = vpack.c.b16 %v2710, %v2706
    %v4159 = vpack.c.b16 %v2711, %v2707
    %v4160 = vpack.c.b16 %v2712, %v2708
    %v4161 = vpack.c.b16 %v2717, %v2713
    %v4162 = vpack.c.b16 %v2718, %v2714
    %v4163 = vpack.c.b16 %v2719, %v2715
    %v4164 = vpack.c.b16 %v2720, %v2716
    %v4165 = vpack.c.b16 %v2725, %v2721
    %v4166 = vpack.c.b16 %v2726, %v2722
    %v4167 = vpack.c.b16 %v2727, %v2723
    %v4168 = vpack.c.b16 %v2728, %v2724
    %v4169 = vpack.c.b16 %v2733, %v2729
    %v4170 = vpack.c.b16 %v2734, %v2730
    %v4171 = vpack.c.b16 %v2735, %v2731
    %v4172 = vpack.c.b16 %v2736, %v2732
    %v4173 = vpack.c.b16 %v2741, %v2737
    %v4174 = vpack.c.b16 %v2742, %v2738
    %v4175 = vpack.c.b16 %v2743, %v2739
    %v4176 = vpack.c.b16 %v2744, %v2740
    %v4177 = vpack.c.b16 %v2749, %v2745
    %v4178 = vpack.c.b16 %v2750, %v2746
    %v4179 = vpack.c.b16 %v2751, %v2747
    %v4180 = vpack.c.b16 %v2752, %v2748
    %v4181 = vpack.c.b16 %v2757, %v2753
    %v4182 = vpack.c.b16 %v2758, %v2754
    %v4183 = vpack.c.b16 %v2759, %v2755
    %v4184 = vpack.c.b16 %v2760, %v2756
    %v4185 = vpack.c.b16 %v2765, %v2761
    %v4186 = vpack.c.b16 %v2766, %v2762
    %v4187 = vpack.c.b16 %v2767, %v2763
    %v4188 = vpack.c.b16 %v2768, %v2764
    %v4189 = vpack.c.b16 %v2773, %v2769
    %v4190 = vpack.c.b16 %v2774, %v2770
    %v4191 = vpack.c.b16 %v2775, %v2771
    %v4192 = vpack.c.b16 %v2776, %v2772
    %v4193 = vpack.c.b16 %v2781, %v2777
    %v4194 = vpack.c.b16 %v2782, %v2778
    %v4195 = vpack.c.b16 %v2783, %v2779
    %v4196 = vpack.c.b16 %v2784, %v2780
    %v4197 = vpack.c.b16 %v2789, %v2785
    %v4198 = vpack.c.b16 %v2790, %v2786
    %v4199 = vpack.c.b16 %v2791, %v2787
    %v4200 = vpack.c.b16 %v2792, %v2788
    %v4201 = vpack.c.b16 %v2797, %v2793
    %v4202 = vpack.c.b16 %v2798, %v2794
    %v4203 = vpack.c.b16 %v2799, %v2795
    %v4204 = vpack.c.b16 %v2800, %v2796
    %v4205 = vpack.c.b16 %v2805, %v2801
    %v4206 = vpack.c.b16 %v2806, %v2802
    %v4207 = vpack.c.b16 %v2807, %v2803
    %v4208 = vpack.c.b16 %v2808, %v2804
    %v4209 = vpack.c.b16 %v2813, %v2809
    %v4210 = vpack.c.b16 %v2814, %v2810
    %v4211 = vpack.c.b16 %v2815, %v2811
    %v4212 = vpack.c.b16 %v2816, %v2812
    %v4213 = vpack.c.b16 %v2821, %v2817
    %v4214 = vpack.c.b16 %v2822, %v2818
    %v4215 = vpack.c.b16 %v2823, %v2819
    %v4216 = vpack.c.b16 %v2824, %v2820
    %v4217 = vpack.c.b16 %v2829, %v2825
    %v4218 = vpack.c.b16 %v2830, %v2826
    %v4219 = vpack.c.b16 %v2831, %v2827
    %v4220 = vpack.c.b16 %v2832, %v2828
    %v4221 = vpack.c.b16 %v2837, %v2833
    %v4222 = vpack.c.b16 %v2838, %v2834
    %v4223 = vpack.c.b16 %v2839, %v2835
    %v4224 = vpack.c.b16 %v2840, %v2836
    %v4225 = vpack.c.b16 %v2845, %v2841
    %v4226 = vpack.c.b16 %v2846, %v2842
    %v4227 = vpack.c.b16 %v2847, %v2843
    %v4228 = vpack.c.b16 %v2848, %v2844
    %v4229 = vpack.c.b16 %v2853, %v2849
    %v4230 = vpack.c.b16 %v2854, %v2850
    %v4231 = vpack.c.b16 %v2855, %v2851
    %v4232 = vpack.c.b16 %v2856, %v2852
    %v4233 = vpack.c.b16 %v2861, %v2857
    %v4234 = vpack.c.b16 %v2862, %v2858
    %v4235 = vpack.c.b16 %v2863, %v2859
    %v4236 = vpack.c.b16 %v2864, %v2860
    %v4237 = vpack.c.b16 %v2869, %v2865
    %v4238 = vpack.c.b16 %v2870, %v2866
    %v4239 = vpack.c.b16 %v2871, %v2867
    %v4240 = vpack.c.b16 %v2872, %v2868
    %v4241 = vpack.c.b16 %v2877, %v2873
    %v4242 = vpack.c.b16 %v2878, %v2874
    %v4243 = vpack.c.b16 %v2879, %v2875
    %v4244 = vpack.c.b16 %v2880, %v2876
    %v4245 = vpack.c.b16 %v2885, %v2881
    %v4246 = vpack.c.b16 %v2886, %v2882
    %v4247 = vpack.c.b16 %v2887, %v2883
    %v4248 = vpack.c.b16 %v2888, %v2884
    %v4249 = vpack.c.b16 %v2893, %v2889
    %v4250 = vpack.c.b16 %v2894, %v2890
    %v4251 = vpack.c.b16 %v2895, %v2891
    %v4252 = vpack.c.b16 %v2896, %v2892
    %v4253 = vpack.c.b16 %v2901, %v2897
    %v4254 = vpack.c.b16 %v2902, %v2898
    %v4255 = vpack.c.b16 %v2903, %v2899
    %v4256 = vpack.c.b16 %v2904, %v2900
    %v4257 = vpack.c.b16 %v2909, %v2905
    %v4258 = vpack.c.b16 %v2910, %v2906
    %v4259 = vpack.c.b16 %v2911, %v2907
    %v4260 = vpack.c.b16 %v2912, %v2908
    %v4261 = vpack.c.b16 %v2917, %v2913
    %v4262 = vpack.c.b16 %v2918, %v2914
    %v4263 = vpack.c.b16 %v2919, %v2915
    %v4264 = vpack.c.b16 %v2920, %v2916
    %v4265 = vpack.c.b16 %v2925, %v2921
    %v4266 = vpack.c.b16 %v2926, %v2922
    %v4267 = vpack.c.b16 %v2927, %v2923
    %v4268 = vpack.c.b16 %v2928, %v2924
    %v4269 = vpack.c.b16 %v2933, %v2929
    %v4270 = vpack.c.b16 %v2934, %v2930
    %v4271 = vpack.c.b16 %v2935, %v2931
    %v4272 = vpack.c.b16 %v2936, %v2932
    %v4273 = vpack.c.b16 %v2941, %v2937
    %v4274 = vpack.c.b16 %v2942, %v2938
    %v4275 = vpack.c.b16 %v2943, %v2939
    %v4276 = vpack.c.b16 %v2944, %v2940
    %v4277 = vpack.c.b16 %v2949, %v2945
    %v4278 = vpack.c.b16 %v2950, %v2946
    %v4279 = vpack.c.b16 %v2951, %v2947
    %v4280 = vpack.c.b16 %v2952, %v2948
    %v4281 = vpack.c.b16 %v2957, %v2953
    %v4282 = vpack.c.b16 %v2958, %v2954
    %v4283 = vpack.c.b16 %v2959, %v2955
    %v4284 = vpack.c.b16 %v2960, %v2956
    %v4285 = vpack.c.b16 %v2965, %v2961
    %v4286 = vpack.c.b16 %v2966, %v2962
    %v4287 = vpack.c.b16 %v2967, %v2963
    %v4288 = vpack.c.b16 %v2968, %v2964
    %v4289 = vpack.c.b16 %v2973, %v2969
    %v4290 = vpack.c.b16 %v2974, %v2970
    %v4291 = vpack.c.b16 %v2975, %v2971
    %v4292 = vpack.c.b16 %v2976, %v2972
    %v4293 = vpack.c.b16 %v2981, %v2977
    %v4294 = vpack.c.b16 %v2982, %v2978
    %v4295 = vpack.c.b16 %v2983, %v2979
    %v4296 = vpack.c.b16 %v2984, %v2980
    %v4297 = vpack.c.b16 %v2989, %v2985
    %v4298 = vpack.c.b16 %v2990, %v2986
    %v4299 = vpack.c.b16 %v2991, %v2987
    %v4300 = vpack.c.b16 %v2992, %v2988
    %v4301 = vpack.c.b16 %v2997, %v2993
    %v4302 = vpack.c.b16 %v2998, %v2994
    %v4303 = vpack.c.b16 %v2999, %v2995
    %v4304 = vpack.c.b16 %v3000, %v2996
    %v4305 = vpack.c.b16 %v3005, %v3001
    %v4306 = vpack.c.b16 %v3006, %v3002
    %v4307 = vpack.c.b16 %v3007, %v3003
    %v4308 = vpack.c.b16 %v3008, %v3004
    %v4309 = vpack.c.b16 %v3013, %v3009
    %v4310 = vpack.c.b16 %v3014, %v3010
    %v4311 = vpack.c.b16 %v3015, %v3011
    %v4312 = vpack.c.b16 %v3016, %v3012
    %v4313 = vpack.c.b16 %v3021, %v3017
    %v4314 = vpack.c.b16 %v3022, %v3018
    %v4315 = vpack.c.b16 %v3023, %v3019
    %v4316 = vpack.c.b16 %v3024, %v3020
    %v4317 = vpack.c.b16 %v3029, %v3025
    %v4318 = vpack.c.b16 %v3030, %v3026
    %v4319 = vpack.c.b16 %v3031, %v3027
    %v4320 = vpack.c.b16 %v3032, %v3028
    %v4321 = vpack.c.b16 %v3037, %v3033
    %v4322 = vpack.c.b16 %v3038, %v3034
    %v4323 = vpack.c.b16 %v3039, %v3035
    %v4324 = vpack.c.b16 %v3040, %v3036
    %v4325 = vpack.c.b16 %v3045, %v3041
    %v4326 = vpack.c.b16 %v3046, %v3042
    %v4327 = vpack.c.b16 %v3047, %v3043
    %v4328 = vpack.c.b16 %v3048, %v3044
    %v4329 = vpack.c.b16 %v3053, %v3049
    %v4330 = vpack.c.b16 %v3054, %v3050
    %v4331 = vpack.c.b16 %v3055, %v3051
    %v4332 = vpack.c.b16 %v3056, %v3052
    %v4333 = vpack.c.b16 %v3061, %v3057
    %v4334 = vpack.c.b16 %v3062, %v3058
    %v4335 = vpack.c.b16 %v3063, %v3059
    %v4336 = vpack.c.b16 %v3064, %v3060
    %v4337 = vpack.c.b16 %v3069, %v3065
    %v4338 = vpack.c.b16 %v3070, %v3066
    %v4339 = vpack.c.b16 %v3071, %v3067
    %v4340 = vpack.c.b16 %v3072, %v3068
    %v4341 = vpack.c.b16 %v3077, %v3073
    %v4342 = vpack.c.b16 %v3078, %v3074
    %v4343 = vpack.c.b16 %v3079, %v3075
    %v4344 = vpack.c.b16 %v3080, %v3076
    %v4345 = vpack.c.b16 %v3085, %v3081
    %v4346 = vpack.c.b16 %v3086, %v3082
    %v4347 = vpack.c.b16 %v3087, %v3083
    %v4348 = vpack.c.b16 %v3088, %v3084
    %v4349 = vpack.c.b16 %v3093, %v3089
    %v4350 = vpack.c.b16 %v3094, %v3090
    %v4351 = vpack.c.b16 %v3095, %v3091
    %v4352 = vpack.c.b16 %v3096, %v3092
    %v4353 = vpack.c.b16 %v3101, %v3097
    %v4354 = vpack.c.b16 %v3102, %v3098
    %v4355 = vpack.c.b16 %v3103, %v3099
    %v4356 = vpack.c.b16 %v3104, %v3100
    %v4357 = vpack.c.b16 %v3109, %v3105
    %v4358 = vpack.c.b16 %v3110, %v3106
    %v4359 = vpack.c.b16 %v3111, %v3107
    %v4360 = vpack.c.b16 %v3112, %v3108
    %v4361 = vpack.c.b16 %v3117, %v3113
    %v4362 = vpack.c.b16 %v3118, %v3114
    %v4363 = vpack.c.b16 %v3119, %v3115
    %v4364 = vpack.c.b16 %v3120, %v3116
    %v4365 = vpack.c.b16 %v3125, %v3121
    %v4366 = vpack.c.b16 %v3126, %v3122
    %v4367 = vpack.c.b16 %v3127, %v3123
    %v4368 = vpack.c.b16 %v3128, %v3124
    %v4369 = vpack.c.b16 %v3133, %v3129
    %v4370 = vpack.c.b16 %v3134, %v3130
    %v4371 = vpack.c.b16 %v3135, %v3131
    %v4372 = vpack.c.b16 %v3136, %v3132
    %v4373 = vpack.c.b16 %v3141, %v3137
    %v4374 = vpack.c.b16 %v3142, %v3138
    %v4375 = vpack.c.b16 %v3143, %v3139
    %v4376 = vpack.c.b16 %v3144, %v3140
    %v4377 = vpack.c.b16 %v3149, %v3145
    %v4378 = vpack.c.b16 %v3150, %v3146
    %v4379 = vpack.c.b16 %v3151, %v3147
    %v4380 = vpack.c.b16 %v3152, %v3148
    %v4381 = vpack.c.b16 %v3157, %v3153
    %v4382 = vpack.c.b16 %v3158, %v3154
    %v4383 = vpack.c.b16 %v3159, %v3155
    %v4384 = vpack.c.b16 %v3160, %v3156
    %v4385 = vpack.c.b16 %v3165, %v3161
    %v4386 = vpack.c.b16 %v3166, %v3162
    %v4387 = vpack.c.b16 %v3167, %v3163
    %v4388 = vpack.c.b16 %v3168, %v3164
    %v4389 = vpack.c.b16 %v3173, %v3169
    %v4390 = vpack.c.b16 %v3174, %v3170
    %v4391 = vpack.c.b16 %v3175, %v3171
    %v4392 = vpack.c.b16 %v3176, %v3172
    %v4393 = vpack.c.b16 %v3181, %v3177
    %v4394 = vpack.c.b16 %v3182, %v3178
    %v4395 = vpack.c.b16 %v3183, %v3179
    %v4396 = vpack.c.b16 %v3184, %v3180
    %v4397 = vpack.c.b16 %v3189, %v3185
    %v4398 = vpack.c.b16 %v3190, %v3186
    %v4399 = vpack.c.b16 %v3191, %v3187
    %v4400 = vpack.c.b16 %v3192, %v3188
    %v4401 = vpack.c.b16 %v3197, %v3193
    %v4402 = vpack.c.b16 %v3198, %v3194
    %v4403 = vpack.c.b16 %v3199, %v3195
    %v4404 = vpack.c.b16 %v3200, %v3196
    %v4405 = vpack.c.b16 %v3205, %v3201
    %v4406 = vpack.c.b16 %v3206, %v3202
    %v4407 = vpack.c.b16 %v3207, %v3203
    %v4408 = vpack.c.b16 %v3208, %v3204
    %v4409 = vpack.c.b16 %v3213, %v3209
    %v4410 = vpack.c.b16 %v3214, %v3210
    %v4411 = vpack.c.b16 %v3215, %v3211
    %v4412 = vpack.c.b16 %v3216, %v3212
    %v4413 = vpack.c.b16 %v3221, %v3217
    %v4414 = vpack.c.b16 %v3222, %v3218
    %v4415 = vpack.c.b16 %v3223, %v3219
    %v4416 = vpack.c.b16 %v3224, %v3220
    %v4417 = vpack.c.b16 %v3229, %v3225
    %v4418 = vpack.c.b16 %v3230, %v3226
    %v4419 = vpack.c.b16 %v3231, %v3227
    %v4420 = vpack.c.b16 %v3232, %v3228
    %v4421 = vpack.c.b16 %v3237, %v3233
    %v4422 = vpack.c.b16 %v3238, %v3234
    %v4423 = vpack.c.b16 %v3239, %v3235
    %v4424 = vpack.c.b16 %v3240, %v3236
    %v4425 = vpack.c.b16 %v3245, %v3241
    %v4426 = vpack.c.b16 %v3246, %v3242
    %v4427 = vpack.c.b16 %v3247, %v3243
    %v4428 = vpack.c.b16 %v3248, %v3244
    %v4429 = vpack.c.b16 %v3253, %v3249
    %v4430 = vpack.c.b16 %v3254, %v3250
    %v4431 = vpack.c.b16 %v3255, %v3251
    %v4432 = vpack.c.b16 %v3256, %v3252
    %v4433 = vpack.c.b16 %v3261, %v3257
    %v4434 = vpack.c.b16 %v3262, %v3258
    %v4435 = vpack.c.b16 %v3263, %v3259
    %v4436 = vpack.c.b16 %v3264, %v3260
    %v4437 = vpack.c.b16 %v3269, %v3265
    %v4438 = vpack.c.b16 %v3270, %v3266
    %v4439 = vpack.c.b16 %v3271, %v3267
    %v4440 = vpack.c.b16 %v3272, %v3268
    %v4441 = vpack.c.b16 %v3277, %v3273
    %v4442 = vpack.c.b16 %v3278, %v3274
    %v4443 = vpack.c.b16 %v3279, %v3275
    %v4444 = vpack.c.b16 %v3280, %v3276
    %v4445 = vpack.c.b16 %v3285, %v3281
    %v4446 = vpack.c.b16 %v3286, %v3282
    %v4447 = vpack.c.b16 %v3287, %v3283
    %v4448 = vpack.c.b16 %v3288, %v3284
    %v4449 = vpack.c.b16 %v3293, %v3289
    %v4450 = vpack.c.b16 %v3294, %v3290
    %v4451 = vpack.c.b16 %v3295, %v3291
    %v4452 = vpack.c.b16 %v3296, %v3292
    %v4453 = vpack.c.b16 %v3301, %v3297
    %v4454 = vpack.c.b16 %v3302, %v3298
    %v4455 = vpack.c.b16 %v3303, %v3299
    %v4456 = vpack.c.b16 %v3304, %v3300
    %v4457 = vpack.c.b16 %v3309, %v3305
    %v4458 = vpack.c.b16 %v3310, %v3306
    %v4459 = vpack.c.b16 %v3311, %v3307
    %v4460 = vpack.c.b16 %v3312, %v3308
    %v4461 = vpack.c.b16 %v3317, %v3313
    %v4462 = vpack.c.b16 %v3318, %v3314
    %v4463 = vpack.c.b16 %v3319, %v3315
    %v4464 = vpack.c.b16 %v3320, %v3316
    %v4465 = vpack.c.b16 %v3325, %v3321
    %v4466 = vpack.c.b16 %v3326, %v3322
    %v4467 = vpack.c.b16 %v3327, %v3323
    %v4468 = vpack.c.b16 %v3328, %v3324
    %v4469 = vpack.c.b16 %v3333, %v3329
    %v4470 = vpack.c.b16 %v3334, %v3330
    %v4471 = vpack.c.b16 %v3335, %v3331
    %v4472 = vpack.c.b16 %v3336, %v3332
    %v4473 = vpack.c.b16 %v3341, %v3337
    %v4474 = vpack.c.b16 %v3342, %v3338
    %v4475 = vpack.c.b16 %v3343, %v3339
    %v4476 = vpack.c.b16 %v3344, %v3340
    %v4477 = vpack.c.b16 %v3349, %v3345
    %v4478 = vpack.c.b16 %v3350, %v3346
    %v4479 = vpack.c.b16 %v3351, %v3347
    %v4480 = vpack.c.b16 %v3352, %v3348
    %v4481 = vpack.c.b16 %v3357, %v3353
    %v4482 = vpack.c.b16 %v3358, %v3354
    %v4483 = vpack.c.b16 %v3359, %v3355
    %v4484 = vpack.c.b16 %v3360, %v3356
    %v4485 = vpack.c.b16 %v3365, %v3361
    %v4486 = vpack.c.b16 %v3366, %v3362
    %v4487 = vpack.c.b16 %v3367, %v3363
    %v4488 = vpack.c.b16 %v3368, %v3364
    %v4489 = vpack.c.b16 %v3373, %v3369
    %v4490 = vpack.c.b16 %v3374, %v3370
    %v4491 = vpack.c.b16 %v3375, %v3371
    %v4492 = vpack.c.b16 %v3376, %v3372
    %v4493 = vpack.c.b16 %v3381, %v3377
    %v4494 = vpack.c.b16 %v3382, %v3378
    %v4495 = vpack.c.b16 %v3383, %v3379
    %v4496 = vpack.c.b16 %v3384, %v3380
    %v4497 = vpack.c.b16 %v3389, %v3385
    %v4498 = vpack.c.b16 %v3390, %v3386
    %v4499 = vpack.c.b16 %v3391, %v3387
    %v4500 = vpack.c.b16 %v3392, %v3388
    %v4501 = vpack.c.b16 %v3397, %v3393
    %v4502 = vpack.c.b16 %v3398, %v3394
    %v4503 = vpack.c.b16 %v3399, %v3395
    %v4504 = vpack.c.b16 %v3400, %v3396
    %v4505 = vpack.c.b16 %v3405, %v3401
    %v4506 = vpack.c.b16 %v3406, %v3402
    %v4507 = vpack.c.b16 %v3407, %v3403
    %v4508 = vpack.c.b16 %v3408, %v3404
    %v4509 = vpack.c.b16 %v3413, %v3409
    %v4510 = vpack.c.b16 %v3414, %v3410
    %v4511 = vpack.c.b16 %v3415, %v3411
    %v4512 = vpack.c.b16 %v3416, %v3412
    %v4513 = vpack.c.b16 %v3421, %v3417
    %v4514 = vpack.c.b16 %v3422, %v3418
    %v4515 = vpack.c.b16 %v3423, %v3419
    %v4516 = vpack.c.b16 %v3424, %v3420
    %v4517 = vpack.c.b16 %v3429, %v3425
    %v4518 = vpack.c.b16 %v3430, %v3426
    %v4519 = vpack.c.b16 %v3431, %v3427
    %v4520 = vpack.c.b16 %v3432, %v3428
    %v4521 = vpack.c.b16 %v3437, %v3433
    %v4522 = vpack.c.b16 %v3438, %v3434
    %v4523 = vpack.c.b16 %v3439, %v3435
    %v4524 = vpack.c.b16 %v3440, %v3436
    %v4525 = vpack.c.b16 %v3445, %v3441
    %v4526 = vpack.c.b16 %v3446, %v3442
    %v4527 = vpack.c.b16 %v3447, %v3443
    %v4528 = vpack.c.b16 %v3448, %v3444
    %v4529 = vpack.c.b16 %v3453, %v3449
    %v4530 = vpack.c.b16 %v3454, %v3450
    %v4531 = vpack.c.b16 %v3455, %v3451
    %v4532 = vpack.c.b16 %v3456, %v3452
    %v4533 = vpack.c.b16 %v3461, %v3457
    %v4534 = vpack.c.b16 %v3462, %v3458
    %v4535 = vpack.c.b16 %v3463, %v3459
    %v4536 = vpack.c.b16 %v3464, %v3460
    %v4537 = vpack.c.b16 %v3469, %v3465
    %v4538 = vpack.c.b16 %v3470, %v3466
    %v4539 = vpack.c.b16 %v3471, %v3467
    %v4540 = vpack.c.b16 %v3472, %v3468
    %v4541 = vpack.c.b16 %v3477, %v3473
    %v4542 = vpack.c.b16 %v3478, %v3474
    %v4543 = vpack.c.b16 %v3479, %v3475
    %v4544 = vpack.c.b16 %v3480, %v3476
    %v4545 = vpack.c.b16 %v3485, %v3481
    %v4546 = vpack.c.b16 %v3486, %v3482
    %v4547 = vpack.c.b16 %v3487, %v3483
    %v4548 = vpack.c.b16 %v3488, %v3484
    %v4549 = vpack.c.b16 %v3493, %v3489
    %v4550 = vpack.c.b16 %v3494, %v3490
    %v4551 = vpack.c.b16 %v3495, %v3491
    %v4552 = vpack.c.b16 %v3496, %v3492
    %v4553 = vpack.c.b16 %v3501, %v3497
    %v4554 = vpack.c.b16 %v3502, %v3498
    %v4555 = vpack.c.b16 %v3503, %v3499
    %v4556 = vpack.c.b16 %v3504, %v3500
    %v4557 = vpack.c.b16 %v3509, %v3505
    %v4558 = vpack.c.b16 %v3510, %v3506
    %v4559 = vpack.c.b16 %v3511, %v3507
    %v4560 = vpack.c.b16 %v3512, %v3508
    %v4561 = vpack.c.b16 %v3517, %v3513
    %v4562 = vpack.c.b16 %v3518, %v3514
    %v4563 = vpack.c.b16 %v3519, %v3515
    %v4564 = vpack.c.b16 %v3520, %v3516
    %v4565 = vpack.c.b16 %v3525, %v3521
    %v4566 = vpack.c.b16 %v3526, %v3522
    %v4567 = vpack.c.b16 %v3527, %v3523
    %v4568 = vpack.c.b16 %v3528, %v3524
    %v4569 = vpack.c.b16 %v3533, %v3529
    %v4570 = vpack.c.b16 %v3534, %v3530
    %v4571 = vpack.c.b16 %v3535, %v3531
    %v4572 = vpack.c.b16 %v3536, %v3532
    %v4573 = vpack.c.b16 %v3541, %v3537
    %v4574 = vpack.c.b16 %v3542, %v3538
    %v4575 = vpack.c.b16 %v3543, %v3539
    %v4576 = vpack.c.b16 %v3544, %v3540
    %v4577 = vpack.c.b16 %v3549, %v3545
    %v4578 = vpack.c.b16 %v3550, %v3546
    %v4579 = vpack.c.b16 %v3551, %v3547
    %v4580 = vpack.c.b16 %v3552, %v3548
    %v4581 = vpack.c.b16 %v3557, %v3553
    %v4582 = vpack.c.b16 %v3558, %v3554
    %v4583 = vpack.c.b16 %v3559, %v3555
    %v4584 = vpack.c.b16 %v3560, %v3556
    %v4585 = vpack.c.b16 %v3565, %v3561
    %v4586 = vpack.c.b16 %v3566, %v3562
    %v4587 = vpack.c.b16 %v3567, %v3563
    %v4588 = vpack.c.b16 %v3568, %v3564
    %v4589 = vpack.c.b16 %v3573, %v3569
    %v4590 = vpack.c.b16 %v3574, %v3570
    %v4591 = vpack.c.b16 %v3575, %v3571
    %v4592 = vpack.c.b16 %v3576, %v3572
    %v4593 = vpack.c.b16 %v3581, %v3577
    %v4594 = vpack.c.b16 %v3582, %v3578
    %v4595 = vpack.c.b16 %v3583, %v3579
    %v4596 = vpack.c.b16 %v3584, %v3580
    %v4597 = vpack.c.b16 %v3589, %v3585
    %v4598 = vpack.c.b16 %v3590, %v3586
    %v4599 = vpack.c.b16 %v3591, %v3587
    %v4600 = vpack.c.b16 %v3592, %v3588
    %v4601 = vpack.c.b16 %v3597, %v3593
    %v4602 = vpack.c.b16 %v3598, %v3594
    %v4603 = vpack.c.b16 %v3599, %v3595
    %v4604 = vpack.c.b16 %v3600, %v3596
    %v4605 = vpack.c.b16 %v3605, %v3601
    %v4606 = vpack.c.b16 %v3606, %v3602
    %v4607 = vpack.c.b16 %v3607, %v3603
    %v4608 = vpack.c.b16 %v3608, %v3604
    %v4609 = vpack.c.b16 %v3613, %v3609
    %v4610 = vpack.c.b16 %v3614, %v3610
    %v4611 = vpack.c.b16 %v3615, %v3611
    %v4612 = vpack.c.b16 %v3616, %v3612
    %v4613 = vpack.c.b16 %v3621, %v3617
    %v4614 = vpack.c.b16 %v3622, %v3618
    %v4615 = vpack.c.b16 %v3623, %v3619
    %v4616 = vpack.c.b16 %v3624, %v3620
    %v4617 = vpack.c.b16 %v3629, %v3625
    %v4618 = vpack.c.b16 %v3630, %v3626
    %v4619 = vpack.c.b16 %v3631, %v3627
    %v4620 = vpack.c.b16 %v3632, %v3628
    %v4621 = vpack.c.b16 %v3637, %v3633
    %v4622 = vpack.c.b16 %v3638, %v3634
    %v4623 = vpack.c.b16 %v3639, %v3635
    %v4624 = vpack.c.b16 %v3640, %v3636
    %v4625 = vpack.c.b16 %v3645, %v3641
    %v4626 = vpack.c.b16 %v3646, %v3642
    %v4627 = vpack.c.b16 %v3647, %v3643
    %v4628 = vpack.c.b16 %v3648, %v3644
    %v4629 = vpack.c.b16 %v3653, %v3649
    %v4630 = vpack.c.b16 %v3654, %v3650
    %v4631 = vpack.c.b16 %v3655, %v3651
    %v4632 = vpack.c.b16 %v3656, %v3652
    %v4633 = vpack.c.b16 %v3661, %v3657
    %v4634 = vpack.c.b16 %v3662, %v3658
    %v4635 = vpack.c.b16 %v3663, %v3659
    %v4636 = vpack.c.b16 %v3664, %v3660
    %v4637 = vpack.c.b16 %v3669, %v3665
    %v4638 = vpack.c.b16 %v3670, %v3666
    %v4639 = vpack.c.b16 %v3671, %v3667
    %v4640 = vpack.c.b16 %v3672, %v3668
    %v4641 = vpack.c.b16 %v3677, %v3673
    %v4642 = vpack.c.b16 %v3678, %v3674
    %v4643 = vpack.c.b16 %v3679, %v3675
    %v4644 = vpack.c.b16 %v3680, %v3676
    %v4645 = vpack.c.b16 %v3685, %v3681
    %v4646 = vpack.c.b16 %v3686, %v3682
    %v4647 = vpack.c.b16 %v3687, %v3683
    %v4648 = vpack.c.b16 %v3688, %v3684
    %v4649 = vpack.c.b16 %v3693, %v3689
    %v4650 = vpack.c.b16 %v3694, %v3690
    %v4651 = vpack.c.b16 %v3695, %v3691
    %v4652 = vpack.c.b16 %v3696, %v3692
    %v4653 = vpack.c.b16 %v3701, %v3697
    %v4654 = vpack.c.b16 %v3702, %v3698
    %v4655 = vpack.c.b16 %v3703, %v3699
    %v4656 = vpack.c.b16 %v3704, %v3700
    %v4657 = vpack.c.b16 %v3709, %v3705
    %v4658 = vpack.c.b16 %v3710, %v3706
    %v4659 = vpack.c.b16 %v3711, %v3707
    %v4660 = vpack.c.b16 %v3712, %v3708
    %v4661 = vpack.c.b16 %v3717, %v3713
    %v4662 = vpack.c.b16 %v3718, %v3714
    %v4663 = vpack.c.b16 %v3719, %v3715
    %v4664 = vpack.c.b16 %v3720, %v3716
    %v4665 = vpack.c.b16 %v3725, %v3721
    %v4666 = vpack.c.b16 %v3726, %v3722
    %v4667 = vpack.c.b16 %v3727, %v3723
    %v4668 = vpack.c.b16 %v3728, %v3724
    %v4669 = vpack.c.b16 %v3733, %v3729
    %v4670 = vpack.c.b16 %v3734, %v3730
    %v4671 = vpack.c.b16 %v3735, %v3731
    %v4672 = vpack.c.b16 %v3736, %v3732
    %v4673 = vpack.c.b16 %v3741, %v3737
    %v4674 = vpack.c.b16 %v3742, %v3738
    %v4675 = vpack.c.b16 %v3743, %v3739
    %v4676 = vpack.c.b16 %v3744, %v3740
    %v4677 = vpack.c.b16 %v3749, %v3745
    %v4678 = vpack.c.b16 %v3750, %v3746
    %v4679 = vpack.c.b16 %v3751, %v3747
    %v4680 = vpack.c.b16 %v3752, %v3748
    %v4681 = vpack.c.b16 %v3757, %v3753
    %v4682 = vpack.c.b16 %v3758, %v3754
    %v4683 = vpack.c.b16 %v3759, %v3755
    %v4684 = vpack.c.b16 %v3760, %v3756
    %v4685 = vpack.c.b16 %v3765, %v3761
    %v4686 = vpack.c.b16 %v3766, %v3762
    %v4687 = vpack.c.b16 %v3767, %v3763
    %v4688 = vpack.c.b16 %v3768, %v3764
    %v4689 = vpack.c.b16 %v3773, %v3769
    %v4690 = vpack.c.b16 %v3774, %v3770
    %v4691 = vpack.c.b16 %v3775, %v3771
    %v4692 = vpack.c.b16 %v3776, %v3772
    %v4693 = vpack.c.b16 %v3781, %v3777
    %v4694 = vpack.c.b16 %v3782, %v3778
    %v4695 = vpack.c.b16 %v3783, %v3779
    %v4696 = vpack.c.b16 %v3784, %v3780
    %v4697 = vpack.c.b16 %v3789, %v3785
    %v4698 = vpack.c.b16 %v3790, %v3786
    %v4699 = vpack.c.b16 %v3791, %v3787
    %v4700 = vpack.c.b16 %v3792, %v3788
    %v4701 = vpack.c.b16 %v3797, %v3793
    %v4702 = vpack.c.b16 %v3798, %v3794
    %v4703 = vpack.c.b16 %v3799, %v3795
    %v4704 = vpack.c.b16 %v3800, %v3796
    %v4705 = vpack.c.b16 %v3805, %v3801
    %v4706 = vpack.c.b16 %v3806, %v3802
    %v4707 = vpack.c.b16 %v3807, %v3803
    %v4708 = vpack.c.b16 %v3808, %v3804
    %v4709 = vpack.c.b16 %v3813, %v3809
    %v4710 = vpack.c.b16 %v3814, %v3810
    %v4711 = vpack.c.b16 %v3815, %v3811
    %v4712 = vpack.c.b16 %v3816, %v3812
    %5609 = vmatprep.subr.bf16.mxu0 %v3818
    %5610 = vmatpush1.bf16.msra.mxu0 %v3817
    %5611 = vmatprep.subr.bf16.mxu0 %v3822
    %5612 = vmatpush1.bf16.msra.mxu0 %v3821
    %5613 = vmatprep.subr.bf16.mxu0 %v3826
    %5614 = vmatpush1.bf16.msra.mxu0 %v3825
    %5615 = vmatprep.subr.bf16.mxu0 %v3830
    %5616 = vmatpush1.bf16.msra.mxu0 %v3829
    %5617 = vmatprep.subr.bf16.mxu0 %v3834
    %5618 = vmatpush1.bf16.msra.mxu0 %v3833
    %5619 = vmatprep.subr.bf16.mxu0 %v3838
    %5620 = vmatpush1.bf16.msra.mxu0 %v3837
    %5621 = vmatprep.subr.bf16.mxu0 %v3842
    %5622 = vmatpush1.bf16.msra.mxu0 %v3841
    %5623 = vmatprep.subr.bf16.mxu0 %v3846
    %5624 = vmatpush1.bf16.msra.mxu0 %v3845
    %5625 = vmatprep.subr.bf16.mxu0 %v3850
    %5626 = vmatpush1.bf16.msra.mxu0 %v3849
    %5627 = vmatprep.subr.bf16.mxu0 %v3854
    %5628 = vmatpush1.bf16.msra.mxu0 %v3853
    %5629 = vmatprep.subr.bf16.mxu0 %v3858
    %5630 = vmatpush1.bf16.msra.mxu0 %v3857
    %5631 = vmatprep.subr.bf16.mxu0 %v3862
    %5632 = vmatpush1.bf16.msra.mxu0 %v3861
    %5633 = vmatprep.subr.bf16.mxu0 %v3866
    %5634 = vmatpush1.bf16.msra.mxu0 %v3865
    %5635 = vmatprep.subr.bf16.mxu0 %v3870
    %5636 = vmatpush1.bf16.msra.mxu0 %v3869
    %5637 = vmatprep.subr.bf16.mxu0 %v3874
    %5638 = vmatpush1.bf16.msra.mxu0 %v3873
    %5639 = vmatprep.subr.bf16.mxu0 %v3878
    %5640 = vmatpush1.bf16.msra.mxu0 %v3877
    %5641 = vmatprep.mubr.bf16.mxu0 %v184
    %5642 = vmatmul.mubr.bf16.gmra.mrb[0].mxu0 %v183
    %v5643 = vpop.f32.mrb[0].mxu0
    %v5644 = vadd.f32 %v1112, %v5643
    %v5645 = vpop.f32.mrb[0].mxu0
    %v5646 = vadd.f32 %v1116, %v5645
    %v5647 = vpop.f32.mrb[0].mxu0
    %v5648 = vpop.f32.mrb[0].mxu0
    %5649 = vdwg.mxu0
    %5650 = vmatprep.subr.bf16.mxu0 %v3882
    %5651 = vmatpush1.bf16.msra.mxu0 %v3881
    %5652 = vmatprep.subr.bf16.mxu0 %v3886
    %5653 = vmatpush1.bf16.msra.mxu0 %v3885
    %5654 = vmatprep.subr.bf16.mxu0 %v3890
    %5655 = vmatpush1.bf16.msra.mxu0 %v3889
    %5656 = vmatprep.subr.bf16.mxu0 %v3894
    %5657 = vmatpush1.bf16.msra.mxu0 %v3893
    %5658 = vmatprep.subr.bf16.mxu0 %v3898
    %5659 = vmatpush1.bf16.msra.mxu0 %v3897
    %5660 = vmatprep.subr.bf16.mxu0 %v3902
    %5661 = vmatpush1.bf16.msra.mxu0 %v3901
    %5662 = vmatprep.subr.bf16.mxu0 %v3906
    %5663 = vmatpush1.bf16.msra.mxu0 %v3905
    %5664 = vmatprep.subr.bf16.mxu0 %v3910
    %5665 = vmatpush1.bf16.msra.mxu0 %v3909
    %5666 = vmatprep.subr.bf16.mxu0 %v3914
    %5667 = vmatpush1.bf16.msra.mxu0 %v3913
    %5668 = vmatprep.subr.bf16.mxu0 %v3918
    %5669 = vmatpush1.bf16.msra.mxu0 %v3917
    %5670 = vmatprep.subr.bf16.mxu0 %v3922
    %5671 = vmatpush1.bf16.msra.mxu0 %v3921
    %5672 = vmatprep.subr.bf16.mxu0 %v3926
    %5673 = vmatpush1.bf16.msra.mxu0 %v3925
    %5674 = vmatprep.subr.bf16.mxu0 %v3930
    %5675 = vmatpush1.bf16.msra.mxu0 %v3929
    %5676 = vmatprep.subr.bf16.mxu0 %v3934
    %5677 = vmatpush1.bf16.msra.mxu0 %v3933
    %5678 = vmatprep.subr.bf16.mxu0 %v3938
    %5679 = vmatpush1.bf16.msra.mxu0 %v3937
    %5680 = vmatprep.subr.bf16.mxu0 %v3942
    %5681 = vmatpush1.bf16.msra.mxu0 %v3941
    %5682 = vmatprep.mubr.bf16.mxu0 %v186
    %5683 = vmatmul.mubr.bf16.gmra.mrb[0].mxu0 %v185
    %v5684 = vpop.f32.mrb[0].mxu0
    %v5685 = vadd.f32 %v5644, %v5684
    %v5686 = vpop.f32.mrb[0].mxu0
    %v5687 = vadd.f32 %v5646, %v5686
    %v5688 = vpop.f32.mrb[0].mxu0
    %v5689 = vpop.f32.mrb[0].mxu0
    %5690 = vdwg.mxu0
    %5691 = vmatprep.subr.bf16.mxu0 %v3946
    %5692 = vmatpush1.bf16.msra.mxu0 %v3945
    %5693 = vmatprep.subr.bf16.mxu0 %v3950
    %5694 = vmatpush1.bf16.msra.mxu0 %v3949
    %5695 = vmatprep.subr.bf16.mxu0 %v3954
    %5696 = vmatpush1.bf16.msra.mxu0 %v3953
    %5697 = vmatprep.subr.bf16.mxu0 %v3958
    %5698 = vmatpush1.bf16.msra.mxu0 %v3957
    %5699 = vmatprep.subr.bf16.mxu0 %v3962
    %5700 = vmatpush1.bf16.msra.mxu0 %v3961
    %5701 = vmatprep.subr.bf16.mxu0 %v3966
    %5702 = vmatpush1.bf16.msra.mxu0 %v3965
    %5703 = vmatprep.subr.bf16.mxu0 %v3970
    %5704 = vmatpush1.bf16.msra.mxu0 %v3969
    %5705 = vmatprep.subr.bf16.mxu0 %v3974
    %5706 = vmatpush1.bf16.msra.mxu0 %v3973
    %5707 = vmatprep.subr.bf16.mxu0 %v3978
    %5708 = vmatpush1.bf16.msra.mxu0 %v3977
    %5709 = vmatprep.subr.bf16.mxu0 %v3982
    %5710 = vmatpush1.bf16.msra.mxu0 %v3981
    %5711 = vmatprep.subr.bf16.mxu0 %v3986
    %5712 = vmatpush1.bf16.msra.mxu0 %v3985
    %5713 = vmatprep.subr.bf16.mxu0 %v3990
    %5714 = vmatpush1.bf16.msra.mxu0 %v3989
    %5715 = vmatprep.subr.bf16.mxu0 %v3994
    %5716 = vmatpush1.bf16.msra.mxu0 %v3993
    %5717 = vmatprep.subr.bf16.mxu0 %v3998
    %5718 = vmatpush1.bf16.msra.mxu0 %v3997
    %5719 = vmatprep.subr.bf16.mxu0 %v4002
    %5720 = vmatpush1.bf16.msra.mxu0 %v4001
    %5721 = vmatprep.subr.bf16.mxu0 %v4006
    %5722 = vmatpush1.bf16.msra.mxu0 %v4005
    %5723 = vmatprep.mubr.bf16.mxu0 %v188
    %5724 = vmatmul.mubr.bf16.gmra.mrb[0].mxu0 %v187
    %v5725 = vpop.f32.mrb[0].mxu0
    %v5726 = vadd.f32 %v5685, %v5725
    %v5727 = vpop.f32.mrb[0].mxu0
    %v5728 = vadd.f32 %v5687, %v5727
    %v5729 = vpop.f32.mrb[0].mxu0
    %v5730 = vpop.f32.mrb[0].mxu0
    %5731 = vdwg.mxu0
    %5732 = vmatprep.subr.bf16.mxu0 %v4010
    %5733 = vmatpush1.bf16.msra.mxu0 %v4009
    %5734 = vmatprep.subr.bf16.mxu0 %v4014
    %5735 = vmatpush1.bf16.msra.mxu0 %v4013
    %5736 = vmatprep.subr.bf16.mxu0 %v4018
    %5737 = vmatpush1.bf16.msra.mxu0 %v4017
    %5738 = vmatprep.subr.bf16.mxu0 %v4022
    %5739 = vmatpush1.bf16.msra.mxu0 %v4021
    %5740 = vmatprep.subr.bf16.mxu0 %v4026
    %5741 = vmatpush1.bf16.msra.mxu0 %v4025
    %5742 = vmatprep.subr.bf16.mxu0 %v4030
    %5743 = vmatpush1.bf16.msra.mxu0 %v4029
    %5744 = vmatprep.subr.bf16.mxu0 %v4034
    %5745 = vmatpush1.bf16.msra.mxu0 %v4033
    %5746 = vmatprep.subr.bf16.mxu0 %v4038
    %5747 = vmatpush1.bf16.msra.mxu0 %v4037
    %5748 = vmatprep.subr.bf16.mxu0 %v4042
    %5749 = vmatpush1.bf16.msra.mxu0 %v4041
    %5750 = vmatprep.subr.bf16.mxu0 %v4046
    %5751 = vmatpush1.bf16.msra.mxu0 %v4045
    %5752 = vmatprep.subr.bf16.mxu0 %v4050
    %5753 = vmatpush1.bf16.msra.mxu0 %v4049
    %5754 = vmatprep.subr.bf16.mxu0 %v4054
    %5755 = vmatpush1.bf16.msra.mxu0 %v4053
    %5756 = vmatprep.subr.bf16.mxu0 %v4058
    %5757 = vmatpush1.bf16.msra.mxu0 %v4057
    %5758 = vmatprep.subr.bf16.mxu0 %v4062
    %5759 = vmatpush1.bf16.msra.mxu0 %v4061
    %5760 = vmatprep.subr.bf16.mxu0 %v4066
    %5761 = vmatpush1.bf16.msra.mxu0 %v4065
    %5762 = vmatprep.subr.bf16.mxu0 %v4070
    %5763 = vmatpush1.bf16.msra.mxu0 %v4069
    %5764 = vmatprep.mubr.bf16.mxu0 %v190
    %5765 = vmatmul.mubr.bf16.gmra.mrb[0].mxu0 %v189
    %v5766 = vpop.f32.mrb[0].mxu0
    %v5767 = vadd.f32 %v5726, %v5766
    %v5768 = vpop.f32.mrb[0].mxu0
    %v5769 = vadd.f32 %v5728, %v5768
    %v5770 = vpop.f32.mrb[0].mxu0
    %v5771 = vpop.f32.mrb[0].mxu0
    %5772 = vdwg.mxu0
    %5773 = vmatprep.subr.bf16.mxu0 %v4074
    %5774 = vmatpush1.bf16.msra.mxu0 %v4073
    %5775 = vmatprep.subr.bf16.mxu0 %v4078
    %5776 = vmatpush1.bf16.msra.mxu0 %v4077
    %5777 = vmatprep.subr.bf16.mxu0 %v4082
    %5778 = vmatpush1.bf16.msra.mxu0 %v4081
    %5779 = vmatprep.subr.bf16.mxu0 %v4086
    %5780 = vmatpush1.bf16.msra.mxu0 %v4085
    %5781 = vmatprep.subr.bf16.mxu0 %v4090
    %5782 = vmatpush1.bf16.msra.mxu0 %v4089
    %5783 = vmatprep.subr.bf16.mxu0 %v4094
    %5784 = vmatpush1.bf16.msra.mxu0 %v4093
    %5785 = vmatprep.subr.bf16.mxu0 %v4098
    %5786 = vmatpush1.bf16.msra.mxu0 %v4097
    %5787 = vmatprep.subr.bf16.mxu0 %v4102
    %5788 = vmatpush1.bf16.msra.mxu0 %v4101
    %5789 = vmatprep.subr.bf16.mxu0 %v4106
    %5790 = vmatpush1.bf16.msra.mxu0 %v4105
    %5791 = vmatprep.subr.bf16.mxu0 %v4110
    %5792 = vmatpush1.bf16.msra.mxu0 %v4109
    %5793 = vmatprep.subr.bf16.mxu0 %v4114
    %5794 = vmatpush1.bf16.msra.mxu0 %v4113
    %5795 = vmatprep.subr.bf16.mxu0 %v4118
    %5796 = vmatpush1.bf16.msra.mxu0 %v4117
    %5797 = vmatprep.subr.bf16.mxu0 %v4122
    %5798 = vmatpush1.bf16.msra.mxu0 %v4121
    %5799 = vmatprep.subr.bf16.mxu0 %v4126
    %5800 = vmatpush1.bf16.msra.mxu0 %v4125
    %5801 = vmatprep.subr.bf16.mxu0 %v4130
    %5802 = vmatpush1.bf16.msra.mxu0 %v4129
    %5803 = vmatprep.subr.bf16.mxu0 %v4134
    %5804 = vmatpush1.bf16.msra.mxu0 %v4133
    %5805 = vmatprep.mubr.bf16.mxu0 %v192
    %5806 = vmatmul.mubr.bf16.gmra.mrb[0].mxu0 %v191
    %v5807 = vpop.f32.mrb[0].mxu0
    %v5808 = vadd.f32 %v5767, %v5807
    %v5809 = vpop.f32.mrb[0].mxu0
    %v5810 = vadd.f32 %v5769, %v5809
    %v5811 = vpop.f32.mrb[0].mxu0
    %v5812 = vpop.f32.mrb[0].mxu0
    %5813 = vdwg.mxu0
    %5814 = vmatprep.subr.bf16.mxu0 %v4138
    %5815 = vmatpush1.bf16.msra.mxu0 %v4137
    %5816 = vmatprep.subr.bf16.mxu0 %v4142
    %5817 = vmatpush1.bf16.msra.mxu0 %v4141
    %5818 = vmatprep.subr.bf16.mxu0 %v4146
    %5819 = vmatpush1.bf16.msra.mxu0 %v4145
    %5820 = vmatprep.subr.bf16.mxu0 %v4150
    %5821 = vmatpush1.bf16.msra.mxu0 %v4149
    %5822 = vmatprep.subr.bf16.mxu0 %v4154
    %5823 = vmatpush1.bf16.msra.mxu0 %v4153
    %5824 = vmatprep.subr.bf16.mxu0 %v4158
    %5825 = vmatpush1.bf16.msra.mxu0 %v4157
    %5826 = vmatprep.subr.bf16.mxu0 %v4162
    %5827 = vmatpush1.bf16.msra.mxu0 %v4161
    %5828 = vmatprep.subr.bf16.mxu0 %v4166
    %5829 = vmatpush1.bf16.msra.mxu0 %v4165
    %5830 = vmatprep.subr.bf16.mxu0 %v4170
    %5831 = vmatpush1.bf16.msra.mxu0 %v4169
    %5832 = vmatprep.subr.bf16.mxu0 %v4174
    %5833 = vmatpush1.bf16.msra.mxu0 %v4173
    %5834 = vmatprep.subr.bf16.mxu0 %v4178
    %5835 = vmatpush1.bf16.msra.mxu0 %v4177
    %5836 = vmatprep.subr.bf16.mxu0 %v4182
    %5837 = vmatpush1.bf16.msra.mxu0 %v4181
    %5838 = vmatprep.subr.bf16.mxu0 %v4186
    %5839 = vmatpush1.bf16.msra.mxu0 %v4185
    %5840 = vmatprep.subr.bf16.mxu0 %v4190
    %5841 = vmatpush1.bf16.msra.mxu0 %v4189
    %5842 = vmatprep.subr.bf16.mxu0 %v4194
    %5843 = vmatpush1.bf16.msra.mxu0 %v4193
    %5844 = vmatprep.subr.bf16.mxu0 %v4198
    %5845 = vmatpush1.bf16.msra.mxu0 %v4197
    %5846 = vmatprep.mubr.bf16.mxu0 %v194
    %5847 = vmatmul.mubr.bf16.gmra.mrb[0].mxu0 %v193
    %v5848 = vpop.f32.mrb[0].mxu0
    %v5849 = vadd.f32 %v5808, %v5848
    %v5850 = vpop.f32.mrb[0].mxu0
    %v5851 = vadd.f32 %v5810, %v5850
    %v5852 = vpop.f32.mrb[0].mxu0
    %v5853 = vpop.f32.mrb[0].mxu0
    %5854 = vdwg.mxu0
    %5855 = vmatprep.subr.bf16.mxu0 %v4202
    %5856 = vmatpush1.bf16.msra.mxu0 %v4201
    %5857 = vmatprep.subr.bf16.mxu0 %v4206
    %5858 = vmatpush1.bf16.msra.mxu0 %v4205
    %5859 = vmatprep.subr.bf16.mxu0 %v4210
    %5860 = vmatpush1.bf16.msra.mxu0 %v4209
    %5861 = vmatprep.subr.bf16.mxu0 %v4214
    %5862 = vmatpush1.bf16.msra.mxu0 %v4213
    %5863 = vmatprep.subr.bf16.mxu0 %v4218
    %5864 = vmatpush1.bf16.msra.mxu0 %v4217
    %5865 = vmatprep.subr.bf16.mxu0 %v4222
    %5866 = vmatpush1.bf16.msra.mxu0 %v4221
    %5867 = vmatprep.subr.bf16.mxu0 %v4226
    %5868 = vmatpush1.bf16.msra.mxu0 %v4225
    %5869 = vmatprep.subr.bf16.mxu0 %v4230
    %5870 = vmatpush1.bf16.msra.mxu0 %v4229
    %5871 = vmatprep.subr.bf16.mxu0 %v4234
    %5872 = vmatpush1.bf16.msra.mxu0 %v4233
    %5873 = vmatprep.subr.bf16.mxu0 %v4238
    %5874 = vmatpush1.bf16.msra.mxu0 %v4237
    %5875 = vmatprep.subr.bf16.mxu0 %v4242
    %5876 = vmatpush1.bf16.msra.mxu0 %v4241
    %5877 = vmatprep.subr.bf16.mxu0 %v4246
    %5878 = vmatpush1.bf16.msra.mxu0 %v4245
    %5879 = vmatprep.subr.bf16.mxu0 %v4250
    %5880 = vmatpush1.bf16.msra.mxu0 %v4249
    %5881 = vmatprep.subr.bf16.mxu0 %v4254
    %5882 = vmatpush1.bf16.msra.mxu0 %v4253
    %5883 = vmatprep.subr.bf16.mxu0 %v4258
    %5884 = vmatpush1.bf16.msra.mxu0 %v4257
    %5885 = vmatprep.subr.bf16.mxu0 %v4262
    %5886 = vmatpush1.bf16.msra.mxu0 %v4261
    %5887 = vmatprep.mubr.bf16.mxu0 %v196
    %5888 = vmatmul.mubr.bf16.gmra.mrb[0].mxu0 %v195
    %v5889 = vpop.f32.mrb[0].mxu0
    %v5890 = vadd.f32 %v5849, %v5889
    %v5891 = vpop.f32.mrb[0].mxu0
    %v5892 = vadd.f32 %v5851, %v5891
    %v5893 = vpop.f32.mrb[0].mxu0
    %v5894 = vpop.f32.mrb[0].mxu0
    %5895 = vdwg.mxu0
    %5896 = vmatprep.subr.bf16.mxu0 %v4266
    %5897 = vmatpush1.bf16.msra.mxu0 %v4265
    %5898 = vmatprep.subr.bf16.mxu0 %v4270
    %5899 = vmatpush1.bf16.msra.mxu0 %v4269
    %5900 = vmatprep.subr.bf16.mxu0 %v4274
    %5901 = vmatpush1.bf16.msra.mxu0 %v4273
    %5902 = vmatprep.subr.bf16.mxu0 %v4278
    %5903 = vmatpush1.bf16.msra.mxu0 %v4277
    %5904 = vmatprep.subr.bf16.mxu0 %v4282
    %5905 = vmatpush1.bf16.msra.mxu0 %v4281
    %5906 = vmatprep.subr.bf16.mxu0 %v4286
    %5907 = vmatpush1.bf16.msra.mxu0 %v4285
    %5908 = vmatprep.subr.bf16.mxu0 %v4290
    %5909 = vmatpush1.bf16.msra.mxu0 %v4289
    %5910 = vmatprep.subr.bf16.mxu0 %v4294
    %5911 = vmatpush1.bf16.msra.mxu0 %v4293
    %5912 = vmatprep.subr.bf16.mxu0 %v4298
    %5913 = vmatpush1.bf16.msra.mxu0 %v4297
    %5914 = vmatprep.subr.bf16.mxu0 %v4302
    %5915 = vmatpush1.bf16.msra.mxu0 %v4301
    %5916 = vmatprep.subr.bf16.mxu0 %v4306
    %5917 = vmatpush1.bf16.msra.mxu0 %v4305
    %5918 = vmatprep.subr.bf16.mxu0 %v4310
    %5919 = vmatpush1.bf16.msra.mxu0 %v4309
    %5920 = vmatprep.subr.bf16.mxu0 %v4314
    %5921 = vmatpush1.bf16.msra.mxu0 %v4313
    %5922 = vmatprep.subr.bf16.mxu0 %v4318
    %5923 = vmatpush1.bf16.msra.mxu0 %v4317
    %5924 = vmatprep.subr.bf16.mxu0 %v4322
    %5925 = vmatpush1.bf16.msra.mxu0 %v4321
    %5926 = vmatprep.subr.bf16.mxu0 %v4326
    %5927 = vmatpush1.bf16.msra.mxu0 %v4325
    %5928 = vmatprep.mubr.bf16.mxu0 %v198
    %5929 = vmatmul.mubr.bf16.gmra.mrb[0].mxu0 %v197
    %v5930 = vpop.f32.mrb[0].mxu0
    %v5931 = vadd.f32 %v5890, %v5930
    %v5932 = vpop.f32.mrb[0].mxu0
    %v5933 = vadd.f32 %v5892, %v5932
    %v5934 = vpop.f32.mrb[0].mxu0
    %v5935 = vpop.f32.mrb[0].mxu0
    %5936 = vdwg.mxu0
    %5937 = vmatprep.subr.bf16.mxu0 %v4330
    %5938 = vmatpush1.bf16.msra.mxu0 %v4329
    %5939 = vmatprep.subr.bf16.mxu0 %v4334
    %5940 = vmatpush1.bf16.msra.mxu0 %v4333
    %5941 = vmatprep.subr.bf16.mxu0 %v4338
    %5942 = vmatpush1.bf16.msra.mxu0 %v4337
    %5943 = vmatprep.subr.bf16.mxu0 %v4342
    %5944 = vmatpush1.bf16.msra.mxu0 %v4341
    %5945 = vmatprep.subr.bf16.mxu0 %v4346
    %5946 = vmatpush1.bf16.msra.mxu0 %v4345
    %5947 = vmatprep.subr.bf16.mxu0 %v4350
    %5948 = vmatpush1.bf16.msra.mxu0 %v4349
    %5949 = vmatprep.subr.bf16.mxu0 %v4354
    %5950 = vmatpush1.bf16.msra.mxu0 %v4353
    %5951 = vmatprep.subr.bf16.mxu0 %v4358
    %5952 = vmatpush1.bf16.msra.mxu0 %v4357
    %5953 = vmatprep.subr.bf16.mxu0 %v4362
    %5954 = vmatpush1.bf16.msra.mxu0 %v4361
    %5955 = vmatprep.subr.bf16.mxu0 %v4366
    %5956 = vmatpush1.bf16.msra.mxu0 %v4365
    %5957 = vmatprep.subr.bf16.mxu0 %v4370
    %5958 = vmatpush1.bf16.msra.mxu0 %v4369
    %5959 = vmatprep.subr.bf16.mxu0 %v4374
    %5960 = vmatpush1.bf16.msra.mxu0 %v4373
    %5961 = vmatprep.subr.bf16.mxu0 %v4378
    %5962 = vmatpush1.bf16.msra.mxu0 %v4377
    %5963 = vmatprep.subr.bf16.mxu0 %v4382
    %5964 = vmatpush1.bf16.msra.mxu0 %v4381
    %5965 = vmatprep.subr.bf16.mxu0 %v4386
    %5966 = vmatpush1.bf16.msra.mxu0 %v4385
    %5967 = vmatprep.subr.bf16.mxu0 %v4390
    %5968 = vmatpush1.bf16.msra.mxu0 %v4389
    %5969 = vmatprep.mubr.bf16.mxu0 %v200
    %5970 = vmatmul.mubr.bf16.gmra.mrb[0].mxu0 %v199
    %v5971 = vpop.f32.mrb[0].mxu0
    %v5972 = vadd.f32 %v5931, %v5971
    %v5973 = vpop.f32.mrb[0].mxu0
    %v5974 = vadd.f32 %v5933, %v5973
    %v5975 = vpop.f32.mrb[0].mxu0
    %v5976 = vpop.f32.mrb[0].mxu0
    %5977 = vdwg.mxu0
    %5978 = vmatprep.subr.bf16.mxu0 %v4394
    %5979 = vmatpush1.bf16.msra.mxu0 %v4393
    %5980 = vmatprep.subr.bf16.mxu0 %v4398
    %5981 = vmatpush1.bf16.msra.mxu0 %v4397
    %5982 = vmatprep.subr.bf16.mxu0 %v4402
    %5983 = vmatpush1.bf16.msra.mxu0 %v4401
    %5984 = vmatprep.subr.bf16.mxu0 %v4406
    %5985 = vmatpush1.bf16.msra.mxu0 %v4405
    %5986 = vmatprep.subr.bf16.mxu0 %v4410
    %5987 = vmatpush1.bf16.msra.mxu0 %v4409
    %5988 = vmatprep.subr.bf16.mxu0 %v4414
    %5989 = vmatpush1.bf16.msra.mxu0 %v4413
    %5990 = vmatprep.subr.bf16.mxu0 %v4418
    %5991 = vmatpush1.bf16.msra.mxu0 %v4417
    %5992 = vmatprep.subr.bf16.mxu0 %v4422
    %5993 = vmatpush1.bf16.msra.mxu0 %v4421
    %5994 = vmatprep.subr.bf16.mxu0 %v4426
    %5995 = vmatpush1.bf16.msra.mxu0 %v4425
    %5996 = vmatprep.subr.bf16.mxu0 %v4430
    %5997 = vmatpush1.bf16.msra.mxu0 %v4429
    %5998 = vmatprep.subr.bf16.mxu0 %v4434
    %5999 = vmatpush1.bf16.msra.mxu0 %v4433
    %6000 = vmatprep.subr.bf16.mxu0 %v4438
    %6001 = vmatpush1.bf16.msra.mxu0 %v4437
    %6002 = vmatprep.subr.bf16.mxu0 %v4442
    %6003 = vmatpush1.bf16.msra.mxu0 %v4441
    %6004 = vmatprep.subr.bf16.mxu0 %v4446
    %6005 = vmatpush1.bf16.msra.mxu0 %v4445
    %6006 = vmatprep.subr.bf16.mxu0 %v4450
    %6007 = vmatpush1.bf16.msra.mxu0 %v4449
    %6008 = vmatprep.subr.bf16.mxu0 %v4454
    %6009 = vmatpush1.bf16.msra.mxu0 %v4453
    %6010 = vmatprep.mubr.bf16.mxu0 %v202
    %6011 = vmatmul.mubr.bf16.gmra.mrb[0].mxu0 %v201
    %v6012 = vpop.f32.mrb[0].mxu0
    %v6013 = vadd.f32 %v5972, %v6012
    %v6014 = vpop.f32.mrb[0].mxu0
    %v6015 = vadd.f32 %v5974, %v6014
    %v6016 = vpop.f32.mrb[0].mxu0
    %v6017 = vpop.f32.mrb[0].mxu0
    %6018 = vdwg.mxu0
    %6019 = vmatprep.subr.bf16.mxu0 %v4458
    %6020 = vmatpush1.bf16.msra.mxu0 %v4457
    %6021 = vmatprep.subr.bf16.mxu0 %v4462
    %6022 = vmatpush1.bf16.msra.mxu0 %v4461
    %6023 = vmatprep.subr.bf16.mxu0 %v4466
    %6024 = vmatpush1.bf16.msra.mxu0 %v4465
    %6025 = vmatprep.subr.bf16.mxu0 %v4470
    %6026 = vmatpush1.bf16.msra.mxu0 %v4469
    %6027 = vmatprep.subr.bf16.mxu0 %v4474
    %6028 = vmatpush1.bf16.msra.mxu0 %v4473
    %6029 = vmatprep.subr.bf16.mxu0 %v4478
    %6030 = vmatpush1.bf16.msra.mxu0 %v4477
    %6031 = vmatprep.subr.bf16.mxu0 %v4482
    %6032 = vmatpush1.bf16.msra.mxu0 %v4481
    %6033 = vmatprep.subr.bf16.mxu0 %v4486
    %6034 = vmatpush1.bf16.msra.mxu0 %v4485
    %6035 = vmatprep.subr.bf16.mxu0 %v4490
    %6036 = vmatpush1.bf16.msra.mxu0 %v4489
    %6037 = vmatprep.subr.bf16.mxu0 %v4494
    %6038 = vmatpush1.bf16.msra.mxu0 %v4493
    %6039 = vmatprep.subr.bf16.mxu0 %v4498
    %6040 = vmatpush1.bf16.msra.mxu0 %v4497
    %6041 = vmatprep.subr.bf16.mxu0 %v4502
    %6042 = vmatpush1.bf16.msra.mxu0 %v4501
    %6043 = vmatprep.subr.bf16.mxu0 %v4506
    %6044 = vmatpush1.bf16.msra.mxu0 %v4505
    %6045 = vmatprep.subr.bf16.mxu0 %v4510
    %6046 = vmatpush1.bf16.msra.mxu0 %v4509
    %6047 = vmatprep.subr.bf16.mxu0 %v4514
    %6048 = vmatpush1.bf16.msra.mxu0 %v4513
    %6049 = vmatprep.subr.bf16.mxu0 %v4518
    %6050 = vmatpush1.bf16.msra.mxu0 %v4517
    %6051 = vmatprep.mubr.bf16.mxu0 %v204
    %6052 = vmatmul.mubr.bf16.gmra.mrb[0].mxu0 %v203
    %v6053 = vpop.f32.mrb[0].mxu0
    %v6054 = vadd.f32 %v6013, %v6053
    %v6055 = vpop.f32.mrb[0].mxu0
    %v6056 = vadd.f32 %v6015, %v6055
    %v6057 = vpop.f32.mrb[0].mxu0
    %v6058 = vpop.f32.mrb[0].mxu0
    %6059 = vdwg.mxu0
    %6060 = vmatprep.subr.bf16.mxu0 %v4522
    %6061 = vmatpush1.bf16.msra.mxu0 %v4521
    %6062 = vmatprep.subr.bf16.mxu0 %v4526
    %6063 = vmatpush1.bf16.msra.mxu0 %v4525
    %6064 = vmatprep.subr.bf16.mxu0 %v4530
    %6065 = vmatpush1.bf16.msra.mxu0 %v4529
    %6066 = vmatprep.subr.bf16.mxu0 %v4534
    %6067 = vmatpush1.bf16.msra.mxu0 %v4533
    %6068 = vmatprep.subr.bf16.mxu0 %v4538
    %6069 = vmatpush1.bf16.msra.mxu0 %v4537
    %6070 = vmatprep.subr.bf16.mxu0 %v4542
    %6071 = vmatpush1.bf16.msra.mxu0 %v4541
    %6072 = vmatprep.subr.bf16.mxu0 %v4546
    %6073 = vmatpush1.bf16.msra.mxu0 %v4545
    %6074 = vmatprep.subr.bf16.mxu0 %v4550
    %6075 = vmatpush1.bf16.msra.mxu0 %v4549
    %6076 = vmatprep.subr.bf16.mxu0 %v4554
    %6077 = vmatpush1.bf16.msra.mxu0 %v4553
    %6078 = vmatprep.subr.bf16.mxu0 %v4558
    %6079 = vmatpush1.bf16.msra.mxu0 %v4557
    %6080 = vmatprep.subr.bf16.mxu0 %v4562
    %6081 = vmatpush1.bf16.msra.mxu0 %v4561
    %6082 = vmatprep.subr.bf16.mxu0 %v4566
    %6083 = vmatpush1.bf16.msra.mxu0 %v4565
    %6084 = vmatprep.subr.bf16.mxu0 %v4570
    %6085 = vmatpush1.bf16.msra.mxu0 %v4569
    %6086 = vmatprep.subr.bf16.mxu0 %v4574
    %6087 = vmatpush1.bf16.msra.mxu0 %v4573
    %6088 = vmatprep.subr.bf16.mxu0 %v4578
    %6089 = vmatpush1.bf16.msra.mxu0 %v4577
    %6090 = vmatprep.subr.bf16.mxu0 %v4582
    %6091 = vmatpush1.bf16.msra.mxu0 %v4581
    %6092 = vmatprep.mubr.bf16.mxu0 %v206
    %6093 = vmatmul.mubr.bf16.gmra.mrb[0].mxu0 %v205
    %v6094 = vpop.f32.mrb[0].mxu0
    %v6095 = vadd.f32 %v6054, %v6094
    %v6096 = vpop.f32.mrb[0].mxu0
    %v6097 = vadd.f32 %v6056, %v6096
    %v6098 = vpop.f32.mrb[0].mxu0
    %v6099 = vpop.f32.mrb[0].mxu0
    %6100 = vdwg.mxu0
    %6101 = vmatprep.subr.bf16.mxu0 %v4586
    %6102 = vmatpush1.bf16.msra.mxu0 %v4585
    %6103 = vmatprep.subr.bf16.mxu0 %v4590
    %6104 = vmatpush1.bf16.msra.mxu0 %v4589
    %6105 = vmatprep.subr.bf16.mxu0 %v4594
    %6106 = vmatpush1.bf16.msra.mxu0 %v4593
    %6107 = vmatprep.subr.bf16.mxu0 %v4598
    %6108 = vmatpush1.bf16.msra.mxu0 %v4597
    %6109 = vmatprep.subr.bf16.mxu0 %v4602
    %6110 = vmatpush1.bf16.msra.mxu0 %v4601
    %6111 = vmatprep.subr.bf16.mxu0 %v4606
    %6112 = vmatpush1.bf16.msra.mxu0 %v4605
    %6113 = vmatprep.subr.bf16.mxu0 %v4610
    %6114 = vmatpush1.bf16.msra.mxu0 %v4609
    %6115 = vmatprep.subr.bf16.mxu0 %v4614
    %6116 = vmatpush1.bf16.msra.mxu0 %v4613
    %6117 = vmatprep.subr.bf16.mxu0 %v4618
    %6118 = vmatpush1.bf16.msra.mxu0 %v4617
    %6119 = vmatprep.subr.bf16.mxu0 %v4622
    %6120 = vmatpush1.bf16.msra.mxu0 %v4621
    %6121 = vmatprep.subr.bf16.mxu0 %v4626
    %6122 = vmatpush1.bf16.msra.mxu0 %v4625
    %6123 = vmatprep.subr.bf16.mxu0 %v4630
    %6124 = vmatpush1.bf16.msra.mxu0 %v4629
    %6125 = vmatprep.subr.bf16.mxu0 %v4634
    %6126 = vmatpush1.bf16.msra.mxu0 %v4633
    %6127 = vmatprep.subr.bf16.mxu0 %v4638
    %6128 = vmatpush1.bf16.msra.mxu0 %v4637
    %6129 = vmatprep.subr.bf16.mxu0 %v4642
    %6130 = vmatpush1.bf16.msra.mxu0 %v4641
    %6131 = vmatprep.subr.bf16.mxu0 %v4646
    %6132 = vmatpush1.bf16.msra.mxu0 %v4645
    %6133 = vmatprep.mubr.bf16.mxu0 %v208
    %6134 = vmatmul.mubr.bf16.gmra.mrb[0].mxu0 %v207
    %v6135 = vpop.f32.mrb[0].mxu0
    %v6136 = vadd.f32 %v6095, %v6135
    %v6137 = vpop.f32.mrb[0].mxu0
    %v6138 = vadd.f32 %v6097, %v6137
    %v6139 = vpop.f32.mrb[0].mxu0
    %v6140 = vpop.f32.mrb[0].mxu0
    %6141 = vdwg.mxu0
    %6142 = vmatprep.subr.bf16.mxu0 %v4650
    %6143 = vmatpush1.bf16.msra.mxu0 %v4649
    %6144 = vmatprep.subr.bf16.mxu0 %v4654
    %6145 = vmatpush1.bf16.msra.mxu0 %v4653
    %6146 = vmatprep.subr.bf16.mxu0 %v4658
    %6147 = vmatpush1.bf16.msra.mxu0 %v4657
    %6148 = vmatprep.subr.bf16.mxu0 %v4662
    %6149 = vmatpush1.bf16.msra.mxu0 %v4661
    %6150 = vmatprep.subr.bf16.mxu0 %v4666
    %6151 = vmatpush1.bf16.msra.mxu0 %v4665
    %6152 = vmatprep.subr.bf16.mxu0 %v4670
    %6153 = vmatpush1.bf16.msra.mxu0 %v4669
    %6154 = vmatprep.subr.bf16.mxu0 %v4674
    %6155 = vmatpush1.bf16.msra.mxu0 %v4673
    %6156 = vmatprep.subr.bf16.mxu0 %v4678
    %6157 = vmatpush1.bf16.msra.mxu0 %v4677
    %6158 = vmatprep.subr.bf16.mxu0 %v4682
    %6159 = vmatpush1.bf16.msra.mxu0 %v4681
    %6160 = vmatprep.subr.bf16.mxu0 %v4686
    %6161 = vmatpush1.bf16.msra.mxu0 %v4685
    %6162 = vmatprep.subr.bf16.mxu0 %v4690
    %6163 = vmatpush1.bf16.msra.mxu0 %v4689
    %6164 = vmatprep.subr.bf16.mxu0 %v4694
    %6165 = vmatpush1.bf16.msra.mxu0 %v4693
    %6166 = vmatprep.subr.bf16.mxu0 %v4698
    %6167 = vmatpush1.bf16.msra.mxu0 %v4697
    %6168 = vmatprep.subr.bf16.mxu0 %v4702
    %6169 = vmatpush1.bf16.msra.mxu0 %v4701
    %6170 = vmatprep.subr.bf16.mxu0 %v4706
    %6171 = vmatpush1.bf16.msra.mxu0 %v4705
    %6172 = vmatprep.subr.bf16.mxu0 %v4710
    %6173 = vmatpush1.bf16.msra.mxu0 %v4709
    %6174 = vmatprep.mubr.bf16.mxu0 %v210
    %6175 = vmatmul.mubr.bf16.gmra.mrb[0].mxu0 %v209
    %v6176 = vpop.f32.mrb[0].mxu0
    %v6177 = vadd.f32 %v6136, %v6176
    %v6178 = vpop.f32.mrb[0].mxu0
    %v6179 = vadd.f32 %v6138, %v6178
    %v6180 = vpop.f32.mrb[0].mxu0
    %v6181 = vpop.f32.mrb[0].mxu0
    %6182 = vdwg.mxu0
    %6183 = vmatprep.subr.bf16.mxu0 %v3820
    %6184 = vmatpush1.bf16.msra.mxu0 %v3819
    %6185 = vmatprep.subr.bf16.mxu0 %v3824
    %6186 = vmatpush1.bf16.msra.mxu0 %v3823
    %6187 = vmatprep.subr.bf16.mxu0 %v3828
    %6188 = vmatpush1.bf16.msra.mxu0 %v3827
    %6189 = vmatprep.subr.bf16.mxu0 %v3832
    %6190 = vmatpush1.bf16.msra.mxu0 %v3831
    %6191 = vmatprep.subr.bf16.mxu0 %v3836
    %6192 = vmatpush1.bf16.msra.mxu0 %v3835
    %6193 = vmatprep.subr.bf16.mxu0 %v3840
    %6194 = vmatpush1.bf16.msra.mxu0 %v3839
    %6195 = vmatprep.subr.bf16.mxu0 %v3844
    %6196 = vmatpush1.bf16.msra.mxu0 %v3843
    %6197 = vmatprep.subr.bf16.mxu0 %v3848
    %6198 = vmatpush1.bf16.msra.mxu0 %v3847
    %6199 = vmatprep.subr.bf16.mxu0 %v3852
    %6200 = vmatpush1.bf16.msra.mxu0 %v3851
    %6201 = vmatprep.subr.bf16.mxu0 %v3856
    %6202 = vmatpush1.bf16.msra.mxu0 %v3855
    %6203 = vmatprep.subr.bf16.mxu0 %v3860
    %6204 = vmatpush1.bf16.msra.mxu0 %v3859
    %6205 = vmatprep.subr.bf16.mxu0 %v3864
    %6206 = vmatpush1.bf16.msra.mxu0 %v3863
    %6207 = vmatprep.subr.bf16.mxu0 %v3868
    %6208 = vmatpush1.bf16.msra.mxu0 %v3867
    %6209 = vmatprep.subr.bf16.mxu0 %v3872
    %6210 = vmatpush1.bf16.msra.mxu0 %v3871
    %6211 = vmatprep.subr.bf16.mxu0 %v3876
    %6212 = vmatpush1.bf16.msra.mxu0 %v3875
    %6213 = vmatprep.subr.bf16.mxu0 %v3880
    %6214 = vmatpush1.bf16.msra.mxu0 %v3879
    %6215 = vmatprep.mubr.bf16.mxu0 %v184
    %6216 = vmatmul.mubr.bf16.gmra.mrb[0].mxu0 %v183
    %v6217 = vpop.f32.mrb[0].mxu0
    %v6218 = vadd.f32 %v1120, %v6217
    %v6219 = vpop.f32.mrb[0].mxu0
    %v6220 = vadd.f32 %v1124, %v6219
    %v6221 = vpop.f32.mrb[0].mxu0
    %v6222 = vpop.f32.mrb[0].mxu0
    %6223 = vdwg.mxu0
    %6224 = vmatprep.subr.bf16.mxu0 %v3884
    %6225 = vmatpush1.bf16.msra.mxu0 %v3883
    %6226 = vmatprep.subr.bf16.mxu0 %v3888
    %6227 = vmatpush1.bf16.msra.mxu0 %v3887
    %6228 = vmatprep.subr.bf16.mxu0 %v3892
    %6229 = vmatpush1.bf16.msra.mxu0 %v3891
    %6230 = vmatprep.subr.bf16.mxu0 %v3896
    %6231 = vmatpush1.bf16.msra.mxu0 %v3895
    %6232 = vmatprep.subr.bf16.mxu0 %v3900
    %6233 = vmatpush1.bf16.msra.mxu0 %v3899
    %6234 = vmatprep.subr.bf16.mxu0 %v3904
    %6235 = vmatpush1.bf16.msra.mxu0 %v3903
    %6236 = vmatprep.subr.bf16.mxu0 %v3908
    %6237 = vmatpush1.bf16.msra.mxu0 %v3907
    %6238 = vmatprep.subr.bf16.mxu0 %v3912
    %6239 = vmatpush1.bf16.msra.mxu0 %v3911
    %6240 = vmatprep.subr.bf16.mxu0 %v3916
    %6241 = vmatpush1.bf16.msra.mxu0 %v3915
    %6242 = vmatprep.subr.bf16.mxu0 %v3920
    %6243 = vmatpush1.bf16.msra.mxu0 %v3919
    %6244 = vmatprep.subr.bf16.mxu0 %v3924
    %6245 = vmatpush1.bf16.msra.mxu0 %v3923
    %6246 = vmatprep.subr.bf16.mxu0 %v3928
    %6247 = vmatpush1.bf16.msra.mxu0 %v3927
    %6248 = vmatprep.subr.bf16.mxu0 %v3932
    %6249 = vmatpush1.bf16.msra.mxu0 %v3931
    %6250 = vmatprep.subr.bf16.mxu0 %v3936
    %6251 = vmatpush1.bf16.msra.mxu0 %v3935
    %6252 = vmatprep.subr.bf16.mxu0 %v3940
    %6253 = vmatpush1.bf16.msra.mxu0 %v3939
    %6254 = vmatprep.subr.bf16.mxu0 %v3944
    %6255 = vmatpush1.bf16.msra.mxu0 %v3943
    %6256 = vmatprep.mubr.bf16.mxu0 %v186
    %6257 = vmatmul.mubr.bf16.gmra.mrb[0].mxu0 %v185
    %v6258 = vpop.f32.mrb[0].mxu0
    %v6259 = vadd.f32 %v6218, %v6258
    %v6260 = vpop.f32.mrb[0].mxu0
    %v6261 = vadd.f32 %v6220, %v6260
    %v6262 = vpop.f32.mrb[0].mxu0
    %v6263 = vpop.f32.mrb[0].mxu0
    %6264 = vdwg.mxu0
    %6265 = vmatprep.subr.bf16.mxu0 %v3948
    %6266 = vmatpush1.bf16.msra.mxu0 %v3947
    %6267 = vmatprep.subr.bf16.mxu0 %v3952
    %6268 = vmatpush1.bf16.msra.mxu0 %v3951
    %6269 = vmatprep.subr.bf16.mxu0 %v3956
    %6270 = vmatpush1.bf16.msra.mxu0 %v3955
    %6271 = vmatprep.subr.bf16.mxu0 %v3960
    %6272 = vmatpush1.bf16.msra.mxu0 %v3959
    %6273 = vmatprep.subr.bf16.mxu0 %v3964
    %6274 = vmatpush1.bf16.msra.mxu0 %v3963
    %6275 = vmatprep.subr.bf16.mxu0 %v3968
    %6276 = vmatpush1.bf16.msra.mxu0 %v3967
    %6277 = vmatprep.subr.bf16.mxu0 %v3972
    %6278 = vmatpush1.bf16.msra.mxu0 %v3971
    %6279 = vmatprep.subr.bf16.mxu0 %v3976
    %6280 = vmatpush1.bf16.msra.mxu0 %v3975
    %6281 = vmatprep.subr.bf16.mxu0 %v3980
    %6282 = vmatpush1.bf16.msra.mxu0 %v3979
    %6283 = vmatprep.subr.bf16.mxu0 %v3984
    %6284 = vmatpush1.bf16.msra.mxu0 %v3983
    %6285 = vmatprep.subr.bf16.mxu0 %v3988
    %6286 = vmatpush1.bf16.msra.mxu0 %v3987
    %6287 = vmatprep.subr.bf16.mxu0 %v3992
    %6288 = vmatpush1.bf16.msra.mxu0 %v3991
    %6289 = vmatprep.subr.bf16.mxu0 %v3996
    %6290 = vmatpush1.bf16.msra.mxu0 %v3995
    %6291 = vmatprep.subr.bf16.mxu0 %v4000
    %6292 = vmatpush1.bf16.msra.mxu0 %v3999
    %6293 = vmatprep.subr.bf16.mxu0 %v4004
    %6294 = vmatpush1.bf16.msra.mxu0 %v4003
    %6295 = vmatprep.subr.bf16.mxu0 %v4008
    %6296 = vmatpush1.bf16.msra.mxu0 %v4007
    %6297 = vmatprep.mubr.bf16.mxu0 %v188
    %6298 = vmatmul.mubr.bf16.gmra.mrb[0].mxu0 %v187
    %v6299 = vpop.f32.mrb[0].mxu0
    %v6300 = vadd.f32 %v6259, %v6299
    %v6301 = vpop.f32.mrb[0].mxu0
    %v6302 = vadd.f32 %v6261, %v6301
    %v6303 = vpop.f32.mrb[0].mxu0
    %v6304 = vpop.f32.mrb[0].mxu0
    %6305 = vdwg.mxu0
    %6306 = vmatprep.subr.bf16.mxu0 %v4012
    %6307 = vmatpush1.bf16.msra.mxu0 %v4011
    %6308 = vmatprep.subr.bf16.mxu0 %v4016
    %6309 = vmatpush1.bf16.msra.mxu0 %v4015
    %6310 = vmatprep.subr.bf16.mxu0 %v4020
    %6311 = vmatpush1.bf16.msra.mxu0 %v4019
    %6312 = vmatprep.subr.bf16.mxu0 %v4024
    %6313 = vmatpush1.bf16.msra.mxu0 %v4023
    %6314 = vmatprep.subr.bf16.mxu0 %v4028
    %6315 = vmatpush1.bf16.msra.mxu0 %v4027
    %6316 = vmatprep.subr.bf16.mxu0 %v4032
    %6317 = vmatpush1.bf16.msra.mxu0 %v4031
    %6318 = vmatprep.subr.bf16.mxu0 %v4036
    %6319 = vmatpush1.bf16.msra.mxu0 %v4035
    %6320 = vmatprep.subr.bf16.mxu0 %v4040
    %6321 = vmatpush1.bf16.msra.mxu0 %v4039
    %6322 = vmatprep.subr.bf16.mxu0 %v4044
    %6323 = vmatpush1.bf16.msra.mxu0 %v4043
    %6324 = vmatprep.subr.bf16.mxu0 %v4048
    %6325 = vmatpush1.bf16.msra.mxu0 %v4047
    %6326 = vmatprep.subr.bf16.mxu0 %v4052
    %6327 = vmatpush1.bf16.msra.mxu0 %v4051
    %6328 = vmatprep.subr.bf16.mxu0 %v4056
    %6329 = vmatpush1.bf16.msra.mxu0 %v4055
    %6330 = vmatprep.subr.bf16.mxu0 %v4060
    %6331 = vmatpush1.bf16.msra.mxu0 %v4059
    %6332 = vmatprep.subr.bf16.mxu0 %v4064
    %6333 = vmatpush1.bf16.msra.mxu0 %v4063
    %6334 = vmatprep.subr.bf16.mxu0 %v4068
    %6335 = vmatpush1.bf16.msra.mxu0 %v4067
    %6336 = vmatprep.subr.bf16.mxu0 %v4072
    %6337 = vmatpush1.bf16.msra.mxu0 %v4071
    %6338 = vmatprep.mubr.bf16.mxu0 %v190
    %6339 = vmatmul.mubr.bf16.gmra.mrb[0].mxu0 %v189
    %v6340 = vpop.f32.mrb[0].mxu0
    %v6341 = vadd.f32 %v6300, %v6340
    %v6342 = vpop.f32.mrb[0].mxu0
    %v6343 = vadd.f32 %v6302, %v6342
    %v6344 = vpop.f32.mrb[0].mxu0
    %v6345 = vpop.f32.mrb[0].mxu0
    %6346 = vdwg.mxu0
    %6347 = vmatprep.subr.bf16.mxu0 %v4076
    %6348 = vmatpush1.bf16.msra.mxu0 %v4075
    %6349 = vmatprep.subr.bf16.mxu0 %v4080
    %6350 = vmatpush1.bf16.msra.mxu0 %v4079
    %6351 = vmatprep.subr.bf16.mxu0 %v4084
    %6352 = vmatpush1.bf16.msra.mxu0 %v4083
    %6353 = vmatprep.subr.bf16.mxu0 %v4088
    %6354 = vmatpush1.bf16.msra.mxu0 %v4087
    %6355 = vmatprep.subr.bf16.mxu0 %v4092
    %6356 = vmatpush1.bf16.msra.mxu0 %v4091
    %6357 = vmatprep.subr.bf16.mxu0 %v4096
    %6358 = vmatpush1.bf16.msra.mxu0 %v4095
    %6359 = vmatprep.subr.bf16.mxu0 %v4100
    %6360 = vmatpush1.bf16.msra.mxu0 %v4099
    %6361 = vmatprep.subr.bf16.mxu0 %v4104
    %6362 = vmatpush1.bf16.msra.mxu0 %v4103
    %6363 = vmatprep.subr.bf16.mxu0 %v4108
    %6364 = vmatpush1.bf16.msra.mxu0 %v4107
    %6365 = vmatprep.subr.bf16.mxu0 %v4112
    %6366 = vmatpush1.bf16.msra.mxu0 %v4111
    %6367 = vmatprep.subr.bf16.mxu0 %v4116
    %6368 = vmatpush1.bf16.msra.mxu0 %v4115
    %6369 = vmatprep.subr.bf16.mxu0 %v4120
    %6370 = vmatpush1.bf16.msra.mxu0 %v4119
    %6371 = vmatprep.subr.bf16.mxu0 %v4124
    %6372 = vmatpush1.bf16.msra.mxu0 %v4123
    %6373 = vmatprep.subr.bf16.mxu0 %v4128
    %6374 = vmatpush1.bf16.msra.mxu0 %v4127
    %6375 = vmatprep.subr.bf16.mxu0 %v4132
    %6376 = vmatpush1.bf16.msra.mxu0 %v4131
    %6377 = vmatprep.subr.bf16.mxu0 %v4136
    %6378 = vmatpush1.bf16.msra.mxu0 %v4135
    %6379 = vmatprep.mubr.bf16.mxu0 %v192
    %6380 = vmatmul.mubr.bf16.gmra.mrb[0].mxu0 %v191
    %v6381 = vpop.f32.mrb[0].mxu0
    %v6382 = vadd.f32 %v6341, %v6381
    %v6383 = vpop.f32.mrb[0].mxu0
    %v6384 = vadd.f32 %v6343, %v6383
    %v6385 = vpop.f32.mrb[0].mxu0
    %v6386 = vpop.f32.mrb[0].mxu0
    %6387 = vdwg.mxu0
    %6388 = vmatprep.subr.bf16.mxu0 %v4140
    %6389 = vmatpush1.bf16.msra.mxu0 %v4139
    %6390 = vmatprep.subr.bf16.mxu0 %v4144
    %6391 = vmatpush1.bf16.msra.mxu0 %v4143
    %6392 = vmatprep.subr.bf16.mxu0 %v4148
    %6393 = vmatpush1.bf16.msra.mxu0 %v4147
    %6394 = vmatprep.subr.bf16.mxu0 %v4152
    %6395 = vmatpush1.bf16.msra.mxu0 %v4151
    %6396 = vmatprep.subr.bf16.mxu0 %v4156
    %6397 = vmatpush1.bf16.msra.mxu0 %v4155
    %6398 = vmatprep.subr.bf16.mxu0 %v4160
    %6399 = vmatpush1.bf16.msra.mxu0 %v4159
    %6400 = vmatprep.subr.bf16.mxu0 %v4164
    %6401 = vmatpush1.bf16.msra.mxu0 %v4163
    %6402 = vmatprep.subr.bf16.mxu0 %v4168
    %6403 = vmatpush1.bf16.msra.mxu0 %v4167
    %6404 = vmatprep.subr.bf16.mxu0 %v4172
    %6405 = vmatpush1.bf16.msra.mxu0 %v4171
    %6406 = vmatprep.subr.bf16.mxu0 %v4176
    %6407 = vmatpush1.bf16.msra.mxu0 %v4175
    %6408 = vmatprep.subr.bf16.mxu0 %v4180
    %6409 = vmatpush1.bf16.msra.mxu0 %v4179
    %6410 = vmatprep.subr.bf16.mxu0 %v4184
    %6411 = vmatpush1.bf16.msra.mxu0 %v4183
    %6412 = vmatprep.subr.bf16.mxu0 %v4188
    %6413 = vmatpush1.bf16.msra.mxu0 %v4187
    %6414 = vmatprep.subr.bf16.mxu0 %v4192
    %6415 = vmatpush1.bf16.msra.mxu0 %v4191
    %6416 = vmatprep.subr.bf16.mxu0 %v4196
    %6417 = vmatpush1.bf16.msra.mxu0 %v4195
    %6418 = vmatprep.subr.bf16.mxu0 %v4200
    %6419 = vmatpush1.bf16.msra.mxu0 %v4199
    %6420 = vmatprep.mubr.bf16.mxu0 %v194
    %6421 = vmatmul.mubr.bf16.gmra.mrb[0].mxu0 %v193
    %v6422 = vpop.f32.mrb[0].mxu0
    %v6423 = vadd.f32 %v6382, %v6422
    %v6424 = vpop.f32.mrb[0].mxu0
    %v6425 = vadd.f32 %v6384, %v6424
    %v6426 = vpop.f32.mrb[0].mxu0
    %v6427 = vpop.f32.mrb[0].mxu0
    %6428 = vdwg.mxu0
    %6429 = vmatprep.subr.bf16.mxu0 %v4204
    %6430 = vmatpush1.bf16.msra.mxu0 %v4203
    %6431 = vmatprep.subr.bf16.mxu0 %v4208
    %6432 = vmatpush1.bf16.msra.mxu0 %v4207
    %6433 = vmatprep.subr.bf16.mxu0 %v4212
    %6434 = vmatpush1.bf16.msra.mxu0 %v4211
    %6435 = vmatprep.subr.bf16.mxu0 %v4216
    %6436 = vmatpush1.bf16.msra.mxu0 %v4215
    %6437 = vmatprep.subr.bf16.mxu0 %v4220
    %6438 = vmatpush1.bf16.msra.mxu0 %v4219
    %6439 = vmatprep.subr.bf16.mxu0 %v4224
    %6440 = vmatpush1.bf16.msra.mxu0 %v4223
    %6441 = vmatprep.subr.bf16.mxu0 %v4228
    %6442 = vmatpush1.bf16.msra.mxu0 %v4227
    %6443 = vmatprep.subr.bf16.mxu0 %v4232
    %6444 = vmatpush1.bf16.msra.mxu0 %v4231
    %6445 = vmatprep.subr.bf16.mxu0 %v4236
    %6446 = vmatpush1.bf16.msra.mxu0 %v4235
    %6447 = vmatprep.subr.bf16.mxu0 %v4240
    %6448 = vmatpush1.bf16.msra.mxu0 %v4239
    %6449 = vmatprep.subr.bf16.mxu0 %v4244
    %6450 = vmatpush1.bf16.msra.mxu0 %v4243
    %6451 = vmatprep.subr.bf16.mxu0 %v4248
    %6452 = vmatpush1.bf16.msra.mxu0 %v4247
    %6453 = vmatprep.subr.bf16.mxu0 %v4252
    %6454 = vmatpush1.bf16.msra.mxu0 %v4251
    %6455 = vmatprep.subr.bf16.mxu0 %v4256
    %6456 = vmatpush1.bf16.msra.mxu0 %v4255
    %6457 = vmatprep.subr.bf16.mxu0 %v4260
    %6458 = vmatpush1.bf16.msra.mxu0 %v4259
    %6459 = vmatprep.subr.bf16.mxu0 %v4264
    %6460 = vmatpush1.bf16.msra.mxu0 %v4263
    %6461 = vmatprep.mubr.bf16.mxu0 %v196
    %6462 = vmatmul.mubr.bf16.gmra.mrb[0].mxu0 %v195
    %v6463 = vpop.f32.mrb[0].mxu0
    %v6464 = vadd.f32 %v6423, %v6463
    %v6465 = vpop.f32.mrb[0].mxu0
    %v6466 = vadd.f32 %v6425, %v6465
    %v6467 = vpop.f32.mrb[0].mxu0
    %v6468 = vpop.f32.mrb[0].mxu0
    %6469 = vdwg.mxu0
    %6470 = vmatprep.subr.bf16.mxu0 %v4268
    %6471 = vmatpush1.bf16.msra.mxu0 %v4267
    %6472 = vmatprep.subr.bf16.mxu0 %v4272
    %6473 = vmatpush1.bf16.msra.mxu0 %v4271
    %6474 = vmatprep.subr.bf16.mxu0 %v4276
    %6475 = vmatpush1.bf16.msra.mxu0 %v4275
    %6476 = vmatprep.subr.bf16.mxu0 %v4280
    %6477 = vmatpush1.bf16.msra.mxu0 %v4279
    %6478 = vmatprep.subr.bf16.mxu0 %v4284
    %6479 = vmatpush1.bf16.msra.mxu0 %v4283
    %6480 = vmatprep.subr.bf16.mxu0 %v4288
    %6481 = vmatpush1.bf16.msra.mxu0 %v4287
    %6482 = vmatprep.subr.bf16.mxu0 %v4292
    %6483 = vmatpush1.bf16.msra.mxu0 %v4291
    %6484 = vmatprep.subr.bf16.mxu0 %v4296
    %6485 = vmatpush1.bf16.msra.mxu0 %v4295
    %6486 = vmatprep.subr.bf16.mxu0 %v4300
    %6487 = vmatpush1.bf16.msra.mxu0 %v4299
    %6488 = vmatprep.subr.bf16.mxu0 %v4304
    %6489 = vmatpush1.bf16.msra.mxu0 %v4303
    %6490 = vmatprep.subr.bf16.mxu0 %v4308
    %6491 = vmatpush1.bf16.msra.mxu0 %v4307
    %6492 = vmatprep.subr.bf16.mxu0 %v4312
    %6493 = vmatpush1.bf16.msra.mxu0 %v4311
    %6494 = vmatprep.subr.bf16.mxu0 %v4316
    %6495 = vmatpush1.bf16.msra.mxu0 %v4315
    %6496 = vmatprep.subr.bf16.mxu0 %v4320
    %6497 = vmatpush1.bf16.msra.mxu0 %v4319
    %6498 = vmatprep.subr.bf16.mxu0 %v4324
    %6499 = vmatpush1.bf16.msra.mxu0 %v4323
    %6500 = vmatprep.subr.bf16.mxu0 %v4328
    %6501 = vmatpush1.bf16.msra.mxu0 %v4327
    %6502 = vmatprep.mubr.bf16.mxu0 %v198
    %6503 = vmatmul.mubr.bf16.gmra.mrb[0].mxu0 %v197
    %v6504 = vpop.f32.mrb[0].mxu0
    %v6505 = vadd.f32 %v6464, %v6504
    %v6506 = vpop.f32.mrb[0].mxu0
    %v6507 = vadd.f32 %v6466, %v6506
    %v6508 = vpop.f32.mrb[0].mxu0
    %v6509 = vpop.f32.mrb[0].mxu0
    %6510 = vdwg.mxu0
    %6511 = vmatprep.subr.bf16.mxu0 %v4332
    %6512 = vmatpush1.bf16.msra.mxu0 %v4331
    %6513 = vmatprep.subr.bf16.mxu0 %v4336
    %6514 = vmatpush1.bf16.msra.mxu0 %v4335
    %6515 = vmatprep.subr.bf16.mxu0 %v4340
    %6516 = vmatpush1.bf16.msra.mxu0 %v4339
    %6517 = vmatprep.subr.bf16.mxu0 %v4344
    %6518 = vmatpush1.bf16.msra.mxu0 %v4343
    %6519 = vmatprep.subr.bf16.mxu0 %v4348
    %6520 = vmatpush1.bf16.msra.mxu0 %v4347
    %6521 = vmatprep.subr.bf16.mxu0 %v4352
    %6522 = vmatpush1.bf16.msra.mxu0 %v4351
    %6523 = vmatprep.subr.bf16.mxu0 %v4356
    %6524 = vmatpush1.bf16.msra.mxu0 %v4355
    %6525 = vmatprep.subr.bf16.mxu0 %v4360
    %6526 = vmatpush1.bf16.msra.mxu0 %v4359
    %6527 = vmatprep.subr.bf16.mxu0 %v4364
    %6528 = vmatpush1.bf16.msra.mxu0 %v4363
    %6529 = vmatprep.subr.bf16.mxu0 %v4368
    %6530 = vmatpush1.bf16.msra.mxu0 %v4367
    %6531 = vmatprep.subr.bf16.mxu0 %v4372
    %6532 = vmatpush1.bf16.msra.mxu0 %v4371
    %6533 = vmatprep.subr.bf16.mxu0 %v4376
    %6534 = vmatpush1.bf16.msra.mxu0 %v4375
    %6535 = vmatprep.subr.bf16.mxu0 %v4380
    %6536 = vmatpush1.bf16.msra.mxu0 %v4379
    %6537 = vmatprep.subr.bf16.mxu0 %v4384
    %6538 = vmatpush1.bf16.msra.mxu0 %v4383
    %6539 = vmatprep.subr.bf16.mxu0 %v4388
    %6540 = vmatpush1.bf16.msra.mxu0 %v4387
    %6541 = vmatprep.subr.bf16.mxu0 %v4392
    %6542 = vmatpush1.bf16.msra.mxu0 %v4391
    %6543 = vmatprep.mubr.bf16.mxu0 %v200
    %6544 = vmatmul.mubr.bf16.gmra.mrb[0].mxu0 %v199
    %v6545 = vpop.f32.mrb[0].mxu0
    %v6546 = vadd.f32 %v6505, %v6545
    %v6547 = vpop.f32.mrb[0].mxu0
    %v6548 = vadd.f32 %v6507, %v6547
    %v6549 = vpop.f32.mrb[0].mxu0
    %v6550 = vpop.f32.mrb[0].mxu0
    %6551 = vdwg.mxu0
    %6552 = vmatprep.subr.bf16.mxu0 %v4396
    %6553 = vmatpush1.bf16.msra.mxu0 %v4395
    %6554 = vmatprep.subr.bf16.mxu0 %v4400
    %6555 = vmatpush1.bf16.msra.mxu0 %v4399
    %6556 = vmatprep.subr.bf16.mxu0 %v4404
    %6557 = vmatpush1.bf16.msra.mxu0 %v4403
    %6558 = vmatprep.subr.bf16.mxu0 %v4408
    %6559 = vmatpush1.bf16.msra.mxu0 %v4407
    %6560 = vmatprep.subr.bf16.mxu0 %v4412
    %6561 = vmatpush1.bf16.msra.mxu0 %v4411
    %6562 = vmatprep.subr.bf16.mxu0 %v4416
    %6563 = vmatpush1.bf16.msra.mxu0 %v4415
    %6564 = vmatprep.subr.bf16.mxu0 %v4420
    %6565 = vmatpush1.bf16.msra.mxu0 %v4419
    %6566 = vmatprep.subr.bf16.mxu0 %v4424
    %6567 = vmatpush1.bf16.msra.mxu0 %v4423
    %6568 = vmatprep.subr.bf16.mxu0 %v4428
    %6569 = vmatpush1.bf16.msra.mxu0 %v4427
    %6570 = vmatprep.subr.bf16.mxu0 %v4432
    %6571 = vmatpush1.bf16.msra.mxu0 %v4431
    %6572 = vmatprep.subr.bf16.mxu0 %v4436
    %6573 = vmatpush1.bf16.msra.mxu0 %v4435
    %6574 = vmatprep.subr.bf16.mxu0 %v4440
    %6575 = vmatpush1.bf16.msra.mxu0 %v4439
    %6576 = vmatprep.subr.bf16.mxu0 %v4444
    %6577 = vmatpush1.bf16.msra.mxu0 %v4443
    %6578 = vmatprep.subr.bf16.mxu0 %v4448
    %6579 = vmatpush1.bf16.msra.mxu0 %v4447
    %6580 = vmatprep.subr.bf16.mxu0 %v4452
    %6581 = vmatpush1.bf16.msra.mxu0 %v4451
    %6582 = vmatprep.subr.bf16.mxu0 %v4456
    %6583 = vmatpush1.bf16.msra.mxu0 %v4455
    %6584 = vmatprep.mubr.bf16.mxu0 %v202
    %6585 = vmatmul.mubr.bf16.gmra.mrb[0].mxu0 %v201
    %v6586 = vpop.f32.mrb[0].mxu0
    %v6587 = vadd.f32 %v6546, %v6586
    %v6588 = vpop.f32.mrb[0].mxu0
    %v6589 = vadd.f32 %v6548, %v6588
    %v6590 = vpop.f32.mrb[0].mxu0
    %v6591 = vpop.f32.mrb[0].mxu0
    %6592 = vdwg.mxu0
    %6593 = vmatprep.subr.bf16.mxu0 %v4460
    %6594 = vmatpush1.bf16.msra.mxu0 %v4459
    %6595 = vmatprep.subr.bf16.mxu0 %v4464
    %6596 = vmatpush1.bf16.msra.mxu0 %v4463
    %6597 = vmatprep.subr.bf16.mxu0 %v4468
    %6598 = vmatpush1.bf16.msra.mxu0 %v4467
    %6599 = vmatprep.subr.bf16.mxu0 %v4472
    %6600 = vmatpush1.bf16.msra.mxu0 %v4471
    %6601 = vmatprep.subr.bf16.mxu0 %v4476
    %6602 = vmatpush1.bf16.msra.mxu0 %v4475
    %6603 = vmatprep.subr.bf16.mxu0 %v4480
    %6604 = vmatpush1.bf16.msra.mxu0 %v4479
    %6605 = vmatprep.subr.bf16.mxu0 %v4484
    %6606 = vmatpush1.bf16.msra.mxu0 %v4483
    %6607 = vmatprep.subr.bf16.mxu0 %v4488
    %6608 = vmatpush1.bf16.msra.mxu0 %v4487
    %6609 = vmatprep.subr.bf16.mxu0 %v4492
    %6610 = vmatpush1.bf16.msra.mxu0 %v4491
    %6611 = vmatprep.subr.bf16.mxu0 %v4496
    %6612 = vmatpush1.bf16.msra.mxu0 %v4495
    %6613 = vmatprep.subr.bf16.mxu0 %v4500
    %6614 = vmatpush1.bf16.msra.mxu0 %v4499
    %6615 = vmatprep.subr.bf16.mxu0 %v4504
    %6616 = vmatpush1.bf16.msra.mxu0 %v4503
    %6617 = vmatprep.subr.bf16.mxu0 %v4508
    %6618 = vmatpush1.bf16.msra.mxu0 %v4507
    %6619 = vmatprep.subr.bf16.mxu0 %v4512
    %6620 = vmatpush1.bf16.msra.mxu0 %v4511
    %6621 = vmatprep.subr.bf16.mxu0 %v4516
    %6622 = vmatpush1.bf16.msra.mxu0 %v4515
    %6623 = vmatprep.subr.bf16.mxu0 %v4520
    %6624 = vmatpush1.bf16.msra.mxu0 %v4519
    %6625 = vmatprep.mubr.bf16.mxu0 %v204
    %6626 = vmatmul.mubr.bf16.gmra.mrb[0].mxu0 %v203
    %v6627 = vpop.f32.mrb[0].mxu0
    %v6628 = vadd.f32 %v6587, %v6627
    %v6629 = vpop.f32.mrb[0].mxu0
    %v6630 = vadd.f32 %v6589, %v6629
    %v6631 = vpop.f32.mrb[0].mxu0
    %v6632 = vpop.f32.mrb[0].mxu0
    %6633 = vdwg.mxu0
    %6634 = vmatprep.subr.bf16.mxu0 %v4524
    %6635 = vmatpush1.bf16.msra.mxu0 %v4523
    %6636 = vmatprep.subr.bf16.mxu0 %v4528
    %6637 = vmatpush1.bf16.msra.mxu0 %v4527
    %6638 = vmatprep.subr.bf16.mxu0 %v4532
    %6639 = vmatpush1.bf16.msra.mxu0 %v4531
    %6640 = vmatprep.subr.bf16.mxu0 %v4536
    %6641 = vmatpush1.bf16.msra.mxu0 %v4535
    %6642 = vmatprep.subr.bf16.mxu0 %v4540
    %6643 = vmatpush1.bf16.msra.mxu0 %v4539
    %6644 = vmatprep.subr.bf16.mxu0 %v4544
    %6645 = vmatpush1.bf16.msra.mxu0 %v4543
    %6646 = vmatprep.subr.bf16.mxu0 %v4548
    %6647 = vmatpush1.bf16.msra.mxu0 %v4547
    %6648 = vmatprep.subr.bf16.mxu0 %v4552
    %6649 = vmatpush1.bf16.msra.mxu0 %v4551
    %6650 = vmatprep.subr.bf16.mxu0 %v4556
    %6651 = vmatpush1.bf16.msra.mxu0 %v4555
    %6652 = vmatprep.subr.bf16.mxu0 %v4560
    %6653 = vmatpush1.bf16.msra.mxu0 %v4559
    %6654 = vmatprep.subr.bf16.mxu0 %v4564
    %6655 = vmatpush1.bf16.msra.mxu0 %v4563
    %6656 = vmatprep.subr.bf16.mxu0 %v4568
    %6657 = vmatpush1.bf16.msra.mxu0 %v4567
    %6658 = vmatprep.subr.bf16.mxu0 %v4572
    %6659 = vmatpush1.bf16.msra.mxu0 %v4571
    %6660 = vmatprep.subr.bf16.mxu0 %v4576
    %6661 = vmatpush1.bf16.msra.mxu0 %v4575
    %6662 = vmatprep.subr.bf16.mxu0 %v4580
    %6663 = vmatpush1.bf16.msra.mxu0 %v4579
    %6664 = vmatprep.subr.bf16.mxu0 %v4584
    %6665 = vmatpush1.bf16.msra.mxu0 %v4583
    %6666 = vmatprep.mubr.bf16.mxu0 %v206
    %6667 = vmatmul.mubr.bf16.gmra.mrb[0].mxu0 %v205
    %v6668 = vpop.f32.mrb[0].mxu0
    %v6669 = vadd.f32 %v6628, %v6668
    %v6670 = vpop.f32.mrb[0].mxu0
    %v6671 = vadd.f32 %v6630, %v6670
    %v6672 = vpop.f32.mrb[0].mxu0
    %v6673 = vpop.f32.mrb[0].mxu0
    %6674 = vdwg.mxu0
    %6675 = vmatprep.subr.bf16.mxu0 %v4588
    %6676 = vmatpush1.bf16.msra.mxu0 %v4587
    %6677 = vmatprep.subr.bf16.mxu0 %v4592
    %6678 = vmatpush1.bf16.msra.mxu0 %v4591
    %6679 = vmatprep.subr.bf16.mxu0 %v4596
    %6680 = vmatpush1.bf16.msra.mxu0 %v4595
    %6681 = vmatprep.subr.bf16.mxu0 %v4600
    %6682 = vmatpush1.bf16.msra.mxu0 %v4599
    %6683 = vmatprep.subr.bf16.mxu0 %v4604
    %6684 = vmatpush1.bf16.msra.mxu0 %v4603
    %6685 = vmatprep.subr.bf16.mxu0 %v4608
    %6686 = vmatpush1.bf16.msra.mxu0 %v4607
    %6687 = vmatprep.subr.bf16.mxu0 %v4612
    %6688 = vmatpush1.bf16.msra.mxu0 %v4611
    %6689 = vmatprep.subr.bf16.mxu0 %v4616
    %6690 = vmatpush1.bf16.msra.mxu0 %v4615
    %6691 = vmatprep.subr.bf16.mxu0 %v4620
    %6692 = vmatpush1.bf16.msra.mxu0 %v4619
    %6693 = vmatprep.subr.bf16.mxu0 %v4624
    %6694 = vmatpush1.bf16.msra.mxu0 %v4623
    %6695 = vmatprep.subr.bf16.mxu0 %v4628
    %6696 = vmatpush1.bf16.msra.mxu0 %v4627
    %6697 = vmatprep.subr.bf16.mxu0 %v4632
    %6698 = vmatpush1.bf16.msra.mxu0 %v4631
    %6699 = vmatprep.subr.bf16.mxu0 %v4636
    %6700 = vmatpush1.bf16.msra.mxu0 %v4635
    %6701 = vmatprep.subr.bf16.mxu0 %v4640
    %6702 = vmatpush1.bf16.msra.mxu0 %v4639
    %6703 = vmatprep.subr.bf16.mxu0 %v4644
    %6704 = vmatpush1.bf16.msra.mxu0 %v4643
    %6705 = vmatprep.subr.bf16.mxu0 %v4648
    %6706 = vmatpush1.bf16.msra.mxu0 %v4647
    %6707 = vmatprep.mubr.bf16.mxu0 %v208
    %6708 = vmatmul.mubr.bf16.gmra.mrb[0].mxu0 %v207
    %v6709 = vpop.f32.mrb[0].mxu0
    %v6710 = vadd.f32 %v6669, %v6709
    %v6711 = vpop.f32.mrb[0].mxu0
    %v6712 = vadd.f32 %v6671, %v6711
    %v6713 = vpop.f32.mrb[0].mxu0
    %v6714 = vpop.f32.mrb[0].mxu0
    %6715 = vdwg.mxu0
    %6716 = vmatprep.subr.bf16.mxu0 %v4652
    %6717 = vmatpush1.bf16.msra.mxu0 %v4651
    %6718 = vmatprep.subr.bf16.mxu0 %v4656
    %6719 = vmatpush1.bf16.msra.mxu0 %v4655
    %6720 = vmatprep.subr.bf16.mxu0 %v4660
    %6721 = vmatpush1.bf16.msra.mxu0 %v4659
    %6722 = vmatprep.subr.bf16.mxu0 %v4664
    %6723 = vmatpush1.bf16.msra.mxu0 %v4663
    %6724 = vmatprep.subr.bf16.mxu0 %v4668
    %6725 = vmatpush1.bf16.msra.mxu0 %v4667
    %6726 = vmatprep.subr.bf16.mxu0 %v4672
    %6727 = vmatpush1.bf16.msra.mxu0 %v4671
    %6728 = vmatprep.subr.bf16.mxu0 %v4676
    %6729 = vmatpush1.bf16.msra.mxu0 %v4675
    %6730 = vmatprep.subr.bf16.mxu0 %v4680
    %6731 = vmatpush1.bf16.msra.mxu0 %v4679
    %6732 = vmatprep.subr.bf16.mxu0 %v4684
    %6733 = vmatpush1.bf16.msra.mxu0 %v4683
    %6734 = vmatprep.subr.bf16.mxu0 %v4688
    %6735 = vmatpush1.bf16.msra.mxu0 %v4687
    %6736 = vmatprep.subr.bf16.mxu0 %v4692
    %6737 = vmatpush1.bf16.msra.mxu0 %v4691
    %6738 = vmatprep.subr.bf16.mxu0 %v4696
    %6739 = vmatpush1.bf16.msra.mxu0 %v4695
    %6740 = vmatprep.subr.bf16.mxu0 %v4700
    %6741 = vmatpush1.bf16.msra.mxu0 %v4699
    %6742 = vmatprep.subr.bf16.mxu0 %v4704
    %6743 = vmatpush1.bf16.msra.mxu0 %v4703
    %6744 = vmatprep.subr.bf16.mxu0 %v4708
    %6745 = vmatpush1.bf16.msra.mxu0 %v4707
    %6746 = vmatprep.subr.bf16.mxu0 %v4712
    %6747 = vmatpush1.bf16.msra.mxu0 %v4711
    %6748 = vmatprep.mubr.bf16.mxu0 %v210
    %6749 = vmatmul.mubr.bf16.gmra.mrb[0].mxu0 %v209
    %v6750 = vpop.f32.mrb[0].mxu0
    %v6751 = vadd.f32 %v6710, %v6750
    %v6752 = vpop.f32.mrb[0].mxu0
    %v6753 = vadd.f32 %v6712, %v6752
    %v6754 = vpop.f32.mrb[0].mxu0
    %v6755 = vpop.f32.mrb[0].mxu0
    %6756 = vdwg.mxu0
    %v6757 = vmax.f32 %v6177, 0.0
    %v6758 = vmax.f32 %v6179, 0.0
    %v6759 = vmax.f32 %v6751, 0.0
    %v6760 = vmax.f32 %v6753, 0.0
    %v6761 = vpack.c.bf16 %v6757, %v6757
    %v6762 = vpack.c.bf16 %v6758, %v6758
    %v6763 = vpack.c.bf16 %v6759, %v6759
    %v6764 = vpack.c.bf16 %v6760, %v6760
    %v6765 = vld [vmem:[%s3] sm:$0xf]
    %v6766 = vld [vmem:[%s3 + $0x4] sm:$0xf]
    %v6767 = vld [vmem:[%s3 + $0x8] sm:$0xf]
    %v6768 = vld [vmem:[%s3 + $0xc] sm:$0xf]
    %v6769 = vld [vmem:[%s3 + $0x10] sm:$0xf]
    %v6770 = vld [vmem:[%s3 + $0x14] sm:$0xf]
    %v6771 = vld [vmem:[%s3 + $0x18] sm:$0xf]
    %v6772 = vld [vmem:[%s3 + $0x1c] sm:$0xf]
    %v6773 = vld [vmem:[%s3 + $0x20] sm:$0xf]
    %v6774 = vld [vmem:[%s3 + $0x24] sm:$0xf]
    %v6775 = vld [vmem:[%s3 + $0x28] sm:$0xf]
    %v6776 = vld [vmem:[%s3 + $0x2c] sm:$0xf]
    %v6777 = vld [vmem:[%s3 + $0x30] sm:$0xf]
    %v6778 = vld [vmem:[%s3 + $0x34] sm:$0xf]
    %v6779 = vld [vmem:[%s3 + $0x38] sm:$0xf]
    %v6780 = vld [vmem:[%s3 + $0x3c] sm:$0xf]
    %v6781 = vld [vmem:[%s3 + $0x40] sm:$0xf]
    %v6782 = vld [vmem:[%s3 + $0x44] sm:$0xf]
    %v6783 = vld [vmem:[%s3 + $0x48] sm:$0xf]
    %v6784 = vld [vmem:[%s3 + $0x4c] sm:$0xf]
    %v6785 = vld [vmem:[%s3 + $0x50] sm:$0xf]
    %v6786 = vld [vmem:[%s3 + $0x54] sm:$0xf]
    %v6787 = vld [vmem:[%s3 + $0x58] sm:$0xf]
    %v6788 = vld [vmem:[%s3 + $0x5c] sm:$0xf]
    %v6789 = vld [vmem:[%s3 + $0x60] sm:$0xf]
    %v6790 = vld [vmem:[%s3 + $0x64] sm:$0xf]
    %v6791 = vld [vmem:[%s3 + $0x68] sm:$0xf]
    %v6792 = vld [vmem:[%s3 + $0x6c] sm:$0xf]
    %v6793 = vld [vmem:[%s3 + $0x70] sm:$0xf]
    %v6794 = vld [vmem:[%s3 + $0x74] sm:$0xf]
    %v6795 = vld [vmem:[%s3 + $0x78] sm:$0xf]
    %v6796 = vld [vmem:[%s3 + $0x7c] sm:$0xf]
    %v6797 = vld [vmem:[%s3 + $0x80] sm:$0xf]
    %v6798 = vld [vmem:[%s3 + $0x84] sm:$0xf]
    %v6799 = vld [vmem:[%s3 + $0x88] sm:$0xf]
    %v6800 = vld [vmem:[%s3 + $0x8c] sm:$0xf]
    %v6801 = vld [vmem:[%s3 + $0x90] sm:$0xf]
    %v6802 = vld [vmem:[%s3 + $0x94] sm:$0xf]
    %v6803 = vld [vmem:[%s3 + $0x98] sm:$0xf]
    %v6804 = vld [vmem:[%s3 + $0x9c] sm:$0xf]
    %v6805 = vld [vmem:[%s3 + $0xa0] sm:$0xf]
    %v6806 = vld [vmem:[%s3 + $0xa4] sm:$0xf]
    %v6807 = vld [vmem:[%s3 + $0xa8] sm:$0xf]
    %v6808 = vld [vmem:[%s3 + $0xac] sm:$0xf]
    %v6809 = vld [vmem:[%s3 + $0xb0] sm:$0xf]
    %v6810 = vld [vmem:[%s3 + $0xb4] sm:$0xf]
    %v6811 = vld [vmem:[%s3 + $0xb8] sm:$0xf]
    %v6812 = vld [vmem:[%s3 + $0xbc] sm:$0xf]
    %v6813 = vld [vmem:[%s3 + $0xc0] sm:$0xf]
    %v6814 = vld [vmem:[%s3 + $0xc4] sm:$0xf]
    %v6815 = vld [vmem:[%s3 + $0xc8] sm:$0xf]
    %v6816 = vld [vmem:[%s3 + $0xcc] sm:$0xf]
    %v6817 = vld [vmem:[%s3 + $0xd0] sm:$0xf]
    %v6818 = vld [vmem:[%s3 + $0xd4] sm:$0xf]
    %v6819 = vld [vmem:[%s3 + $0xd8] sm:$0xf]
    %v6820 = vld [vmem:[%s3 + $0xdc] sm:$0xf]
    %v6821 = vld [vmem:[%s3 + $0xe0] sm:$0xf]
    %v6822 = vld [vmem:[%s3 + $0xe4] sm:$0xf]
    %v6823 = vld [vmem:[%s3 + $0xe8] sm:$0xf]
    %v6824 = vld [vmem:[%s3 + $0xec] sm:$0xf]
    %v6825 = vld [vmem:[%s3 + $0xf0] sm:$0xf]
    %v6826 = vld [vmem:[%s3 + $0xf4] sm:$0xf]
    %v6827 = vld [vmem:[%s3 + $0xf8] sm:$0xf]
    %v6828 = vld [vmem:[%s3 + $0xfc] sm:$0xf]
    %v6829 = vld [vmem:[%s4] sm:$0x1]
    %v6831 = vlaneseq
    %v6832 = vshrl.u32 %v6831, 7
    %v6833 = vsub.s32 0, %v6832
    %v6834 = vrot.slane %v6829, %v6833
    %v6900 = vunpack.c.l.b16 %v6765
    %v6901 = vunpack.c.l.b16 %v6766
    %v6902 = vunpack.c.l.b16 %v6767
    %v6903 = vunpack.c.l.b16 %v6768
    %v6904 = vunpack.c.l.b16 %v6769
    %v6905 = vunpack.c.l.b16 %v6770
    %v6906 = vunpack.c.l.b16 %v6771
    %v6907 = vunpack.c.l.b16 %v6772
    %v6908 = vunpack.c.l.b16 %v6773
    %v6909 = vunpack.c.l.b16 %v6774
    %v6910 = vunpack.c.l.b16 %v6775
    %v6911 = vunpack.c.l.b16 %v6776
    %v6912 = vunpack.c.l.b16 %v6777
    %v6913 = vunpack.c.l.b16 %v6778
    %v6914 = vunpack.c.l.b16 %v6779
    %v6915 = vunpack.c.l.b16 %v6780
    %v6916 = vunpack.c.l.b16 %v6781
    %v6917 = vunpack.c.l.b16 %v6782
    %v6918 = vunpack.c.l.b16 %v6783
    %v6919 = vunpack.c.l.b16 %v6784
    %v6920 = vunpack.c.l.b16 %v6785
    %v6921 = vunpack.c.l.b16 %v6786
    %v6922 = vunpack.c.l.b16 %v6787
    %v6923 = vunpack.c.l.b16 %v6788
    %v6924 = vunpack.c.l.b16 %v6789
    %v6925 = vunpack.c.l.b16 %v6790
    %v6926 = vunpack.c.l.b16 %v6791
    %v6927 = vunpack.c.l.b16 %v6792
    %v6928 = vunpack.c.l.b16 %v6793
    %v6929 = vunpack.c.l.b16 %v6794
    %v6930 = vunpack.c.l.b16 %v6795
    %v6931 = vunpack.c.l.b16 %v6796
    %v6932 = vunpack.c.l.b16 %v6797
    %v6933 = vunpack.c.l.b16 %v6798
    %v6934 = vunpack.c.l.b16 %v6799
    %v6935 = vunpack.c.l.b16 %v6800
    %v6936 = vunpack.c.l.b16 %v6801
    %v6937 = vunpack.c.l.b16 %v6802
    %v6938 = vunpack.c.l.b16 %v6803
    %v6939 = vunpack.c.l.b16 %v6804
    %v6940 = vunpack.c.l.b16 %v6805
    %v6941 = vunpack.c.l.b16 %v6806
    %v6942 = vunpack.c.l.b16 %v6807
    %v6943 = vunpack.c.l.b16 %v6808
    %v6944 = vunpack.c.l.b16 %v6809
    %v6945 = vunpack.c.l.b16 %v6810
    %v6946 = vunpack.c.l.b16 %v6811
    %v6947 = vunpack.c.l.b16 %v6812
    %v6948 = vunpack.c.l.b16 %v6813
    %v6949 = vunpack.c.l.b16 %v6814
    %v6950 = vunpack.c.l.b16 %v6815
    %v6951 = vunpack.c.l.b16 %v6816
    %v6952 = vunpack.c.l.b16 %v6817
    %v6953 = vunpack.c.l.b16 %v6818
    %v6954 = vunpack.c.l.b16 %v6819
    %v6955 = vunpack.c.l.b16 %v6820
    %v6956 = vunpack.c.l.b16 %v6821
    %v6957 = vunpack.c.l.b16 %v6822
    %v6958 = vunpack.c.l.b16 %v6823
    %v6959 = vunpack.c.l.b16 %v6824
    %v6960 = vunpack.c.l.b16 %v6825
    %v6961 = vunpack.c.l.b16 %v6826
    %v6962 = vunpack.c.l.b16 %v6827
    %v6963 = vunpack.c.l.b16 %v6828
    %v6964 = vpack.c.b16 %v6901, %v6900
    %v6965 = vpack.c.b16 %v6903, %v6902
    %v6966 = vpack.c.b16 %v6905, %v6904
    %v6967 = vpack.c.b16 %v6907, %v6906
    %v6968 = vpack.c.b16 %v6909, %v6908
    %v6969 = vpack.c.b16 %v6911, %v6910
    %v6970 = vpack.c.b16 %v6913, %v6912
    %v6971 = vpack.c.b16 %v6915, %v6914
    %v6972 = vpack.c.b16 %v6917, %v6916
    %v6973 = vpack.c.b16 %v6919, %v6918
    %v6974 = vpack.c.b16 %v6921, %v6920
    %v6975 = vpack.c.b16 %v6923, %v6922
    %v6976 = vpack.c.b16 %v6925, %v6924
    %v6977 = vpack.c.b16 %v6927, %v6926
    %v6978 = vpack.c.b16 %v6929, %v6928
    %v6979 = vpack.c.b16 %v6931, %v6930
    %v6980 = vpack.c.b16 %v6933, %v6932
    %v6981 = vpack.c.b16 %v6935, %v6934
    %v6982 = vpack.c.b16 %v6937, %v6936
    %v6983 = vpack.c.b16 %v6939, %v6938
    %v6984 = vpack.c.b16 %v6941, %v6940
    %v6985 = vpack.c.b16 %v6943, %v6942
    %v6986 = vpack.c.b16 %v6945, %v6944
    %v6987 = vpack.c.b16 %v6947, %v6946
    %v6988 = vpack.c.b16 %v6949, %v6948
    %v6989 = vpack.c.b16 %v6951, %v6950
    %v6990 = vpack.c.b16 %v6953, %v6952
    %v6991 = vpack.c.b16 %v6955, %v6954
    %v6992 = vpack.c.b16 %v6957, %v6956
    %v6993 = vpack.c.b16 %v6959, %v6958
    %v6994 = vpack.c.b16 %v6961, %v6960
    %v6995 = vpack.c.b16 %v6963, %v6962
    %7028 = vmatprep.subr.bf16.mxu0 0
    %7029 = vmatpush1.bf16.msra.mxu0 %v6964
    %7030 = vmatprep.subr.bf16.mxu0 0
    %7031 = vmatpush1.bf16.msra.mxu0 %v6965
    %7032 = vmatprep.subr.bf16.mxu0 0
    %7033 = vmatpush1.bf16.msra.mxu0 %v6966
    %7034 = vmatprep.subr.bf16.mxu0 0
    %7035 = vmatpush1.bf16.msra.mxu0 %v6967
    %7036 = vmatprep.subr.bf16.mxu0 0
    %7037 = vmatpush1.bf16.msra.mxu0 %v6968
    %7038 = vmatprep.subr.bf16.mxu0 0
    %7039 = vmatpush1.bf16.msra.mxu0 %v6969
    %7040 = vmatprep.subr.bf16.mxu0 0
    %7041 = vmatpush1.bf16.msra.mxu0 %v6970
    %7042 = vmatprep.subr.bf16.mxu0 0
    %7043 = vmatpush1.bf16.msra.mxu0 %v6971
    %7044 = vmatprep.subr.bf16.mxu0 0
    %7045 = vmatpush1.bf16.msra.mxu0 %v6972
    %7046 = vmatprep.subr.bf16.mxu0 0
    %7047 = vmatpush1.bf16.msra.mxu0 %v6973
    %7048 = vmatprep.subr.bf16.mxu0 0
    %7049 = vmatpush1.bf16.msra.mxu0 %v6974
    %7050 = vmatprep.subr.bf16.mxu0 0
    %7051 = vmatpush1.bf16.msra.mxu0 %v6975
    %7052 = vmatprep.subr.bf16.mxu0 0
    %7053 = vmatpush1.bf16.msra.mxu0 %v6976
    %7054 = vmatprep.subr.bf16.mxu0 0
    %7055 = vmatpush1.bf16.msra.mxu0 %v6977
    %7056 = vmatprep.subr.bf16.mxu0 0
    %7057 = vmatpush1.bf16.msra.mxu0 %v6978
    %7058 = vmatprep.subr.bf16.mxu0 0
    %7059 = vmatpush1.bf16.msra.mxu0 %v6979
    %7060 = vmatprep.mubr.bf16.mxu0 %v6762
    %7061 = vmatmul.mubr.bf16.gmra.mrb[0].mxu0 %v6761
    %v7062 = vpop.f32.mrb[0].mxu0
    %v7063 = vadd.f32 %v6834, %v7062
    %v7064 = vpop.f32.mrb[0].mxu0
    %v7065 = vpop.f32.mrb[0].mxu0
    %v7066 = vpop.f32.mrb[0].mxu0
    %7067 = vdwg.mxu0
    %7068 = vmatprep.subr.bf16.mxu0 0
    %7069 = vmatpush1.bf16.msra.mxu0 %v6980
    %7070 = vmatprep.subr.bf16.mxu0 0
    %7071 = vmatpush1.bf16.msra.mxu0 %v6981
    %7072 = vmatprep.subr.bf16.mxu0 0
    %7073 = vmatpush1.bf16.msra.mxu0 %v6982
    %7074 = vmatprep.subr.bf16.mxu0 0
    %7075 = vmatpush1.bf16.msra.mxu0 %v6983
    %7076 = vmatprep.subr.bf16.mxu0 0
    %7077 = vmatpush1.bf16.msra.mxu0 %v6984
    %7078 = vmatprep.subr.bf16.mxu0 0
    %7079 = vmatpush1.bf16.msra.mxu0 %v6985
    %7080 = vmatprep.subr.bf16.mxu0 0
    %7081 = vmatpush1.bf16.msra.mxu0 %v6986
    %7082 = vmatprep.subr.bf16.mxu0 0
    %7083 = vmatpush1.bf16.msra.mxu0 %v6987
    %7084 = vmatprep.subr.bf16.mxu0 0
    %7085 = vmatpush1.bf16.msra.mxu0 %v6988
    %7086 = vmatprep.subr.bf16.mxu0 0
    %7087 = vmatpush1.bf16.msra.mxu0 %v6989
    %7088 = vmatprep.subr.bf16.mxu0 0
    %7089 = vmatpush1.bf16.msra.mxu0 %v6990
    %7090 = vmatprep.subr.bf16.mxu0 0
    %7091 = vmatpush1.bf16.msra.mxu0 %v6991
    %7092 = vmatprep.subr.bf16.mxu0 0
    %7093 = vmatpush1.bf16.msra.mxu0 %v6992
    %7094 = vmatprep.subr.bf16.mxu0 0
    %7095 = vmatpush1.bf16.msra.mxu0 %v6993
    %7096 = vmatprep.subr.bf16.mxu0 0
    %7097 = vmatpush1.bf16.msra.mxu0 %v6994
    %7098 = vmatprep.subr.bf16.mxu0 0
    %7099 = vmatpush1.bf16.msra.mxu0 %v6995
    %7100 = vmatprep.mubr.bf16.mxu0 %v6764
    %7101 = vmatmul.mubr.bf16.gmra.mrb[0].mxu0 %v6763
    %v7102 = vpop.f32.mrb[0].mxu0
    %v7103 = vadd.f32 %v7063, %v7102
    %v7104 = vpop.f32.mrb[0].mxu0
    %v7105 = vpop.f32.mrb[0].mxu0
    %v7106 = vpop.f32.mrb[0].mxu0
    %7107 = vdwg.mxu0
    %7108 = vst [vmem:[#allocation2] sm:$0x3] %v7103
    // Predicated region
    $region22: #{cnn_forward.7} parent=1 // pred_check
      _
    $region23: #{cnn_forward.7} parent=1 // pred_check_branch
      %7110 = sbr.rel (0) target = $region25
    $region24: #{cnn_forward.7} parent=1 // pred_region
      %s7112 = ssub.s32 32, 32
      %7113 = vsyncadd [#allocation3], %s7112
      %s7115 = sshll.u32 [#allocation2], 4
      %s7116 = int_to_ptr.vmem [resolvable:$true] %s7115
      %7118 = dma.vmem_to_hbm [thread:$0]  %s7116, 32, %s5, [#allocation3]
    $region25: #{cnn_forward.7} parent=1 // pred_fallthru
      _
    // Predicated region
    $region26: #{cnn_forward.7} parent=1 // pred_check
      _
    $region27: #{cnn_forward.7} parent=1 // pred_check_branch
      %7120 = sbr.rel (0) target = $region29
    $region28: #{cnn_forward.7} parent=1 // pred_region
      %7121 = dma.done [#allocation3], 32
    $region29: #{cnn_forward.7} parent=1 // pred_fallthru
      _
    %7122 = vsyncpa [#allocation3], 1

</llo_original>
